<compile_context>
chip_gen: v7x
topology: tpu7x:2x2x1
jax: 0.10.0
libtpu: 0.0.40
codegen_flags: <defaults>
</compile_context>

<pallas_src>
import functools

import jax
import jax.numpy as jnp
from jax.experimental import pallas as pl
from jax.experimental.pallas import tpu as pltpu


def _pointnet_kernel(x_ref,
                     w0_ref, b0_ref,
                     w1_ref, b1_ref,
                     w2_ref, b2_ref,
                     o_ref, *, bt, nc):
    """Grid = (batch tiles ["parallel"], point chunks ["arbitrary"]).

    x_ref : (bt, nc, Cin_pad) f32   point chunk for this batch tile
    wK_ref: (C_k, C_{k+1})          conv weight^T with BN scale folded in
                                    (w0 f32, w1/w2 bf16)
    bK_ref: (1, C_{k+1}) f32        folded BN shift (+ conv bias)
    o_ref : (bt, feat) f32          per-batch-element max-pooled global feature;
                                    VMEM-resident accumulator across the point axis.
    """
    k = pl.program_id(1)
    cin = x_ref.shape[-1]
    x = x_ref[...].reshape(bt * nc, cin)           # free merge: nc % 8 == 0

    # layer 0: conv1x1 (BN scale folded) -> shift -> relu   (tiny K, keep f32)
    h = jnp.dot(x, w0_ref[...], preferred_element_type=jnp.float32)
    h = jnp.maximum(h + b0_ref[...], 0.0)

    # layer 1: bf16 MXU operands, f32 accumulate; elementwise in f32 (v5e-safe)
    h = jnp.dot(h.astype(jnp.bfloat16), w1_ref[...],
                preferred_element_type=jnp.float32)
    h = jnp.maximum(h + b1_ref[...], 0.0)

    # layer 2 (final): matmul only.  The per-channel shift is added after the
    # max-pool (exact: no activation after this layer), skipping a full
    # elementwise pass over the (bt*nc, feat) tensor.
    h = jnp.dot(h.astype(jnp.bfloat16), w2_ref[...],
                preferred_element_type=jnp.float32)

    # torch.max(x, 2)[0], chunk-wise: per-batch-element max over this chunk.
    chunk_max = jnp.max(h.reshape(bt, nc, -1), axis=1)     # (bt, feat)

    @pl.when(k == 0)
    def _():
        o_ref[...] = chunk_max

    @pl.when(k > 0)
    def _():
        o_ref[...] = jnp.maximum(o_ref[...], chunk_max)

    @pl.when(k == pl.num_programs(1) - 1)
    def _():
        o_ref[...] = o_ref[...] + b2_ref[...]


def pointnet_feature_extractor(x, folded_params, *, batch_tile=8, n_chunk=128):
    """x: (B, N, Cin) float32.  Returns (B, feat_size) global features."""
    B, N, Cin = x.shape
    (w0, b0), (w1, b1), (w2, b2) = folded_params
    cin_pad = w0.shape[0]
    feat = w2.shape[1]
    assert batch_tile % 8 == 0, "batch_tile must be a multiple of 8"
    assert n_chunk % 8 == 0, "n_chunk must be a multiple of 8"

    # Pad points to a multiple of n_chunk by repeating the last point (edge
    # mode): duplicated points leave the max-pool unchanged -> exact.
    Np = pl.cdiv(N, n_chunk) * n_chunk
    if Np != N:
        x = jnp.pad(x, ((0, 0), (0, Np - N), (0, 0)), mode="edge")
    # Zero-pad channels to match the zero-padded first-layer weight rows.
    if cin_pad != Cin:
        x = jnp.pad(x, ((0, 0), (0, 0), (0, cin_pad - Cin)))
    # Zero-pad batch to a multiple of the batch tile; padded rows produce
    # garbage features that are sliced off below.
    Bp = pl.cdiv(B, batch_tile) * batch_tile
    if Bp != B:
        x = jnp.pad(x, ((0, Bp - B), (0, 0), (0, 0)))

    def const_spec(shape):
        return pl.BlockSpec(shape, lambda b, k: (0,) * len(shape))

    kernel = functools.partial(_pointnet_kernel, bt=batch_tile, nc=n_chunk)

    flops = 2 * Bp * Np * (cin_pad * w0.shape[1]
                           + w1.shape[0] * w1.shape[1]
                           + w2.shape[0] * w2.shape[1])
    bytes_accessed = (int(x.size) * 4
                      + sum(int(a.size) * a.dtype.itemsize
                            for a in (w0, b0, w1, b1, w2, b2))
                      + Bp * feat * 4)

    out = pl.pallas_call(
        kernel,
        out_shape=jax.ShapeDtypeStruct((Bp, feat), jnp.float32),
        grid_spec=pltpu.PrefetchScalarGridSpec(
            num_scalar_prefetch=0,
            grid=(Bp // batch_tile, Np // n_chunk),
            in_specs=[
                pl.BlockSpec((batch_tile, n_chunk, cin_pad),
                             lambda b, k: (b, k, 0)),                 # x
                const_spec(w0.shape), const_spec(b0.shape),
                const_spec(w1.shape), const_spec(b1.shape),
                const_spec(w2.shape), const_spec(b2.shape),
            ],
            out_specs=pl.BlockSpec((batch_tile, feat), lambda b, k: (b, 0)),
        ),
        compiler_params=pltpu.CompilerParams(
            dimension_semantics=("parallel", "arbitrary"),
            vmem_limit_bytes=48 * 1024 * 1024),
        cost_estimate=pl.CostEstimate(
            flops=int(flops), transcendentals=0,
            bytes_accessed=int(bytes_accessed)),
    )(x, w0, b0, w1, b1, w2, b2)

    return out[:B]


# ----------------------------------------------------------------------------
# Parameter construction (deterministic, synthetic) + pure-JAX reference
# ----------------------------------------------------------------------------

def make_params(key, in_channels=3, layer_dims=(64, 128), feat_size=1024):
    dims = [in_channels] + list(layer_dims) + [feat_size]
    raw = []
    for i in range(len(dims) - 1):
        cin, cout = dims[i], dims[i + 1]
        key, k1, k2, k3, k4, k5, k6 = jax.random.split(key, 7)
        w = jax.random.normal(k1, (cout, cin), jnp.float32) * 0.1       # Conv1d weight
        b = jax.random.normal(k2, (cout,), jnp.float32) * 0.05          # Conv1d bias
        gamma = jax.random.uniform(k3, (cout,), jnp.float32, 0.5, 1.5)  # BN weight
        beta = jax.random.normal(k4, (cout,), jnp.float32) * 0.05       # BN bias
        rmean = jax.random.normal(k5, (cout,), jnp.float32) * 0.05      # BN running_mean
        rvar = jax.random.uniform(k6, (cout,), jnp.float32, 0.5, 1.5)   # BN running_var
        raw.append((w, b, gamma, beta, rmean, rvar))
    return raw


def fold_params(raw, eps=1e-5):
    """Fold Conv1d bias + eval-mode BN into (W^T * scale, shift).

    First layer weight is zero-padded on Cin to a multiple of 8 and kept f32;
    later weights are cast to bf16 (MXU operands, f32 accumulation in-kernel).
    """
    folded = []
    for i, (w, b, gamma, beta, rmean, rvar) in enumerate(raw):
        scale = gamma / jnp.sqrt(rvar + eps)                       # (Cout,)
        shift = (beta - rmean * scale + b * scale).reshape(1, -1)  # (1, Cout)
        wt = w.T * scale[None, :]                                  # (Cin, Cout)
        if i == 0:
            cin = wt.shape[0]
            cin_pad = -(-cin // 8) * 8
            wt = jnp.pad(wt, ((0, cin_pad - cin), (0, 0))).astype(jnp.float32)
        else:
            wt = wt.astype(jnp.bfloat16)
        folded.append((wt, shift.astype(jnp.float32)))
    return folded


def reference_forward(x, raw, eps=1e-5):
    """Pure-JAX f32 reference matching the torch forward (eval-mode BN)."""
    h = x  # (B, N, Cin)
    n_layers = len(raw)
    for idx, (w, b, gamma, beta, rmean, rvar) in enumerate(raw):
        h = jnp.einsum('bnc,oc->bno', h, w) + b
        h = (h - rmean) / jnp.sqrt(rvar + eps) * gamma + beta
        if idx < n_layers - 1:
            h = jnp.maximum(h, 0.0)
    return jnp.max(h, axis=1)  # (B, feat)


if __name__ == "__main__":
    # 2 parallel batch steps (keeps both v7x TCs busy) x 2 point chunks
    # (exercises the running-max accumulator).
    B, N, Cin = 16, 256, 3
    feat_size = 1024

    key = jax.random.PRNGKey(0)
    key, kx = jax.random.split(key)
    x = jax.random.normal(kx, (B, N, Cin), jnp.float32)

    raw = make_params(key, in_channels=Cin, layer_dims=(64, 128),
                      feat_size=feat_size)
    folded = fold_params(raw)

    y = pointnet_feature_extractor(x, folded, batch_tile=8, n_chunk=128)
    y = jax.block_until_ready(y)

    y_ref = reference_forward(x, raw)
    assert y.shape == (B, feat_size), y.shape
    # bf16 MXU operands (f32 accumulation) -> compare to the f32 reference with
    # a correspondingly looser tolerance.
    assert jnp.allclose(y, y_ref, atol=3e-2, rtol=3e-2), float(
        jnp.max(jnp.abs(y - y_ref)))

    print("KERNEL_OK")
</pallas_src>

<mosaic_0001>
module attributes {stable_mosaic.version = 11 : i64} {
  func.func @_pointnet_kernel(%arg0: i32, %arg1: i32, %arg2: memref<8x128x8xf32, #tpu.memory_space<vmem>>, %arg3: memref<8x64xf32, #tpu.memory_space<vmem>>, %arg4: memref<1x64xf32, #tpu.memory_space<vmem>>, %arg5: memref<64x128xbf16, #tpu.memory_space<vmem>>, %arg6: memref<1x128xf32, #tpu.memory_space<vmem>>, %arg7: memref<128x1024xbf16, #tpu.memory_space<vmem>>, %arg8: memref<1x1024xf32, #tpu.memory_space<vmem>>, %arg9: memref<8x1024xf32, #tpu.memory_space<vmem>>) attributes {dimension_semantics = [#tpu.dimension_semantics<parallel>, #tpu.dimension_semantics<arbitrary>], iteration_bounds = array<i64: 2, 2>, scalar_prefetch = 0 : i64, scratch_operands = 0 : i64, tpu.core_type = #tpu.core_type<tc>, window_params = [{transform_indices = @transform_0, window_bounds = array<i64: 8, 128, 8>}, {pipeline_mode = #tpu.pipeline_mode<synchronous>, transform_indices = @transform_1, window_bounds = array<i64: 8, 64>}, {pipeline_mode = #tpu.pipeline_mode<synchronous>, transform_indices = @transform_2, window_bounds = array<i64: 1, 64>}, {pipeline_mode = #tpu.pipeline_mode<synchronous>, transform_indices = @transform_3, window_bounds = array<i64: 64, 128>}, {pipeline_mode = #tpu.pipeline_mode<synchronous>, transform_indices = @transform_4, window_bounds = array<i64: 1, 128>}, {pipeline_mode = #tpu.pipeline_mode<synchronous>, transform_indices = @transform_5, window_bounds = array<i64: 128, 1024>}, {pipeline_mode = #tpu.pipeline_mode<synchronous>, transform_indices = @transform_6, window_bounds = array<i64: 1, 1024>}, {transform_indices = @transform_7, window_bounds = array<i64: 8, 1024>}]} {
    %c0 = arith.constant 0 : index
    %c0_0 = arith.constant 0 : index
    %c0_1 = arith.constant 0 : index
    %0 = vector.load %arg2[%c0, %c0_0, %c0_1] : memref<8x128x8xf32, #tpu.memory_space<vmem>>, vector<8x128x8xf32>
    %1 = vector.shape_cast %0 : vector<8x128x8xf32> to vector<1024x8xf32>
    %c0_2 = arith.constant 0 : index
    %c0_3 = arith.constant 0 : index
    %2 = vector.load %arg3[%c0_2, %c0_3] : memref<8x64xf32, #tpu.memory_space<vmem>>, vector<8x64xf32>
    %cst = arith.constant dense<0.000000e+00> : vector<1024x64xf32>
    %3 = tpu.matmul %1, %2, %cst {dimension_numbers = #tpu.dot_dimension_numbers<[1], [0], [0], [1], [0, 0, 1, 1], [], []>} : vector<1024x8xf32>, vector<8x64xf32>, vector<1024x64xf32> -> vector<1024x64xf32>
    %c0_4 = arith.constant 0 : index
    %c0_5 = arith.constant 0 : index
    %4 = vector.load %arg4[%c0_4, %c0_5] : memref<1x64xf32, #tpu.memory_space<vmem>>, vector<1x64xf32>
    %5 = vector.broadcast %4 : vector<1x64xf32> to vector<1024x64xf32>
    %6 = arith.addf %3, %5 : vector<1024x64xf32>
    %cst_6 = arith.constant 0.000000e+00 : f32
    %7 = vector.broadcast %cst_6 : f32 to vector<1024x64xf32>
    %8 = arith.maximumf %6, %7 : vector<1024x64xf32>
    %9 = arith.truncf %8 : vector<1024x64xf32> to vector<1024x64xbf16>
    %c0_7 = arith.constant 0 : index
    %c0_8 = arith.constant 0 : index
    %10 = vector.load %arg5[%c0_7, %c0_8] : memref<64x128xbf16, #tpu.memory_space<vmem>>, vector<64x128xbf16>
    %cst_9 = arith.constant dense<0.000000e+00> : vector<1024x128xf32>
    %11 = tpu.matmul %9, %10, %cst_9 {dimension_numbers = #tpu.dot_dimension_numbers<[1], [0], [0], [1], [0, 0, 1, 1], [], []>} : vector<1024x64xbf16>, vector<64x128xbf16>, vector<1024x128xf32> -> vector<1024x128xf32>
    %c0_10 = arith.constant 0 : index
    %c0_11 = arith.constant 0 : index
    %12 = vector.load %arg6[%c0_10, %c0_11] : memref<1x128xf32, #tpu.memory_space<vmem>>, vector<1x128xf32>
    %13 = vector.broadcast %12 : vector<1x128xf32> to vector<1024x128xf32>
    %14 = arith.addf %11, %13 : vector<1024x128xf32>
    %cst_12 = arith.constant 0.000000e+00 : f32
    %15 = vector.broadcast %cst_12 : f32 to vector<1024x128xf32>
    %16 = arith.maximumf %14, %15 : vector<1024x128xf32>
    %17 = arith.truncf %16 : vector<1024x128xf32> to vector<1024x128xbf16>
    %c0_13 = arith.constant 0 : index
    %c0_14 = arith.constant 0 : index
    %18 = vector.load %arg7[%c0_13, %c0_14] : memref<128x1024xbf16, #tpu.memory_space<vmem>>, vector<128x1024xbf16>
    %cst_15 = arith.constant dense<0.000000e+00> : vector<1024x1024xf32>
    %19 = tpu.matmul %17, %18, %cst_15 {dimension_numbers = #tpu.dot_dimension_numbers<[1], [0], [0], [1], [0, 0, 1, 1], [], []>} : vector<1024x128xbf16>, vector<128x1024xbf16>, vector<1024x1024xf32> -> vector<1024x1024xf32>
    %20 = vector.shape_cast %19 : vector<1024x1024xf32> to vector<8x128x1024xf32>
    %cst_16 = arith.constant dense<0xFF800000> : vector<8x1024xf32>
    %21 = vector.multi_reduction <maximumf>, %20, %cst_16 [1] : vector<8x128x1024xf32> to vector<8x1024xf32>
    %c0_i32 = arith.constant 0 : i32
    %22 = arith.cmpi eq, %arg1, %c0_i32 : i32
    %23 = arith.extui %22 : i1 to i32
    %c0_i32_17 = arith.constant 0 : i32
    %24 = arith.cmpi ne, %23, %c0_i32_17 : i32
    scf.if %24 {
      %c0_21 = arith.constant 0 : index
      %c0_22 = arith.constant 0 : index
      %31 = vector.load %arg9[%c0_21, %c0_22] : memref<8x1024xf32, #tpu.memory_space<vmem>>, vector<8x1024xf32>
      tpu.vector_store %arg9[%c0_21, %c0_22], %21 {strides = array<i32>} : memref<8x1024xf32, #tpu.memory_space<vmem>>, vector<8x1024xf32>,
    } else {
    }
    %c0_i32_18 = arith.constant 0 : i32
    %25 = arith.cmpi sgt, %arg1, %c0_i32_18 : i32
    %26 = arith.extui %25 : i1 to i32
    %c0_i32_19 = arith.constant 0 : i32
    %27 = arith.cmpi ne, %26, %c0_i32_19 : i32
    scf.if %27 {
      %c0_21 = arith.constant 0 : index
      %c0_22 = arith.constant 0 : index
      %31 = vector.load %arg9[%c0_21, %c0_22] : memref<8x1024xf32, #tpu.memory_space<vmem>>, vector<8x1024xf32>
      %32 = arith.maximumf %31, %21 : vector<8x1024xf32>
      %c0_23 = arith.constant 0 : index
      %c0_24 = arith.constant 0 : index
      %33 = vector.load %arg9[%c0_23, %c0_24] : memref<8x1024xf32, #tpu.memory_space<vmem>>, vector<8x1024xf32>
      tpu.vector_store %arg9[%c0_23, %c0_24], %32 {strides = array<i32>} : memref<8x1024xf32, #tpu.memory_space<vmem>>, vector<8x1024xf32>,
    } else {
    }
    %c1_i32 = arith.constant 1 : i32
    %28 = arith.cmpi eq, %arg1, %c1_i32 : i32
    %29 = arith.extui %28 : i1 to i32
    %c0_i32_20 = arith.constant 0 : i32
    %30 = arith.cmpi ne, %29, %c0_i32_20 : i32
    scf.if %30 {
      %c0_21 = arith.constant 0 : index
      %c0_22 = arith.constant 0 : index
      %31 = vector.load %arg9[%c0_21, %c0_22] : memref<8x1024xf32, #tpu.memory_space<vmem>>, vector<8x1024xf32>
      %c0_23 = arith.constant 0 : index
      %c0_24 = arith.constant 0 : index
      %32 = vector.load %arg8[%c0_23, %c0_24] : memref<1x1024xf32, #tpu.memory_space<vmem>>, vector<1x1024xf32>
      %33 = vector.broadcast %32 : vector<1x1024xf32> to vector<8x1024xf32>
      %34 = arith.addf %31, %33 : vector<8x1024xf32>
      %c0_25 = arith.constant 0 : index
      %c0_26 = arith.constant 0 : index
      %35 = vector.load %arg9[%c0_25, %c0_26] : memref<8x1024xf32, #tpu.memory_space<vmem>>, vector<8x1024xf32>
      tpu.vector_store %arg9[%c0_25, %c0_26], %34 {strides = array<i32>} : memref<8x1024xf32, #tpu.memory_space<vmem>>, vector<8x1024xf32>,
    } else {
    }
    return
  }
  func.func @transform_0(%arg0: i32, %arg1: i32) -> (i32, i32, i32) {
    %c0_i32 = arith.constant 0 : i32
    %c0_i32_0 = arith.constant 0 : i32
    return %arg0, %arg1, %c0_i32 : i32, i32, i32
  }
  func.func @transform_1(%arg0: i32, %arg1: i32) -> (i32, i32) {
    %c0_i32 = arith.constant 0 : i32
    %c0_i32_0 = arith.constant 0 : i32
    %c0_i32_1 = arith.constant 0 : i32
    return %c0_i32, %c0_i32_0 : i32, i32
  }
  func.func @transform_2(%arg0: i32, %arg1: i32) -> (i32, i32) {
    %c0_i32 = arith.constant 0 : i32
    %c0_i32_0 = arith.constant 0 : i32
    %c0_i32_1 = arith.constant 0 : i32
    return %c0_i32, %c0_i32_0 : i32, i32
  }
  func.func @transform_3(%arg0: i32, %arg1: i32) -> (i32, i32) {
    %c0_i32 = arith.constant 0 : i32
    %c0_i32_0 = arith.constant 0 : i32
    %c0_i32_1 = arith.constant 0 : i32
    return %c0_i32, %c0_i32_0 : i32, i32
  }
  func.func @transform_4(%arg0: i32, %arg1: i32) -> (i32, i32) {
    %c0_i32 = arith.constant 0 : i32
    %c0_i32_0 = arith.constant 0 : i32
    %c0_i32_1 = arith.constant 0 : i32
    return %c0_i32, %c0_i32_0 : i32, i32
  }
  func.func @transform_5(%arg0: i32, %arg1: i32) -> (i32, i32) {
    %c0_i32 = arith.constant 0 : i32
    %c0_i32_0 = arith.constant 0 : i32
    %c0_i32_1 = arith.constant 0 : i32
    return %c0_i32, %c0_i32_0 : i32, i32
  }
  func.func @transform_6(%arg0: i32, %arg1: i32) -> (i32, i32) {
    %c0_i32 = arith.constant 0 : i32
    %c0_i32_0 = arith.constant 0 : i32
    %c0_i32_1 = arith.constant 0 : i32
    return %c0_i32, %c0_i32_0 : i32, i32
  }
  func.func @transform_7(%arg0: i32, %arg1: i32) -> (i32, i32) {
    %c0_i32 = arith.constant 0 : i32
    %c0_i32_0 = arith.constant 0 : i32
    return %arg0, %c0_i32 : i32, i32
  }
}

</mosaic_0001>

<llo_original>
// kernel: tpu_custom_call.1
$region0: #{tpu_custom_call.1}
  #allocation0 [shape = 'u32[]', space=smem, size = 0x4, offset = 0x4, fixed_abs, tag = 'smem constant byte address 0x4 - core index']
  #allocation1 [shape = 'u32[144,128]{1,0:T(1,128)}', space=vmem, size = 0x12000, scoped, tag = 'internal scratch']
  %s0 = inlined_call_operand.vmem [shape: f32[16,256,8], index: 0, kind: input, shape index: {}]
  %s1 = inlined_call_operand.vmem [shape: f32[8,64], index: 1, kind: input, shape index: {}]
  %s2 = inlined_call_operand.vmem [shape: f32[1,64], index: 2, kind: input, shape index: {}]
  %s3 = inlined_call_operand.vmem [shape: bf16[64,128], index: 3, kind: input, shape index: {}]
  %s4 = inlined_call_operand.vmem [shape: f32[1,128], index: 4, kind: input, shape index: {}]
  %s5 = inlined_call_operand.vmem [shape: bf16[128,1024], index: 5, kind: input, shape index: {}]
  %s6 = inlined_call_operand.vmem [shape: f32[1,1024], index: 6, kind: input, shape index: {}]
  %s7 = inlined_call_operand.hbm [shape: f32[16,1024], index: 7, kind: output, shape index: {}]
  %s8 = sld [smem:[#allocation0]]
  $region111: #{tpu_custom_call.1} parent=0
    _
  %s10 = ssub.s32 1, %s8
  %s11 = scalar_select 0, %s10, %s8
  $region1: #{tpu_custom_call.1} parent=0
    #allocation2 [shape = 'u8[1048576]{0}', space=vmem, size = 0x100000, scoped, tag = 'input window, operand 0']
    #allocation3 [shape = 'u8[65536]{0}', space=vmem, size = 0x10000, scoped, tag = 'output window, operand 0']
    #allocation4 [shape = 's32[2]{0}', space=sflag, size = 0x8, scoped, tag = 'scoped memory for tpu_custom_call.1']
    %12 = vsyncpa [#allocation4], 0
    %s13 = scalar_lea.sflag [#allocation4], 1
    %14 = vsyncpa %s13, 0
    loop: start=0, step=1, limit=6
    $region2: #{tpu_custom_call.1} parent=1 // loop_pre_header
      _
    $region3: #{tpu_custom_call.1} parent=1 // loop_header
      %s16 = sphi 0, %s20
      %p17 = scmp.ge.s32.totalorder %s16, 6
      %s23 = sphi 0, %s35
      %s24 = sphi 0, %s31
      %s25 = sphi 0, %s23
      %s26 = sphi 0, %s24
      %s27 = sphi 0, %s25
      %s28 = sphi 0, %s26
      %s40 = sphi 0, %s42
      %s43 = sphi 0, %s40
      %s44 = sphi 0, %s43
      %s60 = sphi 0, %s44
      %s64 = sphi 0, %s64
      %s66 = sphi 0, %s64
      %s67 = sphi 0, %s66
      %s81 = sphi 0, %s67
      %s85 = sphi 0, %s85
      %s87 = sphi 0, %s85
      %s88 = sphi 0, %s87
      %s102 = sphi 0, %s88
      %s106 = sphi 0, %s106
      %s108 = sphi 0, %s106
      %s109 = sphi 0, %s108
      %s123 = sphi 0, %s109
      %s127 = sphi 0, %s127
      %s129 = sphi 0, %s127
      %s130 = sphi 0, %s129
      %s144 = sphi 0, %s130
      %s148 = sphi 0, %s148
      %s150 = sphi 0, %s148
      %s151 = sphi 0, %s150
      %s165 = sphi 0, %s151
      %s169 = sphi 0, %s169
      %s171 = sphi 0, %s169
      %s172 = sphi 0, %s171
      %s186 = sphi 0, %s172
      %s192 = sphi 0, %s194
      %s195 = sphi 0, %s192
      %s196 = sphi 0, %s195
      %s212 = sphi 0, %s196
    $region4: #{tpu_custom_call.1} parent=1 // loop_header_branch
      %19 = sbr.rel (%p17) target = $region8
    $region5: #{tpu_custom_call.1} parent=1 // loop_body
      %s21 = ssub.s32 %s16, 1
      %s22 = ssub.s32 %s16, 2
      %s29 = sadd.s32 1, %s24
      %p30 = scmp.ge.s32.totalorder %s29, 2
      %s31 = scalar_select %p30, 0, %s29
      %s32 = sadd.s32 1, %s23
      %s33 = scalar_select %p30, %s32, %s23
      %p34 = scmp.ge.s32.totalorder %s33, 2
      %s35 = scalar_select %p34, 0, %s33
      %s36 = ssub.s32 %s23, %s35
      %s37 = ssub.s32 %s24, %s31
      %s38 = sor.u32 %s36, %s37
      %p39 = scmp.eq.s32.totalorder %s38, 0
      %s41 = sadd.s32 %s40, 1
      %s42 = scalar_select %p39, %s40, %s41
      %p45 = pneg %p39
      %p46 = scmp.eq.s32.totalorder %s16, 3
      %p47 = por %p45, %p46
      %p48 = scmp.ne.s32.totalorder %s40, %s43
      %p49 = scmp.eq.s32.totalorder %s16, 0
      %p50 = por %p48, %p49
      %p51 = scmp.ne.s32.totalorder %s40, %s43
      %p52 = scmp.eq.s32.totalorder %s21, 3
      %p53 = por %p51, %p52
      %p54 = scmp.ne.s32.totalorder %s43, %s44
      %p55 = scmp.eq.s32.totalorder %s21, 0
      %p56 = por %p54, %p55
      %p57 = scmp.ne.s32.totalorder %s43, %s44
      %p58 = scmp.eq.s32.totalorder %s22, 3
      %p59 = por %p57, %p58
      %p61 = scmp.ne.s32.totalorder %s44, %s60
      %p62 = scmp.eq.s32.totalorder %s22, 0
      %p63 = por %p61, %p62
      %s65 = sadd.s32 %s64, 1
      %p68 = scmp.eq.s32.totalorder %s16, 3
      %p69 = scmp.ne.s32.totalorder %s64, %s66
      %p70 = scmp.eq.s32.totalorder %s16, 0
      %p71 = por %p69, %p70
      %p72 = scmp.ne.s32.totalorder %s64, %s66
      %p73 = scmp.eq.s32.totalorder %s21, 3
      %p74 = por %p72, %p73
      %p75 = scmp.ne.s32.totalorder %s66, %s67
      %p76 = scmp.eq.s32.totalorder %s21, 0
      %p77 = por %p75, %p76
      %p78 = scmp.ne.s32.totalorder %s66, %s67
      %p79 = scmp.eq.s32.totalorder %s22, 3
      %p80 = por %p78, %p79
      %p82 = scmp.ne.s32.totalorder %s67, %s81
      %p83 = scmp.eq.s32.totalorder %s22, 0
      %p84 = por %p82, %p83
      %s86 = sadd.s32 %s85, 1
      %p89 = scmp.eq.s32.totalorder %s16, 3
      %p90 = scmp.ne.s32.totalorder %s85, %s87
      %p91 = scmp.eq.s32.totalorder %s16, 0
      %p92 = por %p90, %p91
      %p93 = scmp.ne.s32.totalorder %s85, %s87
      %p94 = scmp.eq.s32.totalorder %s21, 3
      %p95 = por %p93, %p94
      %p96 = scmp.ne.s32.totalorder %s87, %s88
      %p97 = scmp.eq.s32.totalorder %s21, 0
      %p98 = por %p96, %p97
      %p99 = scmp.ne.s32.totalorder %s87, %s88
      %p100 = scmp.eq.s32.totalorder %s22, 3
      %p101 = por %p99, %p100
      %p103 = scmp.ne.s32.totalorder %s88, %s102
      %p104 = scmp.eq.s32.totalorder %s22, 0
      %p105 = por %p103, %p104
      %s107 = sadd.s32 %s106, 1
      %p110 = scmp.eq.s32.totalorder %s16, 3
      %p111 = scmp.ne.s32.totalorder %s106, %s108
      %p112 = scmp.eq.s32.totalorder %s16, 0
      %p113 = por %p111, %p112
      %p114 = scmp.ne.s32.totalorder %s106, %s108
      %p115 = scmp.eq.s32.totalorder %s21, 3
      %p116 = por %p114, %p115
      %p117 = scmp.ne.s32.totalorder %s108, %s109
      %p118 = scmp.eq.s32.totalorder %s21, 0
      %p119 = por %p117, %p118
      %p120 = scmp.ne.s32.totalorder %s108, %s109
      %p121 = scmp.eq.s32.totalorder %s22, 3
      %p122 = por %p120, %p121
      %p124 = scmp.ne.s32.totalorder %s109, %s123
      %p125 = scmp.eq.s32.totalorder %s22, 0
      %p126 = por %p124, %p125
      %s128 = sadd.s32 %s127, 1
      %p131 = scmp.eq.s32.totalorder %s16, 3
      %p132 = scmp.ne.s32.totalorder %s127, %s129
      %p133 = scmp.eq.s32.totalorder %s16, 0
      %p134 = por %p132, %p133
      %p135 = scmp.ne.s32.totalorder %s127, %s129
      %p136 = scmp.eq.s32.totalorder %s21, 3
      %p137 = por %p135, %p136
      %p138 = scmp.ne.s32.totalorder %s129, %s130
      %p139 = scmp.eq.s32.totalorder %s21, 0
      %p140 = por %p138, %p139
      %p141 = scmp.ne.s32.totalorder %s129, %s130
      %p142 = scmp.eq.s32.totalorder %s22, 3
      %p143 = por %p141, %p142
      %p145 = scmp.ne.s32.totalorder %s130, %s144
      %p146 = scmp.eq.s32.totalorder %s22, 0
      %p147 = por %p145, %p146
      %s149 = sadd.s32 %s148, 1
      %p152 = scmp.eq.s32.totalorder %s16, 3
      %p153 = scmp.ne.s32.totalorder %s148, %s150
      %p154 = scmp.eq.s32.totalorder %s16, 0
      %p155 = por %p153, %p154
      %p156 = scmp.ne.s32.totalorder %s148, %s150
      %p157 = scmp.eq.s32.totalorder %s21, 3
      %p158 = por %p156, %p157
      %p159 = scmp.ne.s32.totalorder %s150, %s151
      %p160 = scmp.eq.s32.totalorder %s21, 0
      %p161 = por %p159, %p160
      %p162 = scmp.ne.s32.totalorder %s150, %s151
      %p163 = scmp.eq.s32.totalorder %s22, 3
      %p164 = por %p162, %p163
      %p166 = scmp.ne.s32.totalorder %s151, %s165
      %p167 = scmp.eq.s32.totalorder %s22, 0
      %p168 = por %p166, %p167
      %s170 = sadd.s32 %s169, 1
      %p173 = scmp.eq.s32.totalorder %s16, 3
      %p174 = scmp.ne.s32.totalorder %s169, %s171
      %p175 = scmp.eq.s32.totalorder %s16, 0
      %p176 = por %p174, %p175
      %p177 = scmp.ne.s32.totalorder %s169, %s171
      %p178 = scmp.eq.s32.totalorder %s21, 3
      %p179 = por %p177, %p178
      %p180 = scmp.ne.s32.totalorder %s171, %s172
      %p181 = scmp.eq.s32.totalorder %s21, 0
      %p182 = por %p180, %p181
      %p183 = scmp.ne.s32.totalorder %s171, %s172
      %p184 = scmp.eq.s32.totalorder %s22, 3
      %p185 = por %p183, %p184
      %p187 = scmp.ne.s32.totalorder %s172, %s186
      %p188 = scmp.eq.s32.totalorder %s22, 0
      %p189 = por %p187, %p188
      %s190 = ssub.s32 %s23, %s35
      %p191 = scmp.eq.s32.totalorder %s190, 0
      %s193 = sadd.s32 %s192, 1
      %s194 = scalar_select %p191, %s192, %s193
      %p197 = pneg %p191
      %p198 = scmp.eq.s32.totalorder %s16, 3
      %p199 = por %p197, %p198
      %p200 = scmp.ne.s32.totalorder %s192, %s195
      %p201 = scmp.eq.s32.totalorder %s16, 0
      %p202 = por %p200, %p201
      %p203 = scmp.ne.s32.totalorder %s192, %s195
      %p204 = scmp.eq.s32.totalorder %s21, 3
      %p205 = por %p203, %p204
      %p206 = scmp.ne.s32.totalorder %s195, %s196
      %p207 = scmp.eq.s32.totalorder %s21, 0
      %p208 = por %p206, %p207
      %p209 = scmp.ne.s32.totalorder %s195, %s196
      %p210 = scmp.eq.s32.totalorder %s22, 3
      %p211 = por %p209, %p210
      %p213 = scmp.ne.s32.totalorder %s196, %s212
      %p214 = scmp.eq.s32.totalorder %s22, 0
      %p215 = por %p213, %p214
      %p216 = scmp.le.s32.totalorder 1, %s16
      %p217 = scmp.lt.s32.totalorder %s16, 5
      %p218 = pnand %p216, %p217
      %p219 = pneg %p218
      // Predicated region
      $region9: #{tpu_custom_call.1} parent=5 // pred_check
        _
      $region10: #{tpu_custom_call.1} parent=5 // pred_check_branch
        %221 = sbr.rel (%p218) target = $region12
      $region11: #{tpu_custom_call.1} parent=5 // pred_region
        %s222 = ssub.s32 %s16, 1
        // Predicated region
        $region13: #{tpu_custom_call.1} parent=11 // pred_check
          %p223 = pneg %p77
        $region14: #{tpu_custom_call.1} parent=11 // pred_check_branch
          %225 = sbr.rel (%p223) target = $region16
        $region15: #{tpu_custom_call.1} parent=11 // pred_region
          _
        $region16: #{tpu_custom_call.1} parent=11 // pred_fallthru
          _
        // Predicated region
        $region17: #{tpu_custom_call.1} parent=11 // pred_check
          %p226 = pneg %p98
        $region18: #{tpu_custom_call.1} parent=11 // pred_check_branch
          %228 = sbr.rel (%p226) target = $region20
        $region19: #{tpu_custom_call.1} parent=11 // pred_region
          _
        $region20: #{tpu_custom_call.1} parent=11 // pred_fallthru
          _
        // Predicated region
        $region21: #{tpu_custom_call.1} parent=11 // pred_check
          %p229 = pneg %p119
        $region22: #{tpu_custom_call.1} parent=11 // pred_check_branch
          %231 = sbr.rel (%p229) target = $region24
        $region23: #{tpu_custom_call.1} parent=11 // pred_region
          _
        $region24: #{tpu_custom_call.1} parent=11 // pred_fallthru
          _
        // Predicated region
        $region25: #{tpu_custom_call.1} parent=11 // pred_check
          %p232 = pneg %p140
        $region26: #{tpu_custom_call.1} parent=11 // pred_check_branch
          %234 = sbr.rel (%p232) target = $region28
        $region27: #{tpu_custom_call.1} parent=11 // pred_region
          _
        $region28: #{tpu_custom_call.1} parent=11 // pred_fallthru
          _
        // Predicated region
        $region29: #{tpu_custom_call.1} parent=11 // pred_check
          %p235 = pneg %p161
        $region30: #{tpu_custom_call.1} parent=11 // pred_check_branch
          %237 = sbr.rel (%p235) target = $region32
        $region31: #{tpu_custom_call.1} parent=11 // pred_region
          _
        $region32: #{tpu_custom_call.1} parent=11 // pred_fallthru
          _
        // Predicated region
        $region33: #{tpu_custom_call.1} parent=11 // pred_check
          %p238 = pneg %p182
        $region34: #{tpu_custom_call.1} parent=11 // pred_check_branch
          %240 = sbr.rel (%p238) target = $region36
        $region35: #{tpu_custom_call.1} parent=11 // pred_region
          _
        $region36: #{tpu_custom_call.1} parent=11 // pred_fallthru
          _
      $region12: #{tpu_custom_call.1} parent=5 // pred_fallthru
        _
      %p241 = scmp.lt.s32.totalorder %s16, 4
      // Predicated region
      $region37: #{tpu_custom_call.1} parent=5 // pred_check
        %p242 = pneg %p241
      $region38: #{tpu_custom_call.1} parent=5 // pred_check_branch
        %244 = sbr.rel (%p242) target = $region40
      $region39: #{tpu_custom_call.1} parent=5 // pred_region
        // Predicated region
        $region41: #{tpu_custom_call.1} parent=39 // pred_check
          %p245 = pneg %p50
        $region42: #{tpu_custom_call.1} parent=39 // pred_check_branch
          %247 = sbr.rel (%p245) target = $region44
        $region43: #{tpu_custom_call.1} parent=39 // pred_region
          %s248 = sand.u32 %s40, 1
          %s249 = sand.u32 %s40, 1
          %s250 = smul.addr %s249, 1024
          %s251 = scalar_lea.vmem [#allocation2], %s250
          %s252 = smul.u32 8, %s23
          %s253 = smul.u32 16, %s24
          %s254 = smul.addr %s252, 32
          %s255 = sadd.s32 %s253, %s254
          %s256 = smul.addr %s255, 8
          %s257 = scalar_lea.vmem %s0, %s256
          // Predicated region
          $region45: #{tpu_custom_call.1} parent=43 // pred_check
            _
          $region46: #{tpu_custom_call.1} parent=43 // pred_check_branch
            %259 = sbr.rel (0) target = $region48
          $region47: #{tpu_custom_call.1} parent=43 // pred_region
            // Predicated region
            $region49: #{tpu_custom_call.1} parent=47 // pred_check
              _
            $region50: #{tpu_custom_call.1} parent=47 // pred_check_branch
              %261 = sbr.rel (0) target = $region52
            $region51: #{tpu_custom_call.1} parent=47 // pred_region
              // Predicated region
              $region64: #{tpu_custom_call.1} parent=51 // pred_check
                _
              $region65: #{tpu_custom_call.1} parent=51 // pred_check_branch
                %530 = sbr.rel (0) target = $region67
              $region66: #{tpu_custom_call.1} parent=51 // pred_region
                loop: start=0, step=1, limit=1
                $region68: #{tpu_custom_call.1} parent=66 // loop_pre_header
                  _
                $region69: #{tpu_custom_call.1} parent=66 // loop_header
                  %s532 = sphi 0, %s536
                  %p533 = scmp.ge.s32.totalorder %s532, 1
                  %s537 = sphi %s257, %s257
                  %s538 = sphi %s251, %s251
                $region70: #{tpu_custom_call.1} parent=66 // loop_header_branch
                  %535 = sbr.rel (%p533) target = $region74
                $region71: #{tpu_custom_call.1} parent=66 // loop_body
                  %v539 = vld [vmem:[%s537] sm:$0xff]
                  %540 = vst [vmem:[%s538] sm:$0xff] %v539
                  %v541 = vld [vmem:[%s537 + $0x8] sm:$0xff]
                  %542 = vst [vmem:[%s538 + $0x8] sm:$0xff] %v541
                  %v543 = vld [vmem:[%s537 + $0x10] sm:$0xff]
                  %544 = vst [vmem:[%s538 + $0x10] sm:$0xff] %v543
                  %v545 = vld [vmem:[%s537 + $0x18] sm:$0xff]
                  %546 = vst [vmem:[%s538 + $0x18] sm:$0xff] %v545
                  %v547 = vld [vmem:[%s537 + $0x20] sm:$0xff]
                  %548 = vst [vmem:[%s538 + $0x20] sm:$0xff] %v547
                  %v549 = vld [vmem:[%s537 + $0x28] sm:$0xff]
                  %550 = vst [vmem:[%s538 + $0x28] sm:$0xff] %v549
                  %v551 = vld [vmem:[%s537 + $0x30] sm:$0xff]
                  %552 = vst [vmem:[%s538 + $0x30] sm:$0xff] %v551
                  %v553 = vld [vmem:[%s537 + $0x38] sm:$0xff]
                  %554 = vst [vmem:[%s538 + $0x38] sm:$0xff] %v553
                  %v555 = vld [vmem:[%s537 + $0x40] sm:$0xff]
                  %556 = vst [vmem:[%s538 + $0x40] sm:$0xff] %v555
                  %v557 = vld [vmem:[%s537 + $0x48] sm:$0xff]
                  %558 = vst [vmem:[%s538 + $0x48] sm:$0xff] %v557
                  %v559 = vld [vmem:[%s537 + $0x50] sm:$0xff]
                  %560 = vst [vmem:[%s538 + $0x50] sm:$0xff] %v559
                  %v561 = vld [vmem:[%s537 + $0x58] sm:$0xff]
                  %562 = vst [vmem:[%s538 + $0x58] sm:$0xff] %v561
                  %v563 = vld [vmem:[%s537 + $0x60] sm:$0xff]
                  %564 = vst [vmem:[%s538 + $0x60] sm:$0xff] %v563
                  %v565 = vld [vmem:[%s537 + $0x68] sm:$0xff]
                  %566 = vst [vmem:[%s538 + $0x68] sm:$0xff] %v565
                  %v567 = vld [vmem:[%s537 + $0x70] sm:$0xff]
                  %568 = vst [vmem:[%s538 + $0x70] sm:$0xff] %v567
                  %v569 = vld [vmem:[%s537 + $0x78] sm:$0xff]
                  %570 = vst [vmem:[%s538 + $0x78] sm:$0xff] %v569
                  %v571 = vld [vmem:[%s537 + $0x100] sm:$0xff]
                  %572 = vst [vmem:[%s538 + $0x80] sm:$0xff] %v571
                  %v573 = vld [vmem:[%s537 + $0x108] sm:$0xff]
                  %574 = vst [vmem:[%s538 + $0x88] sm:$0xff] %v573
                  %v575 = vld [vmem:[%s537 + $0x110] sm:$0xff]
                  %576 = vst [vmem:[%s538 + $0x90] sm:$0xff] %v575
                  %v577 = vld [vmem:[%s537 + $0x118] sm:$0xff]
                  %578 = vst [vmem:[%s538 + $0x98] sm:$0xff] %v577
                  %v579 = vld [vmem:[%s537 + $0x120] sm:$0xff]
                  %580 = vst [vmem:[%s538 + $0xa0] sm:$0xff] %v579
                  %v581 = vld [vmem:[%s537 + $0x128] sm:$0xff]
                  %582 = vst [vmem:[%s538 + $0xa8] sm:$0xff] %v581
                  %v583 = vld [vmem:[%s537 + $0x130] sm:$0xff]
                  %584 = vst [vmem:[%s538 + $0xb0] sm:$0xff] %v583
                  %v585 = vld [vmem:[%s537 + $0x138] sm:$0xff]
                  %586 = vst [vmem:[%s538 + $0xb8] sm:$0xff] %v585
                  %v587 = vld [vmem:[%s537 + $0x140] sm:$0xff]
                  %588 = vst [vmem:[%s538 + $0xc0] sm:$0xff] %v587
                  %v589 = vld [vmem:[%s537 + $0x148] sm:$0xff]
                  %590 = vst [vmem:[%s538 + $0xc8] sm:$0xff] %v589
                  %v591 = vld [vmem:[%s537 + $0x150] sm:$0xff]
                  %592 = vst [vmem:[%s538 + $0xd0] sm:$0xff] %v591
                  %v593 = vld [vmem:[%s537 + $0x158] sm:$0xff]
                  %594 = vst [vmem:[%s538 + $0xd8] sm:$0xff] %v593
                  %v595 = vld [vmem:[%s537 + $0x160] sm:$0xff]
                  %596 = vst [vmem:[%s538 + $0xe0] sm:$0xff] %v595
                  %v597 = vld [vmem:[%s537 + $0x168] sm:$0xff]
                  %598 = vst [vmem:[%s538 + $0xe8] sm:$0xff] %v597
                  %v599 = vld [vmem:[%s537 + $0x170] sm:$0xff]
                  %600 = vst [vmem:[%s538 + $0xf0] sm:$0xff] %v599
                  %v601 = vld [vmem:[%s537 + $0x178] sm:$0xff]
                  %602 = vst [vmem:[%s538 + $0xf8] sm:$0xff] %v601
                  %v603 = vld [vmem:[%s537 + $0x200] sm:$0xff]
                  %604 = vst [vmem:[%s538 + $0x100] sm:$0xff] %v603
                  %v605 = vld [vmem:[%s537 + $0x208] sm:$0xff]
                  %606 = vst [vmem:[%s538 + $0x108] sm:$0xff] %v605
                  %v607 = vld [vmem:[%s537 + $0x210] sm:$0xff]
                  %608 = vst [vmem:[%s538 + $0x110] sm:$0xff] %v607
                  %v609 = vld [vmem:[%s537 + $0x218] sm:$0xff]
                  %610 = vst [vmem:[%s538 + $0x118] sm:$0xff] %v609
                  %v611 = vld [vmem:[%s537 + $0x220] sm:$0xff]
                  %612 = vst [vmem:[%s538 + $0x120] sm:$0xff] %v611
                  %v613 = vld [vmem:[%s537 + $0x228] sm:$0xff]
                  %614 = vst [vmem:[%s538 + $0x128] sm:$0xff] %v613
                  %v615 = vld [vmem:[%s537 + $0x230] sm:$0xff]
                  %616 = vst [vmem:[%s538 + $0x130] sm:$0xff] %v615
                  %v617 = vld [vmem:[%s537 + $0x238] sm:$0xff]
                  %618 = vst [vmem:[%s538 + $0x138] sm:$0xff] %v617
                  %v619 = vld [vmem:[%s537 + $0x240] sm:$0xff]
                  %620 = vst [vmem:[%s538 + $0x140] sm:$0xff] %v619
                  %v621 = vld [vmem:[%s537 + $0x248] sm:$0xff]
                  %622 = vst [vmem:[%s538 + $0x148] sm:$0xff] %v621
                  %v623 = vld [vmem:[%s537 + $0x250] sm:$0xff]
                  %624 = vst [vmem:[%s538 + $0x150] sm:$0xff] %v623
                  %v625 = vld [vmem:[%s537 + $0x258] sm:$0xff]
                  %626 = vst [vmem:[%s538 + $0x158] sm:$0xff] %v625
                  %v627 = vld [vmem:[%s537 + $0x260] sm:$0xff]
                  %628 = vst [vmem:[%s538 + $0x160] sm:$0xff] %v627
                  %v629 = vld [vmem:[%s537 + $0x268] sm:$0xff]
                  %630 = vst [vmem:[%s538 + $0x168] sm:$0xff] %v629
                  %v631 = vld [vmem:[%s537 + $0x270] sm:$0xff]
                  %632 = vst [vmem:[%s538 + $0x170] sm:$0xff] %v631
                  %v633 = vld [vmem:[%s537 + $0x278] sm:$0xff]
                  %634 = vst [vmem:[%s538 + $0x178] sm:$0xff] %v633
                  %v635 = vld [vmem:[%s537 + $0x300] sm:$0xff]
                  %636 = vst [vmem:[%s538 + $0x180] sm:$0xff] %v635
                  %v637 = vld [vmem:[%s537 + $0x308] sm:$0xff]
                  %638 = vst [vmem:[%s538 + $0x188] sm:$0xff] %v637
                  %v639 = vld [vmem:[%s537 + $0x310] sm:$0xff]
                  %640 = vst [vmem:[%s538 + $0x190] sm:$0xff] %v639
                  %v641 = vld [vmem:[%s537 + $0x318] sm:$0xff]
                  %642 = vst [vmem:[%s538 + $0x198] sm:$0xff] %v641
                  %v643 = vld [vmem:[%s537 + $0x320] sm:$0xff]
                  %644 = vst [vmem:[%s538 + $0x1a0] sm:$0xff] %v643
                  %v645 = vld [vmem:[%s537 + $0x328] sm:$0xff]
                  %646 = vst [vmem:[%s538 + $0x1a8] sm:$0xff] %v645
                  %v647 = vld [vmem:[%s537 + $0x330] sm:$0xff]
                  %648 = vst [vmem:[%s538 + $0x1b0] sm:$0xff] %v647
                  %v649 = vld [vmem:[%s537 + $0x338] sm:$0xff]
                  %650 = vst [vmem:[%s538 + $0x1b8] sm:$0xff] %v649
                  %v651 = vld [vmem:[%s537 + $0x340] sm:$0xff]
                  %652 = vst [vmem:[%s538 + $0x1c0] sm:$0xff] %v651
                  %v653 = vld [vmem:[%s537 + $0x348] sm:$0xff]
                  %654 = vst [vmem:[%s538 + $0x1c8] sm:$0xff] %v653
                  %v655 = vld [vmem:[%s537 + $0x350] sm:$0xff]
                  %656 = vst [vmem:[%s538 + $0x1d0] sm:$0xff] %v655
                  %v657 = vld [vmem:[%s537 + $0x358] sm:$0xff]
                  %658 = vst [vmem:[%s538 + $0x1d8] sm:$0xff] %v657
                  %v659 = vld [vmem:[%s537 + $0x360] sm:$0xff]
                  %660 = vst [vmem:[%s538 + $0x1e0] sm:$0xff] %v659
                  %v661 = vld [vmem:[%s537 + $0x368] sm:$0xff]
                  %662 = vst [vmem:[%s538 + $0x1e8] sm:$0xff] %v661
                  %v663 = vld [vmem:[%s537 + $0x370] sm:$0xff]
                  %664 = vst [vmem:[%s538 + $0x1f0] sm:$0xff] %v663
                  %v665 = vld [vmem:[%s537 + $0x378] sm:$0xff]
                  %666 = vst [vmem:[%s538 + $0x1f8] sm:$0xff] %v665
                  %v667 = vld [vmem:[%s537 + $0x400] sm:$0xff]
                  %668 = vst [vmem:[%s538 + $0x200] sm:$0xff] %v667
                  %v669 = vld [vmem:[%s537 + $0x408] sm:$0xff]
                  %670 = vst [vmem:[%s538 + $0x208] sm:$0xff] %v669
                  %v671 = vld [vmem:[%s537 + $0x410] sm:$0xff]
                  %672 = vst [vmem:[%s538 + $0x210] sm:$0xff] %v671
                  %v673 = vld [vmem:[%s537 + $0x418] sm:$0xff]
                  %674 = vst [vmem:[%s538 + $0x218] sm:$0xff] %v673
                  %v675 = vld [vmem:[%s537 + $0x420] sm:$0xff]
                  %676 = vst [vmem:[%s538 + $0x220] sm:$0xff] %v675
                  %v677 = vld [vmem:[%s537 + $0x428] sm:$0xff]
                  %678 = vst [vmem:[%s538 + $0x228] sm:$0xff] %v677
                  %v679 = vld [vmem:[%s537 + $0x430] sm:$0xff]
                  %680 = vst [vmem:[%s538 + $0x230] sm:$0xff] %v679
                  %v681 = vld [vmem:[%s537 + $0x438] sm:$0xff]
                  %682 = vst [vmem:[%s538 + $0x238] sm:$0xff] %v681
                  %v683 = vld [vmem:[%s537 + $0x440] sm:$0xff]
                  %684 = vst [vmem:[%s538 + $0x240] sm:$0xff] %v683
                  %v685 = vld [vmem:[%s537 + $0x448] sm:$0xff]
                  %686 = vst [vmem:[%s538 + $0x248] sm:$0xff] %v685
                  %v687 = vld [vmem:[%s537 + $0x450] sm:$0xff]
                  %688 = vst [vmem:[%s538 + $0x250] sm:$0xff] %v687
                  %v689 = vld [vmem:[%s537 + $0x458] sm:$0xff]
                  %690 = vst [vmem:[%s538 + $0x258] sm:$0xff] %v689
                  %v691 = vld [vmem:[%s537 + $0x460] sm:$0xff]
                  %692 = vst [vmem:[%s538 + $0x260] sm:$0xff] %v691
                  %v693 = vld [vmem:[%s537 + $0x468] sm:$0xff]
                  %694 = vst [vmem:[%s538 + $0x268] sm:$0xff] %v693
                  %v695 = vld [vmem:[%s537 + $0x470] sm:$0xff]
                  %696 = vst [vmem:[%s538 + $0x270] sm:$0xff] %v695
                  %v697 = vld [vmem:[%s537 + $0x478] sm:$0xff]
                  %698 = vst [vmem:[%s538 + $0x278] sm:$0xff] %v697
                  %v699 = vld [vmem:[%s537 + $0x500] sm:$0xff]
                  %700 = vst [vmem:[%s538 + $0x280] sm:$0xff] %v699
                  %v701 = vld [vmem:[%s537 + $0x508] sm:$0xff]
                  %702 = vst [vmem:[%s538 + $0x288] sm:$0xff] %v701
                  %v703 = vld [vmem:[%s537 + $0x510] sm:$0xff]
                  %704 = vst [vmem:[%s538 + $0x290] sm:$0xff] %v703
                  %v705 = vld [vmem:[%s537 + $0x518] sm:$0xff]
                  %706 = vst [vmem:[%s538 + $0x298] sm:$0xff] %v705
                  %v707 = vld [vmem:[%s537 + $0x520] sm:$0xff]
                  %708 = vst [vmem:[%s538 + $0x2a0] sm:$0xff] %v707
                  %v709 = vld [vmem:[%s537 + $0x528] sm:$0xff]
                  %710 = vst [vmem:[%s538 + $0x2a8] sm:$0xff] %v709
                  %v711 = vld [vmem:[%s537 + $0x530] sm:$0xff]
                  %712 = vst [vmem:[%s538 + $0x2b0] sm:$0xff] %v711
                  %v713 = vld [vmem:[%s537 + $0x538] sm:$0xff]
                  %714 = vst [vmem:[%s538 + $0x2b8] sm:$0xff] %v713
                  %v715 = vld [vmem:[%s537 + $0x540] sm:$0xff]
                  %716 = vst [vmem:[%s538 + $0x2c0] sm:$0xff] %v715
                  %v717 = vld [vmem:[%s537 + $0x548] sm:$0xff]
                  %718 = vst [vmem:[%s538 + $0x2c8] sm:$0xff] %v717
                  %v719 = vld [vmem:[%s537 + $0x550] sm:$0xff]
                  %720 = vst [vmem:[%s538 + $0x2d0] sm:$0xff] %v719
                  %v721 = vld [vmem:[%s537 + $0x558] sm:$0xff]
                  %722 = vst [vmem:[%s538 + $0x2d8] sm:$0xff] %v721
                  %v723 = vld [vmem:[%s537 + $0x560] sm:$0xff]
                  %724 = vst [vmem:[%s538 + $0x2e0] sm:$0xff] %v723
                  %v725 = vld [vmem:[%s537 + $0x568] sm:$0xff]
                  %726 = vst [vmem:[%s538 + $0x2e8] sm:$0xff] %v725
                  %v727 = vld [vmem:[%s537 + $0x570] sm:$0xff]
                  %728 = vst [vmem:[%s538 + $0x2f0] sm:$0xff] %v727
                  %v729 = vld [vmem:[%s537 + $0x578] sm:$0xff]
                  %730 = vst [vmem:[%s538 + $0x2f8] sm:$0xff] %v729
                  %v731 = vld [vmem:[%s537 + $0x600] sm:$0xff]
                  %732 = vst [vmem:[%s538 + $0x300] sm:$0xff] %v731
                  %v733 = vld [vmem:[%s537 + $0x608] sm:$0xff]
                  %734 = vst [vmem:[%s538 + $0x308] sm:$0xff] %v733
                  %v735 = vld [vmem:[%s537 + $0x610] sm:$0xff]
                  %736 = vst [vmem:[%s538 + $0x310] sm:$0xff] %v735
                  %v737 = vld [vmem:[%s537 + $0x618] sm:$0xff]
                  %738 = vst [vmem:[%s538 + $0x318] sm:$0xff] %v737
                  %v739 = vld [vmem:[%s537 + $0x620] sm:$0xff]
                  %740 = vst [vmem:[%s538 + $0x320] sm:$0xff] %v739
                  %v741 = vld [vmem:[%s537 + $0x628] sm:$0xff]
                  %742 = vst [vmem:[%s538 + $0x328] sm:$0xff] %v741
                  %v743 = vld [vmem:[%s537 + $0x630] sm:$0xff]
                  %744 = vst [vmem:[%s538 + $0x330] sm:$0xff] %v743
                  %v745 = vld [vmem:[%s537 + $0x638] sm:$0xff]
                  %746 = vst [vmem:[%s538 + $0x338] sm:$0xff] %v745
                  %v747 = vld [vmem:[%s537 + $0x640] sm:$0xff]
                  %748 = vst [vmem:[%s538 + $0x340] sm:$0xff] %v747
                  %v749 = vld [vmem:[%s537 + $0x648] sm:$0xff]
                  %750 = vst [vmem:[%s538 + $0x348] sm:$0xff] %v749
                  %v751 = vld [vmem:[%s537 + $0x650] sm:$0xff]
                  %752 = vst [vmem:[%s538 + $0x350] sm:$0xff] %v751
                  %v753 = vld [vmem:[%s537 + $0x658] sm:$0xff]
                  %754 = vst [vmem:[%s538 + $0x358] sm:$0xff] %v753
                  %v755 = vld [vmem:[%s537 + $0x660] sm:$0xff]
                  %756 = vst [vmem:[%s538 + $0x360] sm:$0xff] %v755
                  %v757 = vld [vmem:[%s537 + $0x668] sm:$0xff]
                  %758 = vst [vmem:[%s538 + $0x368] sm:$0xff] %v757
                  %v759 = vld [vmem:[%s537 + $0x670] sm:$0xff]
                  %760 = vst [vmem:[%s538 + $0x370] sm:$0xff] %v759
                  %v761 = vld [vmem:[%s537 + $0x678] sm:$0xff]
                  %762 = vst [vmem:[%s538 + $0x378] sm:$0xff] %v761
                  %v763 = vld [vmem:[%s537 + $0x700] sm:$0xff]
                  %764 = vst [vmem:[%s538 + $0x380] sm:$0xff] %v763
                  %v765 = vld [vmem:[%s537 + $0x708] sm:$0xff]
                  %766 = vst [vmem:[%s538 + $0x388] sm:$0xff] %v765
                  %v767 = vld [vmem:[%s537 + $0x710] sm:$0xff]
                  %768 = vst [vmem:[%s538 + $0x390] sm:$0xff] %v767
                  %v769 = vld [vmem:[%s537 + $0x718] sm:$0xff]
                  %770 = vst [vmem:[%s538 + $0x398] sm:$0xff] %v769
                  %v771 = vld [vmem:[%s537 + $0x720] sm:$0xff]
                  %772 = vst [vmem:[%s538 + $0x3a0] sm:$0xff] %v771
                  %v773 = vld [vmem:[%s537 + $0x728] sm:$0xff]
                  %774 = vst [vmem:[%s538 + $0x3a8] sm:$0xff] %v773
                  %v775 = vld [vmem:[%s537 + $0x730] sm:$0xff]
                  %776 = vst [vmem:[%s538 + $0x3b0] sm:$0xff] %v775
                  %v777 = vld [vmem:[%s537 + $0x738] sm:$0xff]
                  %778 = vst [vmem:[%s538 + $0x3b8] sm:$0xff] %v777
                  %v779 = vld [vmem:[%s537 + $0x740] sm:$0xff]
                  %780 = vst [vmem:[%s538 + $0x3c0] sm:$0xff] %v779
                  %v781 = vld [vmem:[%s537 + $0x748] sm:$0xff]
                  %782 = vst [vmem:[%s538 + $0x3c8] sm:$0xff] %v781
                  %v783 = vld [vmem:[%s537 + $0x750] sm:$0xff]
                  %784 = vst [vmem:[%s538 + $0x3d0] sm:$0xff] %v783
                  %v785 = vld [vmem:[%s537 + $0x758] sm:$0xff]
                  %786 = vst [vmem:[%s538 + $0x3d8] sm:$0xff] %v785
                  %v787 = vld [vmem:[%s537 + $0x760] sm:$0xff]
                  %788 = vst [vmem:[%s538 + $0x3e0] sm:$0xff] %v787
                  %v789 = vld [vmem:[%s537 + $0x768] sm:$0xff]
                  %790 = vst [vmem:[%s538 + $0x3e8] sm:$0xff] %v789
                  %v791 = vld [vmem:[%s537 + $0x770] sm:$0xff]
                  %792 = vst [vmem:[%s538 + $0x3f0] sm:$0xff] %v791
                  %v793 = vld [vmem:[%s537 + $0x778] sm:$0xff]
                  %794 = vst [vmem:[%s538 + $0x3f8] sm:$0xff] %v793
                $region72: #{tpu_custom_call.1} parent=66 // loop_footer
                  %s536 = sadd.s32 1, %s532
                $region73: #{tpu_custom_call.1} parent=66 // loop_footer_branch
                  %531 = sbr.rel target = $region69
                $region74: #{tpu_custom_call.1} parent=66 // loop_exit
                  _
              $region67: #{tpu_custom_call.1} parent=51 // pred_fallthru
                _
              // Predicated region
              $region75: #{tpu_custom_call.1} parent=51 // pred_check
                _
              $region76: #{tpu_custom_call.1} parent=51 // pred_check_branch
                %796 = sbr.rel target = $region78
              $region77: #{tpu_custom_call.1} parent=51 // pred_region
                _
              $region78: #{tpu_custom_call.1} parent=51 // pred_fallthru
                _
            $region52: #{tpu_custom_call.1} parent=47 // pred_fallthru
              _
            // Predicated region
            $region53: #{tpu_custom_call.1} parent=47 // pred_check
              _
            $region54: #{tpu_custom_call.1} parent=47 // pred_check_branch
              %263 = sbr.rel target = $region56
            $region55: #{tpu_custom_call.1} parent=47 // pred_region
              loop: start=0, step=1, limit=1
              $region57: #{tpu_custom_call.1} parent=55 // loop_pre_header
                _
              $region58: #{tpu_custom_call.1} parent=55 // loop_header
                %s266 = sphi 0, %s270
                %p267 = scmp.ge.s32.totalorder %s266, 1
                %s271 = sphi %s257, %s257
                %s272 = sphi %s251, %s251
              $region59: #{tpu_custom_call.1} parent=55 // loop_header_branch
                %269 = sbr.rel (%p267) target = $region63
              $region60: #{tpu_custom_call.1} parent=55 // loop_body
                %v273 = vld [vmem:[%s271] sm:$0xff]
                %274 = vst [vmem:[%s272] sm:$0xff] %v273
                %v275 = vld [vmem:[%s271 + $0x8] sm:$0xff]
                %276 = vst [vmem:[%s272 + $0x8] sm:$0xff] %v275
                %v277 = vld [vmem:[%s271 + $0x10] sm:$0xff]
                %278 = vst [vmem:[%s272 + $0x10] sm:$0xff] %v277
                %v279 = vld [vmem:[%s271 + $0x18] sm:$0xff]
                %280 = vst [vmem:[%s272 + $0x18] sm:$0xff] %v279
                %v281 = vld [vmem:[%s271 + $0x20] sm:$0xff]
                %282 = vst [vmem:[%s272 + $0x20] sm:$0xff] %v281
                %v283 = vld [vmem:[%s271 + $0x28] sm:$0xff]
                %284 = vst [vmem:[%s272 + $0x28] sm:$0xff] %v283
                %v285 = vld [vmem:[%s271 + $0x30] sm:$0xff]
                %286 = vst [vmem:[%s272 + $0x30] sm:$0xff] %v285
                %v287 = vld [vmem:[%s271 + $0x38] sm:$0xff]
                %288 = vst [vmem:[%s272 + $0x38] sm:$0xff] %v287
                %v289 = vld [vmem:[%s271 + $0x40] sm:$0xff]
                %290 = vst [vmem:[%s272 + $0x40] sm:$0xff] %v289
                %v291 = vld [vmem:[%s271 + $0x48] sm:$0xff]
                %292 = vst [vmem:[%s272 + $0x48] sm:$0xff] %v291
                %v293 = vld [vmem:[%s271 + $0x50] sm:$0xff]
                %294 = vst [vmem:[%s272 + $0x50] sm:$0xff] %v293
                %v295 = vld [vmem:[%s271 + $0x58] sm:$0xff]
                %296 = vst [vmem:[%s272 + $0x58] sm:$0xff] %v295
                %v297 = vld [vmem:[%s271 + $0x60] sm:$0xff]
                %298 = vst [vmem:[%s272 + $0x60] sm:$0xff] %v297
                %v299 = vld [vmem:[%s271 + $0x68] sm:$0xff]
                %300 = vst [vmem:[%s272 + $0x68] sm:$0xff] %v299
                %v301 = vld [vmem:[%s271 + $0x70] sm:$0xff]
                %302 = vst [vmem:[%s272 + $0x70] sm:$0xff] %v301
                %v303 = vld [vmem:[%s271 + $0x78] sm:$0xff]
                %304 = vst [vmem:[%s272 + $0x78] sm:$0xff] %v303
                %v305 = vld [vmem:[%s271 + $0x100] sm:$0xff]
                %306 = vst [vmem:[%s272 + $0x80] sm:$0xff] %v305
                %v307 = vld [vmem:[%s271 + $0x108] sm:$0xff]
                %308 = vst [vmem:[%s272 + $0x88] sm:$0xff] %v307
                %v309 = vld [vmem:[%s271 + $0x110] sm:$0xff]
                %310 = vst [vmem:[%s272 + $0x90] sm:$0xff] %v309
                %v311 = vld [vmem:[%s271 + $0x118] sm:$0xff]
                %312 = vst [vmem:[%s272 + $0x98] sm:$0xff] %v311
                %v313 = vld [vmem:[%s271 + $0x120] sm:$0xff]
                %314 = vst [vmem:[%s272 + $0xa0] sm:$0xff] %v313
                %v315 = vld [vmem:[%s271 + $0x128] sm:$0xff]
                %316 = vst [vmem:[%s272 + $0xa8] sm:$0xff] %v315
                %v317 = vld [vmem:[%s271 + $0x130] sm:$0xff]
                %318 = vst [vmem:[%s272 + $0xb0] sm:$0xff] %v317
                %v319 = vld [vmem:[%s271 + $0x138] sm:$0xff]
                %320 = vst [vmem:[%s272 + $0xb8] sm:$0xff] %v319
                %v321 = vld [vmem:[%s271 + $0x140] sm:$0xff]
                %322 = vst [vmem:[%s272 + $0xc0] sm:$0xff] %v321
                %v323 = vld [vmem:[%s271 + $0x148] sm:$0xff]
                %324 = vst [vmem:[%s272 + $0xc8] sm:$0xff] %v323
                %v325 = vld [vmem:[%s271 + $0x150] sm:$0xff]
                %326 = vst [vmem:[%s272 + $0xd0] sm:$0xff] %v325
                %v327 = vld [vmem:[%s271 + $0x158] sm:$0xff]
                %328 = vst [vmem:[%s272 + $0xd8] sm:$0xff] %v327
                %v329 = vld [vmem:[%s271 + $0x160] sm:$0xff]
                %330 = vst [vmem:[%s272 + $0xe0] sm:$0xff] %v329
                %v331 = vld [vmem:[%s271 + $0x168] sm:$0xff]
                %332 = vst [vmem:[%s272 + $0xe8] sm:$0xff] %v331
                %v333 = vld [vmem:[%s271 + $0x170] sm:$0xff]
                %334 = vst [vmem:[%s272 + $0xf0] sm:$0xff] %v333
                %v335 = vld [vmem:[%s271 + $0x178] sm:$0xff]
                %336 = vst [vmem:[%s272 + $0xf8] sm:$0xff] %v335
                %v337 = vld [vmem:[%s271 + $0x200] sm:$0xff]
                %338 = vst [vmem:[%s272 + $0x100] sm:$0xff] %v337
                %v339 = vld [vmem:[%s271 + $0x208] sm:$0xff]
                %340 = vst [vmem:[%s272 + $0x108] sm:$0xff] %v339
                %v341 = vld [vmem:[%s271 + $0x210] sm:$0xff]
                %342 = vst [vmem:[%s272 + $0x110] sm:$0xff] %v341
                %v343 = vld [vmem:[%s271 + $0x218] sm:$0xff]
                %344 = vst [vmem:[%s272 + $0x118] sm:$0xff] %v343
                %v345 = vld [vmem:[%s271 + $0x220] sm:$0xff]
                %346 = vst [vmem:[%s272 + $0x120] sm:$0xff] %v345
                %v347 = vld [vmem:[%s271 + $0x228] sm:$0xff]
                %348 = vst [vmem:[%s272 + $0x128] sm:$0xff] %v347
                %v349 = vld [vmem:[%s271 + $0x230] sm:$0xff]
                %350 = vst [vmem:[%s272 + $0x130] sm:$0xff] %v349
                %v351 = vld [vmem:[%s271 + $0x238] sm:$0xff]
                %352 = vst [vmem:[%s272 + $0x138] sm:$0xff] %v351
                %v353 = vld [vmem:[%s271 + $0x240] sm:$0xff]
                %354 = vst [vmem:[%s272 + $0x140] sm:$0xff] %v353
                %v355 = vld [vmem:[%s271 + $0x248] sm:$0xff]
                %356 = vst [vmem:[%s272 + $0x148] sm:$0xff] %v355
                %v357 = vld [vmem:[%s271 + $0x250] sm:$0xff]
                %358 = vst [vmem:[%s272 + $0x150] sm:$0xff] %v357
                %v359 = vld [vmem:[%s271 + $0x258] sm:$0xff]
                %360 = vst [vmem:[%s272 + $0x158] sm:$0xff] %v359
                %v361 = vld [vmem:[%s271 + $0x260] sm:$0xff]
                %362 = vst [vmem:[%s272 + $0x160] sm:$0xff] %v361
                %v363 = vld [vmem:[%s271 + $0x268] sm:$0xff]
                %364 = vst [vmem:[%s272 + $0x168] sm:$0xff] %v363
                %v365 = vld [vmem:[%s271 + $0x270] sm:$0xff]
                %366 = vst [vmem:[%s272 + $0x170] sm:$0xff] %v365
                %v367 = vld [vmem:[%s271 + $0x278] sm:$0xff]
                %368 = vst [vmem:[%s272 + $0x178] sm:$0xff] %v367
                %v369 = vld [vmem:[%s271 + $0x300] sm:$0xff]
                %370 = vst [vmem:[%s272 + $0x180] sm:$0xff] %v369
                %v371 = vld [vmem:[%s271 + $0x308] sm:$0xff]
                %372 = vst [vmem:[%s272 + $0x188] sm:$0xff] %v371
                %v373 = vld [vmem:[%s271 + $0x310] sm:$0xff]
                %374 = vst [vmem:[%s272 + $0x190] sm:$0xff] %v373
                %v375 = vld [vmem:[%s271 + $0x318] sm:$0xff]
                %376 = vst [vmem:[%s272 + $0x198] sm:$0xff] %v375
                %v377 = vld [vmem:[%s271 + $0x320] sm:$0xff]
                %378 = vst [vmem:[%s272 + $0x1a0] sm:$0xff] %v377
                %v379 = vld [vmem:[%s271 + $0x328] sm:$0xff]
                %380 = vst [vmem:[%s272 + $0x1a8] sm:$0xff] %v379
                %v381 = vld [vmem:[%s271 + $0x330] sm:$0xff]
                %382 = vst [vmem:[%s272 + $0x1b0] sm:$0xff] %v381
                %v383 = vld [vmem:[%s271 + $0x338] sm:$0xff]
                %384 = vst [vmem:[%s272 + $0x1b8] sm:$0xff] %v383
                %v385 = vld [vmem:[%s271 + $0x340] sm:$0xff]
                %386 = vst [vmem:[%s272 + $0x1c0] sm:$0xff] %v385
                %v387 = vld [vmem:[%s271 + $0x348] sm:$0xff]
                %388 = vst [vmem:[%s272 + $0x1c8] sm:$0xff] %v387
                %v389 = vld [vmem:[%s271 + $0x350] sm:$0xff]
                %390 = vst [vmem:[%s272 + $0x1d0] sm:$0xff] %v389
                %v391 = vld [vmem:[%s271 + $0x358] sm:$0xff]
                %392 = vst [vmem:[%s272 + $0x1d8] sm:$0xff] %v391
                %v393 = vld [vmem:[%s271 + $0x360] sm:$0xff]
                %394 = vst [vmem:[%s272 + $0x1e0] sm:$0xff] %v393
                %v395 = vld [vmem:[%s271 + $0x368] sm:$0xff]
                %396 = vst [vmem:[%s272 + $0x1e8] sm:$0xff] %v395
                %v397 = vld [vmem:[%s271 + $0x370] sm:$0xff]
                %398 = vst [vmem:[%s272 + $0x1f0] sm:$0xff] %v397
                %v399 = vld [vmem:[%s271 + $0x378] sm:$0xff]
                %400 = vst [vmem:[%s272 + $0x1f8] sm:$0xff] %v399
                %v401 = vld [vmem:[%s271 + $0x400] sm:$0xff]
                %402 = vst [vmem:[%s272 + $0x200] sm:$0xff] %v401
                %v403 = vld [vmem:[%s271 + $0x408] sm:$0xff]
                %404 = vst [vmem:[%s272 + $0x208] sm:$0xff] %v403
                %v405 = vld [vmem:[%s271 + $0x410] sm:$0xff]
                %406 = vst [vmem:[%s272 + $0x210] sm:$0xff] %v405
                %v407 = vld [vmem:[%s271 + $0x418] sm:$0xff]
                %408 = vst [vmem:[%s272 + $0x218] sm:$0xff] %v407
                %v409 = vld [vmem:[%s271 + $0x420] sm:$0xff]
                %410 = vst [vmem:[%s272 + $0x220] sm:$0xff] %v409
                %v411 = vld [vmem:[%s271 + $0x428] sm:$0xff]
                %412 = vst [vmem:[%s272 + $0x228] sm:$0xff] %v411
                %v413 = vld [vmem:[%s271 + $0x430] sm:$0xff]
                %414 = vst [vmem:[%s272 + $0x230] sm:$0xff] %v413
                %v415 = vld [vmem:[%s271 + $0x438] sm:$0xff]
                %416 = vst [vmem:[%s272 + $0x238] sm:$0xff] %v415
                %v417 = vld [vmem:[%s271 + $0x440] sm:$0xff]
                %418 = vst [vmem:[%s272 + $0x240] sm:$0xff] %v417
                %v419 = vld [vmem:[%s271 + $0x448] sm:$0xff]
                %420 = vst [vmem:[%s272 + $0x248] sm:$0xff] %v419
                %v421 = vld [vmem:[%s271 + $0x450] sm:$0xff]
                %422 = vst [vmem:[%s272 + $0x250] sm:$0xff] %v421
                %v423 = vld [vmem:[%s271 + $0x458] sm:$0xff]
                %424 = vst [vmem:[%s272 + $0x258] sm:$0xff] %v423
                %v425 = vld [vmem:[%s271 + $0x460] sm:$0xff]
                %426 = vst [vmem:[%s272 + $0x260] sm:$0xff] %v425
                %v427 = vld [vmem:[%s271 + $0x468] sm:$0xff]
                %428 = vst [vmem:[%s272 + $0x268] sm:$0xff] %v427
                %v429 = vld [vmem:[%s271 + $0x470] sm:$0xff]
                %430 = vst [vmem:[%s272 + $0x270] sm:$0xff] %v429
                %v431 = vld [vmem:[%s271 + $0x478] sm:$0xff]
                %432 = vst [vmem:[%s272 + $0x278] sm:$0xff] %v431
                %v433 = vld [vmem:[%s271 + $0x500] sm:$0xff]
                %434 = vst [vmem:[%s272 + $0x280] sm:$0xff] %v433
                %v435 = vld [vmem:[%s271 + $0x508] sm:$0xff]
                %436 = vst [vmem:[%s272 + $0x288] sm:$0xff] %v435
                %v437 = vld [vmem:[%s271 + $0x510] sm:$0xff]
                %438 = vst [vmem:[%s272 + $0x290] sm:$0xff] %v437
                %v439 = vld [vmem:[%s271 + $0x518] sm:$0xff]
                %440 = vst [vmem:[%s272 + $0x298] sm:$0xff] %v439
                %v441 = vld [vmem:[%s271 + $0x520] sm:$0xff]
                %442 = vst [vmem:[%s272 + $0x2a0] sm:$0xff] %v441
                %v443 = vld [vmem:[%s271 + $0x528] sm:$0xff]
                %444 = vst [vmem:[%s272 + $0x2a8] sm:$0xff] %v443
                %v445 = vld [vmem:[%s271 + $0x530] sm:$0xff]
                %446 = vst [vmem:[%s272 + $0x2b0] sm:$0xff] %v445
                %v447 = vld [vmem:[%s271 + $0x538] sm:$0xff]
                %448 = vst [vmem:[%s272 + $0x2b8] sm:$0xff] %v447
                %v449 = vld [vmem:[%s271 + $0x540] sm:$0xff]
                %450 = vst [vmem:[%s272 + $0x2c0] sm:$0xff] %v449
                %v451 = vld [vmem:[%s271 + $0x548] sm:$0xff]
                %452 = vst [vmem:[%s272 + $0x2c8] sm:$0xff] %v451
                %v453 = vld [vmem:[%s271 + $0x550] sm:$0xff]
                %454 = vst [vmem:[%s272 + $0x2d0] sm:$0xff] %v453
                %v455 = vld [vmem:[%s271 + $0x558] sm:$0xff]
                %456 = vst [vmem:[%s272 + $0x2d8] sm:$0xff] %v455
                %v457 = vld [vmem:[%s271 + $0x560] sm:$0xff]
                %458 = vst [vmem:[%s272 + $0x2e0] sm:$0xff] %v457
                %v459 = vld [vmem:[%s271 + $0x568] sm:$0xff]
                %460 = vst [vmem:[%s272 + $0x2e8] sm:$0xff] %v459
                %v461 = vld [vmem:[%s271 + $0x570] sm:$0xff]
                %462 = vst [vmem:[%s272 + $0x2f0] sm:$0xff] %v461
                %v463 = vld [vmem:[%s271 + $0x578] sm:$0xff]
                %464 = vst [vmem:[%s272 + $0x2f8] sm:$0xff] %v463
                %v465 = vld [vmem:[%s271 + $0x600] sm:$0xff]
                %466 = vst [vmem:[%s272 + $0x300] sm:$0xff] %v465
                %v467 = vld [vmem:[%s271 + $0x608] sm:$0xff]
                %468 = vst [vmem:[%s272 + $0x308] sm:$0xff] %v467
                %v469 = vld [vmem:[%s271 + $0x610] sm:$0xff]
                %470 = vst [vmem:[%s272 + $0x310] sm:$0xff] %v469
                %v471 = vld [vmem:[%s271 + $0x618] sm:$0xff]
                %472 = vst [vmem:[%s272 + $0x318] sm:$0xff] %v471
                %v473 = vld [vmem:[%s271 + $0x620] sm:$0xff]
                %474 = vst [vmem:[%s272 + $0x320] sm:$0xff] %v473
                %v475 = vld [vmem:[%s271 + $0x628] sm:$0xff]
                %476 = vst [vmem:[%s272 + $0x328] sm:$0xff] %v475
                %v477 = vld [vmem:[%s271 + $0x630] sm:$0xff]
                %478 = vst [vmem:[%s272 + $0x330] sm:$0xff] %v477
                %v479 = vld [vmem:[%s271 + $0x638] sm:$0xff]
                %480 = vst [vmem:[%s272 + $0x338] sm:$0xff] %v479
                %v481 = vld [vmem:[%s271 + $0x640] sm:$0xff]
                %482 = vst [vmem:[%s272 + $0x340] sm:$0xff] %v481
                %v483 = vld [vmem:[%s271 + $0x648] sm:$0xff]
                %484 = vst [vmem:[%s272 + $0x348] sm:$0xff] %v483
                %v485 = vld [vmem:[%s271 + $0x650] sm:$0xff]
                %486 = vst [vmem:[%s272 + $0x350] sm:$0xff] %v485
                %v487 = vld [vmem:[%s271 + $0x658] sm:$0xff]
                %488 = vst [vmem:[%s272 + $0x358] sm:$0xff] %v487
                %v489 = vld [vmem:[%s271 + $0x660] sm:$0xff]
                %490 = vst [vmem:[%s272 + $0x360] sm:$0xff] %v489
                %v491 = vld [vmem:[%s271 + $0x668] sm:$0xff]
                %492 = vst [vmem:[%s272 + $0x368] sm:$0xff] %v491
                %v493 = vld [vmem:[%s271 + $0x670] sm:$0xff]
                %494 = vst [vmem:[%s272 + $0x370] sm:$0xff] %v493
                %v495 = vld [vmem:[%s271 + $0x678] sm:$0xff]
                %496 = vst [vmem:[%s272 + $0x378] sm:$0xff] %v495
                %v497 = vld [vmem:[%s271 + $0x700] sm:$0xff]
                %498 = vst [vmem:[%s272 + $0x380] sm:$0xff] %v497
                %v499 = vld [vmem:[%s271 + $0x708] sm:$0xff]
                %500 = vst [vmem:[%s272 + $0x388] sm:$0xff] %v499
                %v501 = vld [vmem:[%s271 + $0x710] sm:$0xff]
                %502 = vst [vmem:[%s272 + $0x390] sm:$0xff] %v501
                %v503 = vld [vmem:[%s271 + $0x718] sm:$0xff]
                %504 = vst [vmem:[%s272 + $0x398] sm:$0xff] %v503
                %v505 = vld [vmem:[%s271 + $0x720] sm:$0xff]
                %506 = vst [vmem:[%s272 + $0x3a0] sm:$0xff] %v505
                %v507 = vld [vmem:[%s271 + $0x728] sm:$0xff]
                %508 = vst [vmem:[%s272 + $0x3a8] sm:$0xff] %v507
                %v509 = vld [vmem:[%s271 + $0x730] sm:$0xff]
                %510 = vst [vmem:[%s272 + $0x3b0] sm:$0xff] %v509
                %v511 = vld [vmem:[%s271 + $0x738] sm:$0xff]
                %512 = vst [vmem:[%s272 + $0x3b8] sm:$0xff] %v511
                %v513 = vld [vmem:[%s271 + $0x740] sm:$0xff]
                %514 = vst [vmem:[%s272 + $0x3c0] sm:$0xff] %v513
                %v515 = vld [vmem:[%s271 + $0x748] sm:$0xff]
                %516 = vst [vmem:[%s272 + $0x3c8] sm:$0xff] %v515
                %v517 = vld [vmem:[%s271 + $0x750] sm:$0xff]
                %518 = vst [vmem:[%s272 + $0x3d0] sm:$0xff] %v517
                %v519 = vld [vmem:[%s271 + $0x758] sm:$0xff]
                %520 = vst [vmem:[%s272 + $0x3d8] sm:$0xff] %v519
                %v521 = vld [vmem:[%s271 + $0x760] sm:$0xff]
                %522 = vst [vmem:[%s272 + $0x3e0] sm:$0xff] %v521
                %v523 = vld [vmem:[%s271 + $0x768] sm:$0xff]
                %524 = vst [vmem:[%s272 + $0x3e8] sm:$0xff] %v523
                %v525 = vld [vmem:[%s271 + $0x770] sm:$0xff]
                %526 = vst [vmem:[%s272 + $0x3f0] sm:$0xff] %v525
                %v527 = vld [vmem:[%s271 + $0x778] sm:$0xff]
                %528 = vst [vmem:[%s272 + $0x3f8] sm:$0xff] %v527
              $region61: #{tpu_custom_call.1} parent=55 // loop_footer
                %s270 = sadd.s32 1, %s266
              $region62: #{tpu_custom_call.1} parent=55 // loop_footer_branch
                %265 = sbr.rel target = $region58
              $region63: #{tpu_custom_call.1} parent=55 // loop_exit
                _
            $region56: #{tpu_custom_call.1} parent=47 // pred_fallthru
              _
          $region48: #{tpu_custom_call.1} parent=43 // pred_fallthru
            _
          %797 = vnop
        $region44: #{tpu_custom_call.1} parent=39 // pred_fallthru
          _
      $region40: #{tpu_custom_call.1} parent=5 // pred_fallthru
        _
      %p798 = scmp.le.s32.totalorder 1, %s16
      %p799 = scmp.lt.s32.totalorder %s16, 5
      %p800 = pnand %p798, %p799
      %p801 = pneg %p800
      // Predicated region
      $region79: #{tpu_custom_call.1} parent=5 // pred_check
        _
      $region80: #{tpu_custom_call.1} parent=5 // pred_check_branch
        %803 = sbr.rel (%p800) target = $region82
      $region81: #{tpu_custom_call.1} parent=5 // pred_region
        %s804 = ssub.s32 %s16, 1
        %s805 = sand.u32 %s43, 1
        %s806 = sand.u32 %s43, 1
        %s807 = smul.addr %s806, 1024
        %s808 = scalar_lea.vmem [#allocation2], %s807
        // Predicated region
        $region83: #{tpu_custom_call.1} parent=81 // pred_check
          %p809 = pneg %p56
        $region84: #{tpu_custom_call.1} parent=81 // pred_check_branch
          %811 = sbr.rel (%p809) target = $region86
        $region85: #{tpu_custom_call.1} parent=81 // pred_region
          _
        $region86: #{tpu_custom_call.1} parent=81 // pred_fallthru
          _
        %s812 = sand.u32 %s43, 1
        %s813 = sand.u32 %s43, 1
        %s814 = smul.addr %s813, 1024
        %s815 = scalar_lea.vmem [#allocation2], %s814
        %p816 = pneg %p56
        %p817 = pneg %p53
        %p818 = pneg %p77
        %p819 = pneg %p74
        %p820 = pneg %p98
        %p821 = pneg %p95
        %p822 = pneg %p119
        %p823 = pneg %p116
        %p824 = pneg %p140
        %p825 = pneg %p137
        %p826 = pneg %p161
        %p827 = pneg %p158
        %p828 = pneg %p182
        %p829 = pneg %p179
        %p830 = pneg %p208
        %p831 = pneg %p205
        %s832 = sand.u32 %s195, 1
        %s833 = scalar_lea.sflag [#allocation4], %s832
        %s834 = sand.u32 %s195, 1
        %s835 = smul.addr %s834, 64
        %s836 = scalar_lea.vmem [#allocation3], %s835
        %s837 = smul.u32 8, %s25
        %s838 = smul.u32 16, %s26
        %v840 = vld [vmem:[%s808] sm:$0xff]
        %v841 = vld [vmem:[%s808 + $0x8] sm:$0xff]
        %v842 = vld [vmem:[%s808 + $0x10] sm:$0xff]
        %v843 = vld [vmem:[%s808 + $0x18] sm:$0xff]
        %v844 = vld [vmem:[%s808 + $0x20] sm:$0xff]
        %v845 = vld [vmem:[%s808 + $0x28] sm:$0xff]
        %v846 = vld [vmem:[%s808 + $0x30] sm:$0xff]
        %v847 = vld [vmem:[%s808 + $0x38] sm:$0xff]
        %v848 = vld [vmem:[%s808 + $0x40] sm:$0xff]
        %v849 = vld [vmem:[%s808 + $0x48] sm:$0xff]
        %v850 = vld [vmem:[%s808 + $0x50] sm:$0xff]
        %v851 = vld [vmem:[%s808 + $0x58] sm:$0xff]
        %v852 = vld [vmem:[%s808 + $0x60] sm:$0xff]
        %v853 = vld [vmem:[%s808 + $0x68] sm:$0xff]
        %v854 = vld [vmem:[%s808 + $0x70] sm:$0xff]
        %v855 = vld [vmem:[%s808 + $0x78] sm:$0xff]
        %v856 = vld [vmem:[%s808 + $0x80] sm:$0xff]
        %v857 = vld [vmem:[%s808 + $0x88] sm:$0xff]
        %v858 = vld [vmem:[%s808 + $0x90] sm:$0xff]
        %v859 = vld [vmem:[%s808 + $0x98] sm:$0xff]
        %v860 = vld [vmem:[%s808 + $0xa0] sm:$0xff]
        %v861 = vld [vmem:[%s808 + $0xa8] sm:$0xff]
        %v862 = vld [vmem:[%s808 + $0xb0] sm:$0xff]
        %v863 = vld [vmem:[%s808 + $0xb8] sm:$0xff]
        %v864 = vld [vmem:[%s808 + $0xc0] sm:$0xff]
        %v865 = vld [vmem:[%s808 + $0xc8] sm:$0xff]
        %v866 = vld [vmem:[%s808 + $0xd0] sm:$0xff]
        %v867 = vld [vmem:[%s808 + $0xd8] sm:$0xff]
        %v868 = vld [vmem:[%s808 + $0xe0] sm:$0xff]
        %v869 = vld [vmem:[%s808 + $0xe8] sm:$0xff]
        %v870 = vld [vmem:[%s808 + $0xf0] sm:$0xff]
        %v871 = vld [vmem:[%s808 + $0xf8] sm:$0xff]
        %v872 = vld [vmem:[%s808 + $0x100] sm:$0xff]
        %v873 = vld [vmem:[%s808 + $0x108] sm:$0xff]
        %v874 = vld [vmem:[%s808 + $0x110] sm:$0xff]
        %v875 = vld [vmem:[%s808 + $0x118] sm:$0xff]
        %v876 = vld [vmem:[%s808 + $0x120] sm:$0xff]
        %v877 = vld [vmem:[%s808 + $0x128] sm:$0xff]
        %v878 = vld [vmem:[%s808 + $0x130] sm:$0xff]
        %v879 = vld [vmem:[%s808 + $0x138] sm:$0xff]
        %v880 = vld [vmem:[%s808 + $0x140] sm:$0xff]
        %v881 = vld [vmem:[%s808 + $0x148] sm:$0xff]
        %v882 = vld [vmem:[%s808 + $0x150] sm:$0xff]
        %v883 = vld [vmem:[%s808 + $0x158] sm:$0xff]
        %v884 = vld [vmem:[%s808 + $0x160] sm:$0xff]
        %v885 = vld [vmem:[%s808 + $0x168] sm:$0xff]
        %v886 = vld [vmem:[%s808 + $0x170] sm:$0xff]
        %v887 = vld [vmem:[%s808 + $0x178] sm:$0xff]
        %v888 = vld [vmem:[%s808 + $0x180] sm:$0xff]
        %v889 = vld [vmem:[%s808 + $0x188] sm:$0xff]
        %v890 = vld [vmem:[%s808 + $0x190] sm:$0xff]
        %v891 = vld [vmem:[%s808 + $0x198] sm:$0xff]
        %v892 = vld [vmem:[%s808 + $0x1a0] sm:$0xff]
        %v893 = vld [vmem:[%s808 + $0x1a8] sm:$0xff]
        %v894 = vld [vmem:[%s808 + $0x1b0] sm:$0xff]
        %v895 = vld [vmem:[%s808 + $0x1b8] sm:$0xff]
        %v896 = vld [vmem:[%s808 + $0x1c0] sm:$0xff]
        %v897 = vld [vmem:[%s808 + $0x1c8] sm:$0xff]
        %v898 = vld [vmem:[%s808 + $0x1d0] sm:$0xff]
        %v899 = vld [vmem:[%s808 + $0x1d8] sm:$0xff]
        %v900 = vld [vmem:[%s808 + $0x1e0] sm:$0xff]
        %v901 = vld [vmem:[%s808 + $0x1e8] sm:$0xff]
        %v902 = vld [vmem:[%s808 + $0x1f0] sm:$0xff]
        %v903 = vld [vmem:[%s808 + $0x1f8] sm:$0xff]
        %v904 = vld [vmem:[%s808 + $0x200] sm:$0xff]
        %v905 = vld [vmem:[%s808 + $0x208] sm:$0xff]
        %v906 = vld [vmem:[%s808 + $0x210] sm:$0xff]
        %v907 = vld [vmem:[%s808 + $0x218] sm:$0xff]
        %v908 = vld [vmem:[%s808 + $0x220] sm:$0xff]
        %v909 = vld [vmem:[%s808 + $0x228] sm:$0xff]
        %v910 = vld [vmem:[%s808 + $0x230] sm:$0xff]
        %v911 = vld [vmem:[%s808 + $0x238] sm:$0xff]
        %v912 = vld [vmem:[%s808 + $0x240] sm:$0xff]
        %v913 = vld [vmem:[%s808 + $0x248] sm:$0xff]
        %v914 = vld [vmem:[%s808 + $0x250] sm:$0xff]
        %v915 = vld [vmem:[%s808 + $0x258] sm:$0xff]
        %v916 = vld [vmem:[%s808 + $0x260] sm:$0xff]
        %v917 = vld [vmem:[%s808 + $0x268] sm:$0xff]
        %v918 = vld [vmem:[%s808 + $0x270] sm:$0xff]
        %v919 = vld [vmem:[%s808 + $0x278] sm:$0xff]
        %v920 = vld [vmem:[%s808 + $0x280] sm:$0xff]
        %v921 = vld [vmem:[%s808 + $0x288] sm:$0xff]
        %v922 = vld [vmem:[%s808 + $0x290] sm:$0xff]
        %v923 = vld [vmem:[%s808 + $0x298] sm:$0xff]
        %v924 = vld [vmem:[%s808 + $0x2a0] sm:$0xff]
        %v925 = vld [vmem:[%s808 + $0x2a8] sm:$0xff]
        %v926 = vld [vmem:[%s808 + $0x2b0] sm:$0xff]
        %v927 = vld [vmem:[%s808 + $0x2b8] sm:$0xff]
        %v928 = vld [vmem:[%s808 + $0x2c0] sm:$0xff]
        %v929 = vld [vmem:[%s808 + $0x2c8] sm:$0xff]
        %v930 = vld [vmem:[%s808 + $0x2d0] sm:$0xff]
        %v931 = vld [vmem:[%s808 + $0x2d8] sm:$0xff]
        %v932 = vld [vmem:[%s808 + $0x2e0] sm:$0xff]
        %v933 = vld [vmem:[%s808 + $0x2e8] sm:$0xff]
        %v934 = vld [vmem:[%s808 + $0x2f0] sm:$0xff]
        %v935 = vld [vmem:[%s808 + $0x2f8] sm:$0xff]
        %v936 = vld [vmem:[%s808 + $0x300] sm:$0xff]
        %v937 = vld [vmem:[%s808 + $0x308] sm:$0xff]
        %v938 = vld [vmem:[%s808 + $0x310] sm:$0xff]
        %v939 = vld [vmem:[%s808 + $0x318] sm:$0xff]
        %v940 = vld [vmem:[%s808 + $0x320] sm:$0xff]
        %v941 = vld [vmem:[%s808 + $0x328] sm:$0xff]
        %v942 = vld [vmem:[%s808 + $0x330] sm:$0xff]
        %v943 = vld [vmem:[%s808 + $0x338] sm:$0xff]
        %v944 = vld [vmem:[%s808 + $0x340] sm:$0xff]
        %v945 = vld [vmem:[%s808 + $0x348] sm:$0xff]
        %v946 = vld [vmem:[%s808 + $0x350] sm:$0xff]
        %v947 = vld [vmem:[%s808 + $0x358] sm:$0xff]
        %v948 = vld [vmem:[%s808 + $0x360] sm:$0xff]
        %v949 = vld [vmem:[%s808 + $0x368] sm:$0xff]
        %v950 = vld [vmem:[%s808 + $0x370] sm:$0xff]
        %v951 = vld [vmem:[%s808 + $0x378] sm:$0xff]
        %v952 = vld [vmem:[%s808 + $0x380] sm:$0xff]
        %v953 = vld [vmem:[%s808 + $0x388] sm:$0xff]
        %v954 = vld [vmem:[%s808 + $0x390] sm:$0xff]
        %v955 = vld [vmem:[%s808 + $0x398] sm:$0xff]
        %v956 = vld [vmem:[%s808 + $0x3a0] sm:$0xff]
        %v957 = vld [vmem:[%s808 + $0x3a8] sm:$0xff]
        %v958 = vld [vmem:[%s808 + $0x3b0] sm:$0xff]
        %v959 = vld [vmem:[%s808 + $0x3b8] sm:$0xff]
        %v960 = vld [vmem:[%s808 + $0x3c0] sm:$0xff]
        %v961 = vld [vmem:[%s808 + $0x3c8] sm:$0xff]
        %v962 = vld [vmem:[%s808 + $0x3d0] sm:$0xff]
        %v963 = vld [vmem:[%s808 + $0x3d8] sm:$0xff]
        %v964 = vld [vmem:[%s808 + $0x3e0] sm:$0xff]
        %v965 = vld [vmem:[%s808 + $0x3e8] sm:$0xff]
        %v966 = vld [vmem:[%s808 + $0x3f0] sm:$0xff]
        %v967 = vld [vmem:[%s808 + $0x3f8] sm:$0xff]
        %v968 = vld [vmem:[%s1] sm:$0xff]
        %v969 = vld [vmem:[%s2] sm:$0x1]
        %v971 = vlaneseq
        %v972 = vshrl.u32 %v971, 7
        %v973 = vsub.s32 0, %v972
        %v974 = vrot.slane %v969, %v973
        %vm976 = vcmask 64512
        %v978 = vsel %vm976, %v840, 0
        %v981 = vsel %vm976, %v841, 0
        %v984 = vsel %vm976, %v842, 0
        %v987 = vsel %vm976, %v843, 0
        %v990 = vsel %vm976, %v844, 0
        %v993 = vsel %vm976, %v845, 0
        %v996 = vsel %vm976, %v846, 0
        %v999 = vsel %vm976, %v847, 0
        %v1002 = vsel %vm976, %v848, 0
        %v1005 = vsel %vm976, %v849, 0
        %v1008 = vsel %vm976, %v850, 0
        %v1011 = vsel %vm976, %v851, 0
        %v1014 = vsel %vm976, %v852, 0
        %v1017 = vsel %vm976, %v853, 0
        %v1020 = vsel %vm976, %v854, 0
        %v1023 = vsel %vm976, %v855, 0
        %v1026 = vsel %vm976, %v856, 0
        %v1029 = vsel %vm976, %v857, 0
        %v1032 = vsel %vm976, %v858, 0
        %v1035 = vsel %vm976, %v859, 0
        %v1038 = vsel %vm976, %v860, 0
        %v1041 = vsel %vm976, %v861, 0
        %v1044 = vsel %vm976, %v862, 0
        %v1047 = vsel %vm976, %v863, 0
        %v1050 = vsel %vm976, %v864, 0
        %v1053 = vsel %vm976, %v865, 0
        %v1056 = vsel %vm976, %v866, 0
        %v1059 = vsel %vm976, %v867, 0
        %v1062 = vsel %vm976, %v868, 0
        %v1065 = vsel %vm976, %v869, 0
        %v1068 = vsel %vm976, %v870, 0
        %v1071 = vsel %vm976, %v871, 0
        %v1074 = vsel %vm976, %v872, 0
        %v1077 = vsel %vm976, %v873, 0
        %v1080 = vsel %vm976, %v874, 0
        %v1083 = vsel %vm976, %v875, 0
        %v1086 = vsel %vm976, %v876, 0
        %v1089 = vsel %vm976, %v877, 0
        %v1092 = vsel %vm976, %v878, 0
        %v1095 = vsel %vm976, %v879, 0
        %v1098 = vsel %vm976, %v880, 0
        %v1101 = vsel %vm976, %v881, 0
        %v1104 = vsel %vm976, %v882, 0
        %v1107 = vsel %vm976, %v883, 0
        %v1110 = vsel %vm976, %v884, 0
        %v1113 = vsel %vm976, %v885, 0
        %v1116 = vsel %vm976, %v886, 0
        %v1119 = vsel %vm976, %v887, 0
        %v1122 = vsel %vm976, %v888, 0
        %v1125 = vsel %vm976, %v889, 0
        %v1128 = vsel %vm976, %v890, 0
        %v1131 = vsel %vm976, %v891, 0
        %v1134 = vsel %vm976, %v892, 0
        %v1137 = vsel %vm976, %v893, 0
        %v1140 = vsel %vm976, %v894, 0
        %v1143 = vsel %vm976, %v895, 0
        %v1146 = vsel %vm976, %v896, 0
        %v1149 = vsel %vm976, %v897, 0
        %v1152 = vsel %vm976, %v898, 0
        %v1155 = vsel %vm976, %v899, 0
        %v1158 = vsel %vm976, %v900, 0
        %v1161 = vsel %vm976, %v901, 0
        %v1164 = vsel %vm976, %v902, 0
        %v1167 = vsel %vm976, %v903, 0
        %v1170 = vsel %vm976, %v904, 0
        %v1173 = vsel %vm976, %v905, 0
        %v1176 = vsel %vm976, %v906, 0
        %v1179 = vsel %vm976, %v907, 0
        %v1182 = vsel %vm976, %v908, 0
        %v1185 = vsel %vm976, %v909, 0
        %v1188 = vsel %vm976, %v910, 0
        %v1191 = vsel %vm976, %v911, 0
        %v1194 = vsel %vm976, %v912, 0
        %v1197 = vsel %vm976, %v913, 0
        %v1200 = vsel %vm976, %v914, 0
        %v1203 = vsel %vm976, %v915, 0
        %v1206 = vsel %vm976, %v916, 0
        %v1209 = vsel %vm976, %v917, 0
        %v1212 = vsel %vm976, %v918, 0
        %v1215 = vsel %vm976, %v919, 0
        %v1218 = vsel %vm976, %v920, 0
        %v1221 = vsel %vm976, %v921, 0
        %v1224 = vsel %vm976, %v922, 0
        %v1227 = vsel %vm976, %v923, 0
        %v1230 = vsel %vm976, %v924, 0
        %v1233 = vsel %vm976, %v925, 0
        %v1236 = vsel %vm976, %v926, 0
        %v1239 = vsel %vm976, %v927, 0
        %v1242 = vsel %vm976, %v928, 0
        %v1245 = vsel %vm976, %v929, 0
        %v1248 = vsel %vm976, %v930, 0
        %v1251 = vsel %vm976, %v931, 0
        %v1254 = vsel %vm976, %v932, 0
        %v1257 = vsel %vm976, %v933, 0
        %v1260 = vsel %vm976, %v934, 0
        %v1263 = vsel %vm976, %v935, 0
        %v1266 = vsel %vm976, %v936, 0
        %v1269 = vsel %vm976, %v937, 0
        %v1272 = vsel %vm976, %v938, 0
        %v1275 = vsel %vm976, %v939, 0
        %v1278 = vsel %vm976, %v940, 0
        %v1281 = vsel %vm976, %v941, 0
        %v1284 = vsel %vm976, %v942, 0
        %v1287 = vsel %vm976, %v943, 0
        %v1290 = vsel %vm976, %v944, 0
        %v1293 = vsel %vm976, %v945, 0
        %v1296 = vsel %vm976, %v946, 0
        %v1299 = vsel %vm976, %v947, 0
        %v1302 = vsel %vm976, %v948, 0
        %v1305 = vsel %vm976, %v949, 0
        %v1308 = vsel %vm976, %v950, 0
        %v1311 = vsel %vm976, %v951, 0
        %v1314 = vsel %vm976, %v952, 0
        %v1317 = vsel %vm976, %v953, 0
        %v1320 = vsel %vm976, %v954, 0
        %v1323 = vsel %vm976, %v955, 0
        %v1326 = vsel %vm976, %v956, 0
        %v1329 = vsel %vm976, %v957, 0
        %v1332 = vsel %vm976, %v958, 0
        %v1335 = vsel %vm976, %v959, 0
        %v1338 = vsel %vm976, %v960, 0
        %v1341 = vsel %vm976, %v961, 0
        %v1344 = vsel %vm976, %v962, 0
        %v1347 = vsel %vm976, %v963, 0
        %v1350 = vsel %vm976, %v964, 0
        %v1353 = vsel %vm976, %v965, 0
        %v1356 = vsel %vm976, %v966, 0
        %v1359 = vsel %vm976, %v967, 0
        %1361 = vmatprep.subr.mxu0 0.0
        %1362 = vmatpush1.msra.mxu0 %v968
        %1363 = vmatprep.subr.mxu0 0.0
        %1364 = vmatpush1.msra.mxu0 0.0
        %1365 = vmatprep.subr.mxu0 0.0
        %1366 = vmatpush1.msra.mxu0 0.0
        %1367 = vmatprep.subr.mxu0 0.0
        %1368 = vmatpush1.msra.mxu0 0.0
        %1369 = vmatprep.subr.mxu0 0.0
        %1370 = vmatpush1.msra.mxu0 0.0
        %1371 = vmatprep.subr.mxu0 0.0
        %1372 = vmatpush1.msra.mxu0 0.0
        %1373 = vmatprep.subr.mxu0 0.0
        %1374 = vmatpush1.msra.mxu0 0.0
        %1375 = vmatprep.subr.mxu0 0.0
        %1376 = vmatpush1.msra.mxu0 0.0
        %1377 = vmatprep.subr.mxu0 0.0
        %1378 = vmatpush1.msra.mxu0 0.0
        %1379 = vmatprep.subr.mxu0 0.0
        %1380 = vmatpush1.msra.mxu0 0.0
        %1381 = vmatprep.subr.mxu0 0.0
        %1382 = vmatpush1.msra.mxu0 0.0
        %1383 = vmatprep.subr.mxu0 0.0
        %1384 = vmatpush1.msra.mxu0 0.0
        %1385 = vmatprep.subr.mxu0 0.0
        %1386 = vmatpush1.msra.mxu0 0.0
        %1387 = vmatprep.subr.mxu0 0.0
        %1388 = vmatpush1.msra.mxu0 0.0
        %1389 = vmatprep.subr.mxu0 0.0
        %1390 = vmatpush1.msra.mxu0 0.0
        %1391 = vmatprep.subr.mxu0 0.0
        %1392 = vmatpush1.msra.mxu0 0.0
        %1393 = vmatprep.subr.mxu0 0.0
        %1394 = vmatpush1.msra.mxu0 0.0
        %1395 = vmatprep.subr.mxu0 0.0
        %1396 = vmatpush1.msra.mxu0 0.0
        %1397 = vmatprep.subr.mxu0 0.0
        %1398 = vmatpush1.msra.mxu0 0.0
        %1399 = vmatprep.subr.mxu0 0.0
        %1400 = vmatpush1.msra.mxu0 0.0
        %1401 = vmatprep.subr.mxu0 0.0
        %1402 = vmatpush1.msra.mxu0 0.0
        %1403 = vmatprep.subr.mxu0 0.0
        %1404 = vmatpush1.msra.mxu0 0.0
        %1405 = vmatprep.subr.mxu0 0.0
        %1406 = vmatpush1.msra.mxu0 0.0
        %1407 = vmatprep.subr.mxu0 0.0
        %1408 = vmatpush1.msra.mxu0 0.0
        %1409 = vmatprep.subr.mxu0 0.0
        %1410 = vmatpush1.msra.mxu0 0.0
        %1411 = vmatprep.subr.mxu0 0.0
        %1412 = vmatpush1.msra.mxu0 0.0
        %1413 = vmatprep.subr.mxu0 0.0
        %1414 = vmatpush1.msra.mxu0 0.0
        %1415 = vmatprep.subr.mxu0 0.0
        %1416 = vmatpush1.msra.mxu0 0.0
        %1417 = vmatprep.subr.mxu0 0.0
        %1418 = vmatpush1.msra.mxu0 0.0
        %1419 = vmatprep.subr.mxu0 0.0
        %1420 = vmatpush1.msra.mxu0 0.0
        %1421 = vmatprep.subr.mxu0 0.0
        %1422 = vmatpush1.msra.mxu0 0.0
        %1423 = vmatprep.subr.mxu0 0.0
        %1424 = vmatpush1.msra.mxu0 0.0
        %1425 = vmatprep.mubr.f32.mxu0 0.0
        %1426 = vmatmul.mubr.f32.gmra.mrb[0].mxu0 %v978
        %v1427 = vpop.f32.mrb[0].mxu0
        %v1428 = vadd.f32 %v974, %v1427
        %v1429 = vpop.f32.mrb[0].mxu0
        %1430 = vmatprep.mubr.f32.mxu0 0.0
        %1431 = vmatmul.mubr.f32.gmra.mrb[0].mxu0 %v981
        %v1432 = vpop.f32.mrb[0].mxu0
        %v1433 = vadd.f32 %v974, %v1432
        %v1434 = vpop.f32.mrb[0].mxu0
        %1435 = vmatprep.mubr.f32.mxu0 0.0
        %1436 = vmatmul.mubr.f32.gmra.mrb[0].mxu0 %v984
        %v1437 = vpop.f32.mrb[0].mxu0
        %v1438 = vadd.f32 %v974, %v1437
        %v1439 = vpop.f32.mrb[0].mxu0
        %1440 = vmatprep.mubr.f32.mxu0 0.0
        %1441 = vmatmul.mubr.f32.gmra.mrb[0].mxu0 %v987
        %v1442 = vpop.f32.mrb[0].mxu0
        %v1443 = vadd.f32 %v974, %v1442
        %v1444 = vpop.f32.mrb[0].mxu0
        %1445 = vmatprep.mubr.f32.mxu0 0.0
        %1446 = vmatmul.mubr.f32.gmra.mrb[0].mxu0 %v990
        %v1447 = vpop.f32.mrb[0].mxu0
        %v1448 = vadd.f32 %v974, %v1447
        %v1449 = vpop.f32.mrb[0].mxu0
        %1450 = vmatprep.mubr.f32.mxu0 0.0
        %1451 = vmatmul.mubr.f32.gmra.mrb[0].mxu0 %v993
        %v1452 = vpop.f32.mrb[0].mxu0
        %v1453 = vadd.f32 %v974, %v1452
        %v1454 = vpop.f32.mrb[0].mxu0
        %1455 = vmatprep.mubr.f32.mxu0 0.0
        %1456 = vmatmul.mubr.f32.gmra.mrb[0].mxu0 %v996
        %v1457 = vpop.f32.mrb[0].mxu0
        %v1458 = vadd.f32 %v974, %v1457
        %v1459 = vpop.f32.mrb[0].mxu0
        %1460 = vmatprep.mubr.f32.mxu0 0.0
        %1461 = vmatmul.mubr.f32.gmra.mrb[0].mxu0 %v999
        %v1462 = vpop.f32.mrb[0].mxu0
        %v1463 = vadd.f32 %v974, %v1462
        %v1464 = vpop.f32.mrb[0].mxu0
        %1465 = vmatprep.mubr.f32.mxu0 0.0
        %1466 = vmatmul.mubr.f32.gmra.mrb[0].mxu0 %v1002
        %v1467 = vpop.f32.mrb[0].mxu0
        %v1468 = vadd.f32 %v974, %v1467
        %v1469 = vpop.f32.mrb[0].mxu0
        %1470 = vmatprep.mubr.f32.mxu0 0.0
        %1471 = vmatmul.mubr.f32.gmra.mrb[0].mxu0 %v1005
        %v1472 = vpop.f32.mrb[0].mxu0
        %v1473 = vadd.f32 %v974, %v1472
        %v1474 = vpop.f32.mrb[0].mxu0
        %1475 = vmatprep.mubr.f32.mxu0 0.0
        %1476 = vmatmul.mubr.f32.gmra.mrb[0].mxu0 %v1008
        %v1477 = vpop.f32.mrb[0].mxu0
        %v1478 = vadd.f32 %v974, %v1477
        %v1479 = vpop.f32.mrb[0].mxu0
        %1480 = vmatprep.mubr.f32.mxu0 0.0
        %1481 = vmatmul.mubr.f32.gmra.mrb[0].mxu0 %v1011
        %v1482 = vpop.f32.mrb[0].mxu0
        %v1483 = vadd.f32 %v974, %v1482
        %v1484 = vpop.f32.mrb[0].mxu0
        %1485 = vmatprep.mubr.f32.mxu0 0.0
        %1486 = vmatmul.mubr.f32.gmra.mrb[0].mxu0 %v1014
        %v1487 = vpop.f32.mrb[0].mxu0
        %v1488 = vadd.f32 %v974, %v1487
        %v1489 = vpop.f32.mrb[0].mxu0
        %1490 = vmatprep.mubr.f32.mxu0 0.0
        %1491 = vmatmul.mubr.f32.gmra.mrb[0].mxu0 %v1017
        %v1492 = vpop.f32.mrb[0].mxu0
        %v1493 = vadd.f32 %v974, %v1492
        %v1494 = vpop.f32.mrb[0].mxu0
        %1495 = vmatprep.mubr.f32.mxu0 0.0
        %1496 = vmatmul.mubr.f32.gmra.mrb[0].mxu0 %v1020
        %v1497 = vpop.f32.mrb[0].mxu0
        %v1498 = vadd.f32 %v974, %v1497
        %v1499 = vpop.f32.mrb[0].mxu0
        %1500 = vmatprep.mubr.f32.mxu0 0.0
        %1501 = vmatmul.mubr.f32.gmra.mrb[0].mxu0 %v1023
        %v1502 = vpop.f32.mrb[0].mxu0
        %v1503 = vadd.f32 %v974, %v1502
        %v1504 = vpop.f32.mrb[0].mxu0
        %1505 = vmatprep.mubr.f32.mxu0 0.0
        %1506 = vmatmul.mubr.f32.gmra.mrb[0].mxu0 %v1026
        %v1507 = vpop.f32.mrb[0].mxu0
        %v1508 = vadd.f32 %v974, %v1507
        %v1509 = vpop.f32.mrb[0].mxu0
        %1510 = vmatprep.mubr.f32.mxu0 0.0
        %1511 = vmatmul.mubr.f32.gmra.mrb[0].mxu0 %v1029
        %v1512 = vpop.f32.mrb[0].mxu0
        %v1513 = vadd.f32 %v974, %v1512
        %v1514 = vpop.f32.mrb[0].mxu0
        %1515 = vmatprep.mubr.f32.mxu0 0.0
        %1516 = vmatmul.mubr.f32.gmra.mrb[0].mxu0 %v1032
        %v1517 = vpop.f32.mrb[0].mxu0
        %v1518 = vadd.f32 %v974, %v1517
        %v1519 = vpop.f32.mrb[0].mxu0
        %1520 = vmatprep.mubr.f32.mxu0 0.0
        %1521 = vmatmul.mubr.f32.gmra.mrb[0].mxu0 %v1035
        %v1522 = vpop.f32.mrb[0].mxu0
        %v1523 = vadd.f32 %v974, %v1522
        %v1524 = vpop.f32.mrb[0].mxu0
        %1525 = vmatprep.mubr.f32.mxu0 0.0
        %1526 = vmatmul.mubr.f32.gmra.mrb[0].mxu0 %v1038
        %v1527 = vpop.f32.mrb[0].mxu0
        %v1528 = vadd.f32 %v974, %v1527
        %v1529 = vpop.f32.mrb[0].mxu0
        %1530 = vmatprep.mubr.f32.mxu0 0.0
        %1531 = vmatmul.mubr.f32.gmra.mrb[0].mxu0 %v1041
        %v1532 = vpop.f32.mrb[0].mxu0
        %v1533 = vadd.f32 %v974, %v1532
        %v1534 = vpop.f32.mrb[0].mxu0
        %1535 = vmatprep.mubr.f32.mxu0 0.0
        %1536 = vmatmul.mubr.f32.gmra.mrb[0].mxu0 %v1044
        %v1537 = vpop.f32.mrb[0].mxu0
        %v1538 = vadd.f32 %v974, %v1537
        %v1539 = vpop.f32.mrb[0].mxu0
        %1540 = vmatprep.mubr.f32.mxu0 0.0
        %1541 = vmatmul.mubr.f32.gmra.mrb[0].mxu0 %v1047
        %v1542 = vpop.f32.mrb[0].mxu0
        %v1543 = vadd.f32 %v974, %v1542
        %v1544 = vpop.f32.mrb[0].mxu0
        %1545 = vmatprep.mubr.f32.mxu0 0.0
        %1546 = vmatmul.mubr.f32.gmra.mrb[0].mxu0 %v1050
        %v1547 = vpop.f32.mrb[0].mxu0
        %v1548 = vadd.f32 %v974, %v1547
        %v1549 = vpop.f32.mrb[0].mxu0
        %1550 = vmatprep.mubr.f32.mxu0 0.0
        %1551 = vmatmul.mubr.f32.gmra.mrb[0].mxu0 %v1053
        %v1552 = vpop.f32.mrb[0].mxu0
        %v1553 = vadd.f32 %v974, %v1552
        %v1554 = vpop.f32.mrb[0].mxu0
        %1555 = vmatprep.mubr.f32.mxu0 0.0
        %1556 = vmatmul.mubr.f32.gmra.mrb[0].mxu0 %v1056
        %v1557 = vpop.f32.mrb[0].mxu0
        %v1558 = vadd.f32 %v974, %v1557
        %v1559 = vpop.f32.mrb[0].mxu0
        %1560 = vmatprep.mubr.f32.mxu0 0.0
        %1561 = vmatmul.mubr.f32.gmra.mrb[0].mxu0 %v1059
        %v1562 = vpop.f32.mrb[0].mxu0
        %v1563 = vadd.f32 %v974, %v1562
        %v1564 = vpop.f32.mrb[0].mxu0
        %1565 = vmatprep.mubr.f32.mxu0 0.0
        %1566 = vmatmul.mubr.f32.gmra.mrb[0].mxu0 %v1062
        %v1567 = vpop.f32.mrb[0].mxu0
        %v1568 = vadd.f32 %v974, %v1567
        %v1569 = vpop.f32.mrb[0].mxu0
        %1570 = vmatprep.mubr.f32.mxu0 0.0
        %1571 = vmatmul.mubr.f32.gmra.mrb[0].mxu0 %v1065
        %v1572 = vpop.f32.mrb[0].mxu0
        %v1573 = vadd.f32 %v974, %v1572
        %v1574 = vpop.f32.mrb[0].mxu0
        %1575 = vmatprep.mubr.f32.mxu0 0.0
        %1576 = vmatmul.mubr.f32.gmra.mrb[0].mxu0 %v1068
        %v1577 = vpop.f32.mrb[0].mxu0
        %v1578 = vadd.f32 %v974, %v1577
        %v1579 = vpop.f32.mrb[0].mxu0
        %1580 = vmatprep.mubr.f32.mxu0 0.0
        %1581 = vmatmul.mubr.f32.gmra.mrb[0].mxu0 %v1071
        %v1582 = vpop.f32.mrb[0].mxu0
        %v1583 = vadd.f32 %v974, %v1582
        %v1584 = vpop.f32.mrb[0].mxu0
        %1585 = vmatprep.mubr.f32.mxu0 0.0
        %1586 = vmatmul.mubr.f32.gmra.mrb[0].mxu0 %v1074
        %v1587 = vpop.f32.mrb[0].mxu0
        %v1588 = vadd.f32 %v974, %v1587
        %v1589 = vpop.f32.mrb[0].mxu0
        %1590 = vmatprep.mubr.f32.mxu0 0.0
        %1591 = vmatmul.mubr.f32.gmra.mrb[0].mxu0 %v1077
        %v1592 = vpop.f32.mrb[0].mxu0
        %v1593 = vadd.f32 %v974, %v1592
        %v1594 = vpop.f32.mrb[0].mxu0
        %1595 = vmatprep.mubr.f32.mxu0 0.0
        %1596 = vmatmul.mubr.f32.gmra.mrb[0].mxu0 %v1080
        %v1597 = vpop.f32.mrb[0].mxu0
        %v1598 = vadd.f32 %v974, %v1597
        %v1599 = vpop.f32.mrb[0].mxu0
        %1600 = vmatprep.mubr.f32.mxu0 0.0
        %1601 = vmatmul.mubr.f32.gmra.mrb[0].mxu0 %v1083
        %v1602 = vpop.f32.mrb[0].mxu0
        %v1603 = vadd.f32 %v974, %v1602
        %v1604 = vpop.f32.mrb[0].mxu0
        %1605 = vmatprep.mubr.f32.mxu0 0.0
        %1606 = vmatmul.mubr.f32.gmra.mrb[0].mxu0 %v1086
        %v1607 = vpop.f32.mrb[0].mxu0
        %v1608 = vadd.f32 %v974, %v1607
        %v1609 = vpop.f32.mrb[0].mxu0
        %1610 = vmatprep.mubr.f32.mxu0 0.0
        %1611 = vmatmul.mubr.f32.gmra.mrb[0].mxu0 %v1089
        %v1612 = vpop.f32.mrb[0].mxu0
        %v1613 = vadd.f32 %v974, %v1612
        %v1614 = vpop.f32.mrb[0].mxu0
        %1615 = vmatprep.mubr.f32.mxu0 0.0
        %1616 = vmatmul.mubr.f32.gmra.mrb[0].mxu0 %v1092
        %v1617 = vpop.f32.mrb[0].mxu0
        %v1618 = vadd.f32 %v974, %v1617
        %v1619 = vpop.f32.mrb[0].mxu0
        %1620 = vmatprep.mubr.f32.mxu0 0.0
        %1621 = vmatmul.mubr.f32.gmra.mrb[0].mxu0 %v1095
        %v1622 = vpop.f32.mrb[0].mxu0
        %v1623 = vadd.f32 %v974, %v1622
        %v1624 = vpop.f32.mrb[0].mxu0
        %1625 = vmatprep.mubr.f32.mxu0 0.0
        %1626 = vmatmul.mubr.f32.gmra.mrb[0].mxu0 %v1098
        %v1627 = vpop.f32.mrb[0].mxu0
        %v1628 = vadd.f32 %v974, %v1627
        %v1629 = vpop.f32.mrb[0].mxu0
        %1630 = vmatprep.mubr.f32.mxu0 0.0
        %1631 = vmatmul.mubr.f32.gmra.mrb[0].mxu0 %v1101
        %v1632 = vpop.f32.mrb[0].mxu0
        %v1633 = vadd.f32 %v974, %v1632
        %v1634 = vpop.f32.mrb[0].mxu0
        %1635 = vmatprep.mubr.f32.mxu0 0.0
        %1636 = vmatmul.mubr.f32.gmra.mrb[0].mxu0 %v1104
        %v1637 = vpop.f32.mrb[0].mxu0
        %v1638 = vadd.f32 %v974, %v1637
        %v1639 = vpop.f32.mrb[0].mxu0
        %1640 = vmatprep.mubr.f32.mxu0 0.0
        %1641 = vmatmul.mubr.f32.gmra.mrb[0].mxu0 %v1107
        %v1642 = vpop.f32.mrb[0].mxu0
        %v1643 = vadd.f32 %v974, %v1642
        %v1644 = vpop.f32.mrb[0].mxu0
        %1645 = vmatprep.mubr.f32.mxu0 0.0
        %1646 = vmatmul.mubr.f32.gmra.mrb[0].mxu0 %v1110
        %v1647 = vpop.f32.mrb[0].mxu0
        %v1648 = vadd.f32 %v974, %v1647
        %v1649 = vpop.f32.mrb[0].mxu0
        %1650 = vmatprep.mubr.f32.mxu0 0.0
        %1651 = vmatmul.mubr.f32.gmra.mrb[0].mxu0 %v1113
        %v1652 = vpop.f32.mrb[0].mxu0
        %v1653 = vadd.f32 %v974, %v1652
        %v1654 = vpop.f32.mrb[0].mxu0
        %1655 = vmatprep.mubr.f32.mxu0 0.0
        %1656 = vmatmul.mubr.f32.gmra.mrb[0].mxu0 %v1116
        %v1657 = vpop.f32.mrb[0].mxu0
        %v1658 = vadd.f32 %v974, %v1657
        %v1659 = vpop.f32.mrb[0].mxu0
        %1660 = vmatprep.mubr.f32.mxu0 0.0
        %1661 = vmatmul.mubr.f32.gmra.mrb[0].mxu0 %v1119
        %v1662 = vpop.f32.mrb[0].mxu0
        %v1663 = vadd.f32 %v974, %v1662
        %v1664 = vpop.f32.mrb[0].mxu0
        %1665 = vmatprep.mubr.f32.mxu0 0.0
        %1666 = vmatmul.mubr.f32.gmra.mrb[0].mxu0 %v1122
        %v1667 = vpop.f32.mrb[0].mxu0
        %v1668 = vadd.f32 %v974, %v1667
        %v1669 = vpop.f32.mrb[0].mxu0
        %1670 = vmatprep.mubr.f32.mxu0 0.0
        %1671 = vmatmul.mubr.f32.gmra.mrb[0].mxu0 %v1125
        %v1672 = vpop.f32.mrb[0].mxu0
        %v1673 = vadd.f32 %v974, %v1672
        %v1674 = vpop.f32.mrb[0].mxu0
        %1675 = vmatprep.mubr.f32.mxu0 0.0
        %1676 = vmatmul.mubr.f32.gmra.mrb[0].mxu0 %v1128
        %v1677 = vpop.f32.mrb[0].mxu0
        %v1678 = vadd.f32 %v974, %v1677
        %v1679 = vpop.f32.mrb[0].mxu0
        %1680 = vmatprep.mubr.f32.mxu0 0.0
        %1681 = vmatmul.mubr.f32.gmra.mrb[0].mxu0 %v1131
        %v1682 = vpop.f32.mrb[0].mxu0
        %v1683 = vadd.f32 %v974, %v1682
        %v1684 = vpop.f32.mrb[0].mxu0
        %1685 = vmatprep.mubr.f32.mxu0 0.0
        %1686 = vmatmul.mubr.f32.gmra.mrb[0].mxu0 %v1134
        %v1687 = vpop.f32.mrb[0].mxu0
        %v1688 = vadd.f32 %v974, %v1687
        %v1689 = vpop.f32.mrb[0].mxu0
        %1690 = vmatprep.mubr.f32.mxu0 0.0
        %1691 = vmatmul.mubr.f32.gmra.mrb[0].mxu0 %v1137
        %v1692 = vpop.f32.mrb[0].mxu0
        %v1693 = vadd.f32 %v974, %v1692
        %v1694 = vpop.f32.mrb[0].mxu0
        %1695 = vmatprep.mubr.f32.mxu0 0.0
        %1696 = vmatmul.mubr.f32.gmra.mrb[0].mxu0 %v1140
        %v1697 = vpop.f32.mrb[0].mxu0
        %v1698 = vadd.f32 %v974, %v1697
        %v1699 = vpop.f32.mrb[0].mxu0
        %1700 = vmatprep.mubr.f32.mxu0 0.0
        %1701 = vmatmul.mubr.f32.gmra.mrb[0].mxu0 %v1143
        %v1702 = vpop.f32.mrb[0].mxu0
        %v1703 = vadd.f32 %v974, %v1702
        %v1704 = vpop.f32.mrb[0].mxu0
        %1705 = vmatprep.mubr.f32.mxu0 0.0
        %1706 = vmatmul.mubr.f32.gmra.mrb[0].mxu0 %v1146
        %v1707 = vpop.f32.mrb[0].mxu0
        %v1708 = vadd.f32 %v974, %v1707
        %v1709 = vpop.f32.mrb[0].mxu0
        %1710 = vmatprep.mubr.f32.mxu0 0.0
        %1711 = vmatmul.mubr.f32.gmra.mrb[0].mxu0 %v1149
        %v1712 = vpop.f32.mrb[0].mxu0
        %v1713 = vadd.f32 %v974, %v1712
        %v1714 = vpop.f32.mrb[0].mxu0
        %1715 = vmatprep.mubr.f32.mxu0 0.0
        %1716 = vmatmul.mubr.f32.gmra.mrb[0].mxu0 %v1152
        %v1717 = vpop.f32.mrb[0].mxu0
        %v1718 = vadd.f32 %v974, %v1717
        %v1719 = vpop.f32.mrb[0].mxu0
        %1720 = vmatprep.mubr.f32.mxu0 0.0
        %1721 = vmatmul.mubr.f32.gmra.mrb[0].mxu0 %v1155
        %v1722 = vpop.f32.mrb[0].mxu0
        %v1723 = vadd.f32 %v974, %v1722
        %v1724 = vpop.f32.mrb[0].mxu0
        %1725 = vmatprep.mubr.f32.mxu0 0.0
        %1726 = vmatmul.mubr.f32.gmra.mrb[0].mxu0 %v1158
        %v1727 = vpop.f32.mrb[0].mxu0
        %v1728 = vadd.f32 %v974, %v1727
        %v1729 = vpop.f32.mrb[0].mxu0
        %1730 = vmatprep.mubr.f32.mxu0 0.0
        %1731 = vmatmul.mubr.f32.gmra.mrb[0].mxu0 %v1161
        %v1732 = vpop.f32.mrb[0].mxu0
        %v1733 = vadd.f32 %v974, %v1732
        %v1734 = vpop.f32.mrb[0].mxu0
        %1735 = vmatprep.mubr.f32.mxu0 0.0
        %1736 = vmatmul.mubr.f32.gmra.mrb[0].mxu0 %v1164
        %v1737 = vpop.f32.mrb[0].mxu0
        %v1738 = vadd.f32 %v974, %v1737
        %v1739 = vpop.f32.mrb[0].mxu0
        %1740 = vmatprep.mubr.f32.mxu0 0.0
        %1741 = vmatmul.mubr.f32.gmra.mrb[0].mxu0 %v1167
        %v1742 = vpop.f32.mrb[0].mxu0
        %v1743 = vadd.f32 %v974, %v1742
        %v1744 = vpop.f32.mrb[0].mxu0
        %1745 = vmatprep.mubr.f32.mxu0 0.0
        %1746 = vmatmul.mubr.f32.gmra.mrb[0].mxu0 %v1170
        %v1747 = vpop.f32.mrb[0].mxu0
        %v1748 = vadd.f32 %v974, %v1747
        %v1749 = vpop.f32.mrb[0].mxu0
        %1750 = vmatprep.mubr.f32.mxu0 0.0
        %1751 = vmatmul.mubr.f32.gmra.mrb[0].mxu0 %v1173
        %v1752 = vpop.f32.mrb[0].mxu0
        %v1753 = vadd.f32 %v974, %v1752
        %v1754 = vpop.f32.mrb[0].mxu0
        %1755 = vmatprep.mubr.f32.mxu0 0.0
        %1756 = vmatmul.mubr.f32.gmra.mrb[0].mxu0 %v1176
        %v1757 = vpop.f32.mrb[0].mxu0
        %v1758 = vadd.f32 %v974, %v1757
        %v1759 = vpop.f32.mrb[0].mxu0
        %1760 = vmatprep.mubr.f32.mxu0 0.0
        %1761 = vmatmul.mubr.f32.gmra.mrb[0].mxu0 %v1179
        %v1762 = vpop.f32.mrb[0].mxu0
        %v1763 = vadd.f32 %v974, %v1762
        %v1764 = vpop.f32.mrb[0].mxu0
        %1765 = vmatprep.mubr.f32.mxu0 0.0
        %1766 = vmatmul.mubr.f32.gmra.mrb[0].mxu0 %v1182
        %v1767 = vpop.f32.mrb[0].mxu0
        %v1768 = vadd.f32 %v974, %v1767
        %v1769 = vpop.f32.mrb[0].mxu0
        %1770 = vmatprep.mubr.f32.mxu0 0.0
        %1771 = vmatmul.mubr.f32.gmra.mrb[0].mxu0 %v1185
        %v1772 = vpop.f32.mrb[0].mxu0
        %v1773 = vadd.f32 %v974, %v1772
        %v1774 = vpop.f32.mrb[0].mxu0
        %1775 = vmatprep.mubr.f32.mxu0 0.0
        %1776 = vmatmul.mubr.f32.gmra.mrb[0].mxu0 %v1188
        %v1777 = vpop.f32.mrb[0].mxu0
        %v1778 = vadd.f32 %v974, %v1777
        %v1779 = vpop.f32.mrb[0].mxu0
        %1780 = vmatprep.mubr.f32.mxu0 0.0
        %1781 = vmatmul.mubr.f32.gmra.mrb[0].mxu0 %v1191
        %v1782 = vpop.f32.mrb[0].mxu0
        %v1783 = vadd.f32 %v974, %v1782
        %v1784 = vpop.f32.mrb[0].mxu0
        %1785 = vmatprep.mubr.f32.mxu0 0.0
        %1786 = vmatmul.mubr.f32.gmra.mrb[0].mxu0 %v1194
        %v1787 = vpop.f32.mrb[0].mxu0
        %v1788 = vadd.f32 %v974, %v1787
        %v1789 = vpop.f32.mrb[0].mxu0
        %1790 = vmatprep.mubr.f32.mxu0 0.0
        %1791 = vmatmul.mubr.f32.gmra.mrb[0].mxu0 %v1197
        %v1792 = vpop.f32.mrb[0].mxu0
        %v1793 = vadd.f32 %v974, %v1792
        %v1794 = vpop.f32.mrb[0].mxu0
        %1795 = vmatprep.mubr.f32.mxu0 0.0
        %1796 = vmatmul.mubr.f32.gmra.mrb[0].mxu0 %v1200
        %v1797 = vpop.f32.mrb[0].mxu0
        %v1798 = vadd.f32 %v974, %v1797
        %v1799 = vpop.f32.mrb[0].mxu0
        %1800 = vmatprep.mubr.f32.mxu0 0.0
        %1801 = vmatmul.mubr.f32.gmra.mrb[0].mxu0 %v1203
        %v1802 = vpop.f32.mrb[0].mxu0
        %v1803 = vadd.f32 %v974, %v1802
        %v1804 = vpop.f32.mrb[0].mxu0
        %1805 = vmatprep.mubr.f32.mxu0 0.0
        %1806 = vmatmul.mubr.f32.gmra.mrb[0].mxu0 %v1206
        %v1807 = vpop.f32.mrb[0].mxu0
        %v1808 = vadd.f32 %v974, %v1807
        %v1809 = vpop.f32.mrb[0].mxu0
        %1810 = vmatprep.mubr.f32.mxu0 0.0
        %1811 = vmatmul.mubr.f32.gmra.mrb[0].mxu0 %v1209
        %v1812 = vpop.f32.mrb[0].mxu0
        %v1813 = vadd.f32 %v974, %v1812
        %v1814 = vpop.f32.mrb[0].mxu0
        %1815 = vmatprep.mubr.f32.mxu0 0.0
        %1816 = vmatmul.mubr.f32.gmra.mrb[0].mxu0 %v1212
        %v1817 = vpop.f32.mrb[0].mxu0
        %v1818 = vadd.f32 %v974, %v1817
        %v1819 = vpop.f32.mrb[0].mxu0
        %1820 = vmatprep.mubr.f32.mxu0 0.0
        %1821 = vmatmul.mubr.f32.gmra.mrb[0].mxu0 %v1215
        %v1822 = vpop.f32.mrb[0].mxu0
        %v1823 = vadd.f32 %v974, %v1822
        %v1824 = vpop.f32.mrb[0].mxu0
        %1825 = vmatprep.mubr.f32.mxu0 0.0
        %1826 = vmatmul.mubr.f32.gmra.mrb[0].mxu0 %v1218
        %v1827 = vpop.f32.mrb[0].mxu0
        %v1828 = vadd.f32 %v974, %v1827
        %v1829 = vpop.f32.mrb[0].mxu0
        %1830 = vmatprep.mubr.f32.mxu0 0.0
        %1831 = vmatmul.mubr.f32.gmra.mrb[0].mxu0 %v1221
        %v1832 = vpop.f32.mrb[0].mxu0
        %v1833 = vadd.f32 %v974, %v1832
        %v1834 = vpop.f32.mrb[0].mxu0
        %1835 = vmatprep.mubr.f32.mxu0 0.0
        %1836 = vmatmul.mubr.f32.gmra.mrb[0].mxu0 %v1224
        %v1837 = vpop.f32.mrb[0].mxu0
        %v1838 = vadd.f32 %v974, %v1837
        %v1839 = vpop.f32.mrb[0].mxu0
        %1840 = vmatprep.mubr.f32.mxu0 0.0
        %1841 = vmatmul.mubr.f32.gmra.mrb[0].mxu0 %v1227
        %v1842 = vpop.f32.mrb[0].mxu0
        %v1843 = vadd.f32 %v974, %v1842
        %v1844 = vpop.f32.mrb[0].mxu0
        %1845 = vmatprep.mubr.f32.mxu0 0.0
        %1846 = vmatmul.mubr.f32.gmra.mrb[0].mxu0 %v1230
        %v1847 = vpop.f32.mrb[0].mxu0
        %v1848 = vadd.f32 %v974, %v1847
        %v1849 = vpop.f32.mrb[0].mxu0
        %1850 = vmatprep.mubr.f32.mxu0 0.0
        %1851 = vmatmul.mubr.f32.gmra.mrb[0].mxu0 %v1233
        %v1852 = vpop.f32.mrb[0].mxu0
        %v1853 = vadd.f32 %v974, %v1852
        %v1854 = vpop.f32.mrb[0].mxu0
        %1855 = vmatprep.mubr.f32.mxu0 0.0
        %1856 = vmatmul.mubr.f32.gmra.mrb[0].mxu0 %v1236
        %v1857 = vpop.f32.mrb[0].mxu0
        %v1858 = vadd.f32 %v974, %v1857
        %v1859 = vpop.f32.mrb[0].mxu0
        %1860 = vmatprep.mubr.f32.mxu0 0.0
        %1861 = vmatmul.mubr.f32.gmra.mrb[0].mxu0 %v1239
        %v1862 = vpop.f32.mrb[0].mxu0
        %v1863 = vadd.f32 %v974, %v1862
        %v1864 = vpop.f32.mrb[0].mxu0
        %1865 = vmatprep.mubr.f32.mxu0 0.0
        %1866 = vmatmul.mubr.f32.gmra.mrb[0].mxu0 %v1242
        %v1867 = vpop.f32.mrb[0].mxu0
        %v1868 = vadd.f32 %v974, %v1867
        %v1869 = vpop.f32.mrb[0].mxu0
        %1870 = vmatprep.mubr.f32.mxu0 0.0
        %1871 = vmatmul.mubr.f32.gmra.mrb[0].mxu0 %v1245
        %v1872 = vpop.f32.mrb[0].mxu0
        %v1873 = vadd.f32 %v974, %v1872
        %v1874 = vpop.f32.mrb[0].mxu0
        %1875 = vmatprep.mubr.f32.mxu0 0.0
        %1876 = vmatmul.mubr.f32.gmra.mrb[0].mxu0 %v1248
        %v1877 = vpop.f32.mrb[0].mxu0
        %v1878 = vadd.f32 %v974, %v1877
        %v1879 = vpop.f32.mrb[0].mxu0
        %1880 = vmatprep.mubr.f32.mxu0 0.0
        %1881 = vmatmul.mubr.f32.gmra.mrb[0].mxu0 %v1251
        %v1882 = vpop.f32.mrb[0].mxu0
        %v1883 = vadd.f32 %v974, %v1882
        %v1884 = vpop.f32.mrb[0].mxu0
        %1885 = vmatprep.mubr.f32.mxu0 0.0
        %1886 = vmatmul.mubr.f32.gmra.mrb[0].mxu0 %v1254
        %v1887 = vpop.f32.mrb[0].mxu0
        %v1888 = vadd.f32 %v974, %v1887
        %v1889 = vpop.f32.mrb[0].mxu0
        %1890 = vmatprep.mubr.f32.mxu0 0.0
        %1891 = vmatmul.mubr.f32.gmra.mrb[0].mxu0 %v1257
        %v1892 = vpop.f32.mrb[0].mxu0
        %v1893 = vadd.f32 %v974, %v1892
        %v1894 = vpop.f32.mrb[0].mxu0
        %1895 = vmatprep.mubr.f32.mxu0 0.0
        %1896 = vmatmul.mubr.f32.gmra.mrb[0].mxu0 %v1260
        %v1897 = vpop.f32.mrb[0].mxu0
        %v1898 = vadd.f32 %v974, %v1897
        %v1899 = vpop.f32.mrb[0].mxu0
        %1900 = vmatprep.mubr.f32.mxu0 0.0
        %1901 = vmatmul.mubr.f32.gmra.mrb[0].mxu0 %v1263
        %v1902 = vpop.f32.mrb[0].mxu0
        %v1903 = vadd.f32 %v974, %v1902
        %v1904 = vpop.f32.mrb[0].mxu0
        %1905 = vmatprep.mubr.f32.mxu0 0.0
        %1906 = vmatmul.mubr.f32.gmra.mrb[0].mxu0 %v1266
        %v1907 = vpop.f32.mrb[0].mxu0
        %v1908 = vadd.f32 %v974, %v1907
        %v1909 = vpop.f32.mrb[0].mxu0
        %1910 = vmatprep.mubr.f32.mxu0 0.0
        %1911 = vmatmul.mubr.f32.gmra.mrb[0].mxu0 %v1269
        %v1912 = vpop.f32.mrb[0].mxu0
        %v1913 = vadd.f32 %v974, %v1912
        %v1914 = vpop.f32.mrb[0].mxu0
        %1915 = vmatprep.mubr.f32.mxu0 0.0
        %1916 = vmatmul.mubr.f32.gmra.mrb[0].mxu0 %v1272
        %v1917 = vpop.f32.mrb[0].mxu0
        %v1918 = vadd.f32 %v974, %v1917
        %v1919 = vpop.f32.mrb[0].mxu0
        %1920 = vmatprep.mubr.f32.mxu0 0.0
        %1921 = vmatmul.mubr.f32.gmra.mrb[0].mxu0 %v1275
        %v1922 = vpop.f32.mrb[0].mxu0
        %v1923 = vadd.f32 %v974, %v1922
        %v1924 = vpop.f32.mrb[0].mxu0
        %1925 = vmatprep.mubr.f32.mxu0 0.0
        %1926 = vmatmul.mubr.f32.gmra.mrb[0].mxu0 %v1278
        %v1927 = vpop.f32.mrb[0].mxu0
        %v1928 = vadd.f32 %v974, %v1927
        %v1929 = vpop.f32.mrb[0].mxu0
        %1930 = vmatprep.mubr.f32.mxu0 0.0
        %1931 = vmatmul.mubr.f32.gmra.mrb[0].mxu0 %v1281
        %v1932 = vpop.f32.mrb[0].mxu0
        %v1933 = vadd.f32 %v974, %v1932
        %v1934 = vpop.f32.mrb[0].mxu0
        %1935 = vmatprep.mubr.f32.mxu0 0.0
        %1936 = vmatmul.mubr.f32.gmra.mrb[0].mxu0 %v1284
        %v1937 = vpop.f32.mrb[0].mxu0
        %v1938 = vadd.f32 %v974, %v1937
        %v1939 = vpop.f32.mrb[0].mxu0
        %1940 = vmatprep.mubr.f32.mxu0 0.0
        %1941 = vmatmul.mubr.f32.gmra.mrb[0].mxu0 %v1287
        %v1942 = vpop.f32.mrb[0].mxu0
        %v1943 = vadd.f32 %v974, %v1942
        %v1944 = vpop.f32.mrb[0].mxu0
        %1945 = vmatprep.mubr.f32.mxu0 0.0
        %1946 = vmatmul.mubr.f32.gmra.mrb[0].mxu0 %v1290
        %v1947 = vpop.f32.mrb[0].mxu0
        %v1948 = vadd.f32 %v974, %v1947
        %v1949 = vpop.f32.mrb[0].mxu0
        %1950 = vmatprep.mubr.f32.mxu0 0.0
        %1951 = vmatmul.mubr.f32.gmra.mrb[0].mxu0 %v1293
        %v1952 = vpop.f32.mrb[0].mxu0
        %v1953 = vadd.f32 %v974, %v1952
        %v1954 = vpop.f32.mrb[0].mxu0
        %1955 = vmatprep.mubr.f32.mxu0 0.0
        %1956 = vmatmul.mubr.f32.gmra.mrb[0].mxu0 %v1296
        %v1957 = vpop.f32.mrb[0].mxu0
        %v1958 = vadd.f32 %v974, %v1957
        %v1959 = vpop.f32.mrb[0].mxu0
        %1960 = vmatprep.mubr.f32.mxu0 0.0
        %1961 = vmatmul.mubr.f32.gmra.mrb[0].mxu0 %v1299
        %v1962 = vpop.f32.mrb[0].mxu0
        %v1963 = vadd.f32 %v974, %v1962
        %v1964 = vpop.f32.mrb[0].mxu0
        %1965 = vmatprep.mubr.f32.mxu0 0.0
        %1966 = vmatmul.mubr.f32.gmra.mrb[0].mxu0 %v1302
        %v1967 = vpop.f32.mrb[0].mxu0
        %v1968 = vadd.f32 %v974, %v1967
        %v1969 = vpop.f32.mrb[0].mxu0
        %1970 = vmatprep.mubr.f32.mxu0 0.0
        %1971 = vmatmul.mubr.f32.gmra.mrb[0].mxu0 %v1305
        %v1972 = vpop.f32.mrb[0].mxu0
        %v1973 = vadd.f32 %v974, %v1972
        %v1974 = vpop.f32.mrb[0].mxu0
        %1975 = vmatprep.mubr.f32.mxu0 0.0
        %1976 = vmatmul.mubr.f32.gmra.mrb[0].mxu0 %v1308
        %v1977 = vpop.f32.mrb[0].mxu0
        %v1978 = vadd.f32 %v974, %v1977
        %v1979 = vpop.f32.mrb[0].mxu0
        %1980 = vmatprep.mubr.f32.mxu0 0.0
        %1981 = vmatmul.mubr.f32.gmra.mrb[0].mxu0 %v1311
        %v1982 = vpop.f32.mrb[0].mxu0
        %v1983 = vadd.f32 %v974, %v1982
        %v1984 = vpop.f32.mrb[0].mxu0
        %1985 = vmatprep.mubr.f32.mxu0 0.0
        %1986 = vmatmul.mubr.f32.gmra.mrb[0].mxu0 %v1314
        %v1987 = vpop.f32.mrb[0].mxu0
        %v1988 = vadd.f32 %v974, %v1987
        %v1989 = vpop.f32.mrb[0].mxu0
        %1990 = vmatprep.mubr.f32.mxu0 0.0
        %1991 = vmatmul.mubr.f32.gmra.mrb[0].mxu0 %v1317
        %v1992 = vpop.f32.mrb[0].mxu0
        %v1993 = vadd.f32 %v974, %v1992
        %v1994 = vpop.f32.mrb[0].mxu0
        %1995 = vmatprep.mubr.f32.mxu0 0.0
        %1996 = vmatmul.mubr.f32.gmra.mrb[0].mxu0 %v1320
        %v1997 = vpop.f32.mrb[0].mxu0
        %v1998 = vadd.f32 %v974, %v1997
        %v1999 = vpop.f32.mrb[0].mxu0
        %2000 = vmatprep.mubr.f32.mxu0 0.0
        %2001 = vmatmul.mubr.f32.gmra.mrb[0].mxu0 %v1323
        %v2002 = vpop.f32.mrb[0].mxu0
        %v2003 = vadd.f32 %v974, %v2002
        %v2004 = vpop.f32.mrb[0].mxu0
        %2005 = vmatprep.mubr.f32.mxu0 0.0
        %2006 = vmatmul.mubr.f32.gmra.mrb[0].mxu0 %v1326
        %v2007 = vpop.f32.mrb[0].mxu0
        %v2008 = vadd.f32 %v974, %v2007
        %v2009 = vpop.f32.mrb[0].mxu0
        %2010 = vmatprep.mubr.f32.mxu0 0.0
        %2011 = vmatmul.mubr.f32.gmra.mrb[0].mxu0 %v1329
        %v2012 = vpop.f32.mrb[0].mxu0
        %v2013 = vadd.f32 %v974, %v2012
        %v2014 = vpop.f32.mrb[0].mxu0
        %2015 = vmatprep.mubr.f32.mxu0 0.0
        %2016 = vmatmul.mubr.f32.gmra.mrb[0].mxu0 %v1332
        %v2017 = vpop.f32.mrb[0].mxu0
        %v2018 = vadd.f32 %v974, %v2017
        %v2019 = vpop.f32.mrb[0].mxu0
        %2020 = vmatprep.mubr.f32.mxu0 0.0
        %2021 = vmatmul.mubr.f32.gmra.mrb[0].mxu0 %v1335
        %v2022 = vpop.f32.mrb[0].mxu0
        %v2023 = vadd.f32 %v974, %v2022
        %v2024 = vpop.f32.mrb[0].mxu0
        %2025 = vmatprep.mubr.f32.mxu0 0.0
        %2026 = vmatmul.mubr.f32.gmra.mrb[0].mxu0 %v1338
        %v2027 = vpop.f32.mrb[0].mxu0
        %v2028 = vadd.f32 %v974, %v2027
        %v2029 = vpop.f32.mrb[0].mxu0
        %2030 = vmatprep.mubr.f32.mxu0 0.0
        %2031 = vmatmul.mubr.f32.gmra.mrb[0].mxu0 %v1341
        %v2032 = vpop.f32.mrb[0].mxu0
        %v2033 = vadd.f32 %v974, %v2032
        %v2034 = vpop.f32.mrb[0].mxu0
        %2035 = vmatprep.mubr.f32.mxu0 0.0
        %2036 = vmatmul.mubr.f32.gmra.mrb[0].mxu0 %v1344
        %v2037 = vpop.f32.mrb[0].mxu0
        %v2038 = vadd.f32 %v974, %v2037
        %v2039 = vpop.f32.mrb[0].mxu0
        %2040 = vmatprep.mubr.f32.mxu0 0.0
        %2041 = vmatmul.mubr.f32.gmra.mrb[0].mxu0 %v1347
        %v2042 = vpop.f32.mrb[0].mxu0
        %v2043 = vadd.f32 %v974, %v2042
        %v2044 = vpop.f32.mrb[0].mxu0
        %2045 = vmatprep.mubr.f32.mxu0 0.0
        %2046 = vmatmul.mubr.f32.gmra.mrb[0].mxu0 %v1350
        %v2047 = vpop.f32.mrb[0].mxu0
        %v2048 = vadd.f32 %v974, %v2047
        %v2049 = vpop.f32.mrb[0].mxu0
        %2050 = vmatprep.mubr.f32.mxu0 0.0
        %2051 = vmatmul.mubr.f32.gmra.mrb[0].mxu0 %v1353
        %v2052 = vpop.f32.mrb[0].mxu0
        %v2053 = vadd.f32 %v974, %v2052
        %v2054 = vpop.f32.mrb[0].mxu0
        %2055 = vmatprep.mubr.f32.mxu0 0.0
        %2056 = vmatmul.mubr.f32.gmra.mrb[0].mxu0 %v1356
        %v2057 = vpop.f32.mrb[0].mxu0
        %v2058 = vadd.f32 %v974, %v2057
        %v2059 = vpop.f32.mrb[0].mxu0
        %2060 = vmatprep.mubr.f32.mxu0 0.0
        %2061 = vmatmul.mubr.f32.gmra.mrb[0].mxu0 %v1359
        %v2062 = vpop.f32.mrb[0].mxu0
        %v2063 = vadd.f32 %v974, %v2062
        %v2064 = vpop.f32.mrb[0].mxu0
        %2065 = vdwg.mxu0
        %v2066 = vmax.f32 %v1428, 0.0
        %v2067 = vmax.f32 %v1433, 0.0
        %v2068 = vmax.f32 %v1438, 0.0
        %v2069 = vmax.f32 %v1443, 0.0
        %v2070 = vmax.f32 %v1448, 0.0
        %v2071 = vmax.f32 %v1453, 0.0
        %v2072 = vmax.f32 %v1458, 0.0
        %v2073 = vmax.f32 %v1463, 0.0
        %v2074 = vmax.f32 %v1468, 0.0
        %v2075 = vmax.f32 %v1473, 0.0
        %v2076 = vmax.f32 %v1478, 0.0
        %v2077 = vmax.f32 %v1483, 0.0
        %v2078 = vmax.f32 %v1488, 0.0
        %v2079 = vmax.f32 %v1493, 0.0
        %v2080 = vmax.f32 %v1498, 0.0
        %v2081 = vmax.f32 %v1503, 0.0
        %v2082 = vmax.f32 %v1508, 0.0
        %v2083 = vmax.f32 %v1513, 0.0
        %v2084 = vmax.f32 %v1518, 0.0
        %v2085 = vmax.f32 %v1523, 0.0
        %v2086 = vmax.f32 %v1528, 0.0
        %v2087 = vmax.f32 %v1533, 0.0
        %v2088 = vmax.f32 %v1538, 0.0
        %v2089 = vmax.f32 %v1543, 0.0
        %v2090 = vmax.f32 %v1548, 0.0
        %v2091 = vmax.f32 %v1553, 0.0
        %v2092 = vmax.f32 %v1558, 0.0
        %v2093 = vmax.f32 %v1563, 0.0
        %v2094 = vmax.f32 %v1568, 0.0
        %v2095 = vmax.f32 %v1573, 0.0
        %v2096 = vmax.f32 %v1578, 0.0
        %v2097 = vmax.f32 %v1583, 0.0
        %v2098 = vmax.f32 %v1588, 0.0
        %v2099 = vmax.f32 %v1593, 0.0
        %v2100 = vmax.f32 %v1598, 0.0
        %v2101 = vmax.f32 %v1603, 0.0
        %v2102 = vmax.f32 %v1608, 0.0
        %v2103 = vmax.f32 %v1613, 0.0
        %v2104 = vmax.f32 %v1618, 0.0
        %v2105 = vmax.f32 %v1623, 0.0
        %v2106 = vmax.f32 %v1628, 0.0
        %v2107 = vmax.f32 %v1633, 0.0
        %v2108 = vmax.f32 %v1638, 0.0
        %v2109 = vmax.f32 %v1643, 0.0
        %v2110 = vmax.f32 %v1648, 0.0
        %v2111 = vmax.f32 %v1653, 0.0
        %v2112 = vmax.f32 %v1658, 0.0
        %v2113 = vmax.f32 %v1663, 0.0
        %v2114 = vmax.f32 %v1668, 0.0
        %v2115 = vmax.f32 %v1673, 0.0
        %v2116 = vmax.f32 %v1678, 0.0
        %v2117 = vmax.f32 %v1683, 0.0
        %v2118 = vmax.f32 %v1688, 0.0
        %v2119 = vmax.f32 %v1693, 0.0
        %v2120 = vmax.f32 %v1698, 0.0
        %v2121 = vmax.f32 %v1703, 0.0
        %v2122 = vmax.f32 %v1708, 0.0
        %v2123 = vmax.f32 %v1713, 0.0
        %v2124 = vmax.f32 %v1718, 0.0
        %v2125 = vmax.f32 %v1723, 0.0
        %v2126 = vmax.f32 %v1728, 0.0
        %v2127 = vmax.f32 %v1733, 0.0
        %v2128 = vmax.f32 %v1738, 0.0
        %v2129 = vmax.f32 %v1743, 0.0
        %v2130 = vmax.f32 %v1748, 0.0
        %v2131 = vmax.f32 %v1753, 0.0
        %v2132 = vmax.f32 %v1758, 0.0
        %v2133 = vmax.f32 %v1763, 0.0
        %v2134 = vmax.f32 %v1768, 0.0
        %v2135 = vmax.f32 %v1773, 0.0
        %v2136 = vmax.f32 %v1778, 0.0
        %v2137 = vmax.f32 %v1783, 0.0
        %v2138 = vmax.f32 %v1788, 0.0
        %v2139 = vmax.f32 %v1793, 0.0
        %v2140 = vmax.f32 %v1798, 0.0
        %v2141 = vmax.f32 %v1803, 0.0
        %v2142 = vmax.f32 %v1808, 0.0
        %v2143 = vmax.f32 %v1813, 0.0
        %v2144 = vmax.f32 %v1818, 0.0
        %v2145 = vmax.f32 %v1823, 0.0
        %v2146 = vmax.f32 %v1828, 0.0
        %v2147 = vmax.f32 %v1833, 0.0
        %v2148 = vmax.f32 %v1838, 0.0
        %v2149 = vmax.f32 %v1843, 0.0
        %v2150 = vmax.f32 %v1848, 0.0
        %v2151 = vmax.f32 %v1853, 0.0
        %v2152 = vmax.f32 %v1858, 0.0
        %v2153 = vmax.f32 %v1863, 0.0
        %v2154 = vmax.f32 %v1868, 0.0
        %v2155 = vmax.f32 %v1873, 0.0
        %v2156 = vmax.f32 %v1878, 0.0
        %v2157 = vmax.f32 %v1883, 0.0
        %v2158 = vmax.f32 %v1888, 0.0
        %v2159 = vmax.f32 %v1893, 0.0
        %v2160 = vmax.f32 %v1898, 0.0
        %v2161 = vmax.f32 %v1903, 0.0
        %v2162 = vmax.f32 %v1908, 0.0
        %v2163 = vmax.f32 %v1913, 0.0
        %v2164 = vmax.f32 %v1918, 0.0
        %v2165 = vmax.f32 %v1923, 0.0
        %v2166 = vmax.f32 %v1928, 0.0
        %v2167 = vmax.f32 %v1933, 0.0
        %v2168 = vmax.f32 %v1938, 0.0
        %v2169 = vmax.f32 %v1943, 0.0
        %v2170 = vmax.f32 %v1948, 0.0
        %v2171 = vmax.f32 %v1953, 0.0
        %v2172 = vmax.f32 %v1958, 0.0
        %v2173 = vmax.f32 %v1963, 0.0
        %v2174 = vmax.f32 %v1968, 0.0
        %v2175 = vmax.f32 %v1973, 0.0
        %v2176 = vmax.f32 %v1978, 0.0
        %v2177 = vmax.f32 %v1983, 0.0
        %v2178 = vmax.f32 %v1988, 0.0
        %v2179 = vmax.f32 %v1993, 0.0
        %v2180 = vmax.f32 %v1998, 0.0
        %v2181 = vmax.f32 %v2003, 0.0
        %v2182 = vmax.f32 %v2008, 0.0
        %v2183 = vmax.f32 %v2013, 0.0
        %v2184 = vmax.f32 %v2018, 0.0
        %v2185 = vmax.f32 %v2023, 0.0
        %v2186 = vmax.f32 %v2028, 0.0
        %v2187 = vmax.f32 %v2033, 0.0
        %v2188 = vmax.f32 %v2038, 0.0
        %v2189 = vmax.f32 %v2043, 0.0
        %v2190 = vmax.f32 %v2048, 0.0
        %v2191 = vmax.f32 %v2053, 0.0
        %v2192 = vmax.f32 %v2058, 0.0
        %v2193 = vmax.f32 %v2063, 0.0
        %v2194 = vpack.c.bf16 %v2067, %v2066
        %v2195 = vpack.c.bf16 %v2069, %v2068
        %v2196 = vpack.c.bf16 %v2071, %v2070
        %v2197 = vpack.c.bf16 %v2073, %v2072
        %v2198 = vpack.c.bf16 %v2075, %v2074
        %v2199 = vpack.c.bf16 %v2077, %v2076
        %v2200 = vpack.c.bf16 %v2079, %v2078
        %v2201 = vpack.c.bf16 %v2081, %v2080
        %v2202 = vpack.c.bf16 %v2083, %v2082
        %v2203 = vpack.c.bf16 %v2085, %v2084
        %v2204 = vpack.c.bf16 %v2087, %v2086
        %v2205 = vpack.c.bf16 %v2089, %v2088
        %v2206 = vpack.c.bf16 %v2091, %v2090
        %v2207 = vpack.c.bf16 %v2093, %v2092
        %v2208 = vpack.c.bf16 %v2095, %v2094
        %v2209 = vpack.c.bf16 %v2097, %v2096
        %v2210 = vpack.c.bf16 %v2099, %v2098
        %v2211 = vpack.c.bf16 %v2101, %v2100
        %v2212 = vpack.c.bf16 %v2103, %v2102
        %v2213 = vpack.c.bf16 %v2105, %v2104
        %v2214 = vpack.c.bf16 %v2107, %v2106
        %v2215 = vpack.c.bf16 %v2109, %v2108
        %v2216 = vpack.c.bf16 %v2111, %v2110
        %v2217 = vpack.c.bf16 %v2113, %v2112
        %v2218 = vpack.c.bf16 %v2115, %v2114
        %v2219 = vpack.c.bf16 %v2117, %v2116
        %v2220 = vpack.c.bf16 %v2119, %v2118
        %v2221 = vpack.c.bf16 %v2121, %v2120
        %v2222 = vpack.c.bf16 %v2123, %v2122
        %v2223 = vpack.c.bf16 %v2125, %v2124
        %v2224 = vpack.c.bf16 %v2127, %v2126
        %v2225 = vpack.c.bf16 %v2129, %v2128
        %v2226 = vpack.c.bf16 %v2131, %v2130
        %v2227 = vpack.c.bf16 %v2133, %v2132
        %v2228 = vpack.c.bf16 %v2135, %v2134
        %v2229 = vpack.c.bf16 %v2137, %v2136
        %v2230 = vpack.c.bf16 %v2139, %v2138
        %v2231 = vpack.c.bf16 %v2141, %v2140
        %v2232 = vpack.c.bf16 %v2143, %v2142
        %v2233 = vpack.c.bf16 %v2145, %v2144
        %v2234 = vpack.c.bf16 %v2147, %v2146
        %v2235 = vpack.c.bf16 %v2149, %v2148
        %v2236 = vpack.c.bf16 %v2151, %v2150
        %v2237 = vpack.c.bf16 %v2153, %v2152
        %v2238 = vpack.c.bf16 %v2155, %v2154
        %v2239 = vpack.c.bf16 %v2157, %v2156
        %v2240 = vpack.c.bf16 %v2159, %v2158
        %v2241 = vpack.c.bf16 %v2161, %v2160
        %v2242 = vpack.c.bf16 %v2163, %v2162
        %v2243 = vpack.c.bf16 %v2165, %v2164
        %v2244 = vpack.c.bf16 %v2167, %v2166
        %v2245 = vpack.c.bf16 %v2169, %v2168
        %v2246 = vpack.c.bf16 %v2171, %v2170
        %v2247 = vpack.c.bf16 %v2173, %v2172
        %v2248 = vpack.c.bf16 %v2175, %v2174
        %v2249 = vpack.c.bf16 %v2177, %v2176
        %v2250 = vpack.c.bf16 %v2179, %v2178
        %v2251 = vpack.c.bf16 %v2181, %v2180
        %v2252 = vpack.c.bf16 %v2183, %v2182
        %v2253 = vpack.c.bf16 %v2185, %v2184
        %v2254 = vpack.c.bf16 %v2187, %v2186
        %v2255 = vpack.c.bf16 %v2189, %v2188
        %v2256 = vpack.c.bf16 %v2191, %v2190
        %v2257 = vpack.c.bf16 %v2193, %v2192
        %v2258 = vld [vmem:[%s3] sm:$0xf]
        %v2259 = vld [vmem:[%s3 + $0x4] sm:$0xf]
        %v2260 = vld [vmem:[%s3 + $0x8] sm:$0xf]
        %v2261 = vld [vmem:[%s3 + $0xc] sm:$0xf]
        %v2262 = vld [vmem:[%s3 + $0x10] sm:$0xf]
        %v2263 = vld [vmem:[%s3 + $0x14] sm:$0xf]
        %v2264 = vld [vmem:[%s3 + $0x18] sm:$0xf]
        %v2265 = vld [vmem:[%s3 + $0x1c] sm:$0xf]
        %v2266 = vld [vmem:[%s4] sm:$0x1]
        %v2268 = vlaneseq
        %v2269 = vshrl.u32 %v2268, 7
        %v2270 = vsub.s32 0, %v2269
        %v2271 = vrot.slane %v2266, %v2270
        %v2281 = vunpack.c.l.b16 %v2258
        %v2282 = vunpack.c.l.b16 %v2259
        %v2283 = vunpack.c.l.b16 %v2260
        %v2284 = vunpack.c.l.b16 %v2261
        %v2285 = vunpack.c.l.b16 %v2262
        %v2286 = vunpack.c.l.b16 %v2263
        %v2287 = vunpack.c.l.b16 %v2264
        %v2288 = vunpack.c.l.b16 %v2265
        %v2289 = vpack.c.b16 %v2282, %v2281
        %v2290 = vpack.c.b16 %v2284, %v2283
        %v2291 = vpack.c.b16 %v2286, %v2285
        %v2292 = vpack.c.b16 %v2288, %v2287
        %vm2297 = vcmask 523264
        %v2299 = vsel %vm2297, %v2194, 0
        %v2302 = vsel %vm2297, %v2195, 0
        %v2305 = vsel %vm2297, %v2196, 0
        %v2308 = vsel %vm2297, %v2197, 0
        %v2311 = vsel %vm2297, %v2198, 0
        %v2314 = vsel %vm2297, %v2199, 0
        %v2317 = vsel %vm2297, %v2200, 0
        %v2320 = vsel %vm2297, %v2201, 0
        %v2323 = vsel %vm2297, %v2202, 0
        %v2326 = vsel %vm2297, %v2203, 0
        %v2329 = vsel %vm2297, %v2204, 0
        %v2332 = vsel %vm2297, %v2205, 0
        %v2335 = vsel %vm2297, %v2206, 0
        %v2338 = vsel %vm2297, %v2207, 0
        %v2341 = vsel %vm2297, %v2208, 0
        %v2344 = vsel %vm2297, %v2209, 0
        %v2347 = vsel %vm2297, %v2210, 0
        %v2350 = vsel %vm2297, %v2211, 0
        %v2353 = vsel %vm2297, %v2212, 0
        %v2356 = vsel %vm2297, %v2213, 0
        %v2359 = vsel %vm2297, %v2214, 0
        %v2362 = vsel %vm2297, %v2215, 0
        %v2365 = vsel %vm2297, %v2216, 0
        %v2368 = vsel %vm2297, %v2217, 0
        %v2371 = vsel %vm2297, %v2218, 0
        %v2374 = vsel %vm2297, %v2219, 0
        %v2377 = vsel %vm2297, %v2220, 0
        %v2380 = vsel %vm2297, %v2221, 0
        %v2383 = vsel %vm2297, %v2222, 0
        %v2386 = vsel %vm2297, %v2223, 0
        %v2389 = vsel %vm2297, %v2224, 0
        %v2392 = vsel %vm2297, %v2225, 0
        %v2395 = vsel %vm2297, %v2226, 0
        %v2398 = vsel %vm2297, %v2227, 0
        %v2401 = vsel %vm2297, %v2228, 0
        %v2404 = vsel %vm2297, %v2229, 0
        %v2407 = vsel %vm2297, %v2230, 0
        %v2410 = vsel %vm2297, %v2231, 0
        %v2413 = vsel %vm2297, %v2232, 0
        %v2416 = vsel %vm2297, %v2233, 0
        %v2419 = vsel %vm2297, %v2234, 0
        %v2422 = vsel %vm2297, %v2235, 0
        %v2425 = vsel %vm2297, %v2236, 0
        %v2428 = vsel %vm2297, %v2237, 0
        %v2431 = vsel %vm2297, %v2238, 0
        %v2434 = vsel %vm2297, %v2239, 0
        %v2437 = vsel %vm2297, %v2240, 0
        %v2440 = vsel %vm2297, %v2241, 0
        %v2443 = vsel %vm2297, %v2242, 0
        %v2446 = vsel %vm2297, %v2243, 0
        %v2449 = vsel %vm2297, %v2244, 0
        %v2452 = vsel %vm2297, %v2245, 0
        %v2455 = vsel %vm2297, %v2246, 0
        %v2458 = vsel %vm2297, %v2247, 0
        %v2461 = vsel %vm2297, %v2248, 0
        %v2464 = vsel %vm2297, %v2249, 0
        %v2467 = vsel %vm2297, %v2250, 0
        %v2470 = vsel %vm2297, %v2251, 0
        %v2473 = vsel %vm2297, %v2252, 0
        %v2476 = vsel %vm2297, %v2253, 0
        %v2479 = vsel %vm2297, %v2254, 0
        %v2482 = vsel %vm2297, %v2255, 0
        %v2485 = vsel %vm2297, %v2256, 0
        %v2488 = vsel %vm2297, %v2257, 0
        %2490 = vmatprep.subr.bf16.mxu0 0
        %2491 = vmatpush1.bf16.msra.mxu0 %v2289
        %2492 = vmatprep.subr.bf16.mxu0 0
        %2493 = vmatpush1.bf16.msra.mxu0 %v2290
        %2494 = vmatprep.subr.bf16.mxu0 0
        %2495 = vmatpush1.bf16.msra.mxu0 %v2291
        %2496 = vmatprep.subr.bf16.mxu0 0
        %2497 = vmatpush1.bf16.msra.mxu0 %v2292
        %2498 = vmatprep.subr.bf16.mxu0 0
        %2499 = vmatpush1.bf16.msra.mxu0 0
        %2500 = vmatprep.subr.bf16.mxu0 0
        %2501 = vmatpush1.bf16.msra.mxu0 0
        %2502 = vmatprep.subr.bf16.mxu0 0
        %2503 = vmatpush1.bf16.msra.mxu0 0
        %2504 = vmatprep.subr.bf16.mxu0 0
        %2505 = vmatpush1.bf16.msra.mxu0 0
        %2506 = vmatprep.subr.bf16.mxu0 0
        %2507 = vmatpush1.bf16.msra.mxu0 0
        %2508 = vmatprep.subr.bf16.mxu0 0
        %2509 = vmatpush1.bf16.msra.mxu0 0
        %2510 = vmatprep.subr.bf16.mxu0 0
        %2511 = vmatpush1.bf16.msra.mxu0 0
        %2512 = vmatprep.subr.bf16.mxu0 0
        %2513 = vmatpush1.bf16.msra.mxu0 0
        %2514 = vmatprep.subr.bf16.mxu0 0
        %2515 = vmatpush1.bf16.msra.mxu0 0
        %2516 = vmatprep.subr.bf16.mxu0 0
        %2517 = vmatpush1.bf16.msra.mxu0 0
        %2518 = vmatprep.subr.bf16.mxu0 0
        %2519 = vmatpush1.bf16.msra.mxu0 0
        %2520 = vmatprep.subr.bf16.mxu0 0
        %2521 = vmatpush1.bf16.msra.mxu0 0
        %2522 = vmatprep.mubr.bf16.mxu0 0
        %2523 = vmatmul.mubr.bf16.gmra.mrb[0].mxu0 %v2299
        %v2524 = vpop.f32.mrb[0].mxu0
        %v2525 = vadd.f32 %v2271, %v2524
        %v2526 = vpop.f32.mrb[0].mxu0
        %v2527 = vpop.f32.mrb[0].mxu0
        %v2528 = vadd.f32 %v2271, %v2527
        %v2529 = vpop.f32.mrb[0].mxu0
        %2530 = vmatprep.mubr.bf16.mxu0 0
        %2531 = vmatmul.mubr.bf16.gmra.mrb[0].mxu0 %v2302
        %v2532 = vpop.f32.mrb[0].mxu0
        %v2533 = vadd.f32 %v2271, %v2532
        %v2534 = vpop.f32.mrb[0].mxu0
        %v2535 = vpop.f32.mrb[0].mxu0
        %v2536 = vadd.f32 %v2271, %v2535
        %v2537 = vpop.f32.mrb[0].mxu0
        %2538 = vmatprep.mubr.bf16.mxu0 0
        %2539 = vmatmul.mubr.bf16.gmra.mrb[0].mxu0 %v2305
        %v2540 = vpop.f32.mrb[0].mxu0
        %v2541 = vadd.f32 %v2271, %v2540
        %v2542 = vpop.f32.mrb[0].mxu0
        %v2543 = vpop.f32.mrb[0].mxu0
        %v2544 = vadd.f32 %v2271, %v2543
        %v2545 = vpop.f32.mrb[0].mxu0
        %2546 = vmatprep.mubr.bf16.mxu0 0
        %2547 = vmatmul.mubr.bf16.gmra.mrb[0].mxu0 %v2308
        %v2548 = vpop.f32.mrb[0].mxu0
        %v2549 = vadd.f32 %v2271, %v2548
        %v2550 = vpop.f32.mrb[0].mxu0
        %v2551 = vpop.f32.mrb[0].mxu0
        %v2552 = vadd.f32 %v2271, %v2551
        %v2553 = vpop.f32.mrb[0].mxu0
        %2554 = vmatprep.mubr.bf16.mxu0 0
        %2555 = vmatmul.mubr.bf16.gmra.mrb[0].mxu0 %v2311
        %v2556 = vpop.f32.mrb[0].mxu0
        %v2557 = vadd.f32 %v2271, %v2556
        %v2558 = vpop.f32.mrb[0].mxu0
        %v2559 = vpop.f32.mrb[0].mxu0
        %v2560 = vadd.f32 %v2271, %v2559
        %v2561 = vpop.f32.mrb[0].mxu0
        %2562 = vmatprep.mubr.bf16.mxu0 0
        %2563 = vmatmul.mubr.bf16.gmra.mrb[0].mxu0 %v2314
        %v2564 = vpop.f32.mrb[0].mxu0
        %v2565 = vadd.f32 %v2271, %v2564
        %v2566 = vpop.f32.mrb[0].mxu0
        %v2567 = vpop.f32.mrb[0].mxu0
        %v2568 = vadd.f32 %v2271, %v2567
        %v2569 = vpop.f32.mrb[0].mxu0
        %2570 = vmatprep.mubr.bf16.mxu0 0
        %2571 = vmatmul.mubr.bf16.gmra.mrb[0].mxu0 %v2317
        %v2572 = vpop.f32.mrb[0].mxu0
        %v2573 = vadd.f32 %v2271, %v2572
        %v2574 = vpop.f32.mrb[0].mxu0
        %v2575 = vpop.f32.mrb[0].mxu0
        %v2576 = vadd.f32 %v2271, %v2575
        %v2577 = vpop.f32.mrb[0].mxu0
        %2578 = vmatprep.mubr.bf16.mxu0 0
        %2579 = vmatmul.mubr.bf16.gmra.mrb[0].mxu0 %v2320
        %v2580 = vpop.f32.mrb[0].mxu0
        %v2581 = vadd.f32 %v2271, %v2580
        %v2582 = vpop.f32.mrb[0].mxu0
        %v2583 = vpop.f32.mrb[0].mxu0
        %v2584 = vadd.f32 %v2271, %v2583
        %v2585 = vpop.f32.mrb[0].mxu0
        %2586 = vmatprep.mubr.bf16.mxu0 0
        %2587 = vmatmul.mubr.bf16.gmra.mrb[0].mxu0 %v2323
        %v2588 = vpop.f32.mrb[0].mxu0
        %v2589 = vadd.f32 %v2271, %v2588
        %v2590 = vpop.f32.mrb[0].mxu0
        %v2591 = vpop.f32.mrb[0].mxu0
        %v2592 = vadd.f32 %v2271, %v2591
        %v2593 = vpop.f32.mrb[0].mxu0
        %2594 = vmatprep.mubr.bf16.mxu0 0
        %2595 = vmatmul.mubr.bf16.gmra.mrb[0].mxu0 %v2326
        %v2596 = vpop.f32.mrb[0].mxu0
        %v2597 = vadd.f32 %v2271, %v2596
        %v2598 = vpop.f32.mrb[0].mxu0
        %v2599 = vpop.f32.mrb[0].mxu0
        %v2600 = vadd.f32 %v2271, %v2599
        %v2601 = vpop.f32.mrb[0].mxu0
        %2602 = vmatprep.mubr.bf16.mxu0 0
        %2603 = vmatmul.mubr.bf16.gmra.mrb[0].mxu0 %v2329
        %v2604 = vpop.f32.mrb[0].mxu0
        %v2605 = vadd.f32 %v2271, %v2604
        %v2606 = vpop.f32.mrb[0].mxu0
        %v2607 = vpop.f32.mrb[0].mxu0
        %v2608 = vadd.f32 %v2271, %v2607
        %v2609 = vpop.f32.mrb[0].mxu0
        %2610 = vmatprep.mubr.bf16.mxu0 0
        %2611 = vmatmul.mubr.bf16.gmra.mrb[0].mxu0 %v2332
        %v2612 = vpop.f32.mrb[0].mxu0
        %v2613 = vadd.f32 %v2271, %v2612
        %v2614 = vpop.f32.mrb[0].mxu0
        %v2615 = vpop.f32.mrb[0].mxu0
        %v2616 = vadd.f32 %v2271, %v2615
        %v2617 = vpop.f32.mrb[0].mxu0
        %2618 = vmatprep.mubr.bf16.mxu0 0
        %2619 = vmatmul.mubr.bf16.gmra.mrb[0].mxu0 %v2335
        %v2620 = vpop.f32.mrb[0].mxu0
        %v2621 = vadd.f32 %v2271, %v2620
        %v2622 = vpop.f32.mrb[0].mxu0
        %v2623 = vpop.f32.mrb[0].mxu0
        %v2624 = vadd.f32 %v2271, %v2623
        %v2625 = vpop.f32.mrb[0].mxu0
        %2626 = vmatprep.mubr.bf16.mxu0 0
        %2627 = vmatmul.mubr.bf16.gmra.mrb[0].mxu0 %v2338
        %v2628 = vpop.f32.mrb[0].mxu0
        %v2629 = vadd.f32 %v2271, %v2628
        %v2630 = vpop.f32.mrb[0].mxu0
        %v2631 = vpop.f32.mrb[0].mxu0
        %v2632 = vadd.f32 %v2271, %v2631
        %v2633 = vpop.f32.mrb[0].mxu0
        %2634 = vmatprep.mubr.bf16.mxu0 0
        %2635 = vmatmul.mubr.bf16.gmra.mrb[0].mxu0 %v2341
        %v2636 = vpop.f32.mrb[0].mxu0
        %v2637 = vadd.f32 %v2271, %v2636
        %v2638 = vpop.f32.mrb[0].mxu0
        %v2639 = vpop.f32.mrb[0].mxu0
        %v2640 = vadd.f32 %v2271, %v2639
        %v2641 = vpop.f32.mrb[0].mxu0
        %2642 = vmatprep.mubr.bf16.mxu0 0
        %2643 = vmatmul.mubr.bf16.gmra.mrb[0].mxu0 %v2344
        %v2644 = vpop.f32.mrb[0].mxu0
        %v2645 = vadd.f32 %v2271, %v2644
        %v2646 = vpop.f32.mrb[0].mxu0
        %v2647 = vpop.f32.mrb[0].mxu0
        %v2648 = vadd.f32 %v2271, %v2647
        %v2649 = vpop.f32.mrb[0].mxu0
        %2650 = vmatprep.mubr.bf16.mxu0 0
        %2651 = vmatmul.mubr.bf16.gmra.mrb[0].mxu0 %v2347
        %v2652 = vpop.f32.mrb[0].mxu0
        %v2653 = vadd.f32 %v2271, %v2652
        %v2654 = vpop.f32.mrb[0].mxu0
        %v2655 = vpop.f32.mrb[0].mxu0
        %v2656 = vadd.f32 %v2271, %v2655
        %v2657 = vpop.f32.mrb[0].mxu0
        %2658 = vmatprep.mubr.bf16.mxu0 0
        %2659 = vmatmul.mubr.bf16.gmra.mrb[0].mxu0 %v2350
        %v2660 = vpop.f32.mrb[0].mxu0
        %v2661 = vadd.f32 %v2271, %v2660
        %v2662 = vpop.f32.mrb[0].mxu0
        %v2663 = vpop.f32.mrb[0].mxu0
        %v2664 = vadd.f32 %v2271, %v2663
        %v2665 = vpop.f32.mrb[0].mxu0
        %2666 = vmatprep.mubr.bf16.mxu0 0
        %2667 = vmatmul.mubr.bf16.gmra.mrb[0].mxu0 %v2353
        %v2668 = vpop.f32.mrb[0].mxu0
        %v2669 = vadd.f32 %v2271, %v2668
        %v2670 = vpop.f32.mrb[0].mxu0
        %v2671 = vpop.f32.mrb[0].mxu0
        %v2672 = vadd.f32 %v2271, %v2671
        %v2673 = vpop.f32.mrb[0].mxu0
        %2674 = vmatprep.mubr.bf16.mxu0 0
        %2675 = vmatmul.mubr.bf16.gmra.mrb[0].mxu0 %v2356
        %v2676 = vpop.f32.mrb[0].mxu0
        %v2677 = vadd.f32 %v2271, %v2676
        %v2678 = vpop.f32.mrb[0].mxu0
        %v2679 = vpop.f32.mrb[0].mxu0
        %v2680 = vadd.f32 %v2271, %v2679
        %v2681 = vpop.f32.mrb[0].mxu0
        %2682 = vmatprep.mubr.bf16.mxu0 0
        %2683 = vmatmul.mubr.bf16.gmra.mrb[0].mxu0 %v2359
        %v2684 = vpop.f32.mrb[0].mxu0
        %v2685 = vadd.f32 %v2271, %v2684
        %v2686 = vpop.f32.mrb[0].mxu0
        %v2687 = vpop.f32.mrb[0].mxu0
        %v2688 = vadd.f32 %v2271, %v2687
        %v2689 = vpop.f32.mrb[0].mxu0
        %2690 = vmatprep.mubr.bf16.mxu0 0
        %2691 = vmatmul.mubr.bf16.gmra.mrb[0].mxu0 %v2362
        %v2692 = vpop.f32.mrb[0].mxu0
        %v2693 = vadd.f32 %v2271, %v2692
        %v2694 = vpop.f32.mrb[0].mxu0
        %v2695 = vpop.f32.mrb[0].mxu0
        %v2696 = vadd.f32 %v2271, %v2695
        %v2697 = vpop.f32.mrb[0].mxu0
        %2698 = vmatprep.mubr.bf16.mxu0 0
        %2699 = vmatmul.mubr.bf16.gmra.mrb[0].mxu0 %v2365
        %v2700 = vpop.f32.mrb[0].mxu0
        %v2701 = vadd.f32 %v2271, %v2700
        %v2702 = vpop.f32.mrb[0].mxu0
        %v2703 = vpop.f32.mrb[0].mxu0
        %v2704 = vadd.f32 %v2271, %v2703
        %v2705 = vpop.f32.mrb[0].mxu0
        %2706 = vmatprep.mubr.bf16.mxu0 0
        %2707 = vmatmul.mubr.bf16.gmra.mrb[0].mxu0 %v2368
        %v2708 = vpop.f32.mrb[0].mxu0
        %v2709 = vadd.f32 %v2271, %v2708
        %v2710 = vpop.f32.mrb[0].mxu0
        %v2711 = vpop.f32.mrb[0].mxu0
        %v2712 = vadd.f32 %v2271, %v2711
        %v2713 = vpop.f32.mrb[0].mxu0
        %2714 = vmatprep.mubr.bf16.mxu0 0
        %2715 = vmatmul.mubr.bf16.gmra.mrb[0].mxu0 %v2371
        %v2716 = vpop.f32.mrb[0].mxu0
        %v2717 = vadd.f32 %v2271, %v2716
        %v2718 = vpop.f32.mrb[0].mxu0
        %v2719 = vpop.f32.mrb[0].mxu0
        %v2720 = vadd.f32 %v2271, %v2719
        %v2721 = vpop.f32.mrb[0].mxu0
        %2722 = vmatprep.mubr.bf16.mxu0 0
        %2723 = vmatmul.mubr.bf16.gmra.mrb[0].mxu0 %v2374
        %v2724 = vpop.f32.mrb[0].mxu0
        %v2725 = vadd.f32 %v2271, %v2724
        %v2726 = vpop.f32.mrb[0].mxu0
        %v2727 = vpop.f32.mrb[0].mxu0
        %v2728 = vadd.f32 %v2271, %v2727
        %v2729 = vpop.f32.mrb[0].mxu0
        %2730 = vmatprep.mubr.bf16.mxu0 0
        %2731 = vmatmul.mubr.bf16.gmra.mrb[0].mxu0 %v2377
        %v2732 = vpop.f32.mrb[0].mxu0
        %v2733 = vadd.f32 %v2271, %v2732
        %v2734 = vpop.f32.mrb[0].mxu0
        %v2735 = vpop.f32.mrb[0].mxu0
        %v2736 = vadd.f32 %v2271, %v2735
        %v2737 = vpop.f32.mrb[0].mxu0
        %2738 = vmatprep.mubr.bf16.mxu0 0
        %2739 = vmatmul.mubr.bf16.gmra.mrb[0].mxu0 %v2380
        %v2740 = vpop.f32.mrb[0].mxu0
        %v2741 = vadd.f32 %v2271, %v2740
        %v2742 = vpop.f32.mrb[0].mxu0
        %v2743 = vpop.f32.mrb[0].mxu0
        %v2744 = vadd.f32 %v2271, %v2743
        %v2745 = vpop.f32.mrb[0].mxu0
        %2746 = vmatprep.mubr.bf16.mxu0 0
        %2747 = vmatmul.mubr.bf16.gmra.mrb[0].mxu0 %v2383
        %v2748 = vpop.f32.mrb[0].mxu0
        %v2749 = vadd.f32 %v2271, %v2748
        %v2750 = vpop.f32.mrb[0].mxu0
        %v2751 = vpop.f32.mrb[0].mxu0
        %v2752 = vadd.f32 %v2271, %v2751
        %v2753 = vpop.f32.mrb[0].mxu0
        %2754 = vmatprep.mubr.bf16.mxu0 0
        %2755 = vmatmul.mubr.bf16.gmra.mrb[0].mxu0 %v2386
        %v2756 = vpop.f32.mrb[0].mxu0
        %v2757 = vadd.f32 %v2271, %v2756
        %v2758 = vpop.f32.mrb[0].mxu0
        %v2759 = vpop.f32.mrb[0].mxu0
        %v2760 = vadd.f32 %v2271, %v2759
        %v2761 = vpop.f32.mrb[0].mxu0
        %2762 = vmatprep.mubr.bf16.mxu0 0
        %2763 = vmatmul.mubr.bf16.gmra.mrb[0].mxu0 %v2389
        %v2764 = vpop.f32.mrb[0].mxu0
        %v2765 = vadd.f32 %v2271, %v2764
        %v2766 = vpop.f32.mrb[0].mxu0
        %v2767 = vpop.f32.mrb[0].mxu0
        %v2768 = vadd.f32 %v2271, %v2767
        %v2769 = vpop.f32.mrb[0].mxu0
        %2770 = vmatprep.mubr.bf16.mxu0 0
        %2771 = vmatmul.mubr.bf16.gmra.mrb[0].mxu0 %v2392
        %v2772 = vpop.f32.mrb[0].mxu0
        %v2773 = vadd.f32 %v2271, %v2772
        %v2774 = vpop.f32.mrb[0].mxu0
        %v2775 = vpop.f32.mrb[0].mxu0
        %v2776 = vadd.f32 %v2271, %v2775
        %v2777 = vpop.f32.mrb[0].mxu0
        %2778 = vmatprep.mubr.bf16.mxu0 0
        %2779 = vmatmul.mubr.bf16.gmra.mrb[0].mxu0 %v2395
        %v2780 = vpop.f32.mrb[0].mxu0
        %v2781 = vadd.f32 %v2271, %v2780
        %v2782 = vpop.f32.mrb[0].mxu0
        %v2783 = vpop.f32.mrb[0].mxu0
        %v2784 = vadd.f32 %v2271, %v2783
        %v2785 = vpop.f32.mrb[0].mxu0
        %2786 = vmatprep.mubr.bf16.mxu0 0
        %2787 = vmatmul.mubr.bf16.gmra.mrb[0].mxu0 %v2398
        %v2788 = vpop.f32.mrb[0].mxu0
        %v2789 = vadd.f32 %v2271, %v2788
        %v2790 = vpop.f32.mrb[0].mxu0
        %v2791 = vpop.f32.mrb[0].mxu0
        %v2792 = vadd.f32 %v2271, %v2791
        %v2793 = vpop.f32.mrb[0].mxu0
        %2794 = vmatprep.mubr.bf16.mxu0 0
        %2795 = vmatmul.mubr.bf16.gmra.mrb[0].mxu0 %v2401
        %v2796 = vpop.f32.mrb[0].mxu0
        %v2797 = vadd.f32 %v2271, %v2796
        %v2798 = vpop.f32.mrb[0].mxu0
        %v2799 = vpop.f32.mrb[0].mxu0
        %v2800 = vadd.f32 %v2271, %v2799
        %v2801 = vpop.f32.mrb[0].mxu0
        %2802 = vmatprep.mubr.bf16.mxu0 0
        %2803 = vmatmul.mubr.bf16.gmra.mrb[0].mxu0 %v2404
        %v2804 = vpop.f32.mrb[0].mxu0
        %v2805 = vadd.f32 %v2271, %v2804
        %v2806 = vpop.f32.mrb[0].mxu0
        %v2807 = vpop.f32.mrb[0].mxu0
        %v2808 = vadd.f32 %v2271, %v2807
        %v2809 = vpop.f32.mrb[0].mxu0
        %2810 = vmatprep.mubr.bf16.mxu0 0
        %2811 = vmatmul.mubr.bf16.gmra.mrb[0].mxu0 %v2407
        %v2812 = vpop.f32.mrb[0].mxu0
        %v2813 = vadd.f32 %v2271, %v2812
        %v2814 = vpop.f32.mrb[0].mxu0
        %v2815 = vpop.f32.mrb[0].mxu0
        %v2816 = vadd.f32 %v2271, %v2815
        %v2817 = vpop.f32.mrb[0].mxu0
        %2818 = vmatprep.mubr.bf16.mxu0 0
        %2819 = vmatmul.mubr.bf16.gmra.mrb[0].mxu0 %v2410
        %v2820 = vpop.f32.mrb[0].mxu0
        %v2821 = vadd.f32 %v2271, %v2820
        %v2822 = vpop.f32.mrb[0].mxu0
        %v2823 = vpop.f32.mrb[0].mxu0
        %v2824 = vadd.f32 %v2271, %v2823
        %v2825 = vpop.f32.mrb[0].mxu0
        %2826 = vmatprep.mubr.bf16.mxu0 0
        %2827 = vmatmul.mubr.bf16.gmra.mrb[0].mxu0 %v2413
        %v2828 = vpop.f32.mrb[0].mxu0
        %v2829 = vadd.f32 %v2271, %v2828
        %v2830 = vpop.f32.mrb[0].mxu0
        %v2831 = vpop.f32.mrb[0].mxu0
        %v2832 = vadd.f32 %v2271, %v2831
        %v2833 = vpop.f32.mrb[0].mxu0
        %2834 = vmatprep.mubr.bf16.mxu0 0
        %2835 = vmatmul.mubr.bf16.gmra.mrb[0].mxu0 %v2416
        %v2836 = vpop.f32.mrb[0].mxu0
        %v2837 = vadd.f32 %v2271, %v2836
        %v2838 = vpop.f32.mrb[0].mxu0
        %v2839 = vpop.f32.mrb[0].mxu0
        %v2840 = vadd.f32 %v2271, %v2839
        %v2841 = vpop.f32.mrb[0].mxu0
        %2842 = vmatprep.mubr.bf16.mxu0 0
        %2843 = vmatmul.mubr.bf16.gmra.mrb[0].mxu0 %v2419
        %v2844 = vpop.f32.mrb[0].mxu0
        %v2845 = vadd.f32 %v2271, %v2844
        %v2846 = vpop.f32.mrb[0].mxu0
        %v2847 = vpop.f32.mrb[0].mxu0
        %v2848 = vadd.f32 %v2271, %v2847
        %v2849 = vpop.f32.mrb[0].mxu0
        %2850 = vmatprep.mubr.bf16.mxu0 0
        %2851 = vmatmul.mubr.bf16.gmra.mrb[0].mxu0 %v2422
        %v2852 = vpop.f32.mrb[0].mxu0
        %v2853 = vadd.f32 %v2271, %v2852
        %v2854 = vpop.f32.mrb[0].mxu0
        %v2855 = vpop.f32.mrb[0].mxu0
        %v2856 = vadd.f32 %v2271, %v2855
        %v2857 = vpop.f32.mrb[0].mxu0
        %2858 = vmatprep.mubr.bf16.mxu0 0
        %2859 = vmatmul.mubr.bf16.gmra.mrb[0].mxu0 %v2425
        %v2860 = vpop.f32.mrb[0].mxu0
        %v2861 = vadd.f32 %v2271, %v2860
        %v2862 = vpop.f32.mrb[0].mxu0
        %v2863 = vpop.f32.mrb[0].mxu0
        %v2864 = vadd.f32 %v2271, %v2863
        %v2865 = vpop.f32.mrb[0].mxu0
        %2866 = vmatprep.mubr.bf16.mxu0 0
        %2867 = vmatmul.mubr.bf16.gmra.mrb[0].mxu0 %v2428
        %v2868 = vpop.f32.mrb[0].mxu0
        %v2869 = vadd.f32 %v2271, %v2868
        %v2870 = vpop.f32.mrb[0].mxu0
        %v2871 = vpop.f32.mrb[0].mxu0
        %v2872 = vadd.f32 %v2271, %v2871
        %v2873 = vpop.f32.mrb[0].mxu0
        %2874 = vmatprep.mubr.bf16.mxu0 0
        %2875 = vmatmul.mubr.bf16.gmra.mrb[0].mxu0 %v2431
        %v2876 = vpop.f32.mrb[0].mxu0
        %v2877 = vadd.f32 %v2271, %v2876
        %v2878 = vpop.f32.mrb[0].mxu0
        %v2879 = vpop.f32.mrb[0].mxu0
        %v2880 = vadd.f32 %v2271, %v2879
        %v2881 = vpop.f32.mrb[0].mxu0
        %2882 = vmatprep.mubr.bf16.mxu0 0
        %2883 = vmatmul.mubr.bf16.gmra.mrb[0].mxu0 %v2434
        %v2884 = vpop.f32.mrb[0].mxu0
        %v2885 = vadd.f32 %v2271, %v2884
        %v2886 = vpop.f32.mrb[0].mxu0
        %v2887 = vpop.f32.mrb[0].mxu0
        %v2888 = vadd.f32 %v2271, %v2887
        %v2889 = vpop.f32.mrb[0].mxu0
        %2890 = vmatprep.mubr.bf16.mxu0 0
        %2891 = vmatmul.mubr.bf16.gmra.mrb[0].mxu0 %v2437
        %v2892 = vpop.f32.mrb[0].mxu0
        %v2893 = vadd.f32 %v2271, %v2892
        %v2894 = vpop.f32.mrb[0].mxu0
        %v2895 = vpop.f32.mrb[0].mxu0
        %v2896 = vadd.f32 %v2271, %v2895
        %v2897 = vpop.f32.mrb[0].mxu0
        %2898 = vmatprep.mubr.bf16.mxu0 0
        %2899 = vmatmul.mubr.bf16.gmra.mrb[0].mxu0 %v2440
        %v2900 = vpop.f32.mrb[0].mxu0
        %v2901 = vadd.f32 %v2271, %v2900
        %v2902 = vpop.f32.mrb[0].mxu0
        %v2903 = vpop.f32.mrb[0].mxu0
        %v2904 = vadd.f32 %v2271, %v2903
        %v2905 = vpop.f32.mrb[0].mxu0
        %2906 = vmatprep.mubr.bf16.mxu0 0
        %2907 = vmatmul.mubr.bf16.gmra.mrb[0].mxu0 %v2443
        %v2908 = vpop.f32.mrb[0].mxu0
        %v2909 = vadd.f32 %v2271, %v2908
        %v2910 = vpop.f32.mrb[0].mxu0
        %v2911 = vpop.f32.mrb[0].mxu0
        %v2912 = vadd.f32 %v2271, %v2911
        %v2913 = vpop.f32.mrb[0].mxu0
        %2914 = vmatprep.mubr.bf16.mxu0 0
        %2915 = vmatmul.mubr.bf16.gmra.mrb[0].mxu0 %v2446
        %v2916 = vpop.f32.mrb[0].mxu0
        %v2917 = vadd.f32 %v2271, %v2916
        %v2918 = vpop.f32.mrb[0].mxu0
        %v2919 = vpop.f32.mrb[0].mxu0
        %v2920 = vadd.f32 %v2271, %v2919
        %v2921 = vpop.f32.mrb[0].mxu0
        %2922 = vmatprep.mubr.bf16.mxu0 0
        %2923 = vmatmul.mubr.bf16.gmra.mrb[0].mxu0 %v2449
        %v2924 = vpop.f32.mrb[0].mxu0
        %v2925 = vadd.f32 %v2271, %v2924
        %v2926 = vpop.f32.mrb[0].mxu0
        %v2927 = vpop.f32.mrb[0].mxu0
        %v2928 = vadd.f32 %v2271, %v2927
        %v2929 = vpop.f32.mrb[0].mxu0
        %2930 = vmatprep.mubr.bf16.mxu0 0
        %2931 = vmatmul.mubr.bf16.gmra.mrb[0].mxu0 %v2452
        %v2932 = vpop.f32.mrb[0].mxu0
        %v2933 = vadd.f32 %v2271, %v2932
        %v2934 = vpop.f32.mrb[0].mxu0
        %v2935 = vpop.f32.mrb[0].mxu0
        %v2936 = vadd.f32 %v2271, %v2935
        %v2937 = vpop.f32.mrb[0].mxu0
        %2938 = vmatprep.mubr.bf16.mxu0 0
        %2939 = vmatmul.mubr.bf16.gmra.mrb[0].mxu0 %v2455
        %v2940 = vpop.f32.mrb[0].mxu0
        %v2941 = vadd.f32 %v2271, %v2940
        %v2942 = vpop.f32.mrb[0].mxu0
        %v2943 = vpop.f32.mrb[0].mxu0
        %v2944 = vadd.f32 %v2271, %v2943
        %v2945 = vpop.f32.mrb[0].mxu0
        %2946 = vmatprep.mubr.bf16.mxu0 0
        %2947 = vmatmul.mubr.bf16.gmra.mrb[0].mxu0 %v2458
        %v2948 = vpop.f32.mrb[0].mxu0
        %v2949 = vadd.f32 %v2271, %v2948
        %v2950 = vpop.f32.mrb[0].mxu0
        %v2951 = vpop.f32.mrb[0].mxu0
        %v2952 = vadd.f32 %v2271, %v2951
        %v2953 = vpop.f32.mrb[0].mxu0
        %2954 = vmatprep.mubr.bf16.mxu0 0
        %2955 = vmatmul.mubr.bf16.gmra.mrb[0].mxu0 %v2461
        %v2956 = vpop.f32.mrb[0].mxu0
        %v2957 = vadd.f32 %v2271, %v2956
        %v2958 = vpop.f32.mrb[0].mxu0
        %v2959 = vpop.f32.mrb[0].mxu0
        %v2960 = vadd.f32 %v2271, %v2959
        %v2961 = vpop.f32.mrb[0].mxu0
        %2962 = vmatprep.mubr.bf16.mxu0 0
        %2963 = vmatmul.mubr.bf16.gmra.mrb[0].mxu0 %v2464
        %v2964 = vpop.f32.mrb[0].mxu0
        %v2965 = vadd.f32 %v2271, %v2964
        %v2966 = vpop.f32.mrb[0].mxu0
        %v2967 = vpop.f32.mrb[0].mxu0
        %v2968 = vadd.f32 %v2271, %v2967
        %v2969 = vpop.f32.mrb[0].mxu0
        %2970 = vmatprep.mubr.bf16.mxu0 0
        %2971 = vmatmul.mubr.bf16.gmra.mrb[0].mxu0 %v2467
        %v2972 = vpop.f32.mrb[0].mxu0
        %v2973 = vadd.f32 %v2271, %v2972
        %v2974 = vpop.f32.mrb[0].mxu0
        %v2975 = vpop.f32.mrb[0].mxu0
        %v2976 = vadd.f32 %v2271, %v2975
        %v2977 = vpop.f32.mrb[0].mxu0
        %2978 = vmatprep.mubr.bf16.mxu0 0
        %2979 = vmatmul.mubr.bf16.gmra.mrb[0].mxu0 %v2470
        %v2980 = vpop.f32.mrb[0].mxu0
        %v2981 = vadd.f32 %v2271, %v2980
        %v2982 = vpop.f32.mrb[0].mxu0
        %v2983 = vpop.f32.mrb[0].mxu0
        %v2984 = vadd.f32 %v2271, %v2983
        %v2985 = vpop.f32.mrb[0].mxu0
        %2986 = vmatprep.mubr.bf16.mxu0 0
        %2987 = vmatmul.mubr.bf16.gmra.mrb[0].mxu0 %v2473
        %v2988 = vpop.f32.mrb[0].mxu0
        %v2989 = vadd.f32 %v2271, %v2988
        %v2990 = vpop.f32.mrb[0].mxu0
        %v2991 = vpop.f32.mrb[0].mxu0
        %v2992 = vadd.f32 %v2271, %v2991
        %v2993 = vpop.f32.mrb[0].mxu0
        %2994 = vmatprep.mubr.bf16.mxu0 0
        %2995 = vmatmul.mubr.bf16.gmra.mrb[0].mxu0 %v2476
        %v2996 = vpop.f32.mrb[0].mxu0
        %v2997 = vadd.f32 %v2271, %v2996
        %v2998 = vpop.f32.mrb[0].mxu0
        %v2999 = vpop.f32.mrb[0].mxu0
        %v3000 = vadd.f32 %v2271, %v2999
        %v3001 = vpop.f32.mrb[0].mxu0
        %3002 = vmatprep.mubr.bf16.mxu0 0
        %3003 = vmatmul.mubr.bf16.gmra.mrb[0].mxu0 %v2479
        %v3004 = vpop.f32.mrb[0].mxu0
        %v3005 = vadd.f32 %v2271, %v3004
        %v3006 = vpop.f32.mrb[0].mxu0
        %v3007 = vpop.f32.mrb[0].mxu0
        %v3008 = vadd.f32 %v2271, %v3007
        %v3009 = vpop.f32.mrb[0].mxu0
        %3010 = vmatprep.mubr.bf16.mxu0 0
        %3011 = vmatmul.mubr.bf16.gmra.mrb[0].mxu0 %v2482
        %v3012 = vpop.f32.mrb[0].mxu0
        %v3013 = vadd.f32 %v2271, %v3012
        %v3014 = vpop.f32.mrb[0].mxu0
        %v3015 = vpop.f32.mrb[0].mxu0
        %v3016 = vadd.f32 %v2271, %v3015
        %v3017 = vpop.f32.mrb[0].mxu0
        %3018 = vmatprep.mubr.bf16.mxu0 0
        %3019 = vmatmul.mubr.bf16.gmra.mrb[0].mxu0 %v2485
        %v3020 = vpop.f32.mrb[0].mxu0
        %v3021 = vadd.f32 %v2271, %v3020
        %v3022 = vpop.f32.mrb[0].mxu0
        %v3023 = vpop.f32.mrb[0].mxu0
        %v3024 = vadd.f32 %v2271, %v3023
        %v3025 = vpop.f32.mrb[0].mxu0
        %3026 = vmatprep.mubr.bf16.mxu0 0
        %3027 = vmatmul.mubr.bf16.gmra.mrb[0].mxu0 %v2488
        %v3028 = vpop.f32.mrb[0].mxu0
        %v3029 = vadd.f32 %v2271, %v3028
        %v3030 = vpop.f32.mrb[0].mxu0
        %v3031 = vpop.f32.mrb[0].mxu0
        %v3032 = vadd.f32 %v2271, %v3031
        %v3033 = vpop.f32.mrb[0].mxu0
        %3034 = vdwg.mxu0
        %v3035 = vmax.f32 %v2525, 0.0
        %v3036 = vmax.f32 %v2528, 0.0
        %v3037 = vmax.f32 %v2533, 0.0
        %v3038 = vmax.f32 %v2536, 0.0
        %v3039 = vmax.f32 %v2541, 0.0
        %v3040 = vmax.f32 %v2544, 0.0
        %v3041 = vmax.f32 %v2549, 0.0
        %v3042 = vmax.f32 %v2552, 0.0
        %v3043 = vmax.f32 %v2557, 0.0
        %v3044 = vmax.f32 %v2560, 0.0
        %v3045 = vmax.f32 %v2565, 0.0
        %v3046 = vmax.f32 %v2568, 0.0
        %v3047 = vmax.f32 %v2573, 0.0
        %v3048 = vmax.f32 %v2576, 0.0
        %v3049 = vmax.f32 %v2581, 0.0
        %v3050 = vmax.f32 %v2584, 0.0
        %v3051 = vmax.f32 %v2589, 0.0
        %v3052 = vmax.f32 %v2592, 0.0
        %v3053 = vmax.f32 %v2597, 0.0
        %v3054 = vmax.f32 %v2600, 0.0
        %v3055 = vmax.f32 %v2605, 0.0
        %v3056 = vmax.f32 %v2608, 0.0
        %v3057 = vmax.f32 %v2613, 0.0
        %v3058 = vmax.f32 %v2616, 0.0
        %v3059 = vmax.f32 %v2621, 0.0
        %v3060 = vmax.f32 %v2624, 0.0
        %v3061 = vmax.f32 %v2629, 0.0
        %v3062 = vmax.f32 %v2632, 0.0
        %v3063 = vmax.f32 %v2637, 0.0
        %v3064 = vmax.f32 %v2640, 0.0
        %v3065 = vmax.f32 %v2645, 0.0
        %v3066 = vmax.f32 %v2648, 0.0
        %v3067 = vmax.f32 %v2653, 0.0
        %v3068 = vmax.f32 %v2656, 0.0
        %v3069 = vmax.f32 %v2661, 0.0
        %v3070 = vmax.f32 %v2664, 0.0
        %v3071 = vmax.f32 %v2669, 0.0
        %v3072 = vmax.f32 %v2672, 0.0
        %v3073 = vmax.f32 %v2677, 0.0
        %v3074 = vmax.f32 %v2680, 0.0
        %v3075 = vmax.f32 %v2685, 0.0
        %v3076 = vmax.f32 %v2688, 0.0
        %v3077 = vmax.f32 %v2693, 0.0
        %v3078 = vmax.f32 %v2696, 0.0
        %v3079 = vmax.f32 %v2701, 0.0
        %v3080 = vmax.f32 %v2704, 0.0
        %v3081 = vmax.f32 %v2709, 0.0
        %v3082 = vmax.f32 %v2712, 0.0
        %v3083 = vmax.f32 %v2717, 0.0
        %v3084 = vmax.f32 %v2720, 0.0
        %v3085 = vmax.f32 %v2725, 0.0
        %v3086 = vmax.f32 %v2728, 0.0
        %v3087 = vmax.f32 %v2733, 0.0
        %v3088 = vmax.f32 %v2736, 0.0
        %v3089 = vmax.f32 %v2741, 0.0
        %v3090 = vmax.f32 %v2744, 0.0
        %v3091 = vmax.f32 %v2749, 0.0
        %v3092 = vmax.f32 %v2752, 0.0
        %v3093 = vmax.f32 %v2757, 0.0
        %v3094 = vmax.f32 %v2760, 0.0
        %v3095 = vmax.f32 %v2765, 0.0
        %v3096 = vmax.f32 %v2768, 0.0
        %v3097 = vmax.f32 %v2773, 0.0
        %v3098 = vmax.f32 %v2776, 0.0
        %v3099 = vmax.f32 %v2781, 0.0
        %v3100 = vmax.f32 %v2784, 0.0
        %v3101 = vmax.f32 %v2789, 0.0
        %v3102 = vmax.f32 %v2792, 0.0
        %v3103 = vmax.f32 %v2797, 0.0
        %v3104 = vmax.f32 %v2800, 0.0
        %v3105 = vmax.f32 %v2805, 0.0
        %v3106 = vmax.f32 %v2808, 0.0
        %v3107 = vmax.f32 %v2813, 0.0
        %v3108 = vmax.f32 %v2816, 0.0
        %v3109 = vmax.f32 %v2821, 0.0
        %v3110 = vmax.f32 %v2824, 0.0
        %v3111 = vmax.f32 %v2829, 0.0
        %v3112 = vmax.f32 %v2832, 0.0
        %v3113 = vmax.f32 %v2837, 0.0
        %v3114 = vmax.f32 %v2840, 0.0
        %v3115 = vmax.f32 %v2845, 0.0
        %v3116 = vmax.f32 %v2848, 0.0
        %v3117 = vmax.f32 %v2853, 0.0
        %v3118 = vmax.f32 %v2856, 0.0
        %v3119 = vmax.f32 %v2861, 0.0
        %v3120 = vmax.f32 %v2864, 0.0
        %v3121 = vmax.f32 %v2869, 0.0
        %v3122 = vmax.f32 %v2872, 0.0
        %v3123 = vmax.f32 %v2877, 0.0
        %v3124 = vmax.f32 %v2880, 0.0
        %v3125 = vmax.f32 %v2885, 0.0
        %v3126 = vmax.f32 %v2888, 0.0
        %v3127 = vmax.f32 %v2893, 0.0
        %v3128 = vmax.f32 %v2896, 0.0
        %v3129 = vmax.f32 %v2901, 0.0
        %v3130 = vmax.f32 %v2904, 0.0
        %v3131 = vmax.f32 %v2909, 0.0
        %v3132 = vmax.f32 %v2912, 0.0
        %v3133 = vmax.f32 %v2917, 0.0
        %v3134 = vmax.f32 %v2920, 0.0
        %v3135 = vmax.f32 %v2925, 0.0
        %v3136 = vmax.f32 %v2928, 0.0
        %v3137 = vmax.f32 %v2933, 0.0
        %v3138 = vmax.f32 %v2936, 0.0
        %v3139 = vmax.f32 %v2941, 0.0
        %v3140 = vmax.f32 %v2944, 0.0
        %v3141 = vmax.f32 %v2949, 0.0
        %v3142 = vmax.f32 %v2952, 0.0
        %v3143 = vmax.f32 %v2957, 0.0
        %v3144 = vmax.f32 %v2960, 0.0
        %v3145 = vmax.f32 %v2965, 0.0
        %v3146 = vmax.f32 %v2968, 0.0
        %v3147 = vmax.f32 %v2973, 0.0
        %v3148 = vmax.f32 %v2976, 0.0
        %v3149 = vmax.f32 %v2981, 0.0
        %v3150 = vmax.f32 %v2984, 0.0
        %v3151 = vmax.f32 %v2989, 0.0
        %v3152 = vmax.f32 %v2992, 0.0
        %v3153 = vmax.f32 %v2997, 0.0
        %v3154 = vmax.f32 %v3000, 0.0
        %v3155 = vmax.f32 %v3005, 0.0
        %v3156 = vmax.f32 %v3008, 0.0
        %v3157 = vmax.f32 %v3013, 0.0
        %v3158 = vmax.f32 %v3016, 0.0
        %v3159 = vmax.f32 %v3021, 0.0
        %v3160 = vmax.f32 %v3024, 0.0
        %v3161 = vmax.f32 %v3029, 0.0
        %v3162 = vmax.f32 %v3032, 0.0
        %v3163 = vpack.c.bf16 %v3036, %v3035
        %v3164 = vpack.c.bf16 %v3038, %v3037
        %v3165 = vpack.c.bf16 %v3040, %v3039
        %v3166 = vpack.c.bf16 %v3042, %v3041
        %v3167 = vpack.c.bf16 %v3044, %v3043
        %v3168 = vpack.c.bf16 %v3046, %v3045
        %v3169 = vpack.c.bf16 %v3048, %v3047
        %v3170 = vpack.c.bf16 %v3050, %v3049
        %v3171 = vpack.c.bf16 %v3052, %v3051
        %v3172 = vpack.c.bf16 %v3054, %v3053
        %v3173 = vpack.c.bf16 %v3056, %v3055
        %v3174 = vpack.c.bf16 %v3058, %v3057
        %v3175 = vpack.c.bf16 %v3060, %v3059
        %v3176 = vpack.c.bf16 %v3062, %v3061
        %v3177 = vpack.c.bf16 %v3064, %v3063
        %v3178 = vpack.c.bf16 %v3066, %v3065
        %v3179 = vpack.c.bf16 %v3068, %v3067
        %v3180 = vpack.c.bf16 %v3070, %v3069
        %v3181 = vpack.c.bf16 %v3072, %v3071
        %v3182 = vpack.c.bf16 %v3074, %v3073
        %v3183 = vpack.c.bf16 %v3076, %v3075
        %v3184 = vpack.c.bf16 %v3078, %v3077
        %v3185 = vpack.c.bf16 %v3080, %v3079
        %v3186 = vpack.c.bf16 %v3082, %v3081
        %v3187 = vpack.c.bf16 %v3084, %v3083
        %v3188 = vpack.c.bf16 %v3086, %v3085
        %v3189 = vpack.c.bf16 %v3088, %v3087
        %v3190 = vpack.c.bf16 %v3090, %v3089
        %v3191 = vpack.c.bf16 %v3092, %v3091
        %v3192 = vpack.c.bf16 %v3094, %v3093
        %v3193 = vpack.c.bf16 %v3096, %v3095
        %v3194 = vpack.c.bf16 %v3098, %v3097
        %v3195 = vpack.c.bf16 %v3100, %v3099
        %v3196 = vpack.c.bf16 %v3102, %v3101
        %v3197 = vpack.c.bf16 %v3104, %v3103
        %v3198 = vpack.c.bf16 %v3106, %v3105
        %v3199 = vpack.c.bf16 %v3108, %v3107
        %v3200 = vpack.c.bf16 %v3110, %v3109
        %v3201 = vpack.c.bf16 %v3112, %v3111
        %v3202 = vpack.c.bf16 %v3114, %v3113
        %v3203 = vpack.c.bf16 %v3116, %v3115
        %v3204 = vpack.c.bf16 %v3118, %v3117
        %v3205 = vpack.c.bf16 %v3120, %v3119
        %v3206 = vpack.c.bf16 %v3122, %v3121
        %v3207 = vpack.c.bf16 %v3124, %v3123
        %v3208 = vpack.c.bf16 %v3126, %v3125
        %v3209 = vpack.c.bf16 %v3128, %v3127
        %v3210 = vpack.c.bf16 %v3130, %v3129
        %v3211 = vpack.c.bf16 %v3132, %v3131
        %v3212 = vpack.c.bf16 %v3134, %v3133
        %v3213 = vpack.c.bf16 %v3136, %v3135
        %v3214 = vpack.c.bf16 %v3138, %v3137
        %v3215 = vpack.c.bf16 %v3140, %v3139
        %v3216 = vpack.c.bf16 %v3142, %v3141
        %v3217 = vpack.c.bf16 %v3144, %v3143
        %v3218 = vpack.c.bf16 %v3146, %v3145
        %v3219 = vpack.c.bf16 %v3148, %v3147
        %v3220 = vpack.c.bf16 %v3150, %v3149
        %v3221 = vpack.c.bf16 %v3152, %v3151
        %v3222 = vpack.c.bf16 %v3154, %v3153
        %v3223 = vpack.c.bf16 %v3156, %v3155
        %v3224 = vpack.c.bf16 %v3158, %v3157
        %v3225 = vpack.c.bf16 %v3160, %v3159
        %v3226 = vpack.c.bf16 %v3162, %v3161
        %v3227 = vld [vmem:[%s5] sm:$0xff]
        %v3228 = vld [vmem:[%s5 + $0x8] sm:$0xff]
        %v3229 = vld [vmem:[%s5 + $0x10] sm:$0xff]
        %v3230 = vld [vmem:[%s5 + $0x18] sm:$0xff]
        %v3231 = vld [vmem:[%s5 + $0x20] sm:$0xff]
        %v3232 = vld [vmem:[%s5 + $0x28] sm:$0xff]
        %v3233 = vld [vmem:[%s5 + $0x30] sm:$0xff]
        %v3234 = vld [vmem:[%s5 + $0x38] sm:$0xff]
        %v3235 = vld [vmem:[%s5 + $0x40] sm:$0xff]
        %v3236 = vld [vmem:[%s5 + $0x48] sm:$0xff]
        %v3237 = vld [vmem:[%s5 + $0x50] sm:$0xff]
        %v3238 = vld [vmem:[%s5 + $0x58] sm:$0xff]
        %v3239 = vld [vmem:[%s5 + $0x60] sm:$0xff]
        %v3240 = vld [vmem:[%s5 + $0x68] sm:$0xff]
        %v3241 = vld [vmem:[%s5 + $0x70] sm:$0xff]
        %v3242 = vld [vmem:[%s5 + $0x78] sm:$0xff]
        %v3243 = vld [vmem:[%s5 + $0x80] sm:$0xff]
        %v3244 = vld [vmem:[%s5 + $0x88] sm:$0xff]
        %v3245 = vld [vmem:[%s5 + $0x90] sm:$0xff]
        %v3246 = vld [vmem:[%s5 + $0x98] sm:$0xff]
        %v3247 = vld [vmem:[%s5 + $0xa0] sm:$0xff]
        %v3248 = vld [vmem:[%s5 + $0xa8] sm:$0xff]
        %v3249 = vld [vmem:[%s5 + $0xb0] sm:$0xff]
        %v3250 = vld [vmem:[%s5 + $0xb8] sm:$0xff]
        %v3251 = vld [vmem:[%s5 + $0xc0] sm:$0xff]
        %v3252 = vld [vmem:[%s5 + $0xc8] sm:$0xff]
        %v3253 = vld [vmem:[%s5 + $0xd0] sm:$0xff]
        %v3254 = vld [vmem:[%s5 + $0xd8] sm:$0xff]
        %v3255 = vld [vmem:[%s5 + $0xe0] sm:$0xff]
        %v3256 = vld [vmem:[%s5 + $0xe8] sm:$0xff]
        %v3257 = vld [vmem:[%s5 + $0xf0] sm:$0xff]
        %v3258 = vld [vmem:[%s5 + $0xf8] sm:$0xff]
        %v3259 = vld [vmem:[%s5 + $0x100] sm:$0xff]
        %v3260 = vld [vmem:[%s5 + $0x108] sm:$0xff]
        %v3261 = vld [vmem:[%s5 + $0x110] sm:$0xff]
        %v3262 = vld [vmem:[%s5 + $0x118] sm:$0xff]
        %v3263 = vld [vmem:[%s5 + $0x120] sm:$0xff]
        %v3264 = vld [vmem:[%s5 + $0x128] sm:$0xff]
        %v3265 = vld [vmem:[%s5 + $0x130] sm:$0xff]
        %v3266 = vld [vmem:[%s5 + $0x138] sm:$0xff]
        %v3267 = vld [vmem:[%s5 + $0x140] sm:$0xff]
        %v3268 = vld [vmem:[%s5 + $0x148] sm:$0xff]
        %v3269 = vld [vmem:[%s5 + $0x150] sm:$0xff]
        %v3270 = vld [vmem:[%s5 + $0x158] sm:$0xff]
        %v3271 = vld [vmem:[%s5 + $0x160] sm:$0xff]
        %v3272 = vld [vmem:[%s5 + $0x168] sm:$0xff]
        %v3273 = vld [vmem:[%s5 + $0x170] sm:$0xff]
        %v3274 = vld [vmem:[%s5 + $0x178] sm:$0xff]
        %v3275 = vld [vmem:[%s5 + $0x180] sm:$0xff]
        %v3276 = vld [vmem:[%s5 + $0x188] sm:$0xff]
        %v3277 = vld [vmem:[%s5 + $0x190] sm:$0xff]
        %v3278 = vld [vmem:[%s5 + $0x198] sm:$0xff]
        %v3279 = vld [vmem:[%s5 + $0x1a0] sm:$0xff]
        %v3280 = vld [vmem:[%s5 + $0x1a8] sm:$0xff]
        %v3281 = vld [vmem:[%s5 + $0x1b0] sm:$0xff]
        %v3282 = vld [vmem:[%s5 + $0x1b8] sm:$0xff]
        %v3283 = vld [vmem:[%s5 + $0x1c0] sm:$0xff]
        %v3284 = vld [vmem:[%s5 + $0x1c8] sm:$0xff]
        %v3285 = vld [vmem:[%s5 + $0x1d0] sm:$0xff]
        %v3286 = vld [vmem:[%s5 + $0x1d8] sm:$0xff]
        %v3287 = vld [vmem:[%s5 + $0x1e0] sm:$0xff]
        %v3288 = vld [vmem:[%s5 + $0x1e8] sm:$0xff]
        %v3289 = vld [vmem:[%s5 + $0x1f0] sm:$0xff]
        %v3290 = vld [vmem:[%s5 + $0x1f8] sm:$0xff]
        %v3355 = vunpack.c.l.b16 %v3227
        %v3356 = vunpack.c.h.b16 %v3227
        %v3357 = vunpack.c.l.b16 %v3228
        %v3358 = vunpack.c.h.b16 %v3228
        %v3359 = vunpack.c.l.b16 %v3229
        %v3360 = vunpack.c.h.b16 %v3229
        %v3361 = vunpack.c.l.b16 %v3230
        %v3362 = vunpack.c.h.b16 %v3230
        %v3363 = vunpack.c.l.b16 %v3231
        %v3364 = vunpack.c.h.b16 %v3231
        %v3365 = vunpack.c.l.b16 %v3232
        %v3366 = vunpack.c.h.b16 %v3232
        %v3367 = vunpack.c.l.b16 %v3233
        %v3368 = vunpack.c.h.b16 %v3233
        %v3369 = vunpack.c.l.b16 %v3234
        %v3370 = vunpack.c.h.b16 %v3234
        %v3371 = vunpack.c.l.b16 %v3235
        %v3372 = vunpack.c.h.b16 %v3235
        %v3373 = vunpack.c.l.b16 %v3236
        %v3374 = vunpack.c.h.b16 %v3236
        %v3375 = vunpack.c.l.b16 %v3237
        %v3376 = vunpack.c.h.b16 %v3237
        %v3377 = vunpack.c.l.b16 %v3238
        %v3378 = vunpack.c.h.b16 %v3238
        %v3379 = vunpack.c.l.b16 %v3239
        %v3380 = vunpack.c.h.b16 %v3239
        %v3381 = vunpack.c.l.b16 %v3240
        %v3382 = vunpack.c.h.b16 %v3240
        %v3383 = vunpack.c.l.b16 %v3241
        %v3384 = vunpack.c.h.b16 %v3241
        %v3385 = vunpack.c.l.b16 %v3242
        %v3386 = vunpack.c.h.b16 %v3242
        %v3387 = vunpack.c.l.b16 %v3243
        %v3388 = vunpack.c.h.b16 %v3243
        %v3389 = vunpack.c.l.b16 %v3244
        %v3390 = vunpack.c.h.b16 %v3244
        %v3391 = vunpack.c.l.b16 %v3245
        %v3392 = vunpack.c.h.b16 %v3245
        %v3393 = vunpack.c.l.b16 %v3246
        %v3394 = vunpack.c.h.b16 %v3246
        %v3395 = vunpack.c.l.b16 %v3247
        %v3396 = vunpack.c.h.b16 %v3247
        %v3397 = vunpack.c.l.b16 %v3248
        %v3398 = vunpack.c.h.b16 %v3248
        %v3399 = vunpack.c.l.b16 %v3249
        %v3400 = vunpack.c.h.b16 %v3249
        %v3401 = vunpack.c.l.b16 %v3250
        %v3402 = vunpack.c.h.b16 %v3250
        %v3403 = vunpack.c.l.b16 %v3251
        %v3404 = vunpack.c.h.b16 %v3251
        %v3405 = vunpack.c.l.b16 %v3252
        %v3406 = vunpack.c.h.b16 %v3252
        %v3407 = vunpack.c.l.b16 %v3253
        %v3408 = vunpack.c.h.b16 %v3253
        %v3409 = vunpack.c.l.b16 %v3254
        %v3410 = vunpack.c.h.b16 %v3254
        %v3411 = vunpack.c.l.b16 %v3255
        %v3412 = vunpack.c.h.b16 %v3255
        %v3413 = vunpack.c.l.b16 %v3256
        %v3414 = vunpack.c.h.b16 %v3256
        %v3415 = vunpack.c.l.b16 %v3257
        %v3416 = vunpack.c.h.b16 %v3257
        %v3417 = vunpack.c.l.b16 %v3258
        %v3418 = vunpack.c.h.b16 %v3258
        %v3419 = vunpack.c.l.b16 %v3259
        %v3420 = vunpack.c.h.b16 %v3259
        %v3421 = vunpack.c.l.b16 %v3260
        %v3422 = vunpack.c.h.b16 %v3260
        %v3423 = vunpack.c.l.b16 %v3261
        %v3424 = vunpack.c.h.b16 %v3261
        %v3425 = vunpack.c.l.b16 %v3262
        %v3426 = vunpack.c.h.b16 %v3262
        %v3427 = vunpack.c.l.b16 %v3263
        %v3428 = vunpack.c.h.b16 %v3263
        %v3429 = vunpack.c.l.b16 %v3264
        %v3430 = vunpack.c.h.b16 %v3264
        %v3431 = vunpack.c.l.b16 %v3265
        %v3432 = vunpack.c.h.b16 %v3265
        %v3433 = vunpack.c.l.b16 %v3266
        %v3434 = vunpack.c.h.b16 %v3266
        %v3435 = vunpack.c.l.b16 %v3267
        %v3436 = vunpack.c.h.b16 %v3267
        %v3437 = vunpack.c.l.b16 %v3268
        %v3438 = vunpack.c.h.b16 %v3268
        %v3439 = vunpack.c.l.b16 %v3269
        %v3440 = vunpack.c.h.b16 %v3269
        %v3441 = vunpack.c.l.b16 %v3270
        %v3442 = vunpack.c.h.b16 %v3270
        %v3443 = vunpack.c.l.b16 %v3271
        %v3444 = vunpack.c.h.b16 %v3271
        %v3445 = vunpack.c.l.b16 %v3272
        %v3446 = vunpack.c.h.b16 %v3272
        %v3447 = vunpack.c.l.b16 %v3273
        %v3448 = vunpack.c.h.b16 %v3273
        %v3449 = vunpack.c.l.b16 %v3274
        %v3450 = vunpack.c.h.b16 %v3274
        %v3451 = vunpack.c.l.b16 %v3275
        %v3452 = vunpack.c.h.b16 %v3275
        %v3453 = vunpack.c.l.b16 %v3276
        %v3454 = vunpack.c.h.b16 %v3276
        %v3455 = vunpack.c.l.b16 %v3277
        %v3456 = vunpack.c.h.b16 %v3277
        %v3457 = vunpack.c.l.b16 %v3278
        %v3458 = vunpack.c.h.b16 %v3278
        %v3459 = vunpack.c.l.b16 %v3279
        %v3460 = vunpack.c.h.b16 %v3279
        %v3461 = vunpack.c.l.b16 %v3280
        %v3462 = vunpack.c.h.b16 %v3280
        %v3463 = vunpack.c.l.b16 %v3281
        %v3464 = vunpack.c.h.b16 %v3281
        %v3465 = vunpack.c.l.b16 %v3282
        %v3466 = vunpack.c.h.b16 %v3282
        %v3467 = vunpack.c.l.b16 %v3283
        %v3468 = vunpack.c.h.b16 %v3283
        %v3469 = vunpack.c.l.b16 %v3284
        %v3470 = vunpack.c.h.b16 %v3284
        %v3471 = vunpack.c.l.b16 %v3285
        %v3472 = vunpack.c.h.b16 %v3285
        %v3473 = vunpack.c.l.b16 %v3286
        %v3474 = vunpack.c.h.b16 %v3286
        %v3475 = vunpack.c.l.b16 %v3287
        %v3476 = vunpack.c.h.b16 %v3287
        %v3477 = vunpack.c.l.b16 %v3288
        %v3478 = vunpack.c.h.b16 %v3288
        %v3479 = vunpack.c.l.b16 %v3289
        %v3480 = vunpack.c.h.b16 %v3289
        %v3481 = vunpack.c.l.b16 %v3290
        %v3482 = vunpack.c.h.b16 %v3290
        %v3483 = vpack.c.b16 %v3363, %v3355
        %v3484 = vpack.c.b16 %v3364, %v3356
        %v3485 = vpack.c.b16 %v3365, %v3357
        %v3486 = vpack.c.b16 %v3366, %v3358
        %v3487 = vpack.c.b16 %v3367, %v3359
        %v3488 = vpack.c.b16 %v3368, %v3360
        %v3489 = vpack.c.b16 %v3369, %v3361
        %v3490 = vpack.c.b16 %v3370, %v3362
        %v3491 = vpack.c.b16 %v3379, %v3371
        %v3492 = vpack.c.b16 %v3380, %v3372
        %v3493 = vpack.c.b16 %v3381, %v3373
        %v3494 = vpack.c.b16 %v3382, %v3374
        %v3495 = vpack.c.b16 %v3383, %v3375
        %v3496 = vpack.c.b16 %v3384, %v3376
        %v3497 = vpack.c.b16 %v3385, %v3377
        %v3498 = vpack.c.b16 %v3386, %v3378
        %v3499 = vpack.c.b16 %v3395, %v3387
        %v3500 = vpack.c.b16 %v3396, %v3388
        %v3501 = vpack.c.b16 %v3397, %v3389
        %v3502 = vpack.c.b16 %v3398, %v3390
        %v3503 = vpack.c.b16 %v3399, %v3391
        %v3504 = vpack.c.b16 %v3400, %v3392
        %v3505 = vpack.c.b16 %v3401, %v3393
        %v3506 = vpack.c.b16 %v3402, %v3394
        %v3507 = vpack.c.b16 %v3411, %v3403
        %v3508 = vpack.c.b16 %v3412, %v3404
        %v3509 = vpack.c.b16 %v3413, %v3405
        %v3510 = vpack.c.b16 %v3414, %v3406
        %v3511 = vpack.c.b16 %v3415, %v3407
        %v3512 = vpack.c.b16 %v3416, %v3408
        %v3513 = vpack.c.b16 %v3417, %v3409
        %v3514 = vpack.c.b16 %v3418, %v3410
        %v3515 = vpack.c.b16 %v3427, %v3419
        %v3516 = vpack.c.b16 %v3428, %v3420
        %v3517 = vpack.c.b16 %v3429, %v3421
        %v3518 = vpack.c.b16 %v3430, %v3422
        %v3519 = vpack.c.b16 %v3431, %v3423
        %v3520 = vpack.c.b16 %v3432, %v3424
        %v3521 = vpack.c.b16 %v3433, %v3425
        %v3522 = vpack.c.b16 %v3434, %v3426
        %v3523 = vpack.c.b16 %v3443, %v3435
        %v3524 = vpack.c.b16 %v3444, %v3436
        %v3525 = vpack.c.b16 %v3445, %v3437
        %v3526 = vpack.c.b16 %v3446, %v3438
        %v3527 = vpack.c.b16 %v3447, %v3439
        %v3528 = vpack.c.b16 %v3448, %v3440
        %v3529 = vpack.c.b16 %v3449, %v3441
        %v3530 = vpack.c.b16 %v3450, %v3442
        %v3531 = vpack.c.b16 %v3459, %v3451
        %v3532 = vpack.c.b16 %v3460, %v3452
        %v3533 = vpack.c.b16 %v3461, %v3453
        %v3534 = vpack.c.b16 %v3462, %v3454
        %v3535 = vpack.c.b16 %v3463, %v3455
        %v3536 = vpack.c.b16 %v3464, %v3456
        %v3537 = vpack.c.b16 %v3465, %v3457
        %v3538 = vpack.c.b16 %v3466, %v3458
        %v3539 = vpack.c.b16 %v3475, %v3467
        %v3540 = vpack.c.b16 %v3476, %v3468
        %v3541 = vpack.c.b16 %v3477, %v3469
        %v3542 = vpack.c.b16 %v3478, %v3470
        %v3543 = vpack.c.b16 %v3479, %v3471
        %v3544 = vpack.c.b16 %v3480, %v3472
        %v3545 = vpack.c.b16 %v3481, %v3473
        %v3546 = vpack.c.b16 %v3482, %v3474
        %3611 = vmatprep.subr.bf16.mxu0 %v3484
        %3612 = vmatpush1.bf16.msra.mxu0 %v3483
        %3613 = vmatprep.subr.bf16.mxu0 %v3492
        %3614 = vmatpush1.bf16.msra.mxu0 %v3491
        %3615 = vmatprep.subr.bf16.mxu0 %v3500
        %3616 = vmatpush1.bf16.msra.mxu0 %v3499
        %3617 = vmatprep.subr.bf16.mxu0 %v3508
        %3618 = vmatpush1.bf16.msra.mxu0 %v3507
        %3619 = vmatprep.subr.bf16.mxu0 %v3516
        %3620 = vmatpush1.bf16.msra.mxu0 %v3515
        %3621 = vmatprep.subr.bf16.mxu0 %v3524
        %3622 = vmatpush1.bf16.msra.mxu0 %v3523
        %3623 = vmatprep.subr.bf16.mxu0 %v3532
        %3624 = vmatpush1.bf16.msra.mxu0 %v3531
        %3625 = vmatprep.subr.bf16.mxu0 %v3540
        %3626 = vmatpush1.bf16.msra.mxu0 %v3539
        %3627 = vmatprep.subr.bf16.mxu0 0
        %3628 = vmatpush1.bf16.msra.mxu0 0
        %3629 = vmatprep.subr.bf16.mxu0 0
        %3630 = vmatpush1.bf16.msra.mxu0 0
        %3631 = vmatprep.subr.bf16.mxu0 0
        %3632 = vmatpush1.bf16.msra.mxu0 0
        %3633 = vmatprep.subr.bf16.mxu0 0
        %3634 = vmatpush1.bf16.msra.mxu0 0
        %3635 = vmatprep.subr.bf16.mxu0 0
        %3636 = vmatpush1.bf16.msra.mxu0 0
        %3637 = vmatprep.subr.bf16.mxu0 0
        %3638 = vmatpush1.bf16.msra.mxu0 0
        %3639 = vmatprep.subr.bf16.mxu0 0
        %3640 = vmatpush1.bf16.msra.mxu0 0
        %3641 = vmatprep.subr.bf16.mxu0 0
        %3642 = vmatpush1.bf16.msra.mxu0 0
        %3643 = vmatprep.mubr.bf16.mxu0 0
        %3644 = vmatmul.mubr.bf16.gmra.mrb[0].mxu0 %v3163
        %v3645 = vpop.f32.mrb[0].mxu0
        %v3646 = vadd.f32 0.0, %v3645
        %v3647 = vpop.f32.mrb[0].mxu0
        %v3648 = vadd.f32 0.0, %v3647
        %v3649 = vpop.f32.mrb[0].mxu0
        %v3650 = vadd.f32 0.0, %v3649
        %v3651 = vpop.f32.mrb[0].mxu0
        %v3652 = vadd.f32 0.0, %v3651
        %3653 = vmatprep.mubr.bf16.mxu0 0
        %3654 = vmatmul.mubr.bf16.gmra.mrb[0].mxu0 %v3164
        %v3655 = vpop.f32.mrb[0].mxu0
        %v3656 = vadd.f32 0.0, %v3655
        %v3657 = vpop.f32.mrb[0].mxu0
        %v3658 = vadd.f32 0.0, %v3657
        %v3659 = vpop.f32.mrb[0].mxu0
        %v3660 = vadd.f32 0.0, %v3659
        %v3661 = vpop.f32.mrb[0].mxu0
        %v3662 = vadd.f32 0.0, %v3661
        %3663 = vmatprep.mubr.bf16.mxu0 0
        %3664 = vmatmul.mubr.bf16.gmra.mrb[0].mxu0 %v3165
        %v3665 = vpop.f32.mrb[0].mxu0
        %v3666 = vadd.f32 0.0, %v3665
        %v3667 = vpop.f32.mrb[0].mxu0
        %v3668 = vadd.f32 0.0, %v3667
        %v3669 = vpop.f32.mrb[0].mxu0
        %v3670 = vadd.f32 0.0, %v3669
        %v3671 = vpop.f32.mrb[0].mxu0
        %v3672 = vadd.f32 0.0, %v3671
        %3673 = vmatprep.mubr.bf16.mxu0 0
        %3674 = vmatmul.mubr.bf16.gmra.mrb[0].mxu0 %v3166
        %v3675 = vpop.f32.mrb[0].mxu0
        %v3676 = vadd.f32 0.0, %v3675
        %v3677 = vpop.f32.mrb[0].mxu0
        %v3678 = vadd.f32 0.0, %v3677
        %v3679 = vpop.f32.mrb[0].mxu0
        %v3680 = vadd.f32 0.0, %v3679
        %v3681 = vpop.f32.mrb[0].mxu0
        %v3682 = vadd.f32 0.0, %v3681
        %3683 = vmatprep.mubr.bf16.mxu0 0
        %3684 = vmatmul.mubr.bf16.gmra.mrb[0].mxu0 %v3167
        %v3685 = vpop.f32.mrb[0].mxu0
        %v3686 = vadd.f32 0.0, %v3685
        %v3687 = vpop.f32.mrb[0].mxu0
        %v3688 = vadd.f32 0.0, %v3687
        %v3689 = vpop.f32.mrb[0].mxu0
        %v3690 = vadd.f32 0.0, %v3689
        %v3691 = vpop.f32.mrb[0].mxu0
        %v3692 = vadd.f32 0.0, %v3691
        %3693 = vmatprep.mubr.bf16.mxu0 0
        %3694 = vmatmul.mubr.bf16.gmra.mrb[0].mxu0 %v3168
        %v3695 = vpop.f32.mrb[0].mxu0
        %v3696 = vadd.f32 0.0, %v3695
        %v3697 = vpop.f32.mrb[0].mxu0
        %v3698 = vadd.f32 0.0, %v3697
        %v3699 = vpop.f32.mrb[0].mxu0
        %v3700 = vadd.f32 0.0, %v3699
        %v3701 = vpop.f32.mrb[0].mxu0
        %v3702 = vadd.f32 0.0, %v3701
        %3703 = vmatprep.mubr.bf16.mxu0 0
        %3704 = vmatmul.mubr.bf16.gmra.mrb[0].mxu0 %v3169
        %v3705 = vpop.f32.mrb[0].mxu0
        %v3706 = vadd.f32 0.0, %v3705
        %v3707 = vpop.f32.mrb[0].mxu0
        %v3708 = vadd.f32 0.0, %v3707
        %v3709 = vpop.f32.mrb[0].mxu0
        %v3710 = vadd.f32 0.0, %v3709
        %v3711 = vpop.f32.mrb[0].mxu0
        %v3712 = vadd.f32 0.0, %v3711
        %3713 = vmatprep.mubr.bf16.mxu0 0
        %3714 = vmatmul.mubr.bf16.gmra.mrb[0].mxu0 %v3170
        %v3715 = vpop.f32.mrb[0].mxu0
        %v3716 = vadd.f32 0.0, %v3715
        %v3717 = vpop.f32.mrb[0].mxu0
        %v3718 = vadd.f32 0.0, %v3717
        %v3719 = vpop.f32.mrb[0].mxu0
        %v3720 = vadd.f32 0.0, %v3719
        %v3721 = vpop.f32.mrb[0].mxu0
        %v3722 = vadd.f32 0.0, %v3721
        %3723 = vmatprep.mubr.bf16.mxu0 0
        %3724 = vmatmul.mubr.bf16.gmra.mrb[0].mxu0 %v3171
        %v3725 = vpop.f32.mrb[0].mxu0
        %v3726 = vadd.f32 0.0, %v3725
        %v3727 = vpop.f32.mrb[0].mxu0
        %v3728 = vadd.f32 0.0, %v3727
        %v3729 = vpop.f32.mrb[0].mxu0
        %v3730 = vadd.f32 0.0, %v3729
        %v3731 = vpop.f32.mrb[0].mxu0
        %v3732 = vadd.f32 0.0, %v3731
        %3733 = vmatprep.mubr.bf16.mxu0 0
        %3734 = vmatmul.mubr.bf16.gmra.mrb[0].mxu0 %v3172
        %v3735 = vpop.f32.mrb[0].mxu0
        %v3736 = vadd.f32 0.0, %v3735
        %v3737 = vpop.f32.mrb[0].mxu0
        %v3738 = vadd.f32 0.0, %v3737
        %v3739 = vpop.f32.mrb[0].mxu0
        %v3740 = vadd.f32 0.0, %v3739
        %v3741 = vpop.f32.mrb[0].mxu0
        %v3742 = vadd.f32 0.0, %v3741
        %3743 = vmatprep.mubr.bf16.mxu0 0
        %3744 = vmatmul.mubr.bf16.gmra.mrb[0].mxu0 %v3173
        %v3745 = vpop.f32.mrb[0].mxu0
        %v3746 = vadd.f32 0.0, %v3745
        %v3747 = vpop.f32.mrb[0].mxu0
        %v3748 = vadd.f32 0.0, %v3747
        %v3749 = vpop.f32.mrb[0].mxu0
        %v3750 = vadd.f32 0.0, %v3749
        %v3751 = vpop.f32.mrb[0].mxu0
        %v3752 = vadd.f32 0.0, %v3751
        %3753 = vmatprep.mubr.bf16.mxu0 0
        %3754 = vmatmul.mubr.bf16.gmra.mrb[0].mxu0 %v3174
        %v3755 = vpop.f32.mrb[0].mxu0
        %v3756 = vadd.f32 0.0, %v3755
        %v3757 = vpop.f32.mrb[0].mxu0
        %v3758 = vadd.f32 0.0, %v3757
        %v3759 = vpop.f32.mrb[0].mxu0
        %v3760 = vadd.f32 0.0, %v3759
        %v3761 = vpop.f32.mrb[0].mxu0
        %v3762 = vadd.f32 0.0, %v3761
        %3763 = vmatprep.mubr.bf16.mxu0 0
        %3764 = vmatmul.mubr.bf16.gmra.mrb[0].mxu0 %v3175
        %v3765 = vpop.f32.mrb[0].mxu0
        %v3766 = vadd.f32 0.0, %v3765
        %v3767 = vpop.f32.mrb[0].mxu0
        %v3768 = vadd.f32 0.0, %v3767
        %v3769 = vpop.f32.mrb[0].mxu0
        %v3770 = vadd.f32 0.0, %v3769
        %v3771 = vpop.f32.mrb[0].mxu0
        %v3772 = vadd.f32 0.0, %v3771
        %3773 = vmatprep.mubr.bf16.mxu0 0
        %3774 = vmatmul.mubr.bf16.gmra.mrb[0].mxu0 %v3176
        %v3775 = vpop.f32.mrb[0].mxu0
        %v3776 = vadd.f32 0.0, %v3775
        %v3777 = vpop.f32.mrb[0].mxu0
        %v3778 = vadd.f32 0.0, %v3777
        %v3779 = vpop.f32.mrb[0].mxu0
        %v3780 = vadd.f32 0.0, %v3779
        %v3781 = vpop.f32.mrb[0].mxu0
        %v3782 = vadd.f32 0.0, %v3781
        %3783 = vmatprep.mubr.bf16.mxu0 0
        %3784 = vmatmul.mubr.bf16.gmra.mrb[0].mxu0 %v3177
        %v3785 = vpop.f32.mrb[0].mxu0
        %v3786 = vadd.f32 0.0, %v3785
        %v3787 = vpop.f32.mrb[0].mxu0
        %v3788 = vadd.f32 0.0, %v3787
        %v3789 = vpop.f32.mrb[0].mxu0
        %v3790 = vadd.f32 0.0, %v3789
        %v3791 = vpop.f32.mrb[0].mxu0
        %v3792 = vadd.f32 0.0, %v3791
        %3793 = vmatprep.mubr.bf16.mxu0 0
        %3794 = vmatmul.mubr.bf16.gmra.mrb[0].mxu0 %v3178
        %v3795 = vpop.f32.mrb[0].mxu0
        %v3796 = vadd.f32 0.0, %v3795
        %v3797 = vpop.f32.mrb[0].mxu0
        %v3798 = vadd.f32 0.0, %v3797
        %v3799 = vpop.f32.mrb[0].mxu0
        %v3800 = vadd.f32 0.0, %v3799
        %v3801 = vpop.f32.mrb[0].mxu0
        %v3802 = vadd.f32 0.0, %v3801
        %3803 = vmatprep.mubr.bf16.mxu0 0
        %3804 = vmatmul.mubr.bf16.gmra.mrb[0].mxu0 %v3179
        %v3805 = vpop.f32.mrb[0].mxu0
        %v3806 = vadd.f32 0.0, %v3805
        %v3807 = vpop.f32.mrb[0].mxu0
        %v3808 = vadd.f32 0.0, %v3807
        %v3809 = vpop.f32.mrb[0].mxu0
        %v3810 = vadd.f32 0.0, %v3809
        %v3811 = vpop.f32.mrb[0].mxu0
        %v3812 = vadd.f32 0.0, %v3811
        %3813 = vmatprep.mubr.bf16.mxu0 0
        %3814 = vmatmul.mubr.bf16.gmra.mrb[0].mxu0 %v3180
        %v3815 = vpop.f32.mrb[0].mxu0
        %v3816 = vadd.f32 0.0, %v3815
        %v3817 = vpop.f32.mrb[0].mxu0
        %v3818 = vadd.f32 0.0, %v3817
        %v3819 = vpop.f32.mrb[0].mxu0
        %v3820 = vadd.f32 0.0, %v3819
        %v3821 = vpop.f32.mrb[0].mxu0
        %v3822 = vadd.f32 0.0, %v3821
        %3823 = vmatprep.mubr.bf16.mxu0 0
        %3824 = vmatmul.mubr.bf16.gmra.mrb[0].mxu0 %v3181
        %v3825 = vpop.f32.mrb[0].mxu0
        %v3826 = vadd.f32 0.0, %v3825
        %v3827 = vpop.f32.mrb[0].mxu0
        %v3828 = vadd.f32 0.0, %v3827
        %v3829 = vpop.f32.mrb[0].mxu0
        %v3830 = vadd.f32 0.0, %v3829
        %v3831 = vpop.f32.mrb[0].mxu0
        %v3832 = vadd.f32 0.0, %v3831
        %3833 = vmatprep.mubr.bf16.mxu0 0
        %3834 = vmatmul.mubr.bf16.gmra.mrb[0].mxu0 %v3182
        %v3835 = vpop.f32.mrb[0].mxu0
        %v3836 = vadd.f32 0.0, %v3835
        %v3837 = vpop.f32.mrb[0].mxu0
        %v3838 = vadd.f32 0.0, %v3837
        %v3839 = vpop.f32.mrb[0].mxu0
        %v3840 = vadd.f32 0.0, %v3839
        %v3841 = vpop.f32.mrb[0].mxu0
        %v3842 = vadd.f32 0.0, %v3841
        %3843 = vmatprep.mubr.bf16.mxu0 0
        %3844 = vmatmul.mubr.bf16.gmra.mrb[0].mxu0 %v3183
        %v3845 = vpop.f32.mrb[0].mxu0
        %v3846 = vadd.f32 0.0, %v3845
        %v3847 = vpop.f32.mrb[0].mxu0
        %v3848 = vadd.f32 0.0, %v3847
        %v3849 = vpop.f32.mrb[0].mxu0
        %v3850 = vadd.f32 0.0, %v3849
        %v3851 = vpop.f32.mrb[0].mxu0
        %v3852 = vadd.f32 0.0, %v3851
        %3853 = vmatprep.mubr.bf16.mxu0 0
        %3854 = vmatmul.mubr.bf16.gmra.mrb[0].mxu0 %v3184
        %v3855 = vpop.f32.mrb[0].mxu0
        %v3856 = vadd.f32 0.0, %v3855
        %v3857 = vpop.f32.mrb[0].mxu0
        %v3858 = vadd.f32 0.0, %v3857
        %v3859 = vpop.f32.mrb[0].mxu0
        %v3860 = vadd.f32 0.0, %v3859
        %v3861 = vpop.f32.mrb[0].mxu0
        %v3862 = vadd.f32 0.0, %v3861
        %3863 = vmatprep.mubr.bf16.mxu0 0
        %3864 = vmatmul.mubr.bf16.gmra.mrb[0].mxu0 %v3185
        %v3865 = vpop.f32.mrb[0].mxu0
        %v3866 = vadd.f32 0.0, %v3865
        %v3867 = vpop.f32.mrb[0].mxu0
        %v3868 = vadd.f32 0.0, %v3867
        %v3869 = vpop.f32.mrb[0].mxu0
        %v3870 = vadd.f32 0.0, %v3869
        %v3871 = vpop.f32.mrb[0].mxu0
        %v3872 = vadd.f32 0.0, %v3871
        %3873 = vmatprep.mubr.bf16.mxu0 0
        %3874 = vmatmul.mubr.bf16.gmra.mrb[0].mxu0 %v3186
        %v3875 = vpop.f32.mrb[0].mxu0
        %v3876 = vadd.f32 0.0, %v3875
        %v3877 = vpop.f32.mrb[0].mxu0
        %v3878 = vadd.f32 0.0, %v3877
        %v3879 = vpop.f32.mrb[0].mxu0
        %v3880 = vadd.f32 0.0, %v3879
        %v3881 = vpop.f32.mrb[0].mxu0
        %v3882 = vadd.f32 0.0, %v3881
        %3883 = vmatprep.mubr.bf16.mxu0 0
        %3884 = vmatmul.mubr.bf16.gmra.mrb[0].mxu0 %v3187
        %v3885 = vpop.f32.mrb[0].mxu0
        %v3886 = vadd.f32 0.0, %v3885
        %v3887 = vpop.f32.mrb[0].mxu0
        %v3888 = vadd.f32 0.0, %v3887
        %v3889 = vpop.f32.mrb[0].mxu0
        %v3890 = vadd.f32 0.0, %v3889
        %v3891 = vpop.f32.mrb[0].mxu0
        %v3892 = vadd.f32 0.0, %v3891
        %3893 = vmatprep.mubr.bf16.mxu0 0
        %3894 = vmatmul.mubr.bf16.gmra.mrb[0].mxu0 %v3188
        %v3895 = vpop.f32.mrb[0].mxu0
        %v3896 = vadd.f32 0.0, %v3895
        %v3897 = vpop.f32.mrb[0].mxu0
        %v3898 = vadd.f32 0.0, %v3897
        %v3899 = vpop.f32.mrb[0].mxu0
        %v3900 = vadd.f32 0.0, %v3899
        %v3901 = vpop.f32.mrb[0].mxu0
        %v3902 = vadd.f32 0.0, %v3901
        %3903 = vmatprep.mubr.bf16.mxu0 0
        %3904 = vmatmul.mubr.bf16.gmra.mrb[0].mxu0 %v3189
        %v3905 = vpop.f32.mrb[0].mxu0
        %v3906 = vadd.f32 0.0, %v3905
        %v3907 = vpop.f32.mrb[0].mxu0
        %v3908 = vadd.f32 0.0, %v3907
        %v3909 = vpop.f32.mrb[0].mxu0
        %v3910 = vadd.f32 0.0, %v3909
        %v3911 = vpop.f32.mrb[0].mxu0
        %v3912 = vadd.f32 0.0, %v3911
        %3913 = vmatprep.mubr.bf16.mxu0 0
        %3914 = vmatmul.mubr.bf16.gmra.mrb[0].mxu0 %v3190
        %v3915 = vpop.f32.mrb[0].mxu0
        %v3916 = vadd.f32 0.0, %v3915
        %v3917 = vpop.f32.mrb[0].mxu0
        %v3918 = vadd.f32 0.0, %v3917
        %v3919 = vpop.f32.mrb[0].mxu0
        %v3920 = vadd.f32 0.0, %v3919
        %v3921 = vpop.f32.mrb[0].mxu0
        %v3922 = vadd.f32 0.0, %v3921
        %3923 = vmatprep.mubr.bf16.mxu0 0
        %3924 = vmatmul.mubr.bf16.gmra.mrb[0].mxu0 %v3191
        %v3925 = vpop.f32.mrb[0].mxu0
        %v3926 = vadd.f32 0.0, %v3925
        %v3927 = vpop.f32.mrb[0].mxu0
        %v3928 = vadd.f32 0.0, %v3927
        %v3929 = vpop.f32.mrb[0].mxu0
        %v3930 = vadd.f32 0.0, %v3929
        %v3931 = vpop.f32.mrb[0].mxu0
        %v3932 = vadd.f32 0.0, %v3931
        %3933 = vmatprep.mubr.bf16.mxu0 0
        %3934 = vmatmul.mubr.bf16.gmra.mrb[0].mxu0 %v3192
        %v3935 = vpop.f32.mrb[0].mxu0
        %v3936 = vadd.f32 0.0, %v3935
        %v3937 = vpop.f32.mrb[0].mxu0
        %v3938 = vadd.f32 0.0, %v3937
        %v3939 = vpop.f32.mrb[0].mxu0
        %v3940 = vadd.f32 0.0, %v3939
        %v3941 = vpop.f32.mrb[0].mxu0
        %v3942 = vadd.f32 0.0, %v3941
        %3943 = vmatprep.mubr.bf16.mxu0 0
        %3944 = vmatmul.mubr.bf16.gmra.mrb[0].mxu0 %v3193
        %v3945 = vpop.f32.mrb[0].mxu0
        %v3946 = vadd.f32 0.0, %v3945
        %v3947 = vpop.f32.mrb[0].mxu0
        %v3948 = vadd.f32 0.0, %v3947
        %v3949 = vpop.f32.mrb[0].mxu0
        %v3950 = vadd.f32 0.0, %v3949
        %v3951 = vpop.f32.mrb[0].mxu0
        %v3952 = vadd.f32 0.0, %v3951
        %3953 = vmatprep.mubr.bf16.mxu0 0
        %3954 = vmatmul.mubr.bf16.gmra.mrb[0].mxu0 %v3194
        %v3955 = vpop.f32.mrb[0].mxu0
        %v3956 = vadd.f32 0.0, %v3955
        %v3957 = vpop.f32.mrb[0].mxu0
        %v3958 = vadd.f32 0.0, %v3957
        %v3959 = vpop.f32.mrb[0].mxu0
        %v3960 = vadd.f32 0.0, %v3959
        %v3961 = vpop.f32.mrb[0].mxu0
        %v3962 = vadd.f32 0.0, %v3961
        %3963 = vmatprep.mubr.bf16.mxu0 0
        %3964 = vmatmul.mubr.bf16.gmra.mrb[0].mxu0 %v3195
        %v3965 = vpop.f32.mrb[0].mxu0
        %v3966 = vadd.f32 0.0, %v3965
        %v3967 = vpop.f32.mrb[0].mxu0
        %v3968 = vadd.f32 0.0, %v3967
        %v3969 = vpop.f32.mrb[0].mxu0
        %v3970 = vadd.f32 0.0, %v3969
        %v3971 = vpop.f32.mrb[0].mxu0
        %v3972 = vadd.f32 0.0, %v3971
        %3973 = vmatprep.mubr.bf16.mxu0 0
        %3974 = vmatmul.mubr.bf16.gmra.mrb[0].mxu0 %v3196
        %v3975 = vpop.f32.mrb[0].mxu0
        %v3976 = vadd.f32 0.0, %v3975
        %v3977 = vpop.f32.mrb[0].mxu0
        %v3978 = vadd.f32 0.0, %v3977
        %v3979 = vpop.f32.mrb[0].mxu0
        %v3980 = vadd.f32 0.0, %v3979
        %v3981 = vpop.f32.mrb[0].mxu0
        %v3982 = vadd.f32 0.0, %v3981
        %3983 = vmatprep.mubr.bf16.mxu0 0
        %3984 = vmatmul.mubr.bf16.gmra.mrb[0].mxu0 %v3197
        %v3985 = vpop.f32.mrb[0].mxu0
        %v3986 = vadd.f32 0.0, %v3985
        %v3987 = vpop.f32.mrb[0].mxu0
        %v3988 = vadd.f32 0.0, %v3987
        %v3989 = vpop.f32.mrb[0].mxu0
        %v3990 = vadd.f32 0.0, %v3989
        %v3991 = vpop.f32.mrb[0].mxu0
        %v3992 = vadd.f32 0.0, %v3991
        %3993 = vmatprep.mubr.bf16.mxu0 0
        %3994 = vmatmul.mubr.bf16.gmra.mrb[0].mxu0 %v3198
        %v3995 = vpop.f32.mrb[0].mxu0
        %v3996 = vadd.f32 0.0, %v3995
        %v3997 = vpop.f32.mrb[0].mxu0
        %v3998 = vadd.f32 0.0, %v3997
        %v3999 = vpop.f32.mrb[0].mxu0
        %v4000 = vadd.f32 0.0, %v3999
        %v4001 = vpop.f32.mrb[0].mxu0
        %v4002 = vadd.f32 0.0, %v4001
        %4003 = vmatprep.mubr.bf16.mxu0 0
        %4004 = vmatmul.mubr.bf16.gmra.mrb[0].mxu0 %v3199
        %v4005 = vpop.f32.mrb[0].mxu0
        %v4006 = vadd.f32 0.0, %v4005
        %v4007 = vpop.f32.mrb[0].mxu0
        %v4008 = vadd.f32 0.0, %v4007
        %v4009 = vpop.f32.mrb[0].mxu0
        %v4010 = vadd.f32 0.0, %v4009
        %v4011 = vpop.f32.mrb[0].mxu0
        %v4012 = vadd.f32 0.0, %v4011
        %4013 = vmatprep.mubr.bf16.mxu0 0
        %4014 = vmatmul.mubr.bf16.gmra.mrb[0].mxu0 %v3200
        %v4015 = vpop.f32.mrb[0].mxu0
        %v4016 = vadd.f32 0.0, %v4015
        %v4017 = vpop.f32.mrb[0].mxu0
        %v4018 = vadd.f32 0.0, %v4017
        %v4019 = vpop.f32.mrb[0].mxu0
        %v4020 = vadd.f32 0.0, %v4019
        %v4021 = vpop.f32.mrb[0].mxu0
        %v4022 = vadd.f32 0.0, %v4021
        %4023 = vmatprep.mubr.bf16.mxu0 0
        %4024 = vmatmul.mubr.bf16.gmra.mrb[0].mxu0 %v3201
        %v4025 = vpop.f32.mrb[0].mxu0
        %v4026 = vadd.f32 0.0, %v4025
        %v4027 = vpop.f32.mrb[0].mxu0
        %v4028 = vadd.f32 0.0, %v4027
        %v4029 = vpop.f32.mrb[0].mxu0
        %v4030 = vadd.f32 0.0, %v4029
        %v4031 = vpop.f32.mrb[0].mxu0
        %v4032 = vadd.f32 0.0, %v4031
        %4033 = vmatprep.mubr.bf16.mxu0 0
        %4034 = vmatmul.mubr.bf16.gmra.mrb[0].mxu0 %v3202
        %v4035 = vpop.f32.mrb[0].mxu0
        %v4036 = vadd.f32 0.0, %v4035
        %v4037 = vpop.f32.mrb[0].mxu0
        %v4038 = vadd.f32 0.0, %v4037
        %v4039 = vpop.f32.mrb[0].mxu0
        %v4040 = vadd.f32 0.0, %v4039
        %v4041 = vpop.f32.mrb[0].mxu0
        %v4042 = vadd.f32 0.0, %v4041
        %4043 = vmatprep.mubr.bf16.mxu0 0
        %4044 = vmatmul.mubr.bf16.gmra.mrb[0].mxu0 %v3203
        %v4045 = vpop.f32.mrb[0].mxu0
        %v4046 = vadd.f32 0.0, %v4045
        %v4047 = vpop.f32.mrb[0].mxu0
        %v4048 = vadd.f32 0.0, %v4047
        %v4049 = vpop.f32.mrb[0].mxu0
        %v4050 = vadd.f32 0.0, %v4049
        %v4051 = vpop.f32.mrb[0].mxu0
        %v4052 = vadd.f32 0.0, %v4051
        %4053 = vmatprep.mubr.bf16.mxu0 0
        %4054 = vmatmul.mubr.bf16.gmra.mrb[0].mxu0 %v3204
        %v4055 = vpop.f32.mrb[0].mxu0
        %v4056 = vadd.f32 0.0, %v4055
        %v4057 = vpop.f32.mrb[0].mxu0
        %v4058 = vadd.f32 0.0, %v4057
        %v4059 = vpop.f32.mrb[0].mxu0
        %v4060 = vadd.f32 0.0, %v4059
        %v4061 = vpop.f32.mrb[0].mxu0
        %v4062 = vadd.f32 0.0, %v4061
        %4063 = vmatprep.mubr.bf16.mxu0 0
        %4064 = vmatmul.mubr.bf16.gmra.mrb[0].mxu0 %v3205
        %v4065 = vpop.f32.mrb[0].mxu0
        %v4066 = vadd.f32 0.0, %v4065
        %v4067 = vpop.f32.mrb[0].mxu0
        %v4068 = vadd.f32 0.0, %v4067
        %v4069 = vpop.f32.mrb[0].mxu0
        %v4070 = vadd.f32 0.0, %v4069
        %v4071 = vpop.f32.mrb[0].mxu0
        %v4072 = vadd.f32 0.0, %v4071
        %4073 = vmatprep.mubr.bf16.mxu0 0
        %4074 = vmatmul.mubr.bf16.gmra.mrb[0].mxu0 %v3206
        %v4075 = vpop.f32.mrb[0].mxu0
        %v4076 = vadd.f32 0.0, %v4075
        %v4077 = vpop.f32.mrb[0].mxu0
        %v4078 = vadd.f32 0.0, %v4077
        %v4079 = vpop.f32.mrb[0].mxu0
        %v4080 = vadd.f32 0.0, %v4079
        %v4081 = vpop.f32.mrb[0].mxu0
        %v4082 = vadd.f32 0.0, %v4081
        %4083 = vmatprep.mubr.bf16.mxu0 0
        %4084 = vmatmul.mubr.bf16.gmra.mrb[0].mxu0 %v3207
        %v4085 = vpop.f32.mrb[0].mxu0
        %v4086 = vadd.f32 0.0, %v4085
        %v4087 = vpop.f32.mrb[0].mxu0
        %v4088 = vadd.f32 0.0, %v4087
        %v4089 = vpop.f32.mrb[0].mxu0
        %v4090 = vadd.f32 0.0, %v4089
        %v4091 = vpop.f32.mrb[0].mxu0
        %v4092 = vadd.f32 0.0, %v4091
        %4093 = vmatprep.mubr.bf16.mxu0 0
        %4094 = vmatmul.mubr.bf16.gmra.mrb[0].mxu0 %v3208
        %v4095 = vpop.f32.mrb[0].mxu0
        %v4096 = vadd.f32 0.0, %v4095
        %v4097 = vpop.f32.mrb[0].mxu0
        %v4098 = vadd.f32 0.0, %v4097
        %v4099 = vpop.f32.mrb[0].mxu0
        %v4100 = vadd.f32 0.0, %v4099
        %v4101 = vpop.f32.mrb[0].mxu0
        %v4102 = vadd.f32 0.0, %v4101
        %4103 = vmatprep.mubr.bf16.mxu0 0
        %4104 = vmatmul.mubr.bf16.gmra.mrb[0].mxu0 %v3209
        %v4105 = vpop.f32.mrb[0].mxu0
        %v4106 = vadd.f32 0.0, %v4105
        %v4107 = vpop.f32.mrb[0].mxu0
        %v4108 = vadd.f32 0.0, %v4107
        %v4109 = vpop.f32.mrb[0].mxu0
        %v4110 = vadd.f32 0.0, %v4109
        %v4111 = vpop.f32.mrb[0].mxu0
        %v4112 = vadd.f32 0.0, %v4111
        %4113 = vmatprep.mubr.bf16.mxu0 0
        %4114 = vmatmul.mubr.bf16.gmra.mrb[0].mxu0 %v3210
        %v4115 = vpop.f32.mrb[0].mxu0
        %v4116 = vadd.f32 0.0, %v4115
        %v4117 = vpop.f32.mrb[0].mxu0
        %v4118 = vadd.f32 0.0, %v4117
        %v4119 = vpop.f32.mrb[0].mxu0
        %v4120 = vadd.f32 0.0, %v4119
        %v4121 = vpop.f32.mrb[0].mxu0
        %v4122 = vadd.f32 0.0, %v4121
        %4123 = vmatprep.mubr.bf16.mxu0 0
        %4124 = vmatmul.mubr.bf16.gmra.mrb[0].mxu0 %v3211
        %v4125 = vpop.f32.mrb[0].mxu0
        %v4126 = vadd.f32 0.0, %v4125
        %v4127 = vpop.f32.mrb[0].mxu0
        %v4128 = vadd.f32 0.0, %v4127
        %v4129 = vpop.f32.mrb[0].mxu0
        %v4130 = vadd.f32 0.0, %v4129
        %v4131 = vpop.f32.mrb[0].mxu0
        %v4132 = vadd.f32 0.0, %v4131
        %4133 = vmatprep.mubr.bf16.mxu0 0
        %4134 = vmatmul.mubr.bf16.gmra.mrb[0].mxu0 %v3212
        %v4135 = vpop.f32.mrb[0].mxu0
        %v4136 = vadd.f32 0.0, %v4135
        %v4137 = vpop.f32.mrb[0].mxu0
        %v4138 = vadd.f32 0.0, %v4137
        %v4139 = vpop.f32.mrb[0].mxu0
        %v4140 = vadd.f32 0.0, %v4139
        %v4141 = vpop.f32.mrb[0].mxu0
        %v4142 = vadd.f32 0.0, %v4141
        %4143 = vmatprep.mubr.bf16.mxu0 0
        %4144 = vmatmul.mubr.bf16.gmra.mrb[0].mxu0 %v3213
        %v4145 = vpop.f32.mrb[0].mxu0
        %v4146 = vadd.f32 0.0, %v4145
        %v4147 = vpop.f32.mrb[0].mxu0
        %v4148 = vadd.f32 0.0, %v4147
        %v4149 = vpop.f32.mrb[0].mxu0
        %v4150 = vadd.f32 0.0, %v4149
        %v4151 = vpop.f32.mrb[0].mxu0
        %v4152 = vadd.f32 0.0, %v4151
        %4153 = vmatprep.mubr.bf16.mxu0 0
        %4154 = vmatmul.mubr.bf16.gmra.mrb[0].mxu0 %v3214
        %v4155 = vpop.f32.mrb[0].mxu0
        %v4156 = vadd.f32 0.0, %v4155
        %v4157 = vpop.f32.mrb[0].mxu0
        %v4158 = vadd.f32 0.0, %v4157
        %v4159 = vpop.f32.mrb[0].mxu0
        %v4160 = vadd.f32 0.0, %v4159
        %v4161 = vpop.f32.mrb[0].mxu0
        %v4162 = vadd.f32 0.0, %v4161
        %4163 = vmatprep.mubr.bf16.mxu0 0
        %4164 = vmatmul.mubr.bf16.gmra.mrb[0].mxu0 %v3215
        %v4165 = vpop.f32.mrb[0].mxu0
        %v4166 = vadd.f32 0.0, %v4165
        %v4167 = vpop.f32.mrb[0].mxu0
        %v4168 = vadd.f32 0.0, %v4167
        %v4169 = vpop.f32.mrb[0].mxu0
        %v4170 = vadd.f32 0.0, %v4169
        %v4171 = vpop.f32.mrb[0].mxu0
        %v4172 = vadd.f32 0.0, %v4171
        %4173 = vmatprep.mubr.bf16.mxu0 0
        %4174 = vmatmul.mubr.bf16.gmra.mrb[0].mxu0 %v3216
        %v4175 = vpop.f32.mrb[0].mxu0
        %v4176 = vadd.f32 0.0, %v4175
        %v4177 = vpop.f32.mrb[0].mxu0
        %v4178 = vadd.f32 0.0, %v4177
        %v4179 = vpop.f32.mrb[0].mxu0
        %v4180 = vadd.f32 0.0, %v4179
        %v4181 = vpop.f32.mrb[0].mxu0
        %v4182 = vadd.f32 0.0, %v4181
        %4183 = vmatprep.mubr.bf16.mxu0 0
        %4184 = vmatmul.mubr.bf16.gmra.mrb[0].mxu0 %v3217
        %v4185 = vpop.f32.mrb[0].mxu0
        %v4186 = vadd.f32 0.0, %v4185
        %v4187 = vpop.f32.mrb[0].mxu0
        %v4188 = vadd.f32 0.0, %v4187
        %v4189 = vpop.f32.mrb[0].mxu0
        %v4190 = vadd.f32 0.0, %v4189
        %v4191 = vpop.f32.mrb[0].mxu0
        %v4192 = vadd.f32 0.0, %v4191
        %4193 = vmatprep.mubr.bf16.mxu0 0
        %4194 = vmatmul.mubr.bf16.gmra.mrb[0].mxu0 %v3218
        %v4195 = vpop.f32.mrb[0].mxu0
        %v4196 = vadd.f32 0.0, %v4195
        %v4197 = vpop.f32.mrb[0].mxu0
        %v4198 = vadd.f32 0.0, %v4197
        %v4199 = vpop.f32.mrb[0].mxu0
        %v4200 = vadd.f32 0.0, %v4199
        %v4201 = vpop.f32.mrb[0].mxu0
        %v4202 = vadd.f32 0.0, %v4201
        %4203 = vmatprep.mubr.bf16.mxu0 0
        %4204 = vmatmul.mubr.bf16.gmra.mrb[0].mxu0 %v3219
        %v4205 = vpop.f32.mrb[0].mxu0
        %v4206 = vadd.f32 0.0, %v4205
        %v4207 = vpop.f32.mrb[0].mxu0
        %v4208 = vadd.f32 0.0, %v4207
        %v4209 = vpop.f32.mrb[0].mxu0
        %v4210 = vadd.f32 0.0, %v4209
        %v4211 = vpop.f32.mrb[0].mxu0
        %v4212 = vadd.f32 0.0, %v4211
        %4213 = vmatprep.mubr.bf16.mxu0 0
        %4214 = vmatmul.mubr.bf16.gmra.mrb[0].mxu0 %v3220
        %v4215 = vpop.f32.mrb[0].mxu0
        %v4216 = vadd.f32 0.0, %v4215
        %v4217 = vpop.f32.mrb[0].mxu0
        %v4218 = vadd.f32 0.0, %v4217
        %v4219 = vpop.f32.mrb[0].mxu0
        %v4220 = vadd.f32 0.0, %v4219
        %v4221 = vpop.f32.mrb[0].mxu0
        %v4222 = vadd.f32 0.0, %v4221
        %4223 = vmatprep.mubr.bf16.mxu0 0
        %4224 = vmatmul.mubr.bf16.gmra.mrb[0].mxu0 %v3221
        %v4225 = vpop.f32.mrb[0].mxu0
        %v4226 = vadd.f32 0.0, %v4225
        %v4227 = vpop.f32.mrb[0].mxu0
        %v4228 = vadd.f32 0.0, %v4227
        %v4229 = vpop.f32.mrb[0].mxu0
        %v4230 = vadd.f32 0.0, %v4229
        %v4231 = vpop.f32.mrb[0].mxu0
        %v4232 = vadd.f32 0.0, %v4231
        %4233 = vmatprep.mubr.bf16.mxu0 0
        %4234 = vmatmul.mubr.bf16.gmra.mrb[0].mxu0 %v3222
        %v4235 = vpop.f32.mrb[0].mxu0
        %v4236 = vadd.f32 0.0, %v4235
        %v4237 = vpop.f32.mrb[0].mxu0
        %v4238 = vadd.f32 0.0, %v4237
        %v4239 = vpop.f32.mrb[0].mxu0
        %v4240 = vadd.f32 0.0, %v4239
        %v4241 = vpop.f32.mrb[0].mxu0
        %v4242 = vadd.f32 0.0, %v4241
        %4243 = vmatprep.mubr.bf16.mxu0 0
        %4244 = vmatmul.mubr.bf16.gmra.mrb[0].mxu0 %v3223
        %v4245 = vpop.f32.mrb[0].mxu0
        %v4246 = vadd.f32 0.0, %v4245
        %v4247 = vpop.f32.mrb[0].mxu0
        %v4248 = vadd.f32 0.0, %v4247
        %v4249 = vpop.f32.mrb[0].mxu0
        %v4250 = vadd.f32 0.0, %v4249
        %v4251 = vpop.f32.mrb[0].mxu0
        %v4252 = vadd.f32 0.0, %v4251
        %4253 = vmatprep.mubr.bf16.mxu0 0
        %4254 = vmatmul.mubr.bf16.gmra.mrb[0].mxu0 %v3224
        %v4255 = vpop.f32.mrb[0].mxu0
        %v4256 = vadd.f32 0.0, %v4255
        %v4257 = vpop.f32.mrb[0].mxu0
        %v4258 = vadd.f32 0.0, %v4257
        %v4259 = vpop.f32.mrb[0].mxu0
        %v4260 = vadd.f32 0.0, %v4259
        %v4261 = vpop.f32.mrb[0].mxu0
        %v4262 = vadd.f32 0.0, %v4261
        %4263 = vmatprep.mubr.bf16.mxu0 0
        %4264 = vmatmul.mubr.bf16.gmra.mrb[0].mxu0 %v3225
        %v4265 = vpop.f32.mrb[0].mxu0
        %v4266 = vadd.f32 0.0, %v4265
        %v4267 = vpop.f32.mrb[0].mxu0
        %v4268 = vadd.f32 0.0, %v4267
        %v4269 = vpop.f32.mrb[0].mxu0
        %v4270 = vadd.f32 0.0, %v4269
        %v4271 = vpop.f32.mrb[0].mxu0
        %v4272 = vadd.f32 0.0, %v4271
        %4273 = vmatprep.mubr.bf16.mxu0 0
        %4274 = vmatmul.mubr.bf16.gmra.mrb[0].mxu0 %v3226
        %v4275 = vpop.f32.mrb[0].mxu0
        %v4276 = vadd.f32 0.0, %v4275
        %v4277 = vpop.f32.mrb[0].mxu0
        %v4278 = vadd.f32 0.0, %v4277
        %v4279 = vpop.f32.mrb[0].mxu0
        %v4280 = vadd.f32 0.0, %v4279
        %v4281 = vpop.f32.mrb[0].mxu0
        %v4282 = vadd.f32 0.0, %v4281
        %4283 = vdwg.mxu0
        %4284 = vmatprep.subr.bf16.mxu0 %v3486
        %4285 = vmatpush1.bf16.msra.mxu0 %v3485
        %4286 = vmatprep.subr.bf16.mxu0 %v3494
        %4287 = vmatpush1.bf16.msra.mxu0 %v3493
        %4288 = vmatprep.subr.bf16.mxu0 %v3502
        %4289 = vmatpush1.bf16.msra.mxu0 %v3501
        %4290 = vmatprep.subr.bf16.mxu0 %v3510
        %4291 = vmatpush1.bf16.msra.mxu0 %v3509
        %4292 = vmatprep.subr.bf16.mxu0 %v3518
        %4293 = vmatpush1.bf16.msra.mxu0 %v3517
        %4294 = vmatprep.subr.bf16.mxu0 %v3526
        %4295 = vmatpush1.bf16.msra.mxu0 %v3525
        %4296 = vmatprep.subr.bf16.mxu0 %v3534
        %4297 = vmatpush1.bf16.msra.mxu0 %v3533
        %4298 = vmatprep.subr.bf16.mxu0 %v3542
        %4299 = vmatpush1.bf16.msra.mxu0 %v3541
        %4300 = vmatprep.subr.bf16.mxu0 0
        %4301 = vmatpush1.bf16.msra.mxu0 0
        %4302 = vmatprep.subr.bf16.mxu0 0
        %4303 = vmatpush1.bf16.msra.mxu0 0
        %4304 = vmatprep.subr.bf16.mxu0 0
        %4305 = vmatpush1.bf16.msra.mxu0 0
        %4306 = vmatprep.subr.bf16.mxu0 0
        %4307 = vmatpush1.bf16.msra.mxu0 0
        %4308 = vmatprep.subr.bf16.mxu0 0
        %4309 = vmatpush1.bf16.msra.mxu0 0
        %4310 = vmatprep.subr.bf16.mxu0 0
        %4311 = vmatpush1.bf16.msra.mxu0 0
        %4312 = vmatprep.subr.bf16.mxu0 0
        %4313 = vmatpush1.bf16.msra.mxu0 0
        %4314 = vmatprep.subr.bf16.mxu0 0
        %4315 = vmatpush1.bf16.msra.mxu0 0
        %4316 = vmatprep.mubr.bf16.mxu0 0
        %4317 = vmatmul.mubr.bf16.gmra.mrb[0].mxu0 %v3163
        %v4318 = vpop.f32.mrb[0].mxu0
        %v4319 = vadd.f32 0.0, %v4318
        %v4320 = vpop.f32.mrb[0].mxu0
        %v4321 = vadd.f32 0.0, %v4320
        %v4322 = vpop.f32.mrb[0].mxu0
        %v4323 = vadd.f32 0.0, %v4322
        %v4324 = vpop.f32.mrb[0].mxu0
        %v4325 = vadd.f32 0.0, %v4324
        %4326 = vmatprep.mubr.bf16.mxu0 0
        %4327 = vmatmul.mubr.bf16.gmra.mrb[0].mxu0 %v3164
        %v4328 = vpop.f32.mrb[0].mxu0
        %v4329 = vadd.f32 0.0, %v4328
        %v4330 = vpop.f32.mrb[0].mxu0
        %v4331 = vadd.f32 0.0, %v4330
        %v4332 = vpop.f32.mrb[0].mxu0
        %v4333 = vadd.f32 0.0, %v4332
        %v4334 = vpop.f32.mrb[0].mxu0
        %v4335 = vadd.f32 0.0, %v4334
        %4336 = vmatprep.mubr.bf16.mxu0 0
        %4337 = vmatmul.mubr.bf16.gmra.mrb[0].mxu0 %v3165
        %v4338 = vpop.f32.mrb[0].mxu0
        %v4339 = vadd.f32 0.0, %v4338
        %v4340 = vpop.f32.mrb[0].mxu0
        %v4341 = vadd.f32 0.0, %v4340
        %v4342 = vpop.f32.mrb[0].mxu0
        %v4343 = vadd.f32 0.0, %v4342
        %v4344 = vpop.f32.mrb[0].mxu0
        %v4345 = vadd.f32 0.0, %v4344
        %4346 = vmatprep.mubr.bf16.mxu0 0
        %4347 = vmatmul.mubr.bf16.gmra.mrb[0].mxu0 %v3166
        %v4348 = vpop.f32.mrb[0].mxu0
        %v4349 = vadd.f32 0.0, %v4348
        %v4350 = vpop.f32.mrb[0].mxu0
        %v4351 = vadd.f32 0.0, %v4350
        %v4352 = vpop.f32.mrb[0].mxu0
        %v4353 = vadd.f32 0.0, %v4352
        %v4354 = vpop.f32.mrb[0].mxu0
        %v4355 = vadd.f32 0.0, %v4354
        %4356 = vmatprep.mubr.bf16.mxu0 0
        %4357 = vmatmul.mubr.bf16.gmra.mrb[0].mxu0 %v3167
        %v4358 = vpop.f32.mrb[0].mxu0
        %v4359 = vadd.f32 0.0, %v4358
        %v4360 = vpop.f32.mrb[0].mxu0
        %v4361 = vadd.f32 0.0, %v4360
        %v4362 = vpop.f32.mrb[0].mxu0
        %v4363 = vadd.f32 0.0, %v4362
        %v4364 = vpop.f32.mrb[0].mxu0
        %v4365 = vadd.f32 0.0, %v4364
        %4366 = vmatprep.mubr.bf16.mxu0 0
        %4367 = vmatmul.mubr.bf16.gmra.mrb[0].mxu0 %v3168
        %v4368 = vpop.f32.mrb[0].mxu0
        %v4369 = vadd.f32 0.0, %v4368
        %v4370 = vpop.f32.mrb[0].mxu0
        %v4371 = vadd.f32 0.0, %v4370
        %v4372 = vpop.f32.mrb[0].mxu0
        %v4373 = vadd.f32 0.0, %v4372
        %v4374 = vpop.f32.mrb[0].mxu0
        %v4375 = vadd.f32 0.0, %v4374
        %4376 = vmatprep.mubr.bf16.mxu0 0
        %4377 = vmatmul.mubr.bf16.gmra.mrb[0].mxu0 %v3169
        %v4378 = vpop.f32.mrb[0].mxu0
        %v4379 = vadd.f32 0.0, %v4378
        %v4380 = vpop.f32.mrb[0].mxu0
        %v4381 = vadd.f32 0.0, %v4380
        %v4382 = vpop.f32.mrb[0].mxu0
        %v4383 = vadd.f32 0.0, %v4382
        %v4384 = vpop.f32.mrb[0].mxu0
        %v4385 = vadd.f32 0.0, %v4384
        %4386 = vmatprep.mubr.bf16.mxu0 0
        %4387 = vmatmul.mubr.bf16.gmra.mrb[0].mxu0 %v3170
        %v4388 = vpop.f32.mrb[0].mxu0
        %v4389 = vadd.f32 0.0, %v4388
        %v4390 = vpop.f32.mrb[0].mxu0
        %v4391 = vadd.f32 0.0, %v4390
        %v4392 = vpop.f32.mrb[0].mxu0
        %v4393 = vadd.f32 0.0, %v4392
        %v4394 = vpop.f32.mrb[0].mxu0
        %v4395 = vadd.f32 0.0, %v4394
        %4396 = vmatprep.mubr.bf16.mxu0 0
        %4397 = vmatmul.mubr.bf16.gmra.mrb[0].mxu0 %v3171
        %v4398 = vpop.f32.mrb[0].mxu0
        %v4399 = vadd.f32 0.0, %v4398
        %v4400 = vpop.f32.mrb[0].mxu0
        %v4401 = vadd.f32 0.0, %v4400
        %v4402 = vpop.f32.mrb[0].mxu0
        %v4403 = vadd.f32 0.0, %v4402
        %v4404 = vpop.f32.mrb[0].mxu0
        %v4405 = vadd.f32 0.0, %v4404
        %4406 = vmatprep.mubr.bf16.mxu0 0
        %4407 = vmatmul.mubr.bf16.gmra.mrb[0].mxu0 %v3172
        %v4408 = vpop.f32.mrb[0].mxu0
        %v4409 = vadd.f32 0.0, %v4408
        %v4410 = vpop.f32.mrb[0].mxu0
        %v4411 = vadd.f32 0.0, %v4410
        %v4412 = vpop.f32.mrb[0].mxu0
        %v4413 = vadd.f32 0.0, %v4412
        %v4414 = vpop.f32.mrb[0].mxu0
        %v4415 = vadd.f32 0.0, %v4414
        %4416 = vmatprep.mubr.bf16.mxu0 0
        %4417 = vmatmul.mubr.bf16.gmra.mrb[0].mxu0 %v3173
        %v4418 = vpop.f32.mrb[0].mxu0
        %v4419 = vadd.f32 0.0, %v4418
        %v4420 = vpop.f32.mrb[0].mxu0
        %v4421 = vadd.f32 0.0, %v4420
        %v4422 = vpop.f32.mrb[0].mxu0
        %v4423 = vadd.f32 0.0, %v4422
        %v4424 = vpop.f32.mrb[0].mxu0
        %v4425 = vadd.f32 0.0, %v4424
        %4426 = vmatprep.mubr.bf16.mxu0 0
        %4427 = vmatmul.mubr.bf16.gmra.mrb[0].mxu0 %v3174
        %v4428 = vpop.f32.mrb[0].mxu0
        %v4429 = vadd.f32 0.0, %v4428
        %v4430 = vpop.f32.mrb[0].mxu0
        %v4431 = vadd.f32 0.0, %v4430
        %v4432 = vpop.f32.mrb[0].mxu0
        %v4433 = vadd.f32 0.0, %v4432
        %v4434 = vpop.f32.mrb[0].mxu0
        %v4435 = vadd.f32 0.0, %v4434
        %4436 = vmatprep.mubr.bf16.mxu0 0
        %4437 = vmatmul.mubr.bf16.gmra.mrb[0].mxu0 %v3175
        %v4438 = vpop.f32.mrb[0].mxu0
        %v4439 = vadd.f32 0.0, %v4438
        %v4440 = vpop.f32.mrb[0].mxu0
        %v4441 = vadd.f32 0.0, %v4440
        %v4442 = vpop.f32.mrb[0].mxu0
        %v4443 = vadd.f32 0.0, %v4442
        %v4444 = vpop.f32.mrb[0].mxu0
        %v4445 = vadd.f32 0.0, %v4444
        %4446 = vmatprep.mubr.bf16.mxu0 0
        %4447 = vmatmul.mubr.bf16.gmra.mrb[0].mxu0 %v3176
        %v4448 = vpop.f32.mrb[0].mxu0
        %v4449 = vadd.f32 0.0, %v4448
        %v4450 = vpop.f32.mrb[0].mxu0
        %v4451 = vadd.f32 0.0, %v4450
        %v4452 = vpop.f32.mrb[0].mxu0
        %v4453 = vadd.f32 0.0, %v4452
        %v4454 = vpop.f32.mrb[0].mxu0
        %v4455 = vadd.f32 0.0, %v4454
        %4456 = vmatprep.mubr.bf16.mxu0 0
        %4457 = vmatmul.mubr.bf16.gmra.mrb[0].mxu0 %v3177
        %v4458 = vpop.f32.mrb[0].mxu0
        %v4459 = vadd.f32 0.0, %v4458
        %v4460 = vpop.f32.mrb[0].mxu0
        %v4461 = vadd.f32 0.0, %v4460
        %v4462 = vpop.f32.mrb[0].mxu0
        %v4463 = vadd.f32 0.0, %v4462
        %v4464 = vpop.f32.mrb[0].mxu0
        %v4465 = vadd.f32 0.0, %v4464
        %4466 = vmatprep.mubr.bf16.mxu0 0
        %4467 = vmatmul.mubr.bf16.gmra.mrb[0].mxu0 %v3178
        %v4468 = vpop.f32.mrb[0].mxu0
        %v4469 = vadd.f32 0.0, %v4468
        %v4470 = vpop.f32.mrb[0].mxu0
        %v4471 = vadd.f32 0.0, %v4470
        %v4472 = vpop.f32.mrb[0].mxu0
        %v4473 = vadd.f32 0.0, %v4472
        %v4474 = vpop.f32.mrb[0].mxu0
        %v4475 = vadd.f32 0.0, %v4474
        %4476 = vmatprep.mubr.bf16.mxu0 0
        %4477 = vmatmul.mubr.bf16.gmra.mrb[0].mxu0 %v3179
        %v4478 = vpop.f32.mrb[0].mxu0
        %v4479 = vadd.f32 0.0, %v4478
        %v4480 = vpop.f32.mrb[0].mxu0
        %v4481 = vadd.f32 0.0, %v4480
        %v4482 = vpop.f32.mrb[0].mxu0
        %v4483 = vadd.f32 0.0, %v4482
        %v4484 = vpop.f32.mrb[0].mxu0
        %v4485 = vadd.f32 0.0, %v4484
        %4486 = vmatprep.mubr.bf16.mxu0 0
        %4487 = vmatmul.mubr.bf16.gmra.mrb[0].mxu0 %v3180
        %v4488 = vpop.f32.mrb[0].mxu0
        %v4489 = vadd.f32 0.0, %v4488
        %v4490 = vpop.f32.mrb[0].mxu0
        %v4491 = vadd.f32 0.0, %v4490
        %v4492 = vpop.f32.mrb[0].mxu0
        %v4493 = vadd.f32 0.0, %v4492
        %v4494 = vpop.f32.mrb[0].mxu0
        %v4495 = vadd.f32 0.0, %v4494
        %4496 = vmatprep.mubr.bf16.mxu0 0
        %4497 = vmatmul.mubr.bf16.gmra.mrb[0].mxu0 %v3181
        %v4498 = vpop.f32.mrb[0].mxu0
        %v4499 = vadd.f32 0.0, %v4498
        %v4500 = vpop.f32.mrb[0].mxu0
        %v4501 = vadd.f32 0.0, %v4500
        %v4502 = vpop.f32.mrb[0].mxu0
        %v4503 = vadd.f32 0.0, %v4502
        %v4504 = vpop.f32.mrb[0].mxu0
        %v4505 = vadd.f32 0.0, %v4504
        %4506 = vmatprep.mubr.bf16.mxu0 0
        %4507 = vmatmul.mubr.bf16.gmra.mrb[0].mxu0 %v3182
        %v4508 = vpop.f32.mrb[0].mxu0
        %v4509 = vadd.f32 0.0, %v4508
        %v4510 = vpop.f32.mrb[0].mxu0
        %v4511 = vadd.f32 0.0, %v4510
        %v4512 = vpop.f32.mrb[0].mxu0
        %v4513 = vadd.f32 0.0, %v4512
        %v4514 = vpop.f32.mrb[0].mxu0
        %v4515 = vadd.f32 0.0, %v4514
        %4516 = vmatprep.mubr.bf16.mxu0 0
        %4517 = vmatmul.mubr.bf16.gmra.mrb[0].mxu0 %v3183
        %v4518 = vpop.f32.mrb[0].mxu0
        %v4519 = vadd.f32 0.0, %v4518
        %v4520 = vpop.f32.mrb[0].mxu0
        %v4521 = vadd.f32 0.0, %v4520
        %v4522 = vpop.f32.mrb[0].mxu0
        %v4523 = vadd.f32 0.0, %v4522
        %v4524 = vpop.f32.mrb[0].mxu0
        %v4525 = vadd.f32 0.0, %v4524
        %4526 = vmatprep.mubr.bf16.mxu0 0
        %4527 = vmatmul.mubr.bf16.gmra.mrb[0].mxu0 %v3184
        %v4528 = vpop.f32.mrb[0].mxu0
        %v4529 = vadd.f32 0.0, %v4528
        %v4530 = vpop.f32.mrb[0].mxu0
        %v4531 = vadd.f32 0.0, %v4530
        %v4532 = vpop.f32.mrb[0].mxu0
        %v4533 = vadd.f32 0.0, %v4532
        %v4534 = vpop.f32.mrb[0].mxu0
        %v4535 = vadd.f32 0.0, %v4534
        %4536 = vmatprep.mubr.bf16.mxu0 0
        %4537 = vmatmul.mubr.bf16.gmra.mrb[0].mxu0 %v3185
        %v4538 = vpop.f32.mrb[0].mxu0
        %v4539 = vadd.f32 0.0, %v4538
        %v4540 = vpop.f32.mrb[0].mxu0
        %v4541 = vadd.f32 0.0, %v4540
        %v4542 = vpop.f32.mrb[0].mxu0
        %v4543 = vadd.f32 0.0, %v4542
        %v4544 = vpop.f32.mrb[0].mxu0
        %v4545 = vadd.f32 0.0, %v4544
        %4546 = vmatprep.mubr.bf16.mxu0 0
        %4547 = vmatmul.mubr.bf16.gmra.mrb[0].mxu0 %v3186
        %v4548 = vpop.f32.mrb[0].mxu0
        %v4549 = vadd.f32 0.0, %v4548
        %v4550 = vpop.f32.mrb[0].mxu0
        %v4551 = vadd.f32 0.0, %v4550
        %v4552 = vpop.f32.mrb[0].mxu0
        %v4553 = vadd.f32 0.0, %v4552
        %v4554 = vpop.f32.mrb[0].mxu0
        %v4555 = vadd.f32 0.0, %v4554
        %4556 = vmatprep.mubr.bf16.mxu0 0
        %4557 = vmatmul.mubr.bf16.gmra.mrb[0].mxu0 %v3187
        %v4558 = vpop.f32.mrb[0].mxu0
        %v4559 = vadd.f32 0.0, %v4558
        %v4560 = vpop.f32.mrb[0].mxu0
        %v4561 = vadd.f32 0.0, %v4560
        %v4562 = vpop.f32.mrb[0].mxu0
        %v4563 = vadd.f32 0.0, %v4562
        %v4564 = vpop.f32.mrb[0].mxu0
        %v4565 = vadd.f32 0.0, %v4564
        %4566 = vmatprep.mubr.bf16.mxu0 0
        %4567 = vmatmul.mubr.bf16.gmra.mrb[0].mxu0 %v3188
        %v4568 = vpop.f32.mrb[0].mxu0
        %v4569 = vadd.f32 0.0, %v4568
        %v4570 = vpop.f32.mrb[0].mxu0
        %v4571 = vadd.f32 0.0, %v4570
        %v4572 = vpop.f32.mrb[0].mxu0
        %v4573 = vadd.f32 0.0, %v4572
        %v4574 = vpop.f32.mrb[0].mxu0
        %v4575 = vadd.f32 0.0, %v4574
        %4576 = vmatprep.mubr.bf16.mxu0 0
        %4577 = vmatmul.mubr.bf16.gmra.mrb[0].mxu0 %v3189
        %v4578 = vpop.f32.mrb[0].mxu0
        %v4579 = vadd.f32 0.0, %v4578
        %v4580 = vpop.f32.mrb[0].mxu0
        %v4581 = vadd.f32 0.0, %v4580
        %v4582 = vpop.f32.mrb[0].mxu0
        %v4583 = vadd.f32 0.0, %v4582
        %v4584 = vpop.f32.mrb[0].mxu0
        %v4585 = vadd.f32 0.0, %v4584
        %4586 = vmatprep.mubr.bf16.mxu0 0
        %4587 = vmatmul.mubr.bf16.gmra.mrb[0].mxu0 %v3190
        %v4588 = vpop.f32.mrb[0].mxu0
        %v4589 = vadd.f32 0.0, %v4588
        %v4590 = vpop.f32.mrb[0].mxu0
        %v4591 = vadd.f32 0.0, %v4590
        %v4592 = vpop.f32.mrb[0].mxu0
        %v4593 = vadd.f32 0.0, %v4592
        %v4594 = vpop.f32.mrb[0].mxu0
        %v4595 = vadd.f32 0.0, %v4594
        %4596 = vmatprep.mubr.bf16.mxu0 0
        %4597 = vmatmul.mubr.bf16.gmra.mrb[0].mxu0 %v3191
        %v4598 = vpop.f32.mrb[0].mxu0
        %v4599 = vadd.f32 0.0, %v4598
        %v4600 = vpop.f32.mrb[0].mxu0
        %v4601 = vadd.f32 0.0, %v4600
        %v4602 = vpop.f32.mrb[0].mxu0
        %v4603 = vadd.f32 0.0, %v4602
        %v4604 = vpop.f32.mrb[0].mxu0
        %v4605 = vadd.f32 0.0, %v4604
        %4606 = vmatprep.mubr.bf16.mxu0 0
        %4607 = vmatmul.mubr.bf16.gmra.mrb[0].mxu0 %v3192
        %v4608 = vpop.f32.mrb[0].mxu0
        %v4609 = vadd.f32 0.0, %v4608
        %v4610 = vpop.f32.mrb[0].mxu0
        %v4611 = vadd.f32 0.0, %v4610
        %v4612 = vpop.f32.mrb[0].mxu0
        %v4613 = vadd.f32 0.0, %v4612
        %v4614 = vpop.f32.mrb[0].mxu0
        %v4615 = vadd.f32 0.0, %v4614
        %4616 = vmatprep.mubr.bf16.mxu0 0
        %4617 = vmatmul.mubr.bf16.gmra.mrb[0].mxu0 %v3193
        %v4618 = vpop.f32.mrb[0].mxu0
        %v4619 = vadd.f32 0.0, %v4618
        %v4620 = vpop.f32.mrb[0].mxu0
        %v4621 = vadd.f32 0.0, %v4620
        %v4622 = vpop.f32.mrb[0].mxu0
        %v4623 = vadd.f32 0.0, %v4622
        %v4624 = vpop.f32.mrb[0].mxu0
        %v4625 = vadd.f32 0.0, %v4624
        %4626 = vmatprep.mubr.bf16.mxu0 0
        %4627 = vmatmul.mubr.bf16.gmra.mrb[0].mxu0 %v3194
        %v4628 = vpop.f32.mrb[0].mxu0
        %v4629 = vadd.f32 0.0, %v4628
        %v4630 = vpop.f32.mrb[0].mxu0
        %v4631 = vadd.f32 0.0, %v4630
        %v4632 = vpop.f32.mrb[0].mxu0
        %v4633 = vadd.f32 0.0, %v4632
        %v4634 = vpop.f32.mrb[0].mxu0
        %v4635 = vadd.f32 0.0, %v4634
        %4636 = vmatprep.mubr.bf16.mxu0 0
        %4637 = vmatmul.mubr.bf16.gmra.mrb[0].mxu0 %v3195
        %v4638 = vpop.f32.mrb[0].mxu0
        %v4639 = vadd.f32 0.0, %v4638
        %v4640 = vpop.f32.mrb[0].mxu0
        %v4641 = vadd.f32 0.0, %v4640
        %v4642 = vpop.f32.mrb[0].mxu0
        %v4643 = vadd.f32 0.0, %v4642
        %v4644 = vpop.f32.mrb[0].mxu0
        %v4645 = vadd.f32 0.0, %v4644
        %4646 = vmatprep.mubr.bf16.mxu0 0
        %4647 = vmatmul.mubr.bf16.gmra.mrb[0].mxu0 %v3196
        %v4648 = vpop.f32.mrb[0].mxu0
        %v4649 = vadd.f32 0.0, %v4648
        %v4650 = vpop.f32.mrb[0].mxu0
        %v4651 = vadd.f32 0.0, %v4650
        %v4652 = vpop.f32.mrb[0].mxu0
        %v4653 = vadd.f32 0.0, %v4652
        %v4654 = vpop.f32.mrb[0].mxu0
        %v4655 = vadd.f32 0.0, %v4654
        %4656 = vmatprep.mubr.bf16.mxu0 0
        %4657 = vmatmul.mubr.bf16.gmra.mrb[0].mxu0 %v3197
        %v4658 = vpop.f32.mrb[0].mxu0
        %v4659 = vadd.f32 0.0, %v4658
        %v4660 = vpop.f32.mrb[0].mxu0
        %v4661 = vadd.f32 0.0, %v4660
        %v4662 = vpop.f32.mrb[0].mxu0
        %v4663 = vadd.f32 0.0, %v4662
        %v4664 = vpop.f32.mrb[0].mxu0
        %v4665 = vadd.f32 0.0, %v4664
        %4666 = vmatprep.mubr.bf16.mxu0 0
        %4667 = vmatmul.mubr.bf16.gmra.mrb[0].mxu0 %v3198
        %v4668 = vpop.f32.mrb[0].mxu0
        %v4669 = vadd.f32 0.0, %v4668
        %v4670 = vpop.f32.mrb[0].mxu0
        %v4671 = vadd.f32 0.0, %v4670
        %v4672 = vpop.f32.mrb[0].mxu0
        %v4673 = vadd.f32 0.0, %v4672
        %v4674 = vpop.f32.mrb[0].mxu0
        %v4675 = vadd.f32 0.0, %v4674
        %4676 = vmatprep.mubr.bf16.mxu0 0
        %4677 = vmatmul.mubr.bf16.gmra.mrb[0].mxu0 %v3199
        %v4678 = vpop.f32.mrb[0].mxu0
        %v4679 = vadd.f32 0.0, %v4678
        %v4680 = vpop.f32.mrb[0].mxu0
        %v4681 = vadd.f32 0.0, %v4680
        %v4682 = vpop.f32.mrb[0].mxu0
        %v4683 = vadd.f32 0.0, %v4682
        %v4684 = vpop.f32.mrb[0].mxu0
        %v4685 = vadd.f32 0.0, %v4684
        %4686 = vmatprep.mubr.bf16.mxu0 0
        %4687 = vmatmul.mubr.bf16.gmra.mrb[0].mxu0 %v3200
        %v4688 = vpop.f32.mrb[0].mxu0
        %v4689 = vadd.f32 0.0, %v4688
        %v4690 = vpop.f32.mrb[0].mxu0
        %v4691 = vadd.f32 0.0, %v4690
        %v4692 = vpop.f32.mrb[0].mxu0
        %v4693 = vadd.f32 0.0, %v4692
        %v4694 = vpop.f32.mrb[0].mxu0
        %v4695 = vadd.f32 0.0, %v4694
        %4696 = vmatprep.mubr.bf16.mxu0 0
        %4697 = vmatmul.mubr.bf16.gmra.mrb[0].mxu0 %v3201
        %v4698 = vpop.f32.mrb[0].mxu0
        %v4699 = vadd.f32 0.0, %v4698
        %v4700 = vpop.f32.mrb[0].mxu0
        %v4701 = vadd.f32 0.0, %v4700
        %v4702 = vpop.f32.mrb[0].mxu0
        %v4703 = vadd.f32 0.0, %v4702
        %v4704 = vpop.f32.mrb[0].mxu0
        %v4705 = vadd.f32 0.0, %v4704
        %4706 = vmatprep.mubr.bf16.mxu0 0
        %4707 = vmatmul.mubr.bf16.gmra.mrb[0].mxu0 %v3202
        %v4708 = vpop.f32.mrb[0].mxu0
        %v4709 = vadd.f32 0.0, %v4708
        %v4710 = vpop.f32.mrb[0].mxu0
        %v4711 = vadd.f32 0.0, %v4710
        %v4712 = vpop.f32.mrb[0].mxu0
        %v4713 = vadd.f32 0.0, %v4712
        %v4714 = vpop.f32.mrb[0].mxu0
        %v4715 = vadd.f32 0.0, %v4714
        %4716 = vmatprep.mubr.bf16.mxu0 0
        %4717 = vmatmul.mubr.bf16.gmra.mrb[0].mxu0 %v3203
        %v4718 = vpop.f32.mrb[0].mxu0
        %v4719 = vadd.f32 0.0, %v4718
        %v4720 = vpop.f32.mrb[0].mxu0
        %v4721 = vadd.f32 0.0, %v4720
        %v4722 = vpop.f32.mrb[0].mxu0
        %v4723 = vadd.f32 0.0, %v4722
        %v4724 = vpop.f32.mrb[0].mxu0
        %v4725 = vadd.f32 0.0, %v4724
        %4726 = vmatprep.mubr.bf16.mxu0 0
        %4727 = vmatmul.mubr.bf16.gmra.mrb[0].mxu0 %v3204
        %v4728 = vpop.f32.mrb[0].mxu0
        %v4729 = vadd.f32 0.0, %v4728
        %v4730 = vpop.f32.mrb[0].mxu0
        %v4731 = vadd.f32 0.0, %v4730
        %v4732 = vpop.f32.mrb[0].mxu0
        %v4733 = vadd.f32 0.0, %v4732
        %v4734 = vpop.f32.mrb[0].mxu0
        %v4735 = vadd.f32 0.0, %v4734
        %4736 = vmatprep.mubr.bf16.mxu0 0
        %4737 = vmatmul.mubr.bf16.gmra.mrb[0].mxu0 %v3205
        %v4738 = vpop.f32.mrb[0].mxu0
        %v4739 = vadd.f32 0.0, %v4738
        %v4740 = vpop.f32.mrb[0].mxu0
        %v4741 = vadd.f32 0.0, %v4740
        %v4742 = vpop.f32.mrb[0].mxu0
        %v4743 = vadd.f32 0.0, %v4742
        %v4744 = vpop.f32.mrb[0].mxu0
        %v4745 = vadd.f32 0.0, %v4744
        %4746 = vmatprep.mubr.bf16.mxu0 0
        %4747 = vmatmul.mubr.bf16.gmra.mrb[0].mxu0 %v3206
        %v4748 = vpop.f32.mrb[0].mxu0
        %v4749 = vadd.f32 0.0, %v4748
        %v4750 = vpop.f32.mrb[0].mxu0
        %v4751 = vadd.f32 0.0, %v4750
        %v4752 = vpop.f32.mrb[0].mxu0
        %v4753 = vadd.f32 0.0, %v4752
        %v4754 = vpop.f32.mrb[0].mxu0
        %v4755 = vadd.f32 0.0, %v4754
        %4756 = vmatprep.mubr.bf16.mxu0 0
        %4757 = vmatmul.mubr.bf16.gmra.mrb[0].mxu0 %v3207
        %v4758 = vpop.f32.mrb[0].mxu0
        %v4759 = vadd.f32 0.0, %v4758
        %v4760 = vpop.f32.mrb[0].mxu0
        %v4761 = vadd.f32 0.0, %v4760
        %v4762 = vpop.f32.mrb[0].mxu0
        %v4763 = vadd.f32 0.0, %v4762
        %v4764 = vpop.f32.mrb[0].mxu0
        %v4765 = vadd.f32 0.0, %v4764
        %4766 = vmatprep.mubr.bf16.mxu0 0
        %4767 = vmatmul.mubr.bf16.gmra.mrb[0].mxu0 %v3208
        %v4768 = vpop.f32.mrb[0].mxu0
        %v4769 = vadd.f32 0.0, %v4768
        %v4770 = vpop.f32.mrb[0].mxu0
        %v4771 = vadd.f32 0.0, %v4770
        %v4772 = vpop.f32.mrb[0].mxu0
        %v4773 = vadd.f32 0.0, %v4772
        %v4774 = vpop.f32.mrb[0].mxu0
        %v4775 = vadd.f32 0.0, %v4774
        %4776 = vmatprep.mubr.bf16.mxu0 0
        %4777 = vmatmul.mubr.bf16.gmra.mrb[0].mxu0 %v3209
        %v4778 = vpop.f32.mrb[0].mxu0
        %v4779 = vadd.f32 0.0, %v4778
        %v4780 = vpop.f32.mrb[0].mxu0
        %v4781 = vadd.f32 0.0, %v4780
        %v4782 = vpop.f32.mrb[0].mxu0
        %v4783 = vadd.f32 0.0, %v4782
        %v4784 = vpop.f32.mrb[0].mxu0
        %v4785 = vadd.f32 0.0, %v4784
        %4786 = vmatprep.mubr.bf16.mxu0 0
        %4787 = vmatmul.mubr.bf16.gmra.mrb[0].mxu0 %v3210
        %v4788 = vpop.f32.mrb[0].mxu0
        %v4789 = vadd.f32 0.0, %v4788
        %v4790 = vpop.f32.mrb[0].mxu0
        %v4791 = vadd.f32 0.0, %v4790
        %v4792 = vpop.f32.mrb[0].mxu0
        %v4793 = vadd.f32 0.0, %v4792
        %v4794 = vpop.f32.mrb[0].mxu0
        %v4795 = vadd.f32 0.0, %v4794
        %4796 = vmatprep.mubr.bf16.mxu0 0
        %4797 = vmatmul.mubr.bf16.gmra.mrb[0].mxu0 %v3211
        %v4798 = vpop.f32.mrb[0].mxu0
        %v4799 = vadd.f32 0.0, %v4798
        %v4800 = vpop.f32.mrb[0].mxu0
        %v4801 = vadd.f32 0.0, %v4800
        %v4802 = vpop.f32.mrb[0].mxu0
        %v4803 = vadd.f32 0.0, %v4802
        %v4804 = vpop.f32.mrb[0].mxu0
        %v4805 = vadd.f32 0.0, %v4804
        %4806 = vmatprep.mubr.bf16.mxu0 0
        %4807 = vmatmul.mubr.bf16.gmra.mrb[0].mxu0 %v3212
        %v4808 = vpop.f32.mrb[0].mxu0
        %v4809 = vadd.f32 0.0, %v4808
        %v4810 = vpop.f32.mrb[0].mxu0
        %v4811 = vadd.f32 0.0, %v4810
        %v4812 = vpop.f32.mrb[0].mxu0
        %v4813 = vadd.f32 0.0, %v4812
        %v4814 = vpop.f32.mrb[0].mxu0
        %v4815 = vadd.f32 0.0, %v4814
        %4816 = vmatprep.mubr.bf16.mxu0 0
        %4817 = vmatmul.mubr.bf16.gmra.mrb[0].mxu0 %v3213
        %v4818 = vpop.f32.mrb[0].mxu0
        %v4819 = vadd.f32 0.0, %v4818
        %v4820 = vpop.f32.mrb[0].mxu0
        %v4821 = vadd.f32 0.0, %v4820
        %v4822 = vpop.f32.mrb[0].mxu0
        %v4823 = vadd.f32 0.0, %v4822
        %v4824 = vpop.f32.mrb[0].mxu0
        %v4825 = vadd.f32 0.0, %v4824
        %4826 = vmatprep.mubr.bf16.mxu0 0
        %4827 = vmatmul.mubr.bf16.gmra.mrb[0].mxu0 %v3214
        %v4828 = vpop.f32.mrb[0].mxu0
        %v4829 = vadd.f32 0.0, %v4828
        %v4830 = vpop.f32.mrb[0].mxu0
        %v4831 = vadd.f32 0.0, %v4830
        %v4832 = vpop.f32.mrb[0].mxu0
        %v4833 = vadd.f32 0.0, %v4832
        %v4834 = vpop.f32.mrb[0].mxu0
        %v4835 = vadd.f32 0.0, %v4834
        %4836 = vmatprep.mubr.bf16.mxu0 0
        %4837 = vmatmul.mubr.bf16.gmra.mrb[0].mxu0 %v3215
        %v4838 = vpop.f32.mrb[0].mxu0
        %v4839 = vadd.f32 0.0, %v4838
        %v4840 = vpop.f32.mrb[0].mxu0
        %v4841 = vadd.f32 0.0, %v4840
        %v4842 = vpop.f32.mrb[0].mxu0
        %v4843 = vadd.f32 0.0, %v4842
        %v4844 = vpop.f32.mrb[0].mxu0
        %v4845 = vadd.f32 0.0, %v4844
        %4846 = vmatprep.mubr.bf16.mxu0 0
        %4847 = vmatmul.mubr.bf16.gmra.mrb[0].mxu0 %v3216
        %v4848 = vpop.f32.mrb[0].mxu0
        %v4849 = vadd.f32 0.0, %v4848
        %v4850 = vpop.f32.mrb[0].mxu0
        %v4851 = vadd.f32 0.0, %v4850
        %v4852 = vpop.f32.mrb[0].mxu0
        %v4853 = vadd.f32 0.0, %v4852
        %v4854 = vpop.f32.mrb[0].mxu0
        %v4855 = vadd.f32 0.0, %v4854
        %4856 = vmatprep.mubr.bf16.mxu0 0
        %4857 = vmatmul.mubr.bf16.gmra.mrb[0].mxu0 %v3217
        %v4858 = vpop.f32.mrb[0].mxu0
        %v4859 = vadd.f32 0.0, %v4858
        %v4860 = vpop.f32.mrb[0].mxu0
        %v4861 = vadd.f32 0.0, %v4860
        %v4862 = vpop.f32.mrb[0].mxu0
        %v4863 = vadd.f32 0.0, %v4862
        %v4864 = vpop.f32.mrb[0].mxu0
        %v4865 = vadd.f32 0.0, %v4864
        %4866 = vmatprep.mubr.bf16.mxu0 0
        %4867 = vmatmul.mubr.bf16.gmra.mrb[0].mxu0 %v3218
        %v4868 = vpop.f32.mrb[0].mxu0
        %v4869 = vadd.f32 0.0, %v4868
        %v4870 = vpop.f32.mrb[0].mxu0
        %v4871 = vadd.f32 0.0, %v4870
        %v4872 = vpop.f32.mrb[0].mxu0
        %v4873 = vadd.f32 0.0, %v4872
        %v4874 = vpop.f32.mrb[0].mxu0
        %v4875 = vadd.f32 0.0, %v4874
        %4876 = vmatprep.mubr.bf16.mxu0 0
        %4877 = vmatmul.mubr.bf16.gmra.mrb[0].mxu0 %v3219
        %v4878 = vpop.f32.mrb[0].mxu0
        %v4879 = vadd.f32 0.0, %v4878
        %v4880 = vpop.f32.mrb[0].mxu0
        %v4881 = vadd.f32 0.0, %v4880
        %v4882 = vpop.f32.mrb[0].mxu0
        %v4883 = vadd.f32 0.0, %v4882
        %v4884 = vpop.f32.mrb[0].mxu0
        %v4885 = vadd.f32 0.0, %v4884
        %4886 = vmatprep.mubr.bf16.mxu0 0
        %4887 = vmatmul.mubr.bf16.gmra.mrb[0].mxu0 %v3220
        %v4888 = vpop.f32.mrb[0].mxu0
        %v4889 = vadd.f32 0.0, %v4888
        %v4890 = vpop.f32.mrb[0].mxu0
        %v4891 = vadd.f32 0.0, %v4890
        %v4892 = vpop.f32.mrb[0].mxu0
        %v4893 = vadd.f32 0.0, %v4892
        %v4894 = vpop.f32.mrb[0].mxu0
        %v4895 = vadd.f32 0.0, %v4894
        %4896 = vmatprep.mubr.bf16.mxu0 0
        %4897 = vmatmul.mubr.bf16.gmra.mrb[0].mxu0 %v3221
        %v4898 = vpop.f32.mrb[0].mxu0
        %v4899 = vadd.f32 0.0, %v4898
        %v4900 = vpop.f32.mrb[0].mxu0
        %v4901 = vadd.f32 0.0, %v4900
        %v4902 = vpop.f32.mrb[0].mxu0
        %v4903 = vadd.f32 0.0, %v4902
        %v4904 = vpop.f32.mrb[0].mxu0
        %v4905 = vadd.f32 0.0, %v4904
        %4906 = vmatprep.mubr.bf16.mxu0 0
        %4907 = vmatmul.mubr.bf16.gmra.mrb[0].mxu0 %v3222
        %v4908 = vpop.f32.mrb[0].mxu0
        %v4909 = vadd.f32 0.0, %v4908
        %v4910 = vpop.f32.mrb[0].mxu0
        %v4911 = vadd.f32 0.0, %v4910
        %v4912 = vpop.f32.mrb[0].mxu0
        %v4913 = vadd.f32 0.0, %v4912
        %v4914 = vpop.f32.mrb[0].mxu0
        %v4915 = vadd.f32 0.0, %v4914
        %4916 = vmatprep.mubr.bf16.mxu0 0
        %4917 = vmatmul.mubr.bf16.gmra.mrb[0].mxu0 %v3223
        %v4918 = vpop.f32.mrb[0].mxu0
        %v4919 = vadd.f32 0.0, %v4918
        %v4920 = vpop.f32.mrb[0].mxu0
        %v4921 = vadd.f32 0.0, %v4920
        %v4922 = vpop.f32.mrb[0].mxu0
        %v4923 = vadd.f32 0.0, %v4922
        %v4924 = vpop.f32.mrb[0].mxu0
        %v4925 = vadd.f32 0.0, %v4924
        %4926 = vmatprep.mubr.bf16.mxu0 0
        %4927 = vmatmul.mubr.bf16.gmra.mrb[0].mxu0 %v3224
        %v4928 = vpop.f32.mrb[0].mxu0
        %v4929 = vadd.f32 0.0, %v4928
        %v4930 = vpop.f32.mrb[0].mxu0
        %v4931 = vadd.f32 0.0, %v4930
        %v4932 = vpop.f32.mrb[0].mxu0
        %v4933 = vadd.f32 0.0, %v4932
        %v4934 = vpop.f32.mrb[0].mxu0
        %v4935 = vadd.f32 0.0, %v4934
        %4936 = vmatprep.mubr.bf16.mxu0 0
        %4937 = vmatmul.mubr.bf16.gmra.mrb[0].mxu0 %v3225
        %v4938 = vpop.f32.mrb[0].mxu0
        %v4939 = vadd.f32 0.0, %v4938
        %v4940 = vpop.f32.mrb[0].mxu0
        %v4941 = vadd.f32 0.0, %v4940
        %v4942 = vpop.f32.mrb[0].mxu0
        %v4943 = vadd.f32 0.0, %v4942
        %v4944 = vpop.f32.mrb[0].mxu0
        %v4945 = vadd.f32 0.0, %v4944
        %4946 = vmatprep.mubr.bf16.mxu0 0
        %4947 = vmatmul.mubr.bf16.gmra.mrb[0].mxu0 %v3226
        %v4948 = vpop.f32.mrb[0].mxu0
        %v4949 = vadd.f32 0.0, %v4948
        %v4950 = vpop.f32.mrb[0].mxu0
        %v4951 = vadd.f32 0.0, %v4950
        %v4952 = vpop.f32.mrb[0].mxu0
        %v4953 = vadd.f32 0.0, %v4952
        %v4954 = vpop.f32.mrb[0].mxu0
        %v4955 = vadd.f32 0.0, %v4954
        %4956 = vdwg.mxu0
        %4957 = vmatprep.subr.bf16.mxu0 %v3488
        %4958 = vmatpush1.bf16.msra.mxu0 %v3487
        %4959 = vmatprep.subr.bf16.mxu0 %v3496
        %4960 = vmatpush1.bf16.msra.mxu0 %v3495
        %4961 = vmatprep.subr.bf16.mxu0 %v3504
        %4962 = vmatpush1.bf16.msra.mxu0 %v3503
        %4963 = vmatprep.subr.bf16.mxu0 %v3512
        %4964 = vmatpush1.bf16.msra.mxu0 %v3511
        %4965 = vmatprep.subr.bf16.mxu0 %v3520
        %4966 = vmatpush1.bf16.msra.mxu0 %v3519
        %4967 = vmatprep.subr.bf16.mxu0 %v3528
        %4968 = vmatpush1.bf16.msra.mxu0 %v3527
        %4969 = vmatprep.subr.bf16.mxu0 %v3536
        %4970 = vmatpush1.bf16.msra.mxu0 %v3535
        %4971 = vmatprep.subr.bf16.mxu0 %v3544
        %4972 = vmatpush1.bf16.msra.mxu0 %v3543
        %4973 = vmatprep.subr.bf16.mxu0 0
        %4974 = vmatpush1.bf16.msra.mxu0 0
        %4975 = vmatprep.subr.bf16.mxu0 0
        %4976 = vmatpush1.bf16.msra.mxu0 0
        %4977 = vmatprep.subr.bf16.mxu0 0
        %4978 = vmatpush1.bf16.msra.mxu0 0
        %4979 = vmatprep.subr.bf16.mxu0 0
        %4980 = vmatpush1.bf16.msra.mxu0 0
        %4981 = vmatprep.subr.bf16.mxu0 0
        %4982 = vmatpush1.bf16.msra.mxu0 0
        %4983 = vmatprep.subr.bf16.mxu0 0
        %4984 = vmatpush1.bf16.msra.mxu0 0
        %4985 = vmatprep.subr.bf16.mxu0 0
        %4986 = vmatpush1.bf16.msra.mxu0 0
        %4987 = vmatprep.subr.bf16.mxu0 0
        %4988 = vmatpush1.bf16.msra.mxu0 0
        %4989 = vmatprep.mubr.bf16.mxu0 0
        %4990 = vmatmul.mubr.bf16.gmra.mrb[0].mxu0 %v3163
        %v4991 = vpop.f32.mrb[0].mxu0
        %v4992 = vadd.f32 0.0, %v4991
        %v4993 = vpop.f32.mrb[0].mxu0
        %v4994 = vadd.f32 0.0, %v4993
        %v4995 = vpop.f32.mrb[0].mxu0
        %v4996 = vadd.f32 0.0, %v4995
        %v4997 = vpop.f32.mrb[0].mxu0
        %v4998 = vadd.f32 0.0, %v4997
        %4999 = vmatprep.mubr.bf16.mxu0 0
        %5000 = vmatmul.mubr.bf16.gmra.mrb[0].mxu0 %v3164
        %v5001 = vpop.f32.mrb[0].mxu0
        %v5002 = vadd.f32 0.0, %v5001
        %v5003 = vpop.f32.mrb[0].mxu0
        %v5004 = vadd.f32 0.0, %v5003
        %v5005 = vpop.f32.mrb[0].mxu0
        %v5006 = vadd.f32 0.0, %v5005
        %v5007 = vpop.f32.mrb[0].mxu0
        %v5008 = vadd.f32 0.0, %v5007
        %5009 = vmatprep.mubr.bf16.mxu0 0
        %5010 = vmatmul.mubr.bf16.gmra.mrb[0].mxu0 %v3165
        %v5011 = vpop.f32.mrb[0].mxu0
        %v5012 = vadd.f32 0.0, %v5011
        %v5013 = vpop.f32.mrb[0].mxu0
        %v5014 = vadd.f32 0.0, %v5013
        %v5015 = vpop.f32.mrb[0].mxu0
        %v5016 = vadd.f32 0.0, %v5015
        %v5017 = vpop.f32.mrb[0].mxu0
        %v5018 = vadd.f32 0.0, %v5017
        %5019 = vmatprep.mubr.bf16.mxu0 0
        %5020 = vmatmul.mubr.bf16.gmra.mrb[0].mxu0 %v3166
        %v5021 = vpop.f32.mrb[0].mxu0
        %v5022 = vadd.f32 0.0, %v5021
        %v5023 = vpop.f32.mrb[0].mxu0
        %v5024 = vadd.f32 0.0, %v5023
        %v5025 = vpop.f32.mrb[0].mxu0
        %v5026 = vadd.f32 0.0, %v5025
        %v5027 = vpop.f32.mrb[0].mxu0
        %v5028 = vadd.f32 0.0, %v5027
        %5029 = vmatprep.mubr.bf16.mxu0 0
        %5030 = vmatmul.mubr.bf16.gmra.mrb[0].mxu0 %v3167
        %v5031 = vpop.f32.mrb[0].mxu0
        %v5032 = vadd.f32 0.0, %v5031
        %v5033 = vpop.f32.mrb[0].mxu0
        %v5034 = vadd.f32 0.0, %v5033
        %v5035 = vpop.f32.mrb[0].mxu0
        %v5036 = vadd.f32 0.0, %v5035
        %v5037 = vpop.f32.mrb[0].mxu0
        %v5038 = vadd.f32 0.0, %v5037
        %5039 = vmatprep.mubr.bf16.mxu0 0
        %5040 = vmatmul.mubr.bf16.gmra.mrb[0].mxu0 %v3168
        %v5041 = vpop.f32.mrb[0].mxu0
        %v5042 = vadd.f32 0.0, %v5041
        %v5043 = vpop.f32.mrb[0].mxu0
        %v5044 = vadd.f32 0.0, %v5043
        %v5045 = vpop.f32.mrb[0].mxu0
        %v5046 = vadd.f32 0.0, %v5045
        %v5047 = vpop.f32.mrb[0].mxu0
        %v5048 = vadd.f32 0.0, %v5047
        %5049 = vmatprep.mubr.bf16.mxu0 0
        %5050 = vmatmul.mubr.bf16.gmra.mrb[0].mxu0 %v3169
        %v5051 = vpop.f32.mrb[0].mxu0
        %v5052 = vadd.f32 0.0, %v5051
        %v5053 = vpop.f32.mrb[0].mxu0
        %v5054 = vadd.f32 0.0, %v5053
        %v5055 = vpop.f32.mrb[0].mxu0
        %v5056 = vadd.f32 0.0, %v5055
        %v5057 = vpop.f32.mrb[0].mxu0
        %v5058 = vadd.f32 0.0, %v5057
        %5059 = vmatprep.mubr.bf16.mxu0 0
        %5060 = vmatmul.mubr.bf16.gmra.mrb[0].mxu0 %v3170
        %v5061 = vpop.f32.mrb[0].mxu0
        %v5062 = vadd.f32 0.0, %v5061
        %v5063 = vpop.f32.mrb[0].mxu0
        %v5064 = vadd.f32 0.0, %v5063
        %v5065 = vpop.f32.mrb[0].mxu0
        %v5066 = vadd.f32 0.0, %v5065
        %v5067 = vpop.f32.mrb[0].mxu0
        %v5068 = vadd.f32 0.0, %v5067
        %5069 = vmatprep.mubr.bf16.mxu0 0
        %5070 = vmatmul.mubr.bf16.gmra.mrb[0].mxu0 %v3171
        %v5071 = vpop.f32.mrb[0].mxu0
        %v5072 = vadd.f32 0.0, %v5071
        %v5073 = vpop.f32.mrb[0].mxu0
        %v5074 = vadd.f32 0.0, %v5073
        %v5075 = vpop.f32.mrb[0].mxu0
        %v5076 = vadd.f32 0.0, %v5075
        %v5077 = vpop.f32.mrb[0].mxu0
        %v5078 = vadd.f32 0.0, %v5077
        %5079 = vmatprep.mubr.bf16.mxu0 0
        %5080 = vmatmul.mubr.bf16.gmra.mrb[0].mxu0 %v3172
        %v5081 = vpop.f32.mrb[0].mxu0
        %v5082 = vadd.f32 0.0, %v5081
        %v5083 = vpop.f32.mrb[0].mxu0
        %v5084 = vadd.f32 0.0, %v5083
        %v5085 = vpop.f32.mrb[0].mxu0
        %v5086 = vadd.f32 0.0, %v5085
        %v5087 = vpop.f32.mrb[0].mxu0
        %v5088 = vadd.f32 0.0, %v5087
        %5089 = vmatprep.mubr.bf16.mxu0 0
        %5090 = vmatmul.mubr.bf16.gmra.mrb[0].mxu0 %v3173
        %v5091 = vpop.f32.mrb[0].mxu0
        %v5092 = vadd.f32 0.0, %v5091
        %v5093 = vpop.f32.mrb[0].mxu0
        %v5094 = vadd.f32 0.0, %v5093
        %v5095 = vpop.f32.mrb[0].mxu0
        %v5096 = vadd.f32 0.0, %v5095
        %v5097 = vpop.f32.mrb[0].mxu0
        %v5098 = vadd.f32 0.0, %v5097
        %5099 = vmatprep.mubr.bf16.mxu0 0
        %5100 = vmatmul.mubr.bf16.gmra.mrb[0].mxu0 %v3174
        %v5101 = vpop.f32.mrb[0].mxu0
        %v5102 = vadd.f32 0.0, %v5101
        %v5103 = vpop.f32.mrb[0].mxu0
        %v5104 = vadd.f32 0.0, %v5103
        %v5105 = vpop.f32.mrb[0].mxu0
        %v5106 = vadd.f32 0.0, %v5105
        %v5107 = vpop.f32.mrb[0].mxu0
        %v5108 = vadd.f32 0.0, %v5107
        %5109 = vmatprep.mubr.bf16.mxu0 0
        %5110 = vmatmul.mubr.bf16.gmra.mrb[0].mxu0 %v3175
        %v5111 = vpop.f32.mrb[0].mxu0
        %v5112 = vadd.f32 0.0, %v5111
        %v5113 = vpop.f32.mrb[0].mxu0
        %v5114 = vadd.f32 0.0, %v5113
        %v5115 = vpop.f32.mrb[0].mxu0
        %v5116 = vadd.f32 0.0, %v5115
        %v5117 = vpop.f32.mrb[0].mxu0
        %v5118 = vadd.f32 0.0, %v5117
        %5119 = vmatprep.mubr.bf16.mxu0 0
        %5120 = vmatmul.mubr.bf16.gmra.mrb[0].mxu0 %v3176
        %v5121 = vpop.f32.mrb[0].mxu0
        %v5122 = vadd.f32 0.0, %v5121
        %v5123 = vpop.f32.mrb[0].mxu0
        %v5124 = vadd.f32 0.0, %v5123
        %v5125 = vpop.f32.mrb[0].mxu0
        %v5126 = vadd.f32 0.0, %v5125
        %v5127 = vpop.f32.mrb[0].mxu0
        %v5128 = vadd.f32 0.0, %v5127
        %5129 = vmatprep.mubr.bf16.mxu0 0
        %5130 = vmatmul.mubr.bf16.gmra.mrb[0].mxu0 %v3177
        %v5131 = vpop.f32.mrb[0].mxu0
        %v5132 = vadd.f32 0.0, %v5131
        %v5133 = vpop.f32.mrb[0].mxu0
        %v5134 = vadd.f32 0.0, %v5133
        %v5135 = vpop.f32.mrb[0].mxu0
        %v5136 = vadd.f32 0.0, %v5135
        %v5137 = vpop.f32.mrb[0].mxu0
        %v5138 = vadd.f32 0.0, %v5137
        %5139 = vmatprep.mubr.bf16.mxu0 0
        %5140 = vmatmul.mubr.bf16.gmra.mrb[0].mxu0 %v3178
        %v5141 = vpop.f32.mrb[0].mxu0
        %v5142 = vadd.f32 0.0, %v5141
        %v5143 = vpop.f32.mrb[0].mxu0
        %v5144 = vadd.f32 0.0, %v5143
        %v5145 = vpop.f32.mrb[0].mxu0
        %v5146 = vadd.f32 0.0, %v5145
        %v5147 = vpop.f32.mrb[0].mxu0
        %v5148 = vadd.f32 0.0, %v5147
        %5149 = vmatprep.mubr.bf16.mxu0 0
        %5150 = vmatmul.mubr.bf16.gmra.mrb[0].mxu0 %v3179
        %v5151 = vpop.f32.mrb[0].mxu0
        %v5152 = vadd.f32 0.0, %v5151
        %v5153 = vpop.f32.mrb[0].mxu0
        %v5154 = vadd.f32 0.0, %v5153
        %v5155 = vpop.f32.mrb[0].mxu0
        %v5156 = vadd.f32 0.0, %v5155
        %v5157 = vpop.f32.mrb[0].mxu0
        %v5158 = vadd.f32 0.0, %v5157
        %5159 = vmatprep.mubr.bf16.mxu0 0
        %5160 = vmatmul.mubr.bf16.gmra.mrb[0].mxu0 %v3180
        %v5161 = vpop.f32.mrb[0].mxu0
        %v5162 = vadd.f32 0.0, %v5161
        %v5163 = vpop.f32.mrb[0].mxu0
        %v5164 = vadd.f32 0.0, %v5163
        %v5165 = vpop.f32.mrb[0].mxu0
        %v5166 = vadd.f32 0.0, %v5165
        %v5167 = vpop.f32.mrb[0].mxu0
        %v5168 = vadd.f32 0.0, %v5167
        %5169 = vmatprep.mubr.bf16.mxu0 0
        %5170 = vmatmul.mubr.bf16.gmra.mrb[0].mxu0 %v3181
        %v5171 = vpop.f32.mrb[0].mxu0
        %v5172 = vadd.f32 0.0, %v5171
        %v5173 = vpop.f32.mrb[0].mxu0
        %v5174 = vadd.f32 0.0, %v5173
        %v5175 = vpop.f32.mrb[0].mxu0
        %v5176 = vadd.f32 0.0, %v5175
        %v5177 = vpop.f32.mrb[0].mxu0
        %v5178 = vadd.f32 0.0, %v5177
        %5179 = vmatprep.mubr.bf16.mxu0 0
        %5180 = vmatmul.mubr.bf16.gmra.mrb[0].mxu0 %v3182
        %v5181 = vpop.f32.mrb[0].mxu0
        %v5182 = vadd.f32 0.0, %v5181
        %v5183 = vpop.f32.mrb[0].mxu0
        %v5184 = vadd.f32 0.0, %v5183
        %v5185 = vpop.f32.mrb[0].mxu0
        %v5186 = vadd.f32 0.0, %v5185
        %v5187 = vpop.f32.mrb[0].mxu0
        %v5188 = vadd.f32 0.0, %v5187
        %5189 = vmatprep.mubr.bf16.mxu0 0
        %5190 = vmatmul.mubr.bf16.gmra.mrb[0].mxu0 %v3183
        %v5191 = vpop.f32.mrb[0].mxu0
        %v5192 = vadd.f32 0.0, %v5191
        %v5193 = vpop.f32.mrb[0].mxu0
        %v5194 = vadd.f32 0.0, %v5193
        %v5195 = vpop.f32.mrb[0].mxu0
        %v5196 = vadd.f32 0.0, %v5195
        %v5197 = vpop.f32.mrb[0].mxu0
        %v5198 = vadd.f32 0.0, %v5197
        %5199 = vmatprep.mubr.bf16.mxu0 0
        %5200 = vmatmul.mubr.bf16.gmra.mrb[0].mxu0 %v3184
        %v5201 = vpop.f32.mrb[0].mxu0
        %v5202 = vadd.f32 0.0, %v5201
        %v5203 = vpop.f32.mrb[0].mxu0
        %v5204 = vadd.f32 0.0, %v5203
        %v5205 = vpop.f32.mrb[0].mxu0
        %v5206 = vadd.f32 0.0, %v5205
        %v5207 = vpop.f32.mrb[0].mxu0
        %v5208 = vadd.f32 0.0, %v5207
        %5209 = vmatprep.mubr.bf16.mxu0 0
        %5210 = vmatmul.mubr.bf16.gmra.mrb[0].mxu0 %v3185
        %v5211 = vpop.f32.mrb[0].mxu0
        %v5212 = vadd.f32 0.0, %v5211
        %v5213 = vpop.f32.mrb[0].mxu0
        %v5214 = vadd.f32 0.0, %v5213
        %v5215 = vpop.f32.mrb[0].mxu0
        %v5216 = vadd.f32 0.0, %v5215
        %v5217 = vpop.f32.mrb[0].mxu0
        %v5218 = vadd.f32 0.0, %v5217
        %5219 = vmatprep.mubr.bf16.mxu0 0
        %5220 = vmatmul.mubr.bf16.gmra.mrb[0].mxu0 %v3186
        %v5221 = vpop.f32.mrb[0].mxu0
        %v5222 = vadd.f32 0.0, %v5221
        %v5223 = vpop.f32.mrb[0].mxu0
        %v5224 = vadd.f32 0.0, %v5223
        %v5225 = vpop.f32.mrb[0].mxu0
        %v5226 = vadd.f32 0.0, %v5225
        %v5227 = vpop.f32.mrb[0].mxu0
        %v5228 = vadd.f32 0.0, %v5227
        %5229 = vmatprep.mubr.bf16.mxu0 0
        %5230 = vmatmul.mubr.bf16.gmra.mrb[0].mxu0 %v3187
        %v5231 = vpop.f32.mrb[0].mxu0
        %v5232 = vadd.f32 0.0, %v5231
        %v5233 = vpop.f32.mrb[0].mxu0
        %v5234 = vadd.f32 0.0, %v5233
        %v5235 = vpop.f32.mrb[0].mxu0
        %v5236 = vadd.f32 0.0, %v5235
        %v5237 = vpop.f32.mrb[0].mxu0
        %v5238 = vadd.f32 0.0, %v5237
        %5239 = vmatprep.mubr.bf16.mxu0 0
        %5240 = vmatmul.mubr.bf16.gmra.mrb[0].mxu0 %v3188
        %v5241 = vpop.f32.mrb[0].mxu0
        %v5242 = vadd.f32 0.0, %v5241
        %v5243 = vpop.f32.mrb[0].mxu0
        %v5244 = vadd.f32 0.0, %v5243
        %v5245 = vpop.f32.mrb[0].mxu0
        %v5246 = vadd.f32 0.0, %v5245
        %v5247 = vpop.f32.mrb[0].mxu0
        %v5248 = vadd.f32 0.0, %v5247
        %5249 = vmatprep.mubr.bf16.mxu0 0
        %5250 = vmatmul.mubr.bf16.gmra.mrb[0].mxu0 %v3189
        %v5251 = vpop.f32.mrb[0].mxu0
        %v5252 = vadd.f32 0.0, %v5251
        %v5253 = vpop.f32.mrb[0].mxu0
        %v5254 = vadd.f32 0.0, %v5253
        %v5255 = vpop.f32.mrb[0].mxu0
        %v5256 = vadd.f32 0.0, %v5255
        %v5257 = vpop.f32.mrb[0].mxu0
        %v5258 = vadd.f32 0.0, %v5257
        %5259 = vmatprep.mubr.bf16.mxu0 0
        %5260 = vmatmul.mubr.bf16.gmra.mrb[0].mxu0 %v3190
        %v5261 = vpop.f32.mrb[0].mxu0
        %v5262 = vadd.f32 0.0, %v5261
        %v5263 = vpop.f32.mrb[0].mxu0
        %v5264 = vadd.f32 0.0, %v5263
        %v5265 = vpop.f32.mrb[0].mxu0
        %v5266 = vadd.f32 0.0, %v5265
        %v5267 = vpop.f32.mrb[0].mxu0
        %v5268 = vadd.f32 0.0, %v5267
        %5269 = vmatprep.mubr.bf16.mxu0 0
        %5270 = vmatmul.mubr.bf16.gmra.mrb[0].mxu0 %v3191
        %v5271 = vpop.f32.mrb[0].mxu0
        %v5272 = vadd.f32 0.0, %v5271
        %v5273 = vpop.f32.mrb[0].mxu0
        %v5274 = vadd.f32 0.0, %v5273
        %v5275 = vpop.f32.mrb[0].mxu0
        %v5276 = vadd.f32 0.0, %v5275
        %v5277 = vpop.f32.mrb[0].mxu0
        %v5278 = vadd.f32 0.0, %v5277
        %5279 = vmatprep.mubr.bf16.mxu0 0
        %5280 = vmatmul.mubr.bf16.gmra.mrb[0].mxu0 %v3192
        %v5281 = vpop.f32.mrb[0].mxu0
        %v5282 = vadd.f32 0.0, %v5281
        %v5283 = vpop.f32.mrb[0].mxu0
        %v5284 = vadd.f32 0.0, %v5283
        %v5285 = vpop.f32.mrb[0].mxu0
        %v5286 = vadd.f32 0.0, %v5285
        %v5287 = vpop.f32.mrb[0].mxu0
        %v5288 = vadd.f32 0.0, %v5287
        %5289 = vmatprep.mubr.bf16.mxu0 0
        %5290 = vmatmul.mubr.bf16.gmra.mrb[0].mxu0 %v3193
        %v5291 = vpop.f32.mrb[0].mxu0
        %v5292 = vadd.f32 0.0, %v5291
        %v5293 = vpop.f32.mrb[0].mxu0
        %v5294 = vadd.f32 0.0, %v5293
        %v5295 = vpop.f32.mrb[0].mxu0
        %v5296 = vadd.f32 0.0, %v5295
        %v5297 = vpop.f32.mrb[0].mxu0
        %v5298 = vadd.f32 0.0, %v5297
        %5299 = vmatprep.mubr.bf16.mxu0 0
        %5300 = vmatmul.mubr.bf16.gmra.mrb[0].mxu0 %v3194
        %v5301 = vpop.f32.mrb[0].mxu0
        %v5302 = vadd.f32 0.0, %v5301
        %v5303 = vpop.f32.mrb[0].mxu0
        %v5304 = vadd.f32 0.0, %v5303
        %v5305 = vpop.f32.mrb[0].mxu0
        %v5306 = vadd.f32 0.0, %v5305
        %v5307 = vpop.f32.mrb[0].mxu0
        %v5308 = vadd.f32 0.0, %v5307
        %5309 = vmatprep.mubr.bf16.mxu0 0
        %5310 = vmatmul.mubr.bf16.gmra.mrb[0].mxu0 %v3195
        %v5311 = vpop.f32.mrb[0].mxu0
        %v5312 = vadd.f32 0.0, %v5311
        %v5313 = vpop.f32.mrb[0].mxu0
        %v5314 = vadd.f32 0.0, %v5313
        %v5315 = vpop.f32.mrb[0].mxu0
        %v5316 = vadd.f32 0.0, %v5315
        %v5317 = vpop.f32.mrb[0].mxu0
        %v5318 = vadd.f32 0.0, %v5317
        %5319 = vmatprep.mubr.bf16.mxu0 0
        %5320 = vmatmul.mubr.bf16.gmra.mrb[0].mxu0 %v3196
        %v5321 = vpop.f32.mrb[0].mxu0
        %v5322 = vadd.f32 0.0, %v5321
        %v5323 = vpop.f32.mrb[0].mxu0
        %v5324 = vadd.f32 0.0, %v5323
        %v5325 = vpop.f32.mrb[0].mxu0
        %v5326 = vadd.f32 0.0, %v5325
        %v5327 = vpop.f32.mrb[0].mxu0
        %v5328 = vadd.f32 0.0, %v5327
        %5329 = vmatprep.mubr.bf16.mxu0 0
        %5330 = vmatmul.mubr.bf16.gmra.mrb[0].mxu0 %v3197
        %v5331 = vpop.f32.mrb[0].mxu0
        %v5332 = vadd.f32 0.0, %v5331
        %v5333 = vpop.f32.mrb[0].mxu0
        %v5334 = vadd.f32 0.0, %v5333
        %v5335 = vpop.f32.mrb[0].mxu0
        %v5336 = vadd.f32 0.0, %v5335
        %v5337 = vpop.f32.mrb[0].mxu0
        %v5338 = vadd.f32 0.0, %v5337
        %5339 = vmatprep.mubr.bf16.mxu0 0
        %5340 = vmatmul.mubr.bf16.gmra.mrb[0].mxu0 %v3198
        %v5341 = vpop.f32.mrb[0].mxu0
        %v5342 = vadd.f32 0.0, %v5341
        %v5343 = vpop.f32.mrb[0].mxu0
        %v5344 = vadd.f32 0.0, %v5343
        %v5345 = vpop.f32.mrb[0].mxu0
        %v5346 = vadd.f32 0.0, %v5345
        %v5347 = vpop.f32.mrb[0].mxu0
        %v5348 = vadd.f32 0.0, %v5347
        %5349 = vmatprep.mubr.bf16.mxu0 0
        %5350 = vmatmul.mubr.bf16.gmra.mrb[0].mxu0 %v3199
        %v5351 = vpop.f32.mrb[0].mxu0
        %v5352 = vadd.f32 0.0, %v5351
        %v5353 = vpop.f32.mrb[0].mxu0
        %v5354 = vadd.f32 0.0, %v5353
        %v5355 = vpop.f32.mrb[0].mxu0
        %v5356 = vadd.f32 0.0, %v5355
        %v5357 = vpop.f32.mrb[0].mxu0
        %v5358 = vadd.f32 0.0, %v5357
        %5359 = vmatprep.mubr.bf16.mxu0 0
        %5360 = vmatmul.mubr.bf16.gmra.mrb[0].mxu0 %v3200
        %v5361 = vpop.f32.mrb[0].mxu0
        %v5362 = vadd.f32 0.0, %v5361
        %v5363 = vpop.f32.mrb[0].mxu0
        %v5364 = vadd.f32 0.0, %v5363
        %v5365 = vpop.f32.mrb[0].mxu0
        %v5366 = vadd.f32 0.0, %v5365
        %v5367 = vpop.f32.mrb[0].mxu0
        %v5368 = vadd.f32 0.0, %v5367
        %5369 = vmatprep.mubr.bf16.mxu0 0
        %5370 = vmatmul.mubr.bf16.gmra.mrb[0].mxu0 %v3201
        %v5371 = vpop.f32.mrb[0].mxu0
        %v5372 = vadd.f32 0.0, %v5371
        %v5373 = vpop.f32.mrb[0].mxu0
        %v5374 = vadd.f32 0.0, %v5373
        %v5375 = vpop.f32.mrb[0].mxu0
        %v5376 = vadd.f32 0.0, %v5375
        %v5377 = vpop.f32.mrb[0].mxu0
        %v5378 = vadd.f32 0.0, %v5377
        %5379 = vmatprep.mubr.bf16.mxu0 0
        %5380 = vmatmul.mubr.bf16.gmra.mrb[0].mxu0 %v3202
        %v5381 = vpop.f32.mrb[0].mxu0
        %v5382 = vadd.f32 0.0, %v5381
        %v5383 = vpop.f32.mrb[0].mxu0
        %v5384 = vadd.f32 0.0, %v5383
        %v5385 = vpop.f32.mrb[0].mxu0
        %v5386 = vadd.f32 0.0, %v5385
        %v5387 = vpop.f32.mrb[0].mxu0
        %v5388 = vadd.f32 0.0, %v5387
        %5389 = vmatprep.mubr.bf16.mxu0 0
        %5390 = vmatmul.mubr.bf16.gmra.mrb[0].mxu0 %v3203
        %v5391 = vpop.f32.mrb[0].mxu0
        %v5392 = vadd.f32 0.0, %v5391
        %v5393 = vpop.f32.mrb[0].mxu0
        %v5394 = vadd.f32 0.0, %v5393
        %v5395 = vpop.f32.mrb[0].mxu0
        %v5396 = vadd.f32 0.0, %v5395
        %v5397 = vpop.f32.mrb[0].mxu0
        %v5398 = vadd.f32 0.0, %v5397
        %5399 = vmatprep.mubr.bf16.mxu0 0
        %5400 = vmatmul.mubr.bf16.gmra.mrb[0].mxu0 %v3204
        %v5401 = vpop.f32.mrb[0].mxu0
        %v5402 = vadd.f32 0.0, %v5401
        %v5403 = vpop.f32.mrb[0].mxu0
        %v5404 = vadd.f32 0.0, %v5403
        %v5405 = vpop.f32.mrb[0].mxu0
        %v5406 = vadd.f32 0.0, %v5405
        %v5407 = vpop.f32.mrb[0].mxu0
        %v5408 = vadd.f32 0.0, %v5407
        %5409 = vmatprep.mubr.bf16.mxu0 0
        %5410 = vmatmul.mubr.bf16.gmra.mrb[0].mxu0 %v3205
        %v5411 = vpop.f32.mrb[0].mxu0
        %v5412 = vadd.f32 0.0, %v5411
        %v5413 = vpop.f32.mrb[0].mxu0
        %v5414 = vadd.f32 0.0, %v5413
        %v5415 = vpop.f32.mrb[0].mxu0
        %v5416 = vadd.f32 0.0, %v5415
        %v5417 = vpop.f32.mrb[0].mxu0
        %v5418 = vadd.f32 0.0, %v5417
        %5419 = vmatprep.mubr.bf16.mxu0 0
        %5420 = vmatmul.mubr.bf16.gmra.mrb[0].mxu0 %v3206
        %v5421 = vpop.f32.mrb[0].mxu0
        %v5422 = vadd.f32 0.0, %v5421
        %v5423 = vpop.f32.mrb[0].mxu0
        %v5424 = vadd.f32 0.0, %v5423
        %v5425 = vpop.f32.mrb[0].mxu0
        %v5426 = vadd.f32 0.0, %v5425
        %v5427 = vpop.f32.mrb[0].mxu0
        %v5428 = vadd.f32 0.0, %v5427
        %5429 = vmatprep.mubr.bf16.mxu0 0
        %5430 = vmatmul.mubr.bf16.gmra.mrb[0].mxu0 %v3207
        %v5431 = vpop.f32.mrb[0].mxu0
        %v5432 = vadd.f32 0.0, %v5431
        %v5433 = vpop.f32.mrb[0].mxu0
        %v5434 = vadd.f32 0.0, %v5433
        %v5435 = vpop.f32.mrb[0].mxu0
        %v5436 = vadd.f32 0.0, %v5435
        %v5437 = vpop.f32.mrb[0].mxu0
        %v5438 = vadd.f32 0.0, %v5437
        %5439 = vmatprep.mubr.bf16.mxu0 0
        %5440 = vmatmul.mubr.bf16.gmra.mrb[0].mxu0 %v3208
        %v5441 = vpop.f32.mrb[0].mxu0
        %v5442 = vadd.f32 0.0, %v5441
        %v5443 = vpop.f32.mrb[0].mxu0
        %v5444 = vadd.f32 0.0, %v5443
        %v5445 = vpop.f32.mrb[0].mxu0
        %v5446 = vadd.f32 0.0, %v5445
        %v5447 = vpop.f32.mrb[0].mxu0
        %v5448 = vadd.f32 0.0, %v5447
        %5449 = vmatprep.mubr.bf16.mxu0 0
        %5450 = vmatmul.mubr.bf16.gmra.mrb[0].mxu0 %v3209
        %v5451 = vpop.f32.mrb[0].mxu0
        %v5452 = vadd.f32 0.0, %v5451
        %v5453 = vpop.f32.mrb[0].mxu0
        %v5454 = vadd.f32 0.0, %v5453
        %v5455 = vpop.f32.mrb[0].mxu0
        %v5456 = vadd.f32 0.0, %v5455
        %v5457 = vpop.f32.mrb[0].mxu0
        %v5458 = vadd.f32 0.0, %v5457
        %5459 = vmatprep.mubr.bf16.mxu0 0
        %5460 = vmatmul.mubr.bf16.gmra.mrb[0].mxu0 %v3210
        %v5461 = vpop.f32.mrb[0].mxu0
        %v5462 = vadd.f32 0.0, %v5461
        %v5463 = vpop.f32.mrb[0].mxu0
        %v5464 = vadd.f32 0.0, %v5463
        %v5465 = vpop.f32.mrb[0].mxu0
        %v5466 = vadd.f32 0.0, %v5465
        %v5467 = vpop.f32.mrb[0].mxu0
        %v5468 = vadd.f32 0.0, %v5467
        %5469 = vmatprep.mubr.bf16.mxu0 0
        %5470 = vmatmul.mubr.bf16.gmra.mrb[0].mxu0 %v3211
        %v5471 = vpop.f32.mrb[0].mxu0
        %v5472 = vadd.f32 0.0, %v5471
        %v5473 = vpop.f32.mrb[0].mxu0
        %v5474 = vadd.f32 0.0, %v5473
        %v5475 = vpop.f32.mrb[0].mxu0
        %v5476 = vadd.f32 0.0, %v5475
        %v5477 = vpop.f32.mrb[0].mxu0
        %v5478 = vadd.f32 0.0, %v5477
        %5479 = vmatprep.mubr.bf16.mxu0 0
        %5480 = vmatmul.mubr.bf16.gmra.mrb[0].mxu0 %v3212
        %v5481 = vpop.f32.mrb[0].mxu0
        %v5482 = vadd.f32 0.0, %v5481
        %v5483 = vpop.f32.mrb[0].mxu0
        %v5484 = vadd.f32 0.0, %v5483
        %v5485 = vpop.f32.mrb[0].mxu0
        %v5486 = vadd.f32 0.0, %v5485
        %v5487 = vpop.f32.mrb[0].mxu0
        %v5488 = vadd.f32 0.0, %v5487
        %5489 = vmatprep.mubr.bf16.mxu0 0
        %5490 = vmatmul.mubr.bf16.gmra.mrb[0].mxu0 %v3213
        %v5491 = vpop.f32.mrb[0].mxu0
        %v5492 = vadd.f32 0.0, %v5491
        %v5493 = vpop.f32.mrb[0].mxu0
        %v5494 = vadd.f32 0.0, %v5493
        %v5495 = vpop.f32.mrb[0].mxu0
        %v5496 = vadd.f32 0.0, %v5495
        %v5497 = vpop.f32.mrb[0].mxu0
        %v5498 = vadd.f32 0.0, %v5497
        %5499 = vmatprep.mubr.bf16.mxu0 0
        %5500 = vmatmul.mubr.bf16.gmra.mrb[0].mxu0 %v3214
        %v5501 = vpop.f32.mrb[0].mxu0
        %v5502 = vadd.f32 0.0, %v5501
        %v5503 = vpop.f32.mrb[0].mxu0
        %v5504 = vadd.f32 0.0, %v5503
        %v5505 = vpop.f32.mrb[0].mxu0
        %v5506 = vadd.f32 0.0, %v5505
        %v5507 = vpop.f32.mrb[0].mxu0
        %v5508 = vadd.f32 0.0, %v5507
        %5509 = vmatprep.mubr.bf16.mxu0 0
        %5510 = vmatmul.mubr.bf16.gmra.mrb[0].mxu0 %v3215
        %v5511 = vpop.f32.mrb[0].mxu0
        %v5512 = vadd.f32 0.0, %v5511
        %v5513 = vpop.f32.mrb[0].mxu0
        %v5514 = vadd.f32 0.0, %v5513
        %v5515 = vpop.f32.mrb[0].mxu0
        %v5516 = vadd.f32 0.0, %v5515
        %v5517 = vpop.f32.mrb[0].mxu0
        %v5518 = vadd.f32 0.0, %v5517
        %5519 = vmatprep.mubr.bf16.mxu0 0
        %5520 = vmatmul.mubr.bf16.gmra.mrb[0].mxu0 %v3216
        %v5521 = vpop.f32.mrb[0].mxu0
        %v5522 = vadd.f32 0.0, %v5521
        %v5523 = vpop.f32.mrb[0].mxu0
        %v5524 = vadd.f32 0.0, %v5523
        %v5525 = vpop.f32.mrb[0].mxu0
        %v5526 = vadd.f32 0.0, %v5525
        %v5527 = vpop.f32.mrb[0].mxu0
        %v5528 = vadd.f32 0.0, %v5527
        %5529 = vmatprep.mubr.bf16.mxu0 0
        %5530 = vmatmul.mubr.bf16.gmra.mrb[0].mxu0 %v3217
        %v5531 = vpop.f32.mrb[0].mxu0
        %v5532 = vadd.f32 0.0, %v5531
        %v5533 = vpop.f32.mrb[0].mxu0
        %v5534 = vadd.f32 0.0, %v5533
        %v5535 = vpop.f32.mrb[0].mxu0
        %v5536 = vadd.f32 0.0, %v5535
        %v5537 = vpop.f32.mrb[0].mxu0
        %v5538 = vadd.f32 0.0, %v5537
        %5539 = vmatprep.mubr.bf16.mxu0 0
        %5540 = vmatmul.mubr.bf16.gmra.mrb[0].mxu0 %v3218
        %v5541 = vpop.f32.mrb[0].mxu0
        %v5542 = vadd.f32 0.0, %v5541
        %v5543 = vpop.f32.mrb[0].mxu0
        %v5544 = vadd.f32 0.0, %v5543
        %v5545 = vpop.f32.mrb[0].mxu0
        %v5546 = vadd.f32 0.0, %v5545
        %v5547 = vpop.f32.mrb[0].mxu0
        %v5548 = vadd.f32 0.0, %v5547
        %5549 = vmatprep.mubr.bf16.mxu0 0
        %5550 = vmatmul.mubr.bf16.gmra.mrb[0].mxu0 %v3219
        %v5551 = vpop.f32.mrb[0].mxu0
        %v5552 = vadd.f32 0.0, %v5551
        %v5553 = vpop.f32.mrb[0].mxu0
        %v5554 = vadd.f32 0.0, %v5553
        %v5555 = vpop.f32.mrb[0].mxu0
        %v5556 = vadd.f32 0.0, %v5555
        %v5557 = vpop.f32.mrb[0].mxu0
        %v5558 = vadd.f32 0.0, %v5557
        %5559 = vmatprep.mubr.bf16.mxu0 0
        %5560 = vmatmul.mubr.bf16.gmra.mrb[0].mxu0 %v3220
        %v5561 = vpop.f32.mrb[0].mxu0
        %v5562 = vadd.f32 0.0, %v5561
        %v5563 = vpop.f32.mrb[0].mxu0
        %v5564 = vadd.f32 0.0, %v5563
        %v5565 = vpop.f32.mrb[0].mxu0
        %v5566 = vadd.f32 0.0, %v5565
        %v5567 = vpop.f32.mrb[0].mxu0
        %v5568 = vadd.f32 0.0, %v5567
        %5569 = vmatprep.mubr.bf16.mxu0 0
        %5570 = vmatmul.mubr.bf16.gmra.mrb[0].mxu0 %v3221
        %v5571 = vpop.f32.mrb[0].mxu0
        %v5572 = vadd.f32 0.0, %v5571
        %v5573 = vpop.f32.mrb[0].mxu0
        %v5574 = vadd.f32 0.0, %v5573
        %v5575 = vpop.f32.mrb[0].mxu0
        %v5576 = vadd.f32 0.0, %v5575
        %v5577 = vpop.f32.mrb[0].mxu0
        %v5578 = vadd.f32 0.0, %v5577
        %5579 = vmatprep.mubr.bf16.mxu0 0
        %5580 = vmatmul.mubr.bf16.gmra.mrb[0].mxu0 %v3222
        %v5581 = vpop.f32.mrb[0].mxu0
        %v5582 = vadd.f32 0.0, %v5581
        %v5583 = vpop.f32.mrb[0].mxu0
        %v5584 = vadd.f32 0.0, %v5583
        %v5585 = vpop.f32.mrb[0].mxu0
        %v5586 = vadd.f32 0.0, %v5585
        %v5587 = vpop.f32.mrb[0].mxu0
        %v5588 = vadd.f32 0.0, %v5587
        %5589 = vmatprep.mubr.bf16.mxu0 0
        %5590 = vmatmul.mubr.bf16.gmra.mrb[0].mxu0 %v3223
        %v5591 = vpop.f32.mrb[0].mxu0
        %v5592 = vadd.f32 0.0, %v5591
        %v5593 = vpop.f32.mrb[0].mxu0
        %v5594 = vadd.f32 0.0, %v5593
        %v5595 = vpop.f32.mrb[0].mxu0
        %v5596 = vadd.f32 0.0, %v5595
        %v5597 = vpop.f32.mrb[0].mxu0
        %v5598 = vadd.f32 0.0, %v5597
        %5599 = vmatprep.mubr.bf16.mxu0 0
        %5600 = vmatmul.mubr.bf16.gmra.mrb[0].mxu0 %v3224
        %v5601 = vpop.f32.mrb[0].mxu0
        %v5602 = vadd.f32 0.0, %v5601
        %v5603 = vpop.f32.mrb[0].mxu0
        %v5604 = vadd.f32 0.0, %v5603
        %v5605 = vpop.f32.mrb[0].mxu0
        %v5606 = vadd.f32 0.0, %v5605
        %v5607 = vpop.f32.mrb[0].mxu0
        %v5608 = vadd.f32 0.0, %v5607
        %5609 = vmatprep.mubr.bf16.mxu0 0
        %5610 = vmatmul.mubr.bf16.gmra.mrb[0].mxu0 %v3225
        %v5611 = vpop.f32.mrb[0].mxu0
        %v5612 = vadd.f32 0.0, %v5611
        %v5613 = vpop.f32.mrb[0].mxu0
        %v5614 = vadd.f32 0.0, %v5613
        %v5615 = vpop.f32.mrb[0].mxu0
        %v5616 = vadd.f32 0.0, %v5615
        %v5617 = vpop.f32.mrb[0].mxu0
        %v5618 = vadd.f32 0.0, %v5617
        %5619 = vmatprep.mubr.bf16.mxu0 0
        %5620 = vmatmul.mubr.bf16.gmra.mrb[0].mxu0 %v3226
        %v5621 = vpop.f32.mrb[0].mxu0
        %v5622 = vadd.f32 0.0, %v5621
        %v5623 = vpop.f32.mrb[0].mxu0
        %v5624 = vadd.f32 0.0, %v5623
        %v5625 = vpop.f32.mrb[0].mxu0
        %v5626 = vadd.f32 0.0, %v5625
        %v5627 = vpop.f32.mrb[0].mxu0
        %v5628 = vadd.f32 0.0, %v5627
        %5629 = vdwg.mxu0
        %5630 = vmatprep.subr.bf16.mxu0 %v3490
        %5631 = vmatpush1.bf16.msra.mxu0 %v3489
        %5632 = vmatprep.subr.bf16.mxu0 %v3498
        %5633 = vmatpush1.bf16.msra.mxu0 %v3497
        %5634 = vmatprep.subr.bf16.mxu0 %v3506
        %5635 = vmatpush1.bf16.msra.mxu0 %v3505
        %5636 = vmatprep.subr.bf16.mxu0 %v3514
        %5637 = vmatpush1.bf16.msra.mxu0 %v3513
        %5638 = vmatprep.subr.bf16.mxu0 %v3522
        %5639 = vmatpush1.bf16.msra.mxu0 %v3521
        %5640 = vmatprep.subr.bf16.mxu0 %v3530
        %5641 = vmatpush1.bf16.msra.mxu0 %v3529
        %5642 = vmatprep.subr.bf16.mxu0 %v3538
        %5643 = vmatpush1.bf16.msra.mxu0 %v3537
        %5644 = vmatprep.subr.bf16.mxu0 %v3546
        %5645 = vmatpush1.bf16.msra.mxu0 %v3545
        %5646 = vmatprep.subr.bf16.mxu0 0
        %5647 = vmatpush1.bf16.msra.mxu0 0
        %5648 = vmatprep.subr.bf16.mxu0 0
        %5649 = vmatpush1.bf16.msra.mxu0 0
        %5650 = vmatprep.subr.bf16.mxu0 0
        %5651 = vmatpush1.bf16.msra.mxu0 0
        %5652 = vmatprep.subr.bf16.mxu0 0
        %5653 = vmatpush1.bf16.msra.mxu0 0
        %5654 = vmatprep.subr.bf16.mxu0 0
        %5655 = vmatpush1.bf16.msra.mxu0 0
        %5656 = vmatprep.subr.bf16.mxu0 0
        %5657 = vmatpush1.bf16.msra.mxu0 0
        %5658 = vmatprep.subr.bf16.mxu0 0
        %5659 = vmatpush1.bf16.msra.mxu0 0
        %5660 = vmatprep.subr.bf16.mxu0 0
        %5661 = vmatpush1.bf16.msra.mxu0 0
        %5662 = vmatprep.mubr.bf16.mxu0 0
        %5663 = vmatmul.mubr.bf16.gmra.mrb[0].mxu0 %v3163
        %v5664 = vpop.f32.mrb[0].mxu0
        %v5665 = vadd.f32 0.0, %v5664
        %v5666 = vpop.f32.mrb[0].mxu0
        %v5667 = vadd.f32 0.0, %v5666
        %v5668 = vpop.f32.mrb[0].mxu0
        %v5669 = vadd.f32 0.0, %v5668
        %v5670 = vpop.f32.mrb[0].mxu0
        %v5671 = vadd.f32 0.0, %v5670
        %5672 = vmatprep.mubr.bf16.mxu0 0
        %5673 = vmatmul.mubr.bf16.gmra.mrb[0].mxu0 %v3164
        %v5674 = vpop.f32.mrb[0].mxu0
        %v5675 = vadd.f32 0.0, %v5674
        %v5676 = vpop.f32.mrb[0].mxu0
        %v5677 = vadd.f32 0.0, %v5676
        %v5678 = vpop.f32.mrb[0].mxu0
        %v5679 = vadd.f32 0.0, %v5678
        %v5680 = vpop.f32.mrb[0].mxu0
        %v5681 = vadd.f32 0.0, %v5680
        %5682 = vmatprep.mubr.bf16.mxu0 0
        %5683 = vmatmul.mubr.bf16.gmra.mrb[0].mxu0 %v3165
        %v5684 = vpop.f32.mrb[0].mxu0
        %v5685 = vadd.f32 0.0, %v5684
        %v5686 = vpop.f32.mrb[0].mxu0
        %v5687 = vadd.f32 0.0, %v5686
        %v5688 = vpop.f32.mrb[0].mxu0
        %v5689 = vadd.f32 0.0, %v5688
        %v5690 = vpop.f32.mrb[0].mxu0
        %v5691 = vadd.f32 0.0, %v5690
        %5692 = vmatprep.mubr.bf16.mxu0 0
        %5693 = vmatmul.mubr.bf16.gmra.mrb[0].mxu0 %v3166
        %v5694 = vpop.f32.mrb[0].mxu0
        %v5695 = vadd.f32 0.0, %v5694
        %v5696 = vpop.f32.mrb[0].mxu0
        %v5697 = vadd.f32 0.0, %v5696
        %v5698 = vpop.f32.mrb[0].mxu0
        %v5699 = vadd.f32 0.0, %v5698
        %v5700 = vpop.f32.mrb[0].mxu0
        %v5701 = vadd.f32 0.0, %v5700
        %5702 = vmatprep.mubr.bf16.mxu0 0
        %5703 = vmatmul.mubr.bf16.gmra.mrb[0].mxu0 %v3167
        %v5704 = vpop.f32.mrb[0].mxu0
        %v5705 = vadd.f32 0.0, %v5704
        %v5706 = vpop.f32.mrb[0].mxu0
        %v5707 = vadd.f32 0.0, %v5706
        %v5708 = vpop.f32.mrb[0].mxu0
        %v5709 = vadd.f32 0.0, %v5708
        %v5710 = vpop.f32.mrb[0].mxu0
        %v5711 = vadd.f32 0.0, %v5710
        %5712 = vmatprep.mubr.bf16.mxu0 0
        %5713 = vmatmul.mubr.bf16.gmra.mrb[0].mxu0 %v3168
        %v5714 = vpop.f32.mrb[0].mxu0
        %v5715 = vadd.f32 0.0, %v5714
        %v5716 = vpop.f32.mrb[0].mxu0
        %v5717 = vadd.f32 0.0, %v5716
        %v5718 = vpop.f32.mrb[0].mxu0
        %v5719 = vadd.f32 0.0, %v5718
        %v5720 = vpop.f32.mrb[0].mxu0
        %v5721 = vadd.f32 0.0, %v5720
        %5722 = vmatprep.mubr.bf16.mxu0 0
        %5723 = vmatmul.mubr.bf16.gmra.mrb[0].mxu0 %v3169
        %v5724 = vpop.f32.mrb[0].mxu0
        %v5725 = vadd.f32 0.0, %v5724
        %v5726 = vpop.f32.mrb[0].mxu0
        %v5727 = vadd.f32 0.0, %v5726
        %v5728 = vpop.f32.mrb[0].mxu0
        %v5729 = vadd.f32 0.0, %v5728
        %v5730 = vpop.f32.mrb[0].mxu0
        %v5731 = vadd.f32 0.0, %v5730
        %5732 = vmatprep.mubr.bf16.mxu0 0
        %5733 = vmatmul.mubr.bf16.gmra.mrb[0].mxu0 %v3170
        %v5734 = vpop.f32.mrb[0].mxu0
        %v5735 = vadd.f32 0.0, %v5734
        %v5736 = vpop.f32.mrb[0].mxu0
        %v5737 = vadd.f32 0.0, %v5736
        %v5738 = vpop.f32.mrb[0].mxu0
        %v5739 = vadd.f32 0.0, %v5738
        %v5740 = vpop.f32.mrb[0].mxu0
        %v5741 = vadd.f32 0.0, %v5740
        %5742 = vmatprep.mubr.bf16.mxu0 0
        %5743 = vmatmul.mubr.bf16.gmra.mrb[0].mxu0 %v3171
        %v5744 = vpop.f32.mrb[0].mxu0
        %v5745 = vadd.f32 0.0, %v5744
        %v5746 = vpop.f32.mrb[0].mxu0
        %v5747 = vadd.f32 0.0, %v5746
        %v5748 = vpop.f32.mrb[0].mxu0
        %v5749 = vadd.f32 0.0, %v5748
        %v5750 = vpop.f32.mrb[0].mxu0
        %v5751 = vadd.f32 0.0, %v5750
        %5752 = vmatprep.mubr.bf16.mxu0 0
        %5753 = vmatmul.mubr.bf16.gmra.mrb[0].mxu0 %v3172
        %v5754 = vpop.f32.mrb[0].mxu0
        %v5755 = vadd.f32 0.0, %v5754
        %v5756 = vpop.f32.mrb[0].mxu0
        %v5757 = vadd.f32 0.0, %v5756
        %v5758 = vpop.f32.mrb[0].mxu0
        %v5759 = vadd.f32 0.0, %v5758
        %v5760 = vpop.f32.mrb[0].mxu0
        %v5761 = vadd.f32 0.0, %v5760
        %5762 = vmatprep.mubr.bf16.mxu0 0
        %5763 = vmatmul.mubr.bf16.gmra.mrb[0].mxu0 %v3173
        %v5764 = vpop.f32.mrb[0].mxu0
        %v5765 = vadd.f32 0.0, %v5764
        %v5766 = vpop.f32.mrb[0].mxu0
        %v5767 = vadd.f32 0.0, %v5766
        %v5768 = vpop.f32.mrb[0].mxu0
        %v5769 = vadd.f32 0.0, %v5768
        %v5770 = vpop.f32.mrb[0].mxu0
        %v5771 = vadd.f32 0.0, %v5770
        %5772 = vmatprep.mubr.bf16.mxu0 0
        %5773 = vmatmul.mubr.bf16.gmra.mrb[0].mxu0 %v3174
        %v5774 = vpop.f32.mrb[0].mxu0
        %v5775 = vadd.f32 0.0, %v5774
        %v5776 = vpop.f32.mrb[0].mxu0
        %v5777 = vadd.f32 0.0, %v5776
        %v5778 = vpop.f32.mrb[0].mxu0
        %v5779 = vadd.f32 0.0, %v5778
        %v5780 = vpop.f32.mrb[0].mxu0
        %v5781 = vadd.f32 0.0, %v5780
        %5782 = vmatprep.mubr.bf16.mxu0 0
        %5783 = vmatmul.mubr.bf16.gmra.mrb[0].mxu0 %v3175
        %v5784 = vpop.f32.mrb[0].mxu0
        %v5785 = vadd.f32 0.0, %v5784
        %v5786 = vpop.f32.mrb[0].mxu0
        %v5787 = vadd.f32 0.0, %v5786
        %v5788 = vpop.f32.mrb[0].mxu0
        %v5789 = vadd.f32 0.0, %v5788
        %v5790 = vpop.f32.mrb[0].mxu0
        %v5791 = vadd.f32 0.0, %v5790
        %5792 = vmatprep.mubr.bf16.mxu0 0
        %5793 = vmatmul.mubr.bf16.gmra.mrb[0].mxu0 %v3176
        %v5794 = vpop.f32.mrb[0].mxu0
        %v5795 = vadd.f32 0.0, %v5794
        %v5796 = vpop.f32.mrb[0].mxu0
        %v5797 = vadd.f32 0.0, %v5796
        %v5798 = vpop.f32.mrb[0].mxu0
        %v5799 = vadd.f32 0.0, %v5798
        %v5800 = vpop.f32.mrb[0].mxu0
        %v5801 = vadd.f32 0.0, %v5800
        %5802 = vmatprep.mubr.bf16.mxu0 0
        %5803 = vmatmul.mubr.bf16.gmra.mrb[0].mxu0 %v3177
        %v5804 = vpop.f32.mrb[0].mxu0
        %v5805 = vadd.f32 0.0, %v5804
        %v5806 = vpop.f32.mrb[0].mxu0
        %v5807 = vadd.f32 0.0, %v5806
        %v5808 = vpop.f32.mrb[0].mxu0
        %v5809 = vadd.f32 0.0, %v5808
        %v5810 = vpop.f32.mrb[0].mxu0
        %v5811 = vadd.f32 0.0, %v5810
        %5812 = vmatprep.mubr.bf16.mxu0 0
        %5813 = vmatmul.mubr.bf16.gmra.mrb[0].mxu0 %v3178
        %v5814 = vpop.f32.mrb[0].mxu0
        %v5815 = vadd.f32 0.0, %v5814
        %v5816 = vpop.f32.mrb[0].mxu0
        %v5817 = vadd.f32 0.0, %v5816
        %v5818 = vpop.f32.mrb[0].mxu0
        %v5819 = vadd.f32 0.0, %v5818
        %v5820 = vpop.f32.mrb[0].mxu0
        %v5821 = vadd.f32 0.0, %v5820
        %5822 = vmatprep.mubr.bf16.mxu0 0
        %5823 = vmatmul.mubr.bf16.gmra.mrb[0].mxu0 %v3179
        %v5824 = vpop.f32.mrb[0].mxu0
        %v5825 = vadd.f32 0.0, %v5824
        %v5826 = vpop.f32.mrb[0].mxu0
        %v5827 = vadd.f32 0.0, %v5826
        %v5828 = vpop.f32.mrb[0].mxu0
        %v5829 = vadd.f32 0.0, %v5828
        %v5830 = vpop.f32.mrb[0].mxu0
        %v5831 = vadd.f32 0.0, %v5830
        %5832 = vmatprep.mubr.bf16.mxu0 0
        %5833 = vmatmul.mubr.bf16.gmra.mrb[0].mxu0 %v3180
        %v5834 = vpop.f32.mrb[0].mxu0
        %v5835 = vadd.f32 0.0, %v5834
        %v5836 = vpop.f32.mrb[0].mxu0
        %v5837 = vadd.f32 0.0, %v5836
        %v5838 = vpop.f32.mrb[0].mxu0
        %v5839 = vadd.f32 0.0, %v5838
        %v5840 = vpop.f32.mrb[0].mxu0
        %v5841 = vadd.f32 0.0, %v5840
        %5842 = vmatprep.mubr.bf16.mxu0 0
        %5843 = vmatmul.mubr.bf16.gmra.mrb[0].mxu0 %v3181
        %v5844 = vpop.f32.mrb[0].mxu0
        %v5845 = vadd.f32 0.0, %v5844
        %v5846 = vpop.f32.mrb[0].mxu0
        %v5847 = vadd.f32 0.0, %v5846
        %v5848 = vpop.f32.mrb[0].mxu0
        %v5849 = vadd.f32 0.0, %v5848
        %v5850 = vpop.f32.mrb[0].mxu0
        %v5851 = vadd.f32 0.0, %v5850
        %5852 = vmatprep.mubr.bf16.mxu0 0
        %5853 = vmatmul.mubr.bf16.gmra.mrb[0].mxu0 %v3182
        %v5854 = vpop.f32.mrb[0].mxu0
        %v5855 = vadd.f32 0.0, %v5854
        %v5856 = vpop.f32.mrb[0].mxu0
        %v5857 = vadd.f32 0.0, %v5856
        %v5858 = vpop.f32.mrb[0].mxu0
        %v5859 = vadd.f32 0.0, %v5858
        %v5860 = vpop.f32.mrb[0].mxu0
        %v5861 = vadd.f32 0.0, %v5860
        %5862 = vmatprep.mubr.bf16.mxu0 0
        %5863 = vmatmul.mubr.bf16.gmra.mrb[0].mxu0 %v3183
        %v5864 = vpop.f32.mrb[0].mxu0
        %v5865 = vadd.f32 0.0, %v5864
        %v5866 = vpop.f32.mrb[0].mxu0
        %v5867 = vadd.f32 0.0, %v5866
        %v5868 = vpop.f32.mrb[0].mxu0
        %v5869 = vadd.f32 0.0, %v5868
        %v5870 = vpop.f32.mrb[0].mxu0
        %v5871 = vadd.f32 0.0, %v5870
        %5872 = vmatprep.mubr.bf16.mxu0 0
        %5873 = vmatmul.mubr.bf16.gmra.mrb[0].mxu0 %v3184
        %v5874 = vpop.f32.mrb[0].mxu0
        %v5875 = vadd.f32 0.0, %v5874
        %v5876 = vpop.f32.mrb[0].mxu0
        %v5877 = vadd.f32 0.0, %v5876
        %v5878 = vpop.f32.mrb[0].mxu0
        %v5879 = vadd.f32 0.0, %v5878
        %v5880 = vpop.f32.mrb[0].mxu0
        %v5881 = vadd.f32 0.0, %v5880
        %5882 = vmatprep.mubr.bf16.mxu0 0
        %5883 = vmatmul.mubr.bf16.gmra.mrb[0].mxu0 %v3185
        %v5884 = vpop.f32.mrb[0].mxu0
        %v5885 = vadd.f32 0.0, %v5884
        %v5886 = vpop.f32.mrb[0].mxu0
        %v5887 = vadd.f32 0.0, %v5886
        %v5888 = vpop.f32.mrb[0].mxu0
        %v5889 = vadd.f32 0.0, %v5888
        %v5890 = vpop.f32.mrb[0].mxu0
        %v5891 = vadd.f32 0.0, %v5890
        %5892 = vmatprep.mubr.bf16.mxu0 0
        %5893 = vmatmul.mubr.bf16.gmra.mrb[0].mxu0 %v3186
        %v5894 = vpop.f32.mrb[0].mxu0
        %v5895 = vadd.f32 0.0, %v5894
        %v5896 = vpop.f32.mrb[0].mxu0
        %v5897 = vadd.f32 0.0, %v5896
        %v5898 = vpop.f32.mrb[0].mxu0
        %v5899 = vadd.f32 0.0, %v5898
        %v5900 = vpop.f32.mrb[0].mxu0
        %v5901 = vadd.f32 0.0, %v5900
        %5902 = vmatprep.mubr.bf16.mxu0 0
        %5903 = vmatmul.mubr.bf16.gmra.mrb[0].mxu0 %v3187
        %v5904 = vpop.f32.mrb[0].mxu0
        %v5905 = vadd.f32 0.0, %v5904
        %v5906 = vpop.f32.mrb[0].mxu0
        %v5907 = vadd.f32 0.0, %v5906
        %v5908 = vpop.f32.mrb[0].mxu0
        %v5909 = vadd.f32 0.0, %v5908
        %v5910 = vpop.f32.mrb[0].mxu0
        %v5911 = vadd.f32 0.0, %v5910
        %5912 = vmatprep.mubr.bf16.mxu0 0
        %5913 = vmatmul.mubr.bf16.gmra.mrb[0].mxu0 %v3188
        %v5914 = vpop.f32.mrb[0].mxu0
        %v5915 = vadd.f32 0.0, %v5914
        %v5916 = vpop.f32.mrb[0].mxu0
        %v5917 = vadd.f32 0.0, %v5916
        %v5918 = vpop.f32.mrb[0].mxu0
        %v5919 = vadd.f32 0.0, %v5918
        %v5920 = vpop.f32.mrb[0].mxu0
        %v5921 = vadd.f32 0.0, %v5920
        %5922 = vmatprep.mubr.bf16.mxu0 0
        %5923 = vmatmul.mubr.bf16.gmra.mrb[0].mxu0 %v3189
        %v5924 = vpop.f32.mrb[0].mxu0
        %v5925 = vadd.f32 0.0, %v5924
        %v5926 = vpop.f32.mrb[0].mxu0
        %v5927 = vadd.f32 0.0, %v5926
        %v5928 = vpop.f32.mrb[0].mxu0
        %v5929 = vadd.f32 0.0, %v5928
        %v5930 = vpop.f32.mrb[0].mxu0
        %v5931 = vadd.f32 0.0, %v5930
        %5932 = vmatprep.mubr.bf16.mxu0 0
        %5933 = vmatmul.mubr.bf16.gmra.mrb[0].mxu0 %v3190
        %v5934 = vpop.f32.mrb[0].mxu0
        %v5935 = vadd.f32 0.0, %v5934
        %v5936 = vpop.f32.mrb[0].mxu0
        %v5937 = vadd.f32 0.0, %v5936
        %v5938 = vpop.f32.mrb[0].mxu0
        %v5939 = vadd.f32 0.0, %v5938
        %v5940 = vpop.f32.mrb[0].mxu0
        %v5941 = vadd.f32 0.0, %v5940
        %5942 = vmatprep.mubr.bf16.mxu0 0
        %5943 = vmatmul.mubr.bf16.gmra.mrb[0].mxu0 %v3191
        %v5944 = vpop.f32.mrb[0].mxu0
        %v5945 = vadd.f32 0.0, %v5944
        %v5946 = vpop.f32.mrb[0].mxu0
        %v5947 = vadd.f32 0.0, %v5946
        %v5948 = vpop.f32.mrb[0].mxu0
        %v5949 = vadd.f32 0.0, %v5948
        %v5950 = vpop.f32.mrb[0].mxu0
        %v5951 = vadd.f32 0.0, %v5950
        %5952 = vmatprep.mubr.bf16.mxu0 0
        %5953 = vmatmul.mubr.bf16.gmra.mrb[0].mxu0 %v3192
        %v5954 = vpop.f32.mrb[0].mxu0
        %v5955 = vadd.f32 0.0, %v5954
        %v5956 = vpop.f32.mrb[0].mxu0
        %v5957 = vadd.f32 0.0, %v5956
        %v5958 = vpop.f32.mrb[0].mxu0
        %v5959 = vadd.f32 0.0, %v5958
        %v5960 = vpop.f32.mrb[0].mxu0
        %v5961 = vadd.f32 0.0, %v5960
        %5962 = vmatprep.mubr.bf16.mxu0 0
        %5963 = vmatmul.mubr.bf16.gmra.mrb[0].mxu0 %v3193
        %v5964 = vpop.f32.mrb[0].mxu0
        %v5965 = vadd.f32 0.0, %v5964
        %v5966 = vpop.f32.mrb[0].mxu0
        %v5967 = vadd.f32 0.0, %v5966
        %v5968 = vpop.f32.mrb[0].mxu0
        %v5969 = vadd.f32 0.0, %v5968
        %v5970 = vpop.f32.mrb[0].mxu0
        %v5971 = vadd.f32 0.0, %v5970
        %5972 = vmatprep.mubr.bf16.mxu0 0
        %5973 = vmatmul.mubr.bf16.gmra.mrb[0].mxu0 %v3194
        %v5974 = vpop.f32.mrb[0].mxu0
        %v5975 = vadd.f32 0.0, %v5974
        %v5976 = vpop.f32.mrb[0].mxu0
        %v5977 = vadd.f32 0.0, %v5976
        %v5978 = vpop.f32.mrb[0].mxu0
        %v5979 = vadd.f32 0.0, %v5978
        %v5980 = vpop.f32.mrb[0].mxu0
        %v5981 = vadd.f32 0.0, %v5980
        %5982 = vmatprep.mubr.bf16.mxu0 0
        %5983 = vmatmul.mubr.bf16.gmra.mrb[0].mxu0 %v3195
        %v5984 = vpop.f32.mrb[0].mxu0
        %v5985 = vadd.f32 0.0, %v5984
        %v5986 = vpop.f32.mrb[0].mxu0
        %v5987 = vadd.f32 0.0, %v5986
        %v5988 = vpop.f32.mrb[0].mxu0
        %v5989 = vadd.f32 0.0, %v5988
        %v5990 = vpop.f32.mrb[0].mxu0
        %v5991 = vadd.f32 0.0, %v5990
        %5992 = vmatprep.mubr.bf16.mxu0 0
        %5993 = vmatmul.mubr.bf16.gmra.mrb[0].mxu0 %v3196
        %v5994 = vpop.f32.mrb[0].mxu0
        %v5995 = vadd.f32 0.0, %v5994
        %v5996 = vpop.f32.mrb[0].mxu0
        %v5997 = vadd.f32 0.0, %v5996
        %v5998 = vpop.f32.mrb[0].mxu0
        %v5999 = vadd.f32 0.0, %v5998
        %v6000 = vpop.f32.mrb[0].mxu0
        %v6001 = vadd.f32 0.0, %v6000
        %6002 = vmatprep.mubr.bf16.mxu0 0
        %6003 = vmatmul.mubr.bf16.gmra.mrb[0].mxu0 %v3197
        %v6004 = vpop.f32.mrb[0].mxu0
        %v6005 = vadd.f32 0.0, %v6004
        %v6006 = vpop.f32.mrb[0].mxu0
        %v6007 = vadd.f32 0.0, %v6006
        %v6008 = vpop.f32.mrb[0].mxu0
        %v6009 = vadd.f32 0.0, %v6008
        %v6010 = vpop.f32.mrb[0].mxu0
        %v6011 = vadd.f32 0.0, %v6010
        %6012 = vmatprep.mubr.bf16.mxu0 0
        %6013 = vmatmul.mubr.bf16.gmra.mrb[0].mxu0 %v3198
        %v6014 = vpop.f32.mrb[0].mxu0
        %v6015 = vadd.f32 0.0, %v6014
        %v6016 = vpop.f32.mrb[0].mxu0
        %v6017 = vadd.f32 0.0, %v6016
        %v6018 = vpop.f32.mrb[0].mxu0
        %v6019 = vadd.f32 0.0, %v6018
        %v6020 = vpop.f32.mrb[0].mxu0
        %v6021 = vadd.f32 0.0, %v6020
        %6022 = vmatprep.mubr.bf16.mxu0 0
        %6023 = vmatmul.mubr.bf16.gmra.mrb[0].mxu0 %v3199
        %v6024 = vpop.f32.mrb[0].mxu0
        %v6025 = vadd.f32 0.0, %v6024
        %v6026 = vpop.f32.mrb[0].mxu0
        %v6027 = vadd.f32 0.0, %v6026
        %v6028 = vpop.f32.mrb[0].mxu0
        %v6029 = vadd.f32 0.0, %v6028
        %v6030 = vpop.f32.mrb[0].mxu0
        %v6031 = vadd.f32 0.0, %v6030
        %6032 = vmatprep.mubr.bf16.mxu0 0
        %6033 = vmatmul.mubr.bf16.gmra.mrb[0].mxu0 %v3200
        %v6034 = vpop.f32.mrb[0].mxu0
        %v6035 = vadd.f32 0.0, %v6034
        %v6036 = vpop.f32.mrb[0].mxu0
        %v6037 = vadd.f32 0.0, %v6036
        %v6038 = vpop.f32.mrb[0].mxu0
        %v6039 = vadd.f32 0.0, %v6038
        %v6040 = vpop.f32.mrb[0].mxu0
        %v6041 = vadd.f32 0.0, %v6040
        %6042 = vmatprep.mubr.bf16.mxu0 0
        %6043 = vmatmul.mubr.bf16.gmra.mrb[0].mxu0 %v3201
        %v6044 = vpop.f32.mrb[0].mxu0
        %v6045 = vadd.f32 0.0, %v6044
        %v6046 = vpop.f32.mrb[0].mxu0
        %v6047 = vadd.f32 0.0, %v6046
        %v6048 = vpop.f32.mrb[0].mxu0
        %v6049 = vadd.f32 0.0, %v6048
        %v6050 = vpop.f32.mrb[0].mxu0
        %v6051 = vadd.f32 0.0, %v6050
        %6052 = vmatprep.mubr.bf16.mxu0 0
        %6053 = vmatmul.mubr.bf16.gmra.mrb[0].mxu0 %v3202
        %v6054 = vpop.f32.mrb[0].mxu0
        %v6055 = vadd.f32 0.0, %v6054
        %v6056 = vpop.f32.mrb[0].mxu0
        %v6057 = vadd.f32 0.0, %v6056
        %v6058 = vpop.f32.mrb[0].mxu0
        %v6059 = vadd.f32 0.0, %v6058
        %v6060 = vpop.f32.mrb[0].mxu0
        %v6061 = vadd.f32 0.0, %v6060
        %6062 = vmatprep.mubr.bf16.mxu0 0
        %6063 = vmatmul.mubr.bf16.gmra.mrb[0].mxu0 %v3203
        %v6064 = vpop.f32.mrb[0].mxu0
        %v6065 = vadd.f32 0.0, %v6064
        %v6066 = vpop.f32.mrb[0].mxu0
        %v6067 = vadd.f32 0.0, %v6066
        %v6068 = vpop.f32.mrb[0].mxu0
        %v6069 = vadd.f32 0.0, %v6068
        %v6070 = vpop.f32.mrb[0].mxu0
        %v6071 = vadd.f32 0.0, %v6070
        %6072 = vmatprep.mubr.bf16.mxu0 0
        %6073 = vmatmul.mubr.bf16.gmra.mrb[0].mxu0 %v3204
        %v6074 = vpop.f32.mrb[0].mxu0
        %v6075 = vadd.f32 0.0, %v6074
        %v6076 = vpop.f32.mrb[0].mxu0
        %v6077 = vadd.f32 0.0, %v6076
        %v6078 = vpop.f32.mrb[0].mxu0
        %v6079 = vadd.f32 0.0, %v6078
        %v6080 = vpop.f32.mrb[0].mxu0
        %v6081 = vadd.f32 0.0, %v6080
        %6082 = vmatprep.mubr.bf16.mxu0 0
        %6083 = vmatmul.mubr.bf16.gmra.mrb[0].mxu0 %v3205
        %v6084 = vpop.f32.mrb[0].mxu0
        %v6085 = vadd.f32 0.0, %v6084
        %v6086 = vpop.f32.mrb[0].mxu0
        %v6087 = vadd.f32 0.0, %v6086
        %v6088 = vpop.f32.mrb[0].mxu0
        %v6089 = vadd.f32 0.0, %v6088
        %v6090 = vpop.f32.mrb[0].mxu0
        %v6091 = vadd.f32 0.0, %v6090
        %6092 = vmatprep.mubr.bf16.mxu0 0
        %6093 = vmatmul.mubr.bf16.gmra.mrb[0].mxu0 %v3206
        %v6094 = vpop.f32.mrb[0].mxu0
        %v6095 = vadd.f32 0.0, %v6094
        %v6096 = vpop.f32.mrb[0].mxu0
        %v6097 = vadd.f32 0.0, %v6096
        %v6098 = vpop.f32.mrb[0].mxu0
        %v6099 = vadd.f32 0.0, %v6098
        %v6100 = vpop.f32.mrb[0].mxu0
        %v6101 = vadd.f32 0.0, %v6100
        %6102 = vmatprep.mubr.bf16.mxu0 0
        %6103 = vmatmul.mubr.bf16.gmra.mrb[0].mxu0 %v3207
        %v6104 = vpop.f32.mrb[0].mxu0
        %v6105 = vadd.f32 0.0, %v6104
        %v6106 = vpop.f32.mrb[0].mxu0
        %v6107 = vadd.f32 0.0, %v6106
        %v6108 = vpop.f32.mrb[0].mxu0
        %v6109 = vadd.f32 0.0, %v6108
        %v6110 = vpop.f32.mrb[0].mxu0
        %v6111 = vadd.f32 0.0, %v6110
        %6112 = vmatprep.mubr.bf16.mxu0 0
        %6113 = vmatmul.mubr.bf16.gmra.mrb[0].mxu0 %v3208
        %v6114 = vpop.f32.mrb[0].mxu0
        %v6115 = vadd.f32 0.0, %v6114
        %v6116 = vpop.f32.mrb[0].mxu0
        %v6117 = vadd.f32 0.0, %v6116
        %v6118 = vpop.f32.mrb[0].mxu0
        %v6119 = vadd.f32 0.0, %v6118
        %v6120 = vpop.f32.mrb[0].mxu0
        %v6121 = vadd.f32 0.0, %v6120
        %6122 = vmatprep.mubr.bf16.mxu0 0
        %6123 = vmatmul.mubr.bf16.gmra.mrb[0].mxu0 %v3209
        %v6124 = vpop.f32.mrb[0].mxu0
        %v6125 = vadd.f32 0.0, %v6124
        %v6126 = vpop.f32.mrb[0].mxu0
        %v6127 = vadd.f32 0.0, %v6126
        %v6128 = vpop.f32.mrb[0].mxu0
        %v6129 = vadd.f32 0.0, %v6128
        %v6130 = vpop.f32.mrb[0].mxu0
        %v6131 = vadd.f32 0.0, %v6130
        %6132 = vmatprep.mubr.bf16.mxu0 0
        %6133 = vmatmul.mubr.bf16.gmra.mrb[0].mxu0 %v3210
        %v6134 = vpop.f32.mrb[0].mxu0
        %v6135 = vadd.f32 0.0, %v6134
        %v6136 = vpop.f32.mrb[0].mxu0
        %v6137 = vadd.f32 0.0, %v6136
        %v6138 = vpop.f32.mrb[0].mxu0
        %v6139 = vadd.f32 0.0, %v6138
        %v6140 = vpop.f32.mrb[0].mxu0
        %v6141 = vadd.f32 0.0, %v6140
        %6142 = vmatprep.mubr.bf16.mxu0 0
        %6143 = vmatmul.mubr.bf16.gmra.mrb[0].mxu0 %v3211
        %v6144 = vpop.f32.mrb[0].mxu0
        %v6145 = vadd.f32 0.0, %v6144
        %v6146 = vpop.f32.mrb[0].mxu0
        %v6147 = vadd.f32 0.0, %v6146
        %v6148 = vpop.f32.mrb[0].mxu0
        %v6149 = vadd.f32 0.0, %v6148
        %v6150 = vpop.f32.mrb[0].mxu0
        %v6151 = vadd.f32 0.0, %v6150
        %6152 = vmatprep.mubr.bf16.mxu0 0
        %6153 = vmatmul.mubr.bf16.gmra.mrb[0].mxu0 %v3212
        %v6154 = vpop.f32.mrb[0].mxu0
        %v6155 = vadd.f32 0.0, %v6154
        %v6156 = vpop.f32.mrb[0].mxu0
        %v6157 = vadd.f32 0.0, %v6156
        %v6158 = vpop.f32.mrb[0].mxu0
        %v6159 = vadd.f32 0.0, %v6158
        %v6160 = vpop.f32.mrb[0].mxu0
        %v6161 = vadd.f32 0.0, %v6160
        %6162 = vmatprep.mubr.bf16.mxu0 0
        %6163 = vmatmul.mubr.bf16.gmra.mrb[0].mxu0 %v3213
        %v6164 = vpop.f32.mrb[0].mxu0
        %v6165 = vadd.f32 0.0, %v6164
        %v6166 = vpop.f32.mrb[0].mxu0
        %v6167 = vadd.f32 0.0, %v6166
        %v6168 = vpop.f32.mrb[0].mxu0
        %v6169 = vadd.f32 0.0, %v6168
        %v6170 = vpop.f32.mrb[0].mxu0
        %v6171 = vadd.f32 0.0, %v6170
        %6172 = vmatprep.mubr.bf16.mxu0 0
        %6173 = vmatmul.mubr.bf16.gmra.mrb[0].mxu0 %v3214
        %v6174 = vpop.f32.mrb[0].mxu0
        %v6175 = vadd.f32 0.0, %v6174
        %v6176 = vpop.f32.mrb[0].mxu0
        %v6177 = vadd.f32 0.0, %v6176
        %v6178 = vpop.f32.mrb[0].mxu0
        %v6179 = vadd.f32 0.0, %v6178
        %v6180 = vpop.f32.mrb[0].mxu0
        %v6181 = vadd.f32 0.0, %v6180
        %6182 = vmatprep.mubr.bf16.mxu0 0
        %6183 = vmatmul.mubr.bf16.gmra.mrb[0].mxu0 %v3215
        %v6184 = vpop.f32.mrb[0].mxu0
        %v6185 = vadd.f32 0.0, %v6184
        %v6186 = vpop.f32.mrb[0].mxu0
        %v6187 = vadd.f32 0.0, %v6186
        %v6188 = vpop.f32.mrb[0].mxu0
        %v6189 = vadd.f32 0.0, %v6188
        %v6190 = vpop.f32.mrb[0].mxu0
        %v6191 = vadd.f32 0.0, %v6190
        %6192 = vmatprep.mubr.bf16.mxu0 0
        %6193 = vmatmul.mubr.bf16.gmra.mrb[0].mxu0 %v3216
        %v6194 = vpop.f32.mrb[0].mxu0
        %v6195 = vadd.f32 0.0, %v6194
        %v6196 = vpop.f32.mrb[0].mxu0
        %v6197 = vadd.f32 0.0, %v6196
        %v6198 = vpop.f32.mrb[0].mxu0
        %v6199 = vadd.f32 0.0, %v6198
        %v6200 = vpop.f32.mrb[0].mxu0
        %v6201 = vadd.f32 0.0, %v6200
        %6202 = vmatprep.mubr.bf16.mxu0 0
        %6203 = vmatmul.mubr.bf16.gmra.mrb[0].mxu0 %v3217
        %v6204 = vpop.f32.mrb[0].mxu0
        %v6205 = vadd.f32 0.0, %v6204
        %v6206 = vpop.f32.mrb[0].mxu0
        %v6207 = vadd.f32 0.0, %v6206
        %v6208 = vpop.f32.mrb[0].mxu0
        %v6209 = vadd.f32 0.0, %v6208
        %v6210 = vpop.f32.mrb[0].mxu0
        %v6211 = vadd.f32 0.0, %v6210
        %6212 = vmatprep.mubr.bf16.mxu0 0
        %6213 = vmatmul.mubr.bf16.gmra.mrb[0].mxu0 %v3218
        %v6214 = vpop.f32.mrb[0].mxu0
        %v6215 = vadd.f32 0.0, %v6214
        %v6216 = vpop.f32.mrb[0].mxu0
        %v6217 = vadd.f32 0.0, %v6216
        %v6218 = vpop.f32.mrb[0].mxu0
        %v6219 = vadd.f32 0.0, %v6218
        %v6220 = vpop.f32.mrb[0].mxu0
        %v6221 = vadd.f32 0.0, %v6220
        %6222 = vmatprep.mubr.bf16.mxu0 0
        %6223 = vmatmul.mubr.bf16.gmra.mrb[0].mxu0 %v3219
        %v6224 = vpop.f32.mrb[0].mxu0
        %v6225 = vadd.f32 0.0, %v6224
        %v6226 = vpop.f32.mrb[0].mxu0
        %v6227 = vadd.f32 0.0, %v6226
        %v6228 = vpop.f32.mrb[0].mxu0
        %v6229 = vadd.f32 0.0, %v6228
        %v6230 = vpop.f32.mrb[0].mxu0
        %v6231 = vadd.f32 0.0, %v6230
        %6232 = vmatprep.mubr.bf16.mxu0 0
        %6233 = vmatmul.mubr.bf16.gmra.mrb[0].mxu0 %v3220
        %v6234 = vpop.f32.mrb[0].mxu0
        %v6235 = vadd.f32 0.0, %v6234
        %v6236 = vpop.f32.mrb[0].mxu0
        %v6237 = vadd.f32 0.0, %v6236
        %v6238 = vpop.f32.mrb[0].mxu0
        %v6239 = vadd.f32 0.0, %v6238
        %v6240 = vpop.f32.mrb[0].mxu0
        %v6241 = vadd.f32 0.0, %v6240
        %6242 = vmatprep.mubr.bf16.mxu0 0
        %6243 = vmatmul.mubr.bf16.gmra.mrb[0].mxu0 %v3221
        %v6244 = vpop.f32.mrb[0].mxu0
        %v6245 = vadd.f32 0.0, %v6244
        %v6246 = vpop.f32.mrb[0].mxu0
        %v6247 = vadd.f32 0.0, %v6246
        %v6248 = vpop.f32.mrb[0].mxu0
        %v6249 = vadd.f32 0.0, %v6248
        %v6250 = vpop.f32.mrb[0].mxu0
        %v6251 = vadd.f32 0.0, %v6250
        %6252 = vmatprep.mubr.bf16.mxu0 0
        %6253 = vmatmul.mubr.bf16.gmra.mrb[0].mxu0 %v3222
        %v6254 = vpop.f32.mrb[0].mxu0
        %v6255 = vadd.f32 0.0, %v6254
        %v6256 = vpop.f32.mrb[0].mxu0
        %v6257 = vadd.f32 0.0, %v6256
        %v6258 = vpop.f32.mrb[0].mxu0
        %v6259 = vadd.f32 0.0, %v6258
        %v6260 = vpop.f32.mrb[0].mxu0
        %v6261 = vadd.f32 0.0, %v6260
        %6262 = vmatprep.mubr.bf16.mxu0 0
        %6263 = vmatmul.mubr.bf16.gmra.mrb[0].mxu0 %v3223
        %v6264 = vpop.f32.mrb[0].mxu0
        %v6265 = vadd.f32 0.0, %v6264
        %v6266 = vpop.f32.mrb[0].mxu0
        %v6267 = vadd.f32 0.0, %v6266
        %v6268 = vpop.f32.mrb[0].mxu0
        %v6269 = vadd.f32 0.0, %v6268
        %v6270 = vpop.f32.mrb[0].mxu0
        %v6271 = vadd.f32 0.0, %v6270
        %6272 = vmatprep.mubr.bf16.mxu0 0
        %6273 = vmatmul.mubr.bf16.gmra.mrb[0].mxu0 %v3224
        %v6274 = vpop.f32.mrb[0].mxu0
        %v6275 = vadd.f32 0.0, %v6274
        %v6276 = vpop.f32.mrb[0].mxu0
        %v6277 = vadd.f32 0.0, %v6276
        %v6278 = vpop.f32.mrb[0].mxu0
        %v6279 = vadd.f32 0.0, %v6278
        %v6280 = vpop.f32.mrb[0].mxu0
        %v6281 = vadd.f32 0.0, %v6280
        %6282 = vmatprep.mubr.bf16.mxu0 0
        %6283 = vmatmul.mubr.bf16.gmra.mrb[0].mxu0 %v3225
        %v6284 = vpop.f32.mrb[0].mxu0
        %v6285 = vadd.f32 0.0, %v6284
        %v6286 = vpop.f32.mrb[0].mxu0
        %v6287 = vadd.f32 0.0, %v6286
        %v6288 = vpop.f32.mrb[0].mxu0
        %v6289 = vadd.f32 0.0, %v6288
        %v6290 = vpop.f32.mrb[0].mxu0
        %v6291 = vadd.f32 0.0, %v6290
        %6292 = vmatprep.mubr.bf16.mxu0 0
        %6293 = vmatmul.mubr.bf16.gmra.mrb[0].mxu0 %v3226
        %v6294 = vpop.f32.mrb[0].mxu0
        %v6295 = vadd.f32 0.0, %v6294
        %v6296 = vpop.f32.mrb[0].mxu0
        %v6297 = vadd.f32 0.0, %v6296
        %v6298 = vpop.f32.mrb[0].mxu0
        %v6299 = vadd.f32 0.0, %v6298
        %v6300 = vpop.f32.mrb[0].mxu0
        %v6301 = vadd.f32 0.0, %v6300
        %6302 = vdwg.mxu0
        %v6303 = vmax.f32 %v3646, %v3650
        %v6304 = vmax.f32 %v6303, %v3656
        %v6305 = vmax.f32 %v6304, %v3660
        %v6306 = vmax.f32 %v6305, %v3666
        %v6307 = vmax.f32 %v6306, %v3670
        %v6308 = vmax.f32 %v6307, %v3676
        %v6309 = vmax.f32 %v6308, %v3680
        %v6310 = vmax.f32 %v6309, %v3686
        %v6311 = vmax.f32 %v6310, %v3690
        %v6312 = vmax.f32 %v6311, %v3696
        %v6313 = vmax.f32 %v6312, %v3700
        %v6314 = vmax.f32 %v6313, %v3706
        %v6315 = vmax.f32 %v6314, %v3710
        %v6316 = vmax.f32 %v6315, %v3716
        %v6317 = vmax.f32 %v6316, %v3720
        %v6318 = vrot.slane %v6317, 4
        %v6319 = vmax.f32 %v6317, %v6318
        %v6320 = vrot.slane %v6319, 2
        %v6321 = vmax.f32 %v6319, %v6320
        %v6322 = vrot.slane %v6321, 1
        %v6323 = vmax.f32 %v6321, %v6322
        %v6324 = vmax.f32 %v3648, %v3652
        %v6325 = vmax.f32 %v6324, %v3658
        %v6326 = vmax.f32 %v6325, %v3662
        %v6327 = vmax.f32 %v6326, %v3668
        %v6328 = vmax.f32 %v6327, %v3672
        %v6329 = vmax.f32 %v6328, %v3678
        %v6330 = vmax.f32 %v6329, %v3682
        %v6331 = vmax.f32 %v6330, %v3688
        %v6332 = vmax.f32 %v6331, %v3692
        %v6333 = vmax.f32 %v6332, %v3698
        %v6334 = vmax.f32 %v6333, %v3702
        %v6335 = vmax.f32 %v6334, %v3708
        %v6336 = vmax.f32 %v6335, %v3712
        %v6337 = vmax.f32 %v6336, %v3718
        %v6338 = vmax.f32 %v6337, %v3722
        %v6339 = vrot.slane %v6338, 4
        %v6340 = vmax.f32 %v6338, %v6339
        %v6341 = vrot.slane %v6340, 2
        %v6342 = vmax.f32 %v6340, %v6341
        %v6343 = vrot.slane %v6342, 1
        %v6344 = vmax.f32 %v6342, %v6343
        %v6345 = vmax.f32 %v4319, %v4323
        %v6346 = vmax.f32 %v6345, %v4329
        %v6347 = vmax.f32 %v6346, %v4333
        %v6348 = vmax.f32 %v6347, %v4339
        %v6349 = vmax.f32 %v6348, %v4343
        %v6350 = vmax.f32 %v6349, %v4349
        %v6351 = vmax.f32 %v6350, %v4353
        %v6352 = vmax.f32 %v6351, %v4359
        %v6353 = vmax.f32 %v6352, %v4363
        %v6354 = vmax.f32 %v6353, %v4369
        %v6355 = vmax.f32 %v6354, %v4373
        %v6356 = vmax.f32 %v6355, %v4379
        %v6357 = vmax.f32 %v6356, %v4383
        %v6358 = vmax.f32 %v6357, %v4389
        %v6359 = vmax.f32 %v6358, %v4393
        %v6360 = vrot.slane %v6359, 4
        %v6361 = vmax.f32 %v6359, %v6360
        %v6362 = vrot.slane %v6361, 2
        %v6363 = vmax.f32 %v6361, %v6362
        %v6364 = vrot.slane %v6363, 1
        %v6365 = vmax.f32 %v6363, %v6364
        %v6366 = vmax.f32 %v4321, %v4325
        %v6367 = vmax.f32 %v6366, %v4331
        %v6368 = vmax.f32 %v6367, %v4335
        %v6369 = vmax.f32 %v6368, %v4341
        %v6370 = vmax.f32 %v6369, %v4345
        %v6371 = vmax.f32 %v6370, %v4351
        %v6372 = vmax.f32 %v6371, %v4355
        %v6373 = vmax.f32 %v6372, %v4361
        %v6374 = vmax.f32 %v6373, %v4365
        %v6375 = vmax.f32 %v6374, %v4371
        %v6376 = vmax.f32 %v6375, %v4375
        %v6377 = vmax.f32 %v6376, %v4381
        %v6378 = vmax.f32 %v6377, %v4385
        %v6379 = vmax.f32 %v6378, %v4391
        %v6380 = vmax.f32 %v6379, %v4395
        %v6381 = vrot.slane %v6380, 4
        %v6382 = vmax.f32 %v6380, %v6381
        %v6383 = vrot.slane %v6382, 2
        %v6384 = vmax.f32 %v6382, %v6383
        %v6385 = vrot.slane %v6384, 1
        %v6386 = vmax.f32 %v6384, %v6385
        %v6387 = vmax.f32 %v4992, %v4996
        %v6388 = vmax.f32 %v6387, %v5002
        %v6389 = vmax.f32 %v6388, %v5006
        %v6390 = vmax.f32 %v6389, %v5012
        %v6391 = vmax.f32 %v6390, %v5016
        %v6392 = vmax.f32 %v6391, %v5022
        %v6393 = vmax.f32 %v6392, %v5026
        %v6394 = vmax.f32 %v6393, %v5032
        %v6395 = vmax.f32 %v6394, %v5036
        %v6396 = vmax.f32 %v6395, %v5042
        %v6397 = vmax.f32 %v6396, %v5046
        %v6398 = vmax.f32 %v6397, %v5052
        %v6399 = vmax.f32 %v6398, %v5056
        %v6400 = vmax.f32 %v6399, %v5062
        %v6401 = vmax.f32 %v6400, %v5066
        %v6402 = vrot.slane %v6401, 4
        %v6403 = vmax.f32 %v6401, %v6402
        %v6404 = vrot.slane %v6403, 2
        %v6405 = vmax.f32 %v6403, %v6404
        %v6406 = vrot.slane %v6405, 1
        %v6407 = vmax.f32 %v6405, %v6406
        %v6408 = vmax.f32 %v4994, %v4998
        %v6409 = vmax.f32 %v6408, %v5004
        %v6410 = vmax.f32 %v6409, %v5008
        %v6411 = vmax.f32 %v6410, %v5014
        %v6412 = vmax.f32 %v6411, %v5018
        %v6413 = vmax.f32 %v6412, %v5024
        %v6414 = vmax.f32 %v6413, %v5028
        %v6415 = vmax.f32 %v6414, %v5034
        %v6416 = vmax.f32 %v6415, %v5038
        %v6417 = vmax.f32 %v6416, %v5044
        %v6418 = vmax.f32 %v6417, %v5048
        %v6419 = vmax.f32 %v6418, %v5054
        %v6420 = vmax.f32 %v6419, %v5058
        %v6421 = vmax.f32 %v6420, %v5064
        %v6422 = vmax.f32 %v6421, %v5068
        %v6423 = vrot.slane %v6422, 4
        %v6424 = vmax.f32 %v6422, %v6423
        %v6425 = vrot.slane %v6424, 2
        %v6426 = vmax.f32 %v6424, %v6425
        %v6427 = vrot.slane %v6426, 1
        %v6428 = vmax.f32 %v6426, %v6427
        %v6429 = vmax.f32 %v5665, %v5669
        %v6430 = vmax.f32 %v6429, %v5675
        %v6431 = vmax.f32 %v6430, %v5679
        %v6432 = vmax.f32 %v6431, %v5685
        %v6433 = vmax.f32 %v6432, %v5689
        %v6434 = vmax.f32 %v6433, %v5695
        %v6435 = vmax.f32 %v6434, %v5699
        %v6436 = vmax.f32 %v6435, %v5705
        %v6437 = vmax.f32 %v6436, %v5709
        %v6438 = vmax.f32 %v6437, %v5715
        %v6439 = vmax.f32 %v6438, %v5719
        %v6440 = vmax.f32 %v6439, %v5725
        %v6441 = vmax.f32 %v6440, %v5729
        %v6442 = vmax.f32 %v6441, %v5735
        %v6443 = vmax.f32 %v6442, %v5739
        %v6444 = vrot.slane %v6443, 4
        %v6445 = vmax.f32 %v6443, %v6444
        %v6446 = vrot.slane %v6445, 2
        %v6447 = vmax.f32 %v6445, %v6446
        %v6448 = vrot.slane %v6447, 1
        %v6449 = vmax.f32 %v6447, %v6448
        %v6450 = vmax.f32 %v5667, %v5671
        %v6451 = vmax.f32 %v6450, %v5677
        %v6452 = vmax.f32 %v6451, %v5681
        %v6453 = vmax.f32 %v6452, %v5687
        %v6454 = vmax.f32 %v6453, %v5691
        %v6455 = vmax.f32 %v6454, %v5697
        %v6456 = vmax.f32 %v6455, %v5701
        %v6457 = vmax.f32 %v6456, %v5707
        %v6458 = vmax.f32 %v6457, %v5711
        %v6459 = vmax.f32 %v6458, %v5717
        %v6460 = vmax.f32 %v6459, %v5721
        %v6461 = vmax.f32 %v6460, %v5727
        %v6462 = vmax.f32 %v6461, %v5731
        %v6463 = vmax.f32 %v6462, %v5737
        %v6464 = vmax.f32 %v6463, %v5741
        %v6465 = vrot.slane %v6464, 4
        %v6466 = vmax.f32 %v6464, %v6465
        %v6467 = vrot.slane %v6466, 2
        %v6468 = vmax.f32 %v6466, %v6467
        %v6469 = vrot.slane %v6468, 1
        %v6470 = vmax.f32 %v6468, %v6469
        %v6471 = vmax.f32 %v3726, %v3730
        %v6472 = vmax.f32 %v6471, %v3736
        %v6473 = vmax.f32 %v6472, %v3740
        %v6474 = vmax.f32 %v6473, %v3746
        %v6475 = vmax.f32 %v6474, %v3750
        %v6476 = vmax.f32 %v6475, %v3756
        %v6477 = vmax.f32 %v6476, %v3760
        %v6478 = vmax.f32 %v6477, %v3766
        %v6479 = vmax.f32 %v6478, %v3770
        %v6480 = vmax.f32 %v6479, %v3776
        %v6481 = vmax.f32 %v6480, %v3780
        %v6482 = vmax.f32 %v6481, %v3786
        %v6483 = vmax.f32 %v6482, %v3790
        %v6484 = vmax.f32 %v6483, %v3796
        %v6485 = vmax.f32 %v6484, %v3800
        %v6486 = vrot.slane %v6485, 4
        %v6487 = vmax.f32 %v6485, %v6486
        %v6488 = vrot.slane %v6487, 2
        %v6489 = vmax.f32 %v6487, %v6488
        %v6490 = vrot.slane %v6489, 1
        %v6491 = vmax.f32 %v6489, %v6490
        %v6492 = vmax.f32 %v3728, %v3732
        %v6493 = vmax.f32 %v6492, %v3738
        %v6494 = vmax.f32 %v6493, %v3742
        %v6495 = vmax.f32 %v6494, %v3748
        %v6496 = vmax.f32 %v6495, %v3752
        %v6497 = vmax.f32 %v6496, %v3758
        %v6498 = vmax.f32 %v6497, %v3762
        %v6499 = vmax.f32 %v6498, %v3768
        %v6500 = vmax.f32 %v6499, %v3772
        %v6501 = vmax.f32 %v6500, %v3778
        %v6502 = vmax.f32 %v6501, %v3782
        %v6503 = vmax.f32 %v6502, %v3788
        %v6504 = vmax.f32 %v6503, %v3792
        %v6505 = vmax.f32 %v6504, %v3798
        %v6506 = vmax.f32 %v6505, %v3802
        %v6507 = vrot.slane %v6506, 4
        %v6508 = vmax.f32 %v6506, %v6507
        %v6509 = vrot.slane %v6508, 2
        %v6510 = vmax.f32 %v6508, %v6509
        %v6511 = vrot.slane %v6510, 1
        %v6512 = vmax.f32 %v6510, %v6511
        %v6513 = vmax.f32 %v4399, %v4403
        %v6514 = vmax.f32 %v6513, %v4409
        %v6515 = vmax.f32 %v6514, %v4413
        %v6516 = vmax.f32 %v6515, %v4419
        %v6517 = vmax.f32 %v6516, %v4423
        %v6518 = vmax.f32 %v6517, %v4429
        %v6519 = vmax.f32 %v6518, %v4433
        %v6520 = vmax.f32 %v6519, %v4439
        %v6521 = vmax.f32 %v6520, %v4443
        %v6522 = vmax.f32 %v6521, %v4449
        %v6523 = vmax.f32 %v6522, %v4453
        %v6524 = vmax.f32 %v6523, %v4459
        %v6525 = vmax.f32 %v6524, %v4463
        %v6526 = vmax.f32 %v6525, %v4469
        %v6527 = vmax.f32 %v6526, %v4473
        %v6528 = vrot.slane %v6527, 4
        %v6529 = vmax.f32 %v6527, %v6528
        %v6530 = vrot.slane %v6529, 2
        %v6531 = vmax.f32 %v6529, %v6530
        %v6532 = vrot.slane %v6531, 1
        %v6533 = vmax.f32 %v6531, %v6532
        %v6534 = vmax.f32 %v4401, %v4405
        %v6535 = vmax.f32 %v6534, %v4411
        %v6536 = vmax.f32 %v6535, %v4415
        %v6537 = vmax.f32 %v6536, %v4421
        %v6538 = vmax.f32 %v6537, %v4425
        %v6539 = vmax.f32 %v6538, %v4431
        %v6540 = vmax.f32 %v6539, %v4435
        %v6541 = vmax.f32 %v6540, %v4441
        %v6542 = vmax.f32 %v6541, %v4445
        %v6543 = vmax.f32 %v6542, %v4451
        %v6544 = vmax.f32 %v6543, %v4455
        %v6545 = vmax.f32 %v6544, %v4461
        %v6546 = vmax.f32 %v6545, %v4465
        %v6547 = vmax.f32 %v6546, %v4471
        %v6548 = vmax.f32 %v6547, %v4475
        %v6549 = vrot.slane %v6548, 4
        %v6550 = vmax.f32 %v6548, %v6549
        %v6551 = vrot.slane %v6550, 2
        %v6552 = vmax.f32 %v6550, %v6551
        %v6553 = vrot.slane %v6552, 1
        %v6554 = vmax.f32 %v6552, %v6553
        %v6555 = vmax.f32 %v5072, %v5076
        %v6556 = vmax.f32 %v6555, %v5082
        %v6557 = vmax.f32 %v6556, %v5086
        %v6558 = vmax.f32 %v6557, %v5092
        %v6559 = vmax.f32 %v6558, %v5096
        %v6560 = vmax.f32 %v6559, %v5102
        %v6561 = vmax.f32 %v6560, %v5106
        %v6562 = vmax.f32 %v6561, %v5112
        %v6563 = vmax.f32 %v6562, %v5116
        %v6564 = vmax.f32 %v6563, %v5122
        %v6565 = vmax.f32 %v6564, %v5126
        %v6566 = vmax.f32 %v6565, %v5132
        %v6567 = vmax.f32 %v6566, %v5136
        %v6568 = vmax.f32 %v6567, %v5142
        %v6569 = vmax.f32 %v6568, %v5146
        %v6570 = vrot.slane %v6569, 4
        %v6571 = vmax.f32 %v6569, %v6570
        %v6572 = vrot.slane %v6571, 2
        %v6573 = vmax.f32 %v6571, %v6572
        %v6574 = vrot.slane %v6573, 1
        %v6575 = vmax.f32 %v6573, %v6574
        %v6576 = vmax.f32 %v5074, %v5078
        %v6577 = vmax.f32 %v6576, %v5084
        %v6578 = vmax.f32 %v6577, %v5088
        %v6579 = vmax.f32 %v6578, %v5094
        %v6580 = vmax.f32 %v6579, %v5098
        %v6581 = vmax.f32 %v6580, %v5104
        %v6582 = vmax.f32 %v6581, %v5108
        %v6583 = vmax.f32 %v6582, %v5114
        %v6584 = vmax.f32 %v6583, %v5118
        %v6585 = vmax.f32 %v6584, %v5124
        %v6586 = vmax.f32 %v6585, %v5128
        %v6587 = vmax.f32 %v6586, %v5134
        %v6588 = vmax.f32 %v6587, %v5138
        %v6589 = vmax.f32 %v6588, %v5144
        %v6590 = vmax.f32 %v6589, %v5148
        %v6591 = vrot.slane %v6590, 4
        %v6592 = vmax.f32 %v6590, %v6591
        %v6593 = vrot.slane %v6592, 2
        %v6594 = vmax.f32 %v6592, %v6593
        %v6595 = vrot.slane %v6594, 1
        %v6596 = vmax.f32 %v6594, %v6595
        %v6597 = vmax.f32 %v5745, %v5749
        %v6598 = vmax.f32 %v6597, %v5755
        %v6599 = vmax.f32 %v6598, %v5759
        %v6600 = vmax.f32 %v6599, %v5765
        %v6601 = vmax.f32 %v6600, %v5769
        %v6602 = vmax.f32 %v6601, %v5775
        %v6603 = vmax.f32 %v6602, %v5779
        %v6604 = vmax.f32 %v6603, %v5785
        %v6605 = vmax.f32 %v6604, %v5789
        %v6606 = vmax.f32 %v6605, %v5795
        %v6607 = vmax.f32 %v6606, %v5799
        %v6608 = vmax.f32 %v6607, %v5805
        %v6609 = vmax.f32 %v6608, %v5809
        %v6610 = vmax.f32 %v6609, %v5815
        %v6611 = vmax.f32 %v6610, %v5819
        %v6612 = vrot.slane %v6611, 4
        %v6613 = vmax.f32 %v6611, %v6612
        %v6614 = vrot.slane %v6613, 2
        %v6615 = vmax.f32 %v6613, %v6614
        %v6616 = vrot.slane %v6615, 1
        %v6617 = vmax.f32 %v6615, %v6616
        %v6618 = vmax.f32 %v5747, %v5751
        %v6619 = vmax.f32 %v6618, %v5757
        %v6620 = vmax.f32 %v6619, %v5761
        %v6621 = vmax.f32 %v6620, %v5767
        %v6622 = vmax.f32 %v6621, %v5771
        %v6623 = vmax.f32 %v6622, %v5777
        %v6624 = vmax.f32 %v6623, %v5781
        %v6625 = vmax.f32 %v6624, %v5787
        %v6626 = vmax.f32 %v6625, %v5791
        %v6627 = vmax.f32 %v6626, %v5797
        %v6628 = vmax.f32 %v6627, %v5801
        %v6629 = vmax.f32 %v6628, %v5807
        %v6630 = vmax.f32 %v6629, %v5811
        %v6631 = vmax.f32 %v6630, %v5817
        %v6632 = vmax.f32 %v6631, %v5821
        %v6633 = vrot.slane %v6632, 4
        %v6634 = vmax.f32 %v6632, %v6633
        %v6635 = vrot.slane %v6634, 2
        %v6636 = vmax.f32 %v6634, %v6635
        %v6637 = vrot.slane %v6636, 1
        %v6638 = vmax.f32 %v6636, %v6637
        %v6639 = vmax.f32 %v3806, %v3810
        %v6640 = vmax.f32 %v6639, %v3816
        %v6641 = vmax.f32 %v6640, %v3820
        %v6642 = vmax.f32 %v6641, %v3826
        %v6643 = vmax.f32 %v6642, %v3830
        %v6644 = vmax.f32 %v6643, %v3836
        %v6645 = vmax.f32 %v6644, %v3840
        %v6646 = vmax.f32 %v6645, %v3846
        %v6647 = vmax.f32 %v6646, %v3850
        %v6648 = vmax.f32 %v6647, %v3856
        %v6649 = vmax.f32 %v6648, %v3860
        %v6650 = vmax.f32 %v6649, %v3866
        %v6651 = vmax.f32 %v6650, %v3870
        %v6652 = vmax.f32 %v6651, %v3876
        %v6653 = vmax.f32 %v6652, %v3880
        %v6654 = vrot.slane %v6653, 4
        %v6655 = vmax.f32 %v6653, %v6654
        %v6656 = vrot.slane %v6655, 2
        %v6657 = vmax.f32 %v6655, %v6656
        %v6658 = vrot.slane %v6657, 1
        %v6659 = vmax.f32 %v6657, %v6658
        %v6660 = vmax.f32 %v3808, %v3812
        %v6661 = vmax.f32 %v6660, %v3818
        %v6662 = vmax.f32 %v6661, %v3822
        %v6663 = vmax.f32 %v6662, %v3828
        %v6664 = vmax.f32 %v6663, %v3832
        %v6665 = vmax.f32 %v6664, %v3838
        %v6666 = vmax.f32 %v6665, %v3842
        %v6667 = vmax.f32 %v6666, %v3848
        %v6668 = vmax.f32 %v6667, %v3852
        %v6669 = vmax.f32 %v6668, %v3858
        %v6670 = vmax.f32 %v6669, %v3862
        %v6671 = vmax.f32 %v6670, %v3868
        %v6672 = vmax.f32 %v6671, %v3872
        %v6673 = vmax.f32 %v6672, %v3878
        %v6674 = vmax.f32 %v6673, %v3882
        %v6675 = vrot.slane %v6674, 4
        %v6676 = vmax.f32 %v6674, %v6675
        %v6677 = vrot.slane %v6676, 2
        %v6678 = vmax.f32 %v6676, %v6677
        %v6679 = vrot.slane %v6678, 1
        %v6680 = vmax.f32 %v6678, %v6679
        %v6681 = vmax.f32 %v4479, %v4483
        %v6682 = vmax.f32 %v6681, %v4489
        %v6683 = vmax.f32 %v6682, %v4493
        %v6684 = vmax.f32 %v6683, %v4499
        %v6685 = vmax.f32 %v6684, %v4503
        %v6686 = vmax.f32 %v6685, %v4509
        %v6687 = vmax.f32 %v6686, %v4513
        %v6688 = vmax.f32 %v6687, %v4519
        %v6689 = vmax.f32 %v6688, %v4523
        %v6690 = vmax.f32 %v6689, %v4529
        %v6691 = vmax.f32 %v6690, %v4533
        %v6692 = vmax.f32 %v6691, %v4539
        %v6693 = vmax.f32 %v6692, %v4543
        %v6694 = vmax.f32 %v6693, %v4549
        %v6695 = vmax.f32 %v6694, %v4553
        %v6696 = vrot.slane %v6695, 4
        %v6697 = vmax.f32 %v6695, %v6696
        %v6698 = vrot.slane %v6697, 2
        %v6699 = vmax.f32 %v6697, %v6698
        %v6700 = vrot.slane %v6699, 1
        %v6701 = vmax.f32 %v6699, %v6700
        %v6702 = vmax.f32 %v4481, %v4485
        %v6703 = vmax.f32 %v6702, %v4491
        %v6704 = vmax.f32 %v6703, %v4495
        %v6705 = vmax.f32 %v6704, %v4501
        %v6706 = vmax.f32 %v6705, %v4505
        %v6707 = vmax.f32 %v6706, %v4511
        %v6708 = vmax.f32 %v6707, %v4515
        %v6709 = vmax.f32 %v6708, %v4521
        %v6710 = vmax.f32 %v6709, %v4525
        %v6711 = vmax.f32 %v6710, %v4531
        %v6712 = vmax.f32 %v6711, %v4535
        %v6713 = vmax.f32 %v6712, %v4541
        %v6714 = vmax.f32 %v6713, %v4545
        %v6715 = vmax.f32 %v6714, %v4551
        %v6716 = vmax.f32 %v6715, %v4555
        %v6717 = vrot.slane %v6716, 4
        %v6718 = vmax.f32 %v6716, %v6717
        %v6719 = vrot.slane %v6718, 2
        %v6720 = vmax.f32 %v6718, %v6719
        %v6721 = vrot.slane %v6720, 1
        %v6722 = vmax.f32 %v6720, %v6721
        %v6723 = vmax.f32 %v5152, %v5156
        %v6724 = vmax.f32 %v6723, %v5162
        %v6725 = vmax.f32 %v6724, %v5166
        %v6726 = vmax.f32 %v6725, %v5172
        %v6727 = vmax.f32 %v6726, %v5176
        %v6728 = vmax.f32 %v6727, %v5182
        %v6729 = vmax.f32 %v6728, %v5186
        %v6730 = vmax.f32 %v6729, %v5192
        %v6731 = vmax.f32 %v6730, %v5196
        %v6732 = vmax.f32 %v6731, %v5202
        %v6733 = vmax.f32 %v6732, %v5206
        %v6734 = vmax.f32 %v6733, %v5212
        %v6735 = vmax.f32 %v6734, %v5216
        %v6736 = vmax.f32 %v6735, %v5222
        %v6737 = vmax.f32 %v6736, %v5226
        %v6738 = vrot.slane %v6737, 4
        %v6739 = vmax.f32 %v6737, %v6738
        %v6740 = vrot.slane %v6739, 2
        %v6741 = vmax.f32 %v6739, %v6740
        %v6742 = vrot.slane %v6741, 1
        %v6743 = vmax.f32 %v6741, %v6742
        %v6744 = vmax.f32 %v5154, %v5158
        %v6745 = vmax.f32 %v6744, %v5164
        %v6746 = vmax.f32 %v6745, %v5168
        %v6747 = vmax.f32 %v6746, %v5174
        %v6748 = vmax.f32 %v6747, %v5178
        %v6749 = vmax.f32 %v6748, %v5184
        %v6750 = vmax.f32 %v6749, %v5188
        %v6751 = vmax.f32 %v6750, %v5194
        %v6752 = vmax.f32 %v6751, %v5198
        %v6753 = vmax.f32 %v6752, %v5204
        %v6754 = vmax.f32 %v6753, %v5208
        %v6755 = vmax.f32 %v6754, %v5214
        %v6756 = vmax.f32 %v6755, %v5218
        %v6757 = vmax.f32 %v6756, %v5224
        %v6758 = vmax.f32 %v6757, %v5228
        %v6759 = vrot.slane %v6758, 4
        %v6760 = vmax.f32 %v6758, %v6759
        %v6761 = vrot.slane %v6760, 2
        %v6762 = vmax.f32 %v6760, %v6761
        %v6763 = vrot.slane %v6762, 1
        %v6764 = vmax.f32 %v6762, %v6763
        %v6765 = vmax.f32 %v5825, %v5829
        %v6766 = vmax.f32 %v6765, %v5835
        %v6767 = vmax.f32 %v6766, %v5839
        %v6768 = vmax.f32 %v6767, %v5845
        %v6769 = vmax.f32 %v6768, %v5849
        %v6770 = vmax.f32 %v6769, %v5855
        %v6771 = vmax.f32 %v6770, %v5859
        %v6772 = vmax.f32 %v6771, %v5865
        %v6773 = vmax.f32 %v6772, %v5869
        %v6774 = vmax.f32 %v6773, %v5875
        %v6775 = vmax.f32 %v6774, %v5879
        %v6776 = vmax.f32 %v6775, %v5885
        %v6777 = vmax.f32 %v6776, %v5889
        %v6778 = vmax.f32 %v6777, %v5895
        %v6779 = vmax.f32 %v6778, %v5899
        %v6780 = vrot.slane %v6779, 4
        %v6781 = vmax.f32 %v6779, %v6780
        %v6782 = vrot.slane %v6781, 2
        %v6783 = vmax.f32 %v6781, %v6782
        %v6784 = vrot.slane %v6783, 1
        %v6785 = vmax.f32 %v6783, %v6784
        %v6786 = vmax.f32 %v5827, %v5831
        %v6787 = vmax.f32 %v6786, %v5837
        %v6788 = vmax.f32 %v6787, %v5841
        %v6789 = vmax.f32 %v6788, %v5847
        %v6790 = vmax.f32 %v6789, %v5851
        %v6791 = vmax.f32 %v6790, %v5857
        %v6792 = vmax.f32 %v6791, %v5861
        %v6793 = vmax.f32 %v6792, %v5867
        %v6794 = vmax.f32 %v6793, %v5871
        %v6795 = vmax.f32 %v6794, %v5877
        %v6796 = vmax.f32 %v6795, %v5881
        %v6797 = vmax.f32 %v6796, %v5887
        %v6798 = vmax.f32 %v6797, %v5891
        %v6799 = vmax.f32 %v6798, %v5897
        %v6800 = vmax.f32 %v6799, %v5901
        %v6801 = vrot.slane %v6800, 4
        %v6802 = vmax.f32 %v6800, %v6801
        %v6803 = vrot.slane %v6802, 2
        %v6804 = vmax.f32 %v6802, %v6803
        %v6805 = vrot.slane %v6804, 1
        %v6806 = vmax.f32 %v6804, %v6805
        %v6807 = vmax.f32 %v3886, %v3890
        %v6808 = vmax.f32 %v6807, %v3896
        %v6809 = vmax.f32 %v6808, %v3900
        %v6810 = vmax.f32 %v6809, %v3906
        %v6811 = vmax.f32 %v6810, %v3910
        %v6812 = vmax.f32 %v6811, %v3916
        %v6813 = vmax.f32 %v6812, %v3920
        %v6814 = vmax.f32 %v6813, %v3926
        %v6815 = vmax.f32 %v6814, %v3930
        %v6816 = vmax.f32 %v6815, %v3936
        %v6817 = vmax.f32 %v6816, %v3940
        %v6818 = vmax.f32 %v6817, %v3946
        %v6819 = vmax.f32 %v6818, %v3950
        %v6820 = vmax.f32 %v6819, %v3956
        %v6821 = vmax.f32 %v6820, %v3960
        %v6822 = vrot.slane %v6821, 4
        %v6823 = vmax.f32 %v6821, %v6822
        %v6824 = vrot.slane %v6823, 2
        %v6825 = vmax.f32 %v6823, %v6824
        %v6826 = vrot.slane %v6825, 1
        %v6827 = vmax.f32 %v6825, %v6826
        %v6828 = vmax.f32 %v3888, %v3892
        %v6829 = vmax.f32 %v6828, %v3898
        %v6830 = vmax.f32 %v6829, %v3902
        %v6831 = vmax.f32 %v6830, %v3908
        %v6832 = vmax.f32 %v6831, %v3912
        %v6833 = vmax.f32 %v6832, %v3918
        %v6834 = vmax.f32 %v6833, %v3922
        %v6835 = vmax.f32 %v6834, %v3928
        %v6836 = vmax.f32 %v6835, %v3932
        %v6837 = vmax.f32 %v6836, %v3938
        %v6838 = vmax.f32 %v6837, %v3942
        %v6839 = vmax.f32 %v6838, %v3948
        %v6840 = vmax.f32 %v6839, %v3952
        %v6841 = vmax.f32 %v6840, %v3958
        %v6842 = vmax.f32 %v6841, %v3962
        %v6843 = vrot.slane %v6842, 4
        %v6844 = vmax.f32 %v6842, %v6843
        %v6845 = vrot.slane %v6844, 2
        %v6846 = vmax.f32 %v6844, %v6845
        %v6847 = vrot.slane %v6846, 1
        %v6848 = vmax.f32 %v6846, %v6847
        %v6849 = vmax.f32 %v4559, %v4563
        %v6850 = vmax.f32 %v6849, %v4569
        %v6851 = vmax.f32 %v6850, %v4573
        %v6852 = vmax.f32 %v6851, %v4579
        %v6853 = vmax.f32 %v6852, %v4583
        %v6854 = vmax.f32 %v6853, %v4589
        %v6855 = vmax.f32 %v6854, %v4593
        %v6856 = vmax.f32 %v6855, %v4599
        %v6857 = vmax.f32 %v6856, %v4603
        %v6858 = vmax.f32 %v6857, %v4609
        %v6859 = vmax.f32 %v6858, %v4613
        %v6860 = vmax.f32 %v6859, %v4619
        %v6861 = vmax.f32 %v6860, %v4623
        %v6862 = vmax.f32 %v6861, %v4629
        %v6863 = vmax.f32 %v6862, %v4633
        %v6864 = vrot.slane %v6863, 4
        %v6865 = vmax.f32 %v6863, %v6864
        %v6866 = vrot.slane %v6865, 2
        %v6867 = vmax.f32 %v6865, %v6866
        %v6868 = vrot.slane %v6867, 1
        %v6869 = vmax.f32 %v6867, %v6868
        %v6870 = vmax.f32 %v4561, %v4565
        %v6871 = vmax.f32 %v6870, %v4571
        %v6872 = vmax.f32 %v6871, %v4575
        %v6873 = vmax.f32 %v6872, %v4581
        %v6874 = vmax.f32 %v6873, %v4585
        %v6875 = vmax.f32 %v6874, %v4591
        %v6876 = vmax.f32 %v6875, %v4595
        %v6877 = vmax.f32 %v6876, %v4601
        %v6878 = vmax.f32 %v6877, %v4605
        %v6879 = vmax.f32 %v6878, %v4611
        %v6880 = vmax.f32 %v6879, %v4615
        %v6881 = vmax.f32 %v6880, %v4621
        %v6882 = vmax.f32 %v6881, %v4625
        %v6883 = vmax.f32 %v6882, %v4631
        %v6884 = vmax.f32 %v6883, %v4635
        %v6885 = vrot.slane %v6884, 4
        %v6886 = vmax.f32 %v6884, %v6885
        %v6887 = vrot.slane %v6886, 2
        %v6888 = vmax.f32 %v6886, %v6887
        %v6889 = vrot.slane %v6888, 1
        %v6890 = vmax.f32 %v6888, %v6889
        %v6891 = vmax.f32 %v5232, %v5236
        %v6892 = vmax.f32 %v6891, %v5242
        %v6893 = vmax.f32 %v6892, %v5246
        %v6894 = vmax.f32 %v6893, %v5252
        %v6895 = vmax.f32 %v6894, %v5256
        %v6896 = vmax.f32 %v6895, %v5262
        %v6897 = vmax.f32 %v6896, %v5266
        %v6898 = vmax.f32 %v6897, %v5272
        %v6899 = vmax.f32 %v6898, %v5276
        %v6900 = vmax.f32 %v6899, %v5282
        %v6901 = vmax.f32 %v6900, %v5286
        %v6902 = vmax.f32 %v6901, %v5292
        %v6903 = vmax.f32 %v6902, %v5296
        %v6904 = vmax.f32 %v6903, %v5302
        %v6905 = vmax.f32 %v6904, %v5306
        %v6906 = vrot.slane %v6905, 4
        %v6907 = vmax.f32 %v6905, %v6906
        %v6908 = vrot.slane %v6907, 2
        %v6909 = vmax.f32 %v6907, %v6908
        %v6910 = vrot.slane %v6909, 1
        %v6911 = vmax.f32 %v6909, %v6910
        %v6912 = vmax.f32 %v5234, %v5238
        %v6913 = vmax.f32 %v6912, %v5244
        %v6914 = vmax.f32 %v6913, %v5248
        %v6915 = vmax.f32 %v6914, %v5254
        %v6916 = vmax.f32 %v6915, %v5258
        %v6917 = vmax.f32 %v6916, %v5264
        %v6918 = vmax.f32 %v6917, %v5268
        %v6919 = vmax.f32 %v6918, %v5274
        %v6920 = vmax.f32 %v6919, %v5278
        %v6921 = vmax.f32 %v6920, %v5284
        %v6922 = vmax.f32 %v6921, %v5288
        %v6923 = vmax.f32 %v6922, %v5294
        %v6924 = vmax.f32 %v6923, %v5298
        %v6925 = vmax.f32 %v6924, %v5304
        %v6926 = vmax.f32 %v6925, %v5308
        %v6927 = vrot.slane %v6926, 4
        %v6928 = vmax.f32 %v6926, %v6927
        %v6929 = vrot.slane %v6928, 2
        %v6930 = vmax.f32 %v6928, %v6929
        %v6931 = vrot.slane %v6930, 1
        %v6932 = vmax.f32 %v6930, %v6931
        %v6933 = vmax.f32 %v5905, %v5909
        %v6934 = vmax.f32 %v6933, %v5915
        %v6935 = vmax.f32 %v6934, %v5919
        %v6936 = vmax.f32 %v6935, %v5925
        %v6937 = vmax.f32 %v6936, %v5929
        %v6938 = vmax.f32 %v6937, %v5935
        %v6939 = vmax.f32 %v6938, %v5939
        %v6940 = vmax.f32 %v6939, %v5945
        %v6941 = vmax.f32 %v6940, %v5949
        %v6942 = vmax.f32 %v6941, %v5955
        %v6943 = vmax.f32 %v6942, %v5959
        %v6944 = vmax.f32 %v6943, %v5965
        %v6945 = vmax.f32 %v6944, %v5969
        %v6946 = vmax.f32 %v6945, %v5975
        %v6947 = vmax.f32 %v6946, %v5979
        %v6948 = vrot.slane %v6947, 4
        %v6949 = vmax.f32 %v6947, %v6948
        %v6950 = vrot.slane %v6949, 2
        %v6951 = vmax.f32 %v6949, %v6950
        %v6952 = vrot.slane %v6951, 1
        %v6953 = vmax.f32 %v6951, %v6952
        %v6954 = vmax.f32 %v5907, %v5911
        %v6955 = vmax.f32 %v6954, %v5917
        %v6956 = vmax.f32 %v6955, %v5921
        %v6957 = vmax.f32 %v6956, %v5927
        %v6958 = vmax.f32 %v6957, %v5931
        %v6959 = vmax.f32 %v6958, %v5937
        %v6960 = vmax.f32 %v6959, %v5941
        %v6961 = vmax.f32 %v6960, %v5947
        %v6962 = vmax.f32 %v6961, %v5951
        %v6963 = vmax.f32 %v6962, %v5957
        %v6964 = vmax.f32 %v6963, %v5961
        %v6965 = vmax.f32 %v6964, %v5967
        %v6966 = vmax.f32 %v6965, %v5971
        %v6967 = vmax.f32 %v6966, %v5977
        %v6968 = vmax.f32 %v6967, %v5981
        %v6969 = vrot.slane %v6968, 4
        %v6970 = vmax.f32 %v6968, %v6969
        %v6971 = vrot.slane %v6970, 2
        %v6972 = vmax.f32 %v6970, %v6971
        %v6973 = vrot.slane %v6972, 1
        %v6974 = vmax.f32 %v6972, %v6973
        %v6975 = vmax.f32 %v3966, %v3970
        %v6976 = vmax.f32 %v6975, %v3976
        %v6977 = vmax.f32 %v6976, %v3980
        %v6978 = vmax.f32 %v6977, %v3986
        %v6979 = vmax.f32 %v6978, %v3990
        %v6980 = vmax.f32 %v6979, %v3996
        %v6981 = vmax.f32 %v6980, %v4000
        %v6982 = vmax.f32 %v6981, %v4006
        %v6983 = vmax.f32 %v6982, %v4010
        %v6984 = vmax.f32 %v6983, %v4016
        %v6985 = vmax.f32 %v6984, %v4020
        %v6986 = vmax.f32 %v6985, %v4026
        %v6987 = vmax.f32 %v6986, %v4030
        %v6988 = vmax.f32 %v6987, %v4036
        %v6989 = vmax.f32 %v6988, %v4040
        %v6990 = vrot.slane %v6989, 4
        %v6991 = vmax.f32 %v6989, %v6990
        %v6992 = vrot.slane %v6991, 2
        %v6993 = vmax.f32 %v6991, %v6992
        %v6994 = vrot.slane %v6993, 1
        %v6995 = vmax.f32 %v6993, %v6994
        %v6996 = vmax.f32 %v3968, %v3972
        %v6997 = vmax.f32 %v6996, %v3978
        %v6998 = vmax.f32 %v6997, %v3982
        %v6999 = vmax.f32 %v6998, %v3988
        %v7000 = vmax.f32 %v6999, %v3992
        %v7001 = vmax.f32 %v7000, %v3998
        %v7002 = vmax.f32 %v7001, %v4002
        %v7003 = vmax.f32 %v7002, %v4008
        %v7004 = vmax.f32 %v7003, %v4012
        %v7005 = vmax.f32 %v7004, %v4018
        %v7006 = vmax.f32 %v7005, %v4022
        %v7007 = vmax.f32 %v7006, %v4028
        %v7008 = vmax.f32 %v7007, %v4032
        %v7009 = vmax.f32 %v7008, %v4038
        %v7010 = vmax.f32 %v7009, %v4042
        %v7011 = vrot.slane %v7010, 4
        %v7012 = vmax.f32 %v7010, %v7011
        %v7013 = vrot.slane %v7012, 2
        %v7014 = vmax.f32 %v7012, %v7013
        %v7015 = vrot.slane %v7014, 1
        %v7016 = vmax.f32 %v7014, %v7015
        %v7017 = vmax.f32 %v4639, %v4643
        %v7018 = vmax.f32 %v7017, %v4649
        %v7019 = vmax.f32 %v7018, %v4653
        %v7020 = vmax.f32 %v7019, %v4659
        %v7021 = vmax.f32 %v7020, %v4663
        %v7022 = vmax.f32 %v7021, %v4669
        %v7023 = vmax.f32 %v7022, %v4673
        %v7024 = vmax.f32 %v7023, %v4679
        %v7025 = vmax.f32 %v7024, %v4683
        %v7026 = vmax.f32 %v7025, %v4689
        %v7027 = vmax.f32 %v7026, %v4693
        %v7028 = vmax.f32 %v7027, %v4699
        %v7029 = vmax.f32 %v7028, %v4703
        %v7030 = vmax.f32 %v7029, %v4709
        %v7031 = vmax.f32 %v7030, %v4713
        %v7032 = vrot.slane %v7031, 4
        %v7033 = vmax.f32 %v7031, %v7032
        %v7034 = vrot.slane %v7033, 2
        %v7035 = vmax.f32 %v7033, %v7034
        %v7036 = vrot.slane %v7035, 1
        %v7037 = vmax.f32 %v7035, %v7036
        %v7038 = vmax.f32 %v4641, %v4645
        %v7039 = vmax.f32 %v7038, %v4651
        %v7040 = vmax.f32 %v7039, %v4655
        %v7041 = vmax.f32 %v7040, %v4661
        %v7042 = vmax.f32 %v7041, %v4665
        %v7043 = vmax.f32 %v7042, %v4671
        %v7044 = vmax.f32 %v7043, %v4675
        %v7045 = vmax.f32 %v7044, %v4681
        %v7046 = vmax.f32 %v7045, %v4685
        %v7047 = vmax.f32 %v7046, %v4691
        %v7048 = vmax.f32 %v7047, %v4695
        %v7049 = vmax.f32 %v7048, %v4701
        %v7050 = vmax.f32 %v7049, %v4705
        %v7051 = vmax.f32 %v7050, %v4711
        %v7052 = vmax.f32 %v7051, %v4715
        %v7053 = vrot.slane %v7052, 4
        %v7054 = vmax.f32 %v7052, %v7053
        %v7055 = vrot.slane %v7054, 2
        %v7056 = vmax.f32 %v7054, %v7055
        %v7057 = vrot.slane %v7056, 1
        %v7058 = vmax.f32 %v7056, %v7057
        %v7059 = vmax.f32 %v5312, %v5316
        %v7060 = vmax.f32 %v7059, %v5322
        %v7061 = vmax.f32 %v7060, %v5326
        %v7062 = vmax.f32 %v7061, %v5332
        %v7063 = vmax.f32 %v7062, %v5336
        %v7064 = vmax.f32 %v7063, %v5342
        %v7065 = vmax.f32 %v7064, %v5346
        %v7066 = vmax.f32 %v7065, %v5352
        %v7067 = vmax.f32 %v7066, %v5356
        %v7068 = vmax.f32 %v7067, %v5362
        %v7069 = vmax.f32 %v7068, %v5366
        %v7070 = vmax.f32 %v7069, %v5372
        %v7071 = vmax.f32 %v7070, %v5376
        %v7072 = vmax.f32 %v7071, %v5382
        %v7073 = vmax.f32 %v7072, %v5386
        %v7074 = vrot.slane %v7073, 4
        %v7075 = vmax.f32 %v7073, %v7074
        %v7076 = vrot.slane %v7075, 2
        %v7077 = vmax.f32 %v7075, %v7076
        %v7078 = vrot.slane %v7077, 1
        %v7079 = vmax.f32 %v7077, %v7078
        %v7080 = vmax.f32 %v5314, %v5318
        %v7081 = vmax.f32 %v7080, %v5324
        %v7082 = vmax.f32 %v7081, %v5328
        %v7083 = vmax.f32 %v7082, %v5334
        %v7084 = vmax.f32 %v7083, %v5338
        %v7085 = vmax.f32 %v7084, %v5344
        %v7086 = vmax.f32 %v7085, %v5348
        %v7087 = vmax.f32 %v7086, %v5354
        %v7088 = vmax.f32 %v7087, %v5358
        %v7089 = vmax.f32 %v7088, %v5364
        %v7090 = vmax.f32 %v7089, %v5368
        %v7091 = vmax.f32 %v7090, %v5374
        %v7092 = vmax.f32 %v7091, %v5378
        %v7093 = vmax.f32 %v7092, %v5384
        %v7094 = vmax.f32 %v7093, %v5388
        %v7095 = vrot.slane %v7094, 4
        %v7096 = vmax.f32 %v7094, %v7095
        %v7097 = vrot.slane %v7096, 2
        %v7098 = vmax.f32 %v7096, %v7097
        %v7099 = vrot.slane %v7098, 1
        %v7100 = vmax.f32 %v7098, %v7099
        %v7101 = vmax.f32 %v5985, %v5989
        %v7102 = vmax.f32 %v7101, %v5995
        %v7103 = vmax.f32 %v7102, %v5999
        %v7104 = vmax.f32 %v7103, %v6005
        %v7105 = vmax.f32 %v7104, %v6009
        %v7106 = vmax.f32 %v7105, %v6015
        %v7107 = vmax.f32 %v7106, %v6019
        %v7108 = vmax.f32 %v7107, %v6025
        %v7109 = vmax.f32 %v7108, %v6029
        %v7110 = vmax.f32 %v7109, %v6035
        %v7111 = vmax.f32 %v7110, %v6039
        %v7112 = vmax.f32 %v7111, %v6045
        %v7113 = vmax.f32 %v7112, %v6049
        %v7114 = vmax.f32 %v7113, %v6055
        %v7115 = vmax.f32 %v7114, %v6059
        %v7116 = vrot.slane %v7115, 4
        %v7117 = vmax.f32 %v7115, %v7116
        %v7118 = vrot.slane %v7117, 2
        %v7119 = vmax.f32 %v7117, %v7118
        %v7120 = vrot.slane %v7119, 1
        %v7121 = vmax.f32 %v7119, %v7120
        %v7122 = vmax.f32 %v5987, %v5991
        %v7123 = vmax.f32 %v7122, %v5997
        %v7124 = vmax.f32 %v7123, %v6001
        %v7125 = vmax.f32 %v7124, %v6007
        %v7126 = vmax.f32 %v7125, %v6011
        %v7127 = vmax.f32 %v7126, %v6017
        %v7128 = vmax.f32 %v7127, %v6021
        %v7129 = vmax.f32 %v7128, %v6027
        %v7130 = vmax.f32 %v7129, %v6031
        %v7131 = vmax.f32 %v7130, %v6037
        %v7132 = vmax.f32 %v7131, %v6041
        %v7133 = vmax.f32 %v7132, %v6047
        %v7134 = vmax.f32 %v7133, %v6051
        %v7135 = vmax.f32 %v7134, %v6057
        %v7136 = vmax.f32 %v7135, %v6061
        %v7137 = vrot.slane %v7136, 4
        %v7138 = vmax.f32 %v7136, %v7137
        %v7139 = vrot.slane %v7138, 2
        %v7140 = vmax.f32 %v7138, %v7139
        %v7141 = vrot.slane %v7140, 1
        %v7142 = vmax.f32 %v7140, %v7141
        %v7143 = vmax.f32 %v4046, %v4050
        %v7144 = vmax.f32 %v7143, %v4056
        %v7145 = vmax.f32 %v7144, %v4060
        %v7146 = vmax.f32 %v7145, %v4066
        %v7147 = vmax.f32 %v7146, %v4070
        %v7148 = vmax.f32 %v7147, %v4076
        %v7149 = vmax.f32 %v7148, %v4080
        %v7150 = vmax.f32 %v7149, %v4086
        %v7151 = vmax.f32 %v7150, %v4090
        %v7152 = vmax.f32 %v7151, %v4096
        %v7153 = vmax.f32 %v7152, %v4100
        %v7154 = vmax.f32 %v7153, %v4106
        %v7155 = vmax.f32 %v7154, %v4110
        %v7156 = vmax.f32 %v7155, %v4116
        %v7157 = vmax.f32 %v7156, %v4120
        %v7158 = vrot.slane %v7157, 4
        %v7159 = vmax.f32 %v7157, %v7158
        %v7160 = vrot.slane %v7159, 2
        %v7161 = vmax.f32 %v7159, %v7160
        %v7162 = vrot.slane %v7161, 1
        %v7163 = vmax.f32 %v7161, %v7162
        %v7164 = vmax.f32 %v4048, %v4052
        %v7165 = vmax.f32 %v7164, %v4058
        %v7166 = vmax.f32 %v7165, %v4062
        %v7167 = vmax.f32 %v7166, %v4068
        %v7168 = vmax.f32 %v7167, %v4072
        %v7169 = vmax.f32 %v7168, %v4078
        %v7170 = vmax.f32 %v7169, %v4082
        %v7171 = vmax.f32 %v7170, %v4088
        %v7172 = vmax.f32 %v7171, %v4092
        %v7173 = vmax.f32 %v7172, %v4098
        %v7174 = vmax.f32 %v7173, %v4102
        %v7175 = vmax.f32 %v7174, %v4108
        %v7176 = vmax.f32 %v7175, %v4112
        %v7177 = vmax.f32 %v7176, %v4118
        %v7178 = vmax.f32 %v7177, %v4122
        %v7179 = vrot.slane %v7178, 4
        %v7180 = vmax.f32 %v7178, %v7179
        %v7181 = vrot.slane %v7180, 2
        %v7182 = vmax.f32 %v7180, %v7181
        %v7183 = vrot.slane %v7182, 1
        %v7184 = vmax.f32 %v7182, %v7183
        %v7185 = vmax.f32 %v4719, %v4723
        %v7186 = vmax.f32 %v7185, %v4729
        %v7187 = vmax.f32 %v7186, %v4733
        %v7188 = vmax.f32 %v7187, %v4739
        %v7189 = vmax.f32 %v7188, %v4743
        %v7190 = vmax.f32 %v7189, %v4749
        %v7191 = vmax.f32 %v7190, %v4753
        %v7192 = vmax.f32 %v7191, %v4759
        %v7193 = vmax.f32 %v7192, %v4763
        %v7194 = vmax.f32 %v7193, %v4769
        %v7195 = vmax.f32 %v7194, %v4773
        %v7196 = vmax.f32 %v7195, %v4779
        %v7197 = vmax.f32 %v7196, %v4783
        %v7198 = vmax.f32 %v7197, %v4789
        %v7199 = vmax.f32 %v7198, %v4793
        %v7200 = vrot.slane %v7199, 4
        %v7201 = vmax.f32 %v7199, %v7200
        %v7202 = vrot.slane %v7201, 2
        %v7203 = vmax.f32 %v7201, %v7202
        %v7204 = vrot.slane %v7203, 1
        %v7205 = vmax.f32 %v7203, %v7204
        %v7206 = vmax.f32 %v4721, %v4725
        %v7207 = vmax.f32 %v7206, %v4731
        %v7208 = vmax.f32 %v7207, %v4735
        %v7209 = vmax.f32 %v7208, %v4741
        %v7210 = vmax.f32 %v7209, %v4745
        %v7211 = vmax.f32 %v7210, %v4751
        %v7212 = vmax.f32 %v7211, %v4755
        %v7213 = vmax.f32 %v7212, %v4761
        %v7214 = vmax.f32 %v7213, %v4765
        %v7215 = vmax.f32 %v7214, %v4771
        %v7216 = vmax.f32 %v7215, %v4775
        %v7217 = vmax.f32 %v7216, %v4781
        %v7218 = vmax.f32 %v7217, %v4785
        %v7219 = vmax.f32 %v7218, %v4791
        %v7220 = vmax.f32 %v7219, %v4795
        %v7221 = vrot.slane %v7220, 4
        %v7222 = vmax.f32 %v7220, %v7221
        %v7223 = vrot.slane %v7222, 2
        %v7224 = vmax.f32 %v7222, %v7223
        %v7225 = vrot.slane %v7224, 1
        %v7226 = vmax.f32 %v7224, %v7225
        %v7227 = vmax.f32 %v5392, %v5396
        %v7228 = vmax.f32 %v7227, %v5402
        %v7229 = vmax.f32 %v7228, %v5406
        %v7230 = vmax.f32 %v7229, %v5412
        %v7231 = vmax.f32 %v7230, %v5416
        %v7232 = vmax.f32 %v7231, %v5422
        %v7233 = vmax.f32 %v7232, %v5426
        %v7234 = vmax.f32 %v7233, %v5432
        %v7235 = vmax.f32 %v7234, %v5436
        %v7236 = vmax.f32 %v7235, %v5442
        %v7237 = vmax.f32 %v7236, %v5446
        %v7238 = vmax.f32 %v7237, %v5452
        %v7239 = vmax.f32 %v7238, %v5456
        %v7240 = vmax.f32 %v7239, %v5462
        %v7241 = vmax.f32 %v7240, %v5466
        %v7242 = vrot.slane %v7241, 4
        %v7243 = vmax.f32 %v7241, %v7242
        %v7244 = vrot.slane %v7243, 2
        %v7245 = vmax.f32 %v7243, %v7244
        %v7246 = vrot.slane %v7245, 1
        %v7247 = vmax.f32 %v7245, %v7246
        %v7248 = vmax.f32 %v5394, %v5398
        %v7249 = vmax.f32 %v7248, %v5404
        %v7250 = vmax.f32 %v7249, %v5408
        %v7251 = vmax.f32 %v7250, %v5414
        %v7252 = vmax.f32 %v7251, %v5418
        %v7253 = vmax.f32 %v7252, %v5424
        %v7254 = vmax.f32 %v7253, %v5428
        %v7255 = vmax.f32 %v7254, %v5434
        %v7256 = vmax.f32 %v7255, %v5438
        %v7257 = vmax.f32 %v7256, %v5444
        %v7258 = vmax.f32 %v7257, %v5448
        %v7259 = vmax.f32 %v7258, %v5454
        %v7260 = vmax.f32 %v7259, %v5458
        %v7261 = vmax.f32 %v7260, %v5464
        %v7262 = vmax.f32 %v7261, %v5468
        %v7263 = vrot.slane %v7262, 4
        %v7264 = vmax.f32 %v7262, %v7263
        %v7265 = vrot.slane %v7264, 2
        %v7266 = vmax.f32 %v7264, %v7265
        %v7267 = vrot.slane %v7266, 1
        %v7268 = vmax.f32 %v7266, %v7267
        %v7269 = vmax.f32 %v6065, %v6069
        %v7270 = vmax.f32 %v7269, %v6075
        %v7271 = vmax.f32 %v7270, %v6079
        %v7272 = vmax.f32 %v7271, %v6085
        %v7273 = vmax.f32 %v7272, %v6089
        %v7274 = vmax.f32 %v7273, %v6095
        %v7275 = vmax.f32 %v7274, %v6099
        %v7276 = vmax.f32 %v7275, %v6105
        %v7277 = vmax.f32 %v7276, %v6109
        %v7278 = vmax.f32 %v7277, %v6115
        %v7279 = vmax.f32 %v7278, %v6119
        %v7280 = vmax.f32 %v7279, %v6125
        %v7281 = vmax.f32 %v7280, %v6129
        %v7282 = vmax.f32 %v7281, %v6135
        %v7283 = vmax.f32 %v7282, %v6139
        %v7284 = vrot.slane %v7283, 4
        %v7285 = vmax.f32 %v7283, %v7284
        %v7286 = vrot.slane %v7285, 2
        %v7287 = vmax.f32 %v7285, %v7286
        %v7288 = vrot.slane %v7287, 1
        %v7289 = vmax.f32 %v7287, %v7288
        %v7290 = vmax.f32 %v6067, %v6071
        %v7291 = vmax.f32 %v7290, %v6077
        %v7292 = vmax.f32 %v7291, %v6081
        %v7293 = vmax.f32 %v7292, %v6087
        %v7294 = vmax.f32 %v7293, %v6091
        %v7295 = vmax.f32 %v7294, %v6097
        %v7296 = vmax.f32 %v7295, %v6101
        %v7297 = vmax.f32 %v7296, %v6107
        %v7298 = vmax.f32 %v7297, %v6111
        %v7299 = vmax.f32 %v7298, %v6117
        %v7300 = vmax.f32 %v7299, %v6121
        %v7301 = vmax.f32 %v7300, %v6127
        %v7302 = vmax.f32 %v7301, %v6131
        %v7303 = vmax.f32 %v7302, %v6137
        %v7304 = vmax.f32 %v7303, %v6141
        %v7305 = vrot.slane %v7304, 4
        %v7306 = vmax.f32 %v7304, %v7305
        %v7307 = vrot.slane %v7306, 2
        %v7308 = vmax.f32 %v7306, %v7307
        %v7309 = vrot.slane %v7308, 1
        %v7310 = vmax.f32 %v7308, %v7309
        %v7311 = vmax.f32 %v4126, %v4130
        %v7312 = vmax.f32 %v7311, %v4136
        %v7313 = vmax.f32 %v7312, %v4140
        %v7314 = vmax.f32 %v7313, %v4146
        %v7315 = vmax.f32 %v7314, %v4150
        %v7316 = vmax.f32 %v7315, %v4156
        %v7317 = vmax.f32 %v7316, %v4160
        %v7318 = vmax.f32 %v7317, %v4166
        %v7319 = vmax.f32 %v7318, %v4170
        %v7320 = vmax.f32 %v7319, %v4176
        %v7321 = vmax.f32 %v7320, %v4180
        %v7322 = vmax.f32 %v7321, %v4186
        %v7323 = vmax.f32 %v7322, %v4190
        %v7324 = vmax.f32 %v7323, %v4196
        %v7325 = vmax.f32 %v7324, %v4200
        %v7326 = vrot.slane %v7325, 4
        %v7327 = vmax.f32 %v7325, %v7326
        %v7328 = vrot.slane %v7327, 2
        %v7329 = vmax.f32 %v7327, %v7328
        %v7330 = vrot.slane %v7329, 1
        %v7331 = vmax.f32 %v7329, %v7330
        %v7332 = vmax.f32 %v4128, %v4132
        %v7333 = vmax.f32 %v7332, %v4138
        %v7334 = vmax.f32 %v7333, %v4142
        %v7335 = vmax.f32 %v7334, %v4148
        %v7336 = vmax.f32 %v7335, %v4152
        %v7337 = vmax.f32 %v7336, %v4158
        %v7338 = vmax.f32 %v7337, %v4162
        %v7339 = vmax.f32 %v7338, %v4168
        %v7340 = vmax.f32 %v7339, %v4172
        %v7341 = vmax.f32 %v7340, %v4178
        %v7342 = vmax.f32 %v7341, %v4182
        %v7343 = vmax.f32 %v7342, %v4188
        %v7344 = vmax.f32 %v7343, %v4192
        %v7345 = vmax.f32 %v7344, %v4198
        %v7346 = vmax.f32 %v7345, %v4202
        %v7347 = vrot.slane %v7346, 4
        %v7348 = vmax.f32 %v7346, %v7347
        %v7349 = vrot.slane %v7348, 2
        %v7350 = vmax.f32 %v7348, %v7349
        %v7351 = vrot.slane %v7350, 1
        %v7352 = vmax.f32 %v7350, %v7351
        %v7353 = vmax.f32 %v4799, %v4803
        %v7354 = vmax.f32 %v7353, %v4809
        %v7355 = vmax.f32 %v7354, %v4813
        %v7356 = vmax.f32 %v7355, %v4819
        %v7357 = vmax.f32 %v7356, %v4823
        %v7358 = vmax.f32 %v7357, %v4829
        %v7359 = vmax.f32 %v7358, %v4833
        %v7360 = vmax.f32 %v7359, %v4839
        %v7361 = vmax.f32 %v7360, %v4843
        %v7362 = vmax.f32 %v7361, %v4849
        %v7363 = vmax.f32 %v7362, %v4853
        %v7364 = vmax.f32 %v7363, %v4859
        %v7365 = vmax.f32 %v7364, %v4863
        %v7366 = vmax.f32 %v7365, %v4869
        %v7367 = vmax.f32 %v7366, %v4873
        %v7368 = vrot.slane %v7367, 4
        %v7369 = vmax.f32 %v7367, %v7368
        %v7370 = vrot.slane %v7369, 2
        %v7371 = vmax.f32 %v7369, %v7370
        %v7372 = vrot.slane %v7371, 1
        %v7373 = vmax.f32 %v7371, %v7372
        %v7374 = vmax.f32 %v4801, %v4805
        %v7375 = vmax.f32 %v7374, %v4811
        %v7376 = vmax.f32 %v7375, %v4815
        %v7377 = vmax.f32 %v7376, %v4821
        %v7378 = vmax.f32 %v7377, %v4825
        %v7379 = vmax.f32 %v7378, %v4831
        %v7380 = vmax.f32 %v7379, %v4835
        %v7381 = vmax.f32 %v7380, %v4841
        %v7382 = vmax.f32 %v7381, %v4845
        %v7383 = vmax.f32 %v7382, %v4851
        %v7384 = vmax.f32 %v7383, %v4855
        %v7385 = vmax.f32 %v7384, %v4861
        %v7386 = vmax.f32 %v7385, %v4865
        %v7387 = vmax.f32 %v7386, %v4871
        %v7388 = vmax.f32 %v7387, %v4875
        %v7389 = vrot.slane %v7388, 4
        %v7390 = vmax.f32 %v7388, %v7389
        %v7391 = vrot.slane %v7390, 2
        %v7392 = vmax.f32 %v7390, %v7391
        %v7393 = vrot.slane %v7392, 1
        %v7394 = vmax.f32 %v7392, %v7393
        %v7395 = vmax.f32 %v5472, %v5476
        %v7396 = vmax.f32 %v7395, %v5482
        %v7397 = vmax.f32 %v7396, %v5486
        %v7398 = vmax.f32 %v7397, %v5492
        %v7399 = vmax.f32 %v7398, %v5496
        %v7400 = vmax.f32 %v7399, %v5502
        %v7401 = vmax.f32 %v7400, %v5506
        %v7402 = vmax.f32 %v7401, %v5512
        %v7403 = vmax.f32 %v7402, %v5516
        %v7404 = vmax.f32 %v7403, %v5522
        %v7405 = vmax.f32 %v7404, %v5526
        %v7406 = vmax.f32 %v7405, %v5532
        %v7407 = vmax.f32 %v7406, %v5536
        %v7408 = vmax.f32 %v7407, %v5542
        %v7409 = vmax.f32 %v7408, %v5546
        %v7410 = vrot.slane %v7409, 4
        %v7411 = vmax.f32 %v7409, %v7410
        %v7412 = vrot.slane %v7411, 2
        %v7413 = vmax.f32 %v7411, %v7412
        %v7414 = vrot.slane %v7413, 1
        %v7415 = vmax.f32 %v7413, %v7414
        %v7416 = vmax.f32 %v5474, %v5478
        %v7417 = vmax.f32 %v7416, %v5484
        %v7418 = vmax.f32 %v7417, %v5488
        %v7419 = vmax.f32 %v7418, %v5494
        %v7420 = vmax.f32 %v7419, %v5498
        %v7421 = vmax.f32 %v7420, %v5504
        %v7422 = vmax.f32 %v7421, %v5508
        %v7423 = vmax.f32 %v7422, %v5514
        %v7424 = vmax.f32 %v7423, %v5518
        %v7425 = vmax.f32 %v7424, %v5524
        %v7426 = vmax.f32 %v7425, %v5528
        %v7427 = vmax.f32 %v7426, %v5534
        %v7428 = vmax.f32 %v7427, %v5538
        %v7429 = vmax.f32 %v7428, %v5544
        %v7430 = vmax.f32 %v7429, %v5548
        %v7431 = vrot.slane %v7430, 4
        %v7432 = vmax.f32 %v7430, %v7431
        %v7433 = vrot.slane %v7432, 2
        %v7434 = vmax.f32 %v7432, %v7433
        %v7435 = vrot.slane %v7434, 1
        %v7436 = vmax.f32 %v7434, %v7435
        %v7437 = vmax.f32 %v6145, %v6149
        %v7438 = vmax.f32 %v7437, %v6155
        %v7439 = vmax.f32 %v7438, %v6159
        %v7440 = vmax.f32 %v7439, %v6165
        %v7441 = vmax.f32 %v7440, %v6169
        %v7442 = vmax.f32 %v7441, %v6175
        %v7443 = vmax.f32 %v7442, %v6179
        %v7444 = vmax.f32 %v7443, %v6185
        %v7445 = vmax.f32 %v7444, %v6189
        %v7446 = vmax.f32 %v7445, %v6195
        %v7447 = vmax.f32 %v7446, %v6199
        %v7448 = vmax.f32 %v7447, %v6205
        %v7449 = vmax.f32 %v7448, %v6209
        %v7450 = vmax.f32 %v7449, %v6215
        %v7451 = vmax.f32 %v7450, %v6219
        %v7452 = vrot.slane %v7451, 4
        %v7453 = vmax.f32 %v7451, %v7452
        %v7454 = vrot.slane %v7453, 2
        %v7455 = vmax.f32 %v7453, %v7454
        %v7456 = vrot.slane %v7455, 1
        %v7457 = vmax.f32 %v7455, %v7456
        %v7458 = vmax.f32 %v6147, %v6151
        %v7459 = vmax.f32 %v7458, %v6157
        %v7460 = vmax.f32 %v7459, %v6161
        %v7461 = vmax.f32 %v7460, %v6167
        %v7462 = vmax.f32 %v7461, %v6171
        %v7463 = vmax.f32 %v7462, %v6177
        %v7464 = vmax.f32 %v7463, %v6181
        %v7465 = vmax.f32 %v7464, %v6187
        %v7466 = vmax.f32 %v7465, %v6191
        %v7467 = vmax.f32 %v7466, %v6197
        %v7468 = vmax.f32 %v7467, %v6201
        %v7469 = vmax.f32 %v7468, %v6207
        %v7470 = vmax.f32 %v7469, %v6211
        %v7471 = vmax.f32 %v7470, %v6217
        %v7472 = vmax.f32 %v7471, %v6221
        %v7473 = vrot.slane %v7472, 4
        %v7474 = vmax.f32 %v7472, %v7473
        %v7475 = vrot.slane %v7474, 2
        %v7476 = vmax.f32 %v7474, %v7475
        %v7477 = vrot.slane %v7476, 1
        %v7478 = vmax.f32 %v7476, %v7477
        %v7479 = vmax.f32 %v4206, %v4210
        %v7480 = vmax.f32 %v7479, %v4216
        %v7481 = vmax.f32 %v7480, %v4220
        %v7482 = vmax.f32 %v7481, %v4226
        %v7483 = vmax.f32 %v7482, %v4230
        %v7484 = vmax.f32 %v7483, %v4236
        %v7485 = vmax.f32 %v7484, %v4240
        %v7486 = vmax.f32 %v7485, %v4246
        %v7487 = vmax.f32 %v7486, %v4250
        %v7488 = vmax.f32 %v7487, %v4256
        %v7489 = vmax.f32 %v7488, %v4260
        %v7490 = vmax.f32 %v7489, %v4266
        %v7491 = vmax.f32 %v7490, %v4270
        %v7492 = vmax.f32 %v7491, %v4276
        %v7493 = vmax.f32 %v7492, %v4280
        %v7494 = vrot.slane %v7493, 4
        %v7495 = vmax.f32 %v7493, %v7494
        %v7496 = vrot.slane %v7495, 2
        %v7497 = vmax.f32 %v7495, %v7496
        %v7498 = vrot.slane %v7497, 1
        %v7499 = vmax.f32 %v7497, %v7498
        %v7500 = vmax.f32 %v4208, %v4212
        %v7501 = vmax.f32 %v7500, %v4218
        %v7502 = vmax.f32 %v7501, %v4222
        %v7503 = vmax.f32 %v7502, %v4228
        %v7504 = vmax.f32 %v7503, %v4232
        %v7505 = vmax.f32 %v7504, %v4238
        %v7506 = vmax.f32 %v7505, %v4242
        %v7507 = vmax.f32 %v7506, %v4248
        %v7508 = vmax.f32 %v7507, %v4252
        %v7509 = vmax.f32 %v7508, %v4258
        %v7510 = vmax.f32 %v7509, %v4262
        %v7511 = vmax.f32 %v7510, %v4268
        %v7512 = vmax.f32 %v7511, %v4272
        %v7513 = vmax.f32 %v7512, %v4278
        %v7514 = vmax.f32 %v7513, %v4282
        %v7515 = vrot.slane %v7514, 4
        %v7516 = vmax.f32 %v7514, %v7515
        %v7517 = vrot.slane %v7516, 2
        %v7518 = vmax.f32 %v7516, %v7517
        %v7519 = vrot.slane %v7518, 1
        %v7520 = vmax.f32 %v7518, %v7519
        %v7521 = vmax.f32 %v4879, %v4883
        %v7522 = vmax.f32 %v7521, %v4889
        %v7523 = vmax.f32 %v7522, %v4893
        %v7524 = vmax.f32 %v7523, %v4899
        %v7525 = vmax.f32 %v7524, %v4903
        %v7526 = vmax.f32 %v7525, %v4909
        %v7527 = vmax.f32 %v7526, %v4913
        %v7528 = vmax.f32 %v7527, %v4919
        %v7529 = vmax.f32 %v7528, %v4923
        %v7530 = vmax.f32 %v7529, %v4929
        %v7531 = vmax.f32 %v7530, %v4933
        %v7532 = vmax.f32 %v7531, %v4939
        %v7533 = vmax.f32 %v7532, %v4943
        %v7534 = vmax.f32 %v7533, %v4949
        %v7535 = vmax.f32 %v7534, %v4953
        %v7536 = vrot.slane %v7535, 4
        %v7537 = vmax.f32 %v7535, %v7536
        %v7538 = vrot.slane %v7537, 2
        %v7539 = vmax.f32 %v7537, %v7538
        %v7540 = vrot.slane %v7539, 1
        %v7541 = vmax.f32 %v7539, %v7540
        %v7542 = vmax.f32 %v4881, %v4885
        %v7543 = vmax.f32 %v7542, %v4891
        %v7544 = vmax.f32 %v7543, %v4895
        %v7545 = vmax.f32 %v7544, %v4901
        %v7546 = vmax.f32 %v7545, %v4905
        %v7547 = vmax.f32 %v7546, %v4911
        %v7548 = vmax.f32 %v7547, %v4915
        %v7549 = vmax.f32 %v7548, %v4921
        %v7550 = vmax.f32 %v7549, %v4925
        %v7551 = vmax.f32 %v7550, %v4931
        %v7552 = vmax.f32 %v7551, %v4935
        %v7553 = vmax.f32 %v7552, %v4941
        %v7554 = vmax.f32 %v7553, %v4945
        %v7555 = vmax.f32 %v7554, %v4951
        %v7556 = vmax.f32 %v7555, %v4955
        %v7557 = vrot.slane %v7556, 4
        %v7558 = vmax.f32 %v7556, %v7557
        %v7559 = vrot.slane %v7558, 2
        %v7560 = vmax.f32 %v7558, %v7559
        %v7561 = vrot.slane %v7560, 1
        %v7562 = vmax.f32 %v7560, %v7561
        %v7563 = vmax.f32 %v5552, %v5556
        %v7564 = vmax.f32 %v7563, %v5562
        %v7565 = vmax.f32 %v7564, %v5566
        %v7566 = vmax.f32 %v7565, %v5572
        %v7567 = vmax.f32 %v7566, %v5576
        %v7568 = vmax.f32 %v7567, %v5582
        %v7569 = vmax.f32 %v7568, %v5586
        %v7570 = vmax.f32 %v7569, %v5592
        %v7571 = vmax.f32 %v7570, %v5596
        %v7572 = vmax.f32 %v7571, %v5602
        %v7573 = vmax.f32 %v7572, %v5606
        %v7574 = vmax.f32 %v7573, %v5612
        %v7575 = vmax.f32 %v7574, %v5616
        %v7576 = vmax.f32 %v7575, %v5622
        %v7577 = vmax.f32 %v7576, %v5626
        %v7578 = vrot.slane %v7577, 4
        %v7579 = vmax.f32 %v7577, %v7578
        %v7580 = vrot.slane %v7579, 2
        %v7581 = vmax.f32 %v7579, %v7580
        %v7582 = vrot.slane %v7581, 1
        %v7583 = vmax.f32 %v7581, %v7582
        %v7584 = vmax.f32 %v5554, %v5558
        %v7585 = vmax.f32 %v7584, %v5564
        %v7586 = vmax.f32 %v7585, %v5568
        %v7587 = vmax.f32 %v7586, %v5574
        %v7588 = vmax.f32 %v7587, %v5578
        %v7589 = vmax.f32 %v7588, %v5584
        %v7590 = vmax.f32 %v7589, %v5588
        %v7591 = vmax.f32 %v7590, %v5594
        %v7592 = vmax.f32 %v7591, %v5598
        %v7593 = vmax.f32 %v7592, %v5604
        %v7594 = vmax.f32 %v7593, %v5608
        %v7595 = vmax.f32 %v7594, %v5614
        %v7596 = vmax.f32 %v7595, %v5618
        %v7597 = vmax.f32 %v7596, %v5624
        %v7598 = vmax.f32 %v7597, %v5628
        %v7599 = vrot.slane %v7598, 4
        %v7600 = vmax.f32 %v7598, %v7599
        %v7601 = vrot.slane %v7600, 2
        %v7602 = vmax.f32 %v7600, %v7601
        %v7603 = vrot.slane %v7602, 1
        %v7604 = vmax.f32 %v7602, %v7603
        %v7605 = vmax.f32 %v6225, %v6229
        %v7606 = vmax.f32 %v7605, %v6235
        %v7607 = vmax.f32 %v7606, %v6239
        %v7608 = vmax.f32 %v7607, %v6245
        %v7609 = vmax.f32 %v7608, %v6249
        %v7610 = vmax.f32 %v7609, %v6255
        %v7611 = vmax.f32 %v7610, %v6259
        %v7612 = vmax.f32 %v7611, %v6265
        %v7613 = vmax.f32 %v7612, %v6269
        %v7614 = vmax.f32 %v7613, %v6275
        %v7615 = vmax.f32 %v7614, %v6279
        %v7616 = vmax.f32 %v7615, %v6285
        %v7617 = vmax.f32 %v7616, %v6289
        %v7618 = vmax.f32 %v7617, %v6295
        %v7619 = vmax.f32 %v7618, %v6299
        %v7620 = vrot.slane %v7619, 4
        %v7621 = vmax.f32 %v7619, %v7620
        %v7622 = vrot.slane %v7621, 2
        %v7623 = vmax.f32 %v7621, %v7622
        %v7624 = vrot.slane %v7623, 1
        %v7625 = vmax.f32 %v7623, %v7624
        %v7626 = vmax.f32 %v6227, %v6231
        %v7627 = vmax.f32 %v7626, %v6237
        %v7628 = vmax.f32 %v7627, %v6241
        %v7629 = vmax.f32 %v7628, %v6247
        %v7630 = vmax.f32 %v7629, %v6251
        %v7631 = vmax.f32 %v7630, %v6257
        %v7632 = vmax.f32 %v7631, %v6261
        %v7633 = vmax.f32 %v7632, %v6267
        %v7634 = vmax.f32 %v7633, %v6271
        %v7635 = vmax.f32 %v7634, %v6277
        %v7636 = vmax.f32 %v7635, %v6281
        %v7637 = vmax.f32 %v7636, %v6287
        %v7638 = vmax.f32 %v7637, %v6291
        %v7639 = vmax.f32 %v7638, %v6297
        %v7640 = vmax.f32 %v7639, %v6301
        %v7641 = vrot.slane %v7640, 4
        %v7642 = vmax.f32 %v7640, %v7641
        %v7643 = vrot.slane %v7642, 2
        %v7644 = vmax.f32 %v7642, %v7643
        %v7645 = vrot.slane %v7644, 1
        %v7646 = vmax.f32 %v7644, %v7645
        %p7647 = scmp.eq.s32.totalorder %s26, 0
        // Predicated region
        $region87: #{tpu_custom_call.1} parent=81 // pred_check
          %p7648 = pneg %p7647
        $region88: #{tpu_custom_call.1} parent=81 // pred_check_branch
          %7650 = sbr.rel (%p7648) target = $region90
        $region89: #{tpu_custom_call.1} parent=81 // pred_region
          %vm7715 = vcmask 1041409
          %v7716 = vsel %vm7715, %v6491, %v6323
          %vm7717 = vcmask 1042434
          %v7718 = vsel %vm7717, %v6659, %v7716
          %vm7719 = vcmask 1043459
          %v7720 = vsel %vm7719, %v6827, %v7718
          %vm7721 = vcmask 1044484
          %v7722 = vsel %vm7721, %v6995, %v7720
          %vm7723 = vcmask 1045509
          %v7724 = vsel %vm7723, %v7163, %v7722
          %vm7725 = vcmask 1046534
          %v7726 = vsel %vm7725, %v7331, %v7724
          %vm7727 = vcmask 1047559
          %v7728 = vsel %vm7727, %v7499, %v7726
          %v7729 = vsel %vm7715, %v6512, %v6344
          %v7730 = vsel %vm7717, %v6680, %v7729
          %v7731 = vsel %vm7719, %v6848, %v7730
          %v7732 = vsel %vm7721, %v7016, %v7731
          %v7733 = vsel %vm7723, %v7184, %v7732
          %v7734 = vsel %vm7725, %v7352, %v7733
          %v7735 = vsel %vm7727, %v7520, %v7734
          %v7736 = vsel %vm7715, %v6533, %v6365
          %v7737 = vsel %vm7717, %v6701, %v7736
          %v7738 = vsel %vm7719, %v6869, %v7737
          %v7739 = vsel %vm7721, %v7037, %v7738
          %v7740 = vsel %vm7723, %v7205, %v7739
          %v7741 = vsel %vm7725, %v7373, %v7740
          %v7742 = vsel %vm7727, %v7541, %v7741
          %v7743 = vsel %vm7715, %v6554, %v6386
          %v7744 = vsel %vm7717, %v6722, %v7743
          %v7745 = vsel %vm7719, %v6890, %v7744
          %v7746 = vsel %vm7721, %v7058, %v7745
          %v7747 = vsel %vm7723, %v7226, %v7746
          %v7748 = vsel %vm7725, %v7394, %v7747
          %v7749 = vsel %vm7727, %v7562, %v7748
          %v7750 = vsel %vm7715, %v6575, %v6407
          %v7751 = vsel %vm7717, %v6743, %v7750
          %v7752 = vsel %vm7719, %v6911, %v7751
          %v7753 = vsel %vm7721, %v7079, %v7752
          %v7754 = vsel %vm7723, %v7247, %v7753
          %v7755 = vsel %vm7725, %v7415, %v7754
          %v7756 = vsel %vm7727, %v7583, %v7755
          %v7757 = vsel %vm7715, %v6596, %v6428
          %v7758 = vsel %vm7717, %v6764, %v7757
          %v7759 = vsel %vm7719, %v6932, %v7758
          %v7760 = vsel %vm7721, %v7100, %v7759
          %v7761 = vsel %vm7723, %v7268, %v7760
          %v7762 = vsel %vm7725, %v7436, %v7761
          %v7763 = vsel %vm7727, %v7604, %v7762
          %v7764 = vsel %vm7715, %v6617, %v6449
          %v7765 = vsel %vm7717, %v6785, %v7764
          %v7766 = vsel %vm7719, %v6953, %v7765
          %v7767 = vsel %vm7721, %v7121, %v7766
          %v7768 = vsel %vm7723, %v7289, %v7767
          %v7769 = vsel %vm7725, %v7457, %v7768
          %v7770 = vsel %vm7727, %v7625, %v7769
          %v7771 = vsel %vm7715, %v6638, %v6470
          %v7772 = vsel %vm7717, %v6806, %v7771
          %v7773 = vsel %vm7719, %v6974, %v7772
          %v7774 = vsel %vm7721, %v7142, %v7773
          %v7775 = vsel %vm7723, %v7310, %v7774
          %v7776 = vsel %vm7725, %v7478, %v7775
          %v7777 = vsel %vm7727, %v7646, %v7776
          %7786 = vst [vmem:[%s836] sm:$0xff] %v7728
          %7787 = vst [vmem:[%s836 + $0x8] sm:$0xff] %v7735
          %7788 = vst [vmem:[%s836 + $0x10] sm:$0xff] %v7742
          %7789 = vst [vmem:[%s836 + $0x18] sm:$0xff] %v7749
          %7790 = vst [vmem:[%s836 + $0x20] sm:$0xff] %v7756
          %7791 = vst [vmem:[%s836 + $0x28] sm:$0xff] %v7763
          %7792 = vst [vmem:[%s836 + $0x30] sm:$0xff] %v7770
          %7793 = vst [vmem:[%s836 + $0x38] sm:$0xff] %v7777
        $region90: #{tpu_custom_call.1} parent=81 // pred_fallthru
          _
        %p7794 = scmp.gt.s32.totalorder %s26, 0
        // Predicated region
        $region91: #{tpu_custom_call.1} parent=81 // pred_check
          %p7795 = pneg %p7794
        $region92: #{tpu_custom_call.1} parent=81 // pred_check_branch
          %7797 = sbr.rel (%p7795) target = $region94
        $region93: #{tpu_custom_call.1} parent=81 // pred_region
          %v7798 = vld [vmem:[%s836] sm:$0xff]
          %v7799 = vld [vmem:[%s836 + $0x8] sm:$0xff]
          %v7800 = vld [vmem:[%s836 + $0x10] sm:$0xff]
          %v7801 = vld [vmem:[%s836 + $0x18] sm:$0xff]
          %v7802 = vld [vmem:[%s836 + $0x20] sm:$0xff]
          %v7803 = vld [vmem:[%s836 + $0x28] sm:$0xff]
          %v7804 = vld [vmem:[%s836 + $0x30] sm:$0xff]
          %v7805 = vld [vmem:[%s836 + $0x38] sm:$0xff]
          %vm7870 = vcmask 1041409
          %v7871 = vsel %vm7870, %v6491, %v6323
          %vm7872 = vcmask 1042434
          %v7873 = vsel %vm7872, %v6659, %v7871
          %vm7874 = vcmask 1043459
          %v7875 = vsel %vm7874, %v6827, %v7873
          %vm7876 = vcmask 1044484
          %v7877 = vsel %vm7876, %v6995, %v7875
          %vm7878 = vcmask 1045509
          %v7879 = vsel %vm7878, %v7163, %v7877
          %vm7880 = vcmask 1046534
          %v7881 = vsel %vm7880, %v7331, %v7879
          %vm7882 = vcmask 1047559
          %v7883 = vsel %vm7882, %v7499, %v7881
          %v7884 = vsel %vm7870, %v6512, %v6344
          %v7885 = vsel %vm7872, %v6680, %v7884
          %v7886 = vsel %vm7874, %v6848, %v7885
          %v7887 = vsel %vm7876, %v7016, %v7886
          %v7888 = vsel %vm7878, %v7184, %v7887
          %v7889 = vsel %vm7880, %v7352, %v7888
          %v7890 = vsel %vm7882, %v7520, %v7889
          %v7891 = vsel %vm7870, %v6533, %v6365
          %v7892 = vsel %vm7872, %v6701, %v7891
          %v7893 = vsel %vm7874, %v6869, %v7892
          %v7894 = vsel %vm7876, %v7037, %v7893
          %v7895 = vsel %vm7878, %v7205, %v7894
          %v7896 = vsel %vm7880, %v7373, %v7895
          %v7897 = vsel %vm7882, %v7541, %v7896
          %v7898 = vsel %vm7870, %v6554, %v6386
          %v7899 = vsel %vm7872, %v6722, %v7898
          %v7900 = vsel %vm7874, %v6890, %v7899
          %v7901 = vsel %vm7876, %v7058, %v7900
          %v7902 = vsel %vm7878, %v7226, %v7901
          %v7903 = vsel %vm7880, %v7394, %v7902
          %v7904 = vsel %vm7882, %v7562, %v7903
          %v7905 = vsel %vm7870, %v6575, %v6407
          %v7906 = vsel %vm7872, %v6743, %v7905
          %v7907 = vsel %vm7874, %v6911, %v7906
          %v7908 = vsel %vm7876, %v7079, %v7907
          %v7909 = vsel %vm7878, %v7247, %v7908
          %v7910 = vsel %vm7880, %v7415, %v7909
          %v7911 = vsel %vm7882, %v7583, %v7910
          %v7912 = vsel %vm7870, %v6596, %v6428
          %v7913 = vsel %vm7872, %v6764, %v7912
          %v7914 = vsel %vm7874, %v6932, %v7913
          %v7915 = vsel %vm7876, %v7100, %v7914
          %v7916 = vsel %vm7878, %v7268, %v7915
          %v7917 = vsel %vm7880, %v7436, %v7916
          %v7918 = vsel %vm7882, %v7604, %v7917
          %v7919 = vsel %vm7870, %v6617, %v6449
          %v7920 = vsel %vm7872, %v6785, %v7919
          %v7921 = vsel %vm7874, %v6953, %v7920
          %v7922 = vsel %vm7876, %v7121, %v7921
          %v7923 = vsel %vm7878, %v7289, %v7922
          %v7924 = vsel %vm7880, %v7457, %v7923
          %v7925 = vsel %vm7882, %v7625, %v7924
          %v7926 = vsel %vm7870, %v6638, %v6470
          %v7927 = vsel %vm7872, %v6806, %v7926
          %v7928 = vsel %vm7874, %v6974, %v7927
          %v7929 = vsel %vm7876, %v7142, %v7928
          %v7930 = vsel %vm7878, %v7310, %v7929
          %v7931 = vsel %vm7880, %v7478, %v7930
          %v7932 = vsel %vm7882, %v7646, %v7931
          %v7941 = vmax.f32 %v7798, %v7883
          %v7942 = vmax.f32 %v7799, %v7890
          %v7943 = vmax.f32 %v7800, %v7897
          %v7944 = vmax.f32 %v7801, %v7904
          %v7945 = vmax.f32 %v7802, %v7911
          %v7946 = vmax.f32 %v7803, %v7918
          %v7947 = vmax.f32 %v7804, %v7925
          %v7948 = vmax.f32 %v7805, %v7932
          %7949 = vst [vmem:[%s836] sm:$0xff] %v7941
          %7950 = vst [vmem:[%s836 + $0x8] sm:$0xff] %v7942
          %7951 = vst [vmem:[%s836 + $0x10] sm:$0xff] %v7943
          %7952 = vst [vmem:[%s836 + $0x18] sm:$0xff] %v7944
          %7953 = vst [vmem:[%s836 + $0x20] sm:$0xff] %v7945
          %7954 = vst [vmem:[%s836 + $0x28] sm:$0xff] %v7946
          %7955 = vst [vmem:[%s836 + $0x30] sm:$0xff] %v7947
          %7956 = vst [vmem:[%s836 + $0x38] sm:$0xff] %v7948
        $region94: #{tpu_custom_call.1} parent=81 // pred_fallthru
          _
        %p7957 = scmp.eq.s32.totalorder %s26, 1
        // Predicated region
        $region95: #{tpu_custom_call.1} parent=81 // pred_check
          %p7958 = pneg %p7957
        $region96: #{tpu_custom_call.1} parent=81 // pred_check_branch
          %7960 = sbr.rel (%p7958) target = $region98
        $region97: #{tpu_custom_call.1} parent=81 // pred_region
          %v7961 = vld [vmem:[%s836] sm:$0xff]
          %v7962 = vld [vmem:[%s836 + $0x8] sm:$0xff]
          %v7963 = vld [vmem:[%s836 + $0x10] sm:$0xff]
          %v7964 = vld [vmem:[%s836 + $0x18] sm:$0xff]
          %v7965 = vld [vmem:[%s836 + $0x20] sm:$0xff]
          %v7966 = vld [vmem:[%s836 + $0x28] sm:$0xff]
          %v7967 = vld [vmem:[%s836 + $0x30] sm:$0xff]
          %v7968 = vld [vmem:[%s836 + $0x38] sm:$0xff]
          %v7969 = vld [vmem:[%s6] sm:$0xff]
          %v7971 = vlaneseq
          %v7972 = vshrl.u32 %v7971, 7
          %v7973 = vsub.s32 0, %v7972
          %v7974 = vrot.slane %v7969, %v7973
          %v7975 = vlaneseq
          %v7976 = vshrl.u32 %v7975, 7
          %v7977 = vsub.s32 1, %v7976
          %v7978 = vrot.slane %v7969, %v7977
          %v7979 = vlaneseq
          %v7980 = vshrl.u32 %v7979, 7
          %v7981 = vsub.s32 2, %v7980
          %v7982 = vrot.slane %v7969, %v7981
          %v7983 = vlaneseq
          %v7984 = vshrl.u32 %v7983, 7
          %v7985 = vsub.s32 3, %v7984
          %v7986 = vrot.slane %v7969, %v7985
          %v7987 = vlaneseq
          %v7988 = vshrl.u32 %v7987, 7
          %v7989 = vsub.s32 4, %v7988
          %v7990 = vrot.slane %v7969, %v7989
          %v7991 = vlaneseq
          %v7992 = vshrl.u32 %v7991, 7
          %v7993 = vsub.s32 5, %v7992
          %v7994 = vrot.slane %v7969, %v7993
          %v7995 = vlaneseq
          %v7996 = vshrl.u32 %v7995, 7
          %v7997 = vsub.s32 6, %v7996
          %v7998 = vrot.slane %v7969, %v7997
          %v7999 = vlaneseq
          %v8000 = vshrl.u32 %v7999, 7
          %v8001 = vsub.s32 7, %v8000
          %v8002 = vrot.slane %v7969, %v8001
          %v8011 = vadd.f32 %v7961, %v7974
          %v8012 = vadd.f32 %v7962, %v7978
          %v8013 = vadd.f32 %v7963, %v7982
          %v8014 = vadd.f32 %v7964, %v7986
          %v8015 = vadd.f32 %v7965, %v7990
          %v8016 = vadd.f32 %v7966, %v7994
          %v8017 = vadd.f32 %v7967, %v7998
          %v8018 = vadd.f32 %v7968, %v8002
          %8019 = vst [vmem:[%s836] sm:$0xff] %v8011
          %8020 = vst [vmem:[%s836 + $0x8] sm:$0xff] %v8012
          %8021 = vst [vmem:[%s836 + $0x10] sm:$0xff] %v8013
          %8022 = vst [vmem:[%s836 + $0x18] sm:$0xff] %v8014
          %8023 = vst [vmem:[%s836 + $0x20] sm:$0xff] %v8015
          %8024 = vst [vmem:[%s836 + $0x28] sm:$0xff] %v8016
          %8025 = vst [vmem:[%s836 + $0x30] sm:$0xff] %v8017
          %8026 = vst [vmem:[%s836 + $0x38] sm:$0xff] %v8018
        $region98: #{tpu_custom_call.1} parent=81 // pred_fallthru
          _
        %s8027 = sand.u32 %s195, 1
        %s8028 = scalar_lea.sflag [#allocation4], %s8027
        %s8029 = sand.u32 %s195, 1
        %s8030 = smul.addr %s8029, 64
        %s8031 = scalar_lea.vmem [#allocation3], %s8030
        // Predicated region
        $region99: #{tpu_custom_call.1} parent=81 // pred_check
          %p8032 = pneg %p205
        $region100: #{tpu_custom_call.1} parent=81 // pred_check_branch
          %8034 = sbr.rel (%p8032) target = $region102
        $region101: #{tpu_custom_call.1} parent=81 // pred_region
          %s8036 = ssub.s32 1024, 1024
          %8037 = vsyncadd %s8028, %s8036
          %s8038 = smul.addr %s25, 8
          %s8039 = smul.addr %s8038, 128
          %s8040 = scalar_lea.hbm %s7, %s8039
          %s8042 = sshll.u32 %s8031, 4
          %s8043 = int_to_ptr.vmem [resolvable:$true] %s8042
          %8045 = dma.vmem_to_hbm [thread:$0]  %s8043, 1024, %s8040, %s8028
        $region102: #{tpu_custom_call.1} parent=81 // pred_fallthru
          _
      $region82: #{tpu_custom_call.1} parent=5 // pred_fallthru
        _
      %p8046 = scmp.le.s32.totalorder 2, %s16
      // Predicated region
      $region103: #{tpu_custom_call.1} parent=5 // pred_check
        %p8047 = pneg %p8046
      $region104: #{tpu_custom_call.1} parent=5 // pred_check_branch
        %8049 = sbr.rel (%p8047) target = $region106
      $region105: #{tpu_custom_call.1} parent=5 // pred_region
        %s8050 = ssub.s32 %s16, 2
        // Predicated region
        $region107: #{tpu_custom_call.1} parent=105 // pred_check
          %p8051 = pneg %p211
        $region108: #{tpu_custom_call.1} parent=105 // pred_check_branch
          %8053 = sbr.rel (%p8051) target = $region110
        $region109: #{tpu_custom_call.1} parent=105 // pred_region
          %s8054 = sand.u32 %s196, 1
          %s8055 = scalar_lea.sflag [#allocation4], %s8054
          %s8056 = sand.u32 %s196, 1
          %s8057 = smul.addr %s8056, 64
          %s8058 = scalar_lea.vmem [#allocation3], %s8057
          %8059 = dma.done %s8055, 1024
        $region110: #{tpu_custom_call.1} parent=105 // pred_fallthru
          _
      $region106: #{tpu_custom_call.1} parent=5 // pred_fallthru
        _
    $region6: #{tpu_custom_call.1} parent=1 // loop_footer
      %s20 = sadd.s32 1, %s16
    $region7: #{tpu_custom_call.1} parent=1 // loop_footer_branch
      %15 = sbr.rel target = $region3
    $region8: #{tpu_custom_call.1} parent=1 // loop_exit
      _
    %8060 = vsyncpa [#allocation4], 1
    %s8061 = scalar_lea.sflag [#allocation4], 1
    %8062 = vsyncpa %s8061, 1

</llo_original>
